<compile_context>
chip_gen: v6e
topology: v6e:2x2x1
jax: 0.10.0
libtpu: 0.0.40
codegen_flags: <defaults>
</compile_context>

<pallas_src>
import jax
import jax.numpy as jnp
from jax.experimental import pallas as pl
from jax.experimental.pallas import tpu as pltpu


def msag_kernel(xp_ref, w_pw_ref, b_pw_ref, w_ord_ref, b_ord_ref,
                w_dil_ref, b_dil_ref, w_v_ref, b_v_ref, o_ref):
    # xp_ref : (1, H+4, W+4, C)  padded input for one image
    # w_pw   : (C, C)            biases b_* : (1, C)    (BN already folded in)
    # w_ord, w_dil : (3, 3, C, C)   (kh, kw, C_in, C_out)
    # w_v    : (3, C, C)            vote conv weight split per branch
    # o_ref  : (1, H*W, C)
    _, Hp, Wp, C = xp_ref.shape
    H, W = Hp - 4, Wp - 4

    def tap(dy, dx):
        # shifted (H, W, C) window of the padded input, flattened to (H*W, C)
        t = xp_ref[0, 2 + dy:2 + dy + H, 2 + dx:2 + dx + W, :]
        return t.reshape(H * W, C)

    xc = tap(0, 0)  # original (unpadded) input tile, (H*W, C); reused 3 times

    # --- pointwise 1x1 conv (+ folded BN) ------------------------------------
    x1 = jnp.dot(xc, w_pw_ref[...], preferred_element_type=jnp.float32)
    x1 = x1 + b_pw_ref[...]

    # --- 3x3 ordinary conv (pad=1) and 3x3 dilated conv (pad=2, dil=2) -------
    # Center tap (ky=kx=1) reuses xc for both branches; accumulators start there.
    x2 = jnp.dot(xc, w_ord_ref[1, 1], preferred_element_type=jnp.float32)
    x3 = jnp.dot(xc, w_dil_ref[1, 1], preferred_element_type=jnp.float32)
    for ky in range(3):
        for kx in range(3):
            if ky == 1 and kx == 1:
                continue
            dy, dx = ky - 1, kx - 1
            x2 = x2 + jnp.dot(tap(dy, dx), w_ord_ref[ky, kx],
                              preferred_element_type=jnp.float32)
            x3 = x3 + jnp.dot(tap(2 * dy, 2 * dx), w_dil_ref[ky, kx],
                              preferred_element_type=jnp.float32)
    x2 = x2 + b_ord_ref[...]
    x3 = x3 + b_dil_ref[...]

    # --- ReLU + 1x1 vote conv over the virtual concat + sigmoid --------------
    a1 = jnp.maximum(x1, 0.0)
    a2 = jnp.maximum(x2, 0.0)
    a3 = jnp.maximum(x3, 0.0)
    v = (jnp.dot(a1, w_v_ref[0], preferred_element_type=jnp.float32)
         + jnp.dot(a2, w_v_ref[1], preferred_element_type=jnp.float32)
         + jnp.dot(a3, w_v_ref[2], preferred_element_type=jnp.float32)
         + b_v_ref[...])
    # sigmoid: exp on EUP, approx reciprocal on EUP (keeps the VALU slot free)
    gate = pl.reciprocal(1.0 + jnp.exp(-v), approx=True)

    # --- residual gating: x + x * gate ---------------------------------------
    out = xc.astype(jnp.float32) * (1.0 + gate)
    o_ref[0] = out.astype(o_ref.dtype)


def _fold_bn(w_oihw, b, bn, eps=1e-5):
    """Fold inference-mode BatchNorm into conv weight/bias; return (kh,kw,Cin,Cout) weight."""
    gamma, beta, mean, var = bn
    scale = gamma / jnp.sqrt(var + eps)                      # per output channel
    w = jnp.transpose(w_oihw, (2, 3, 1, 0)) * scale          # (kh, kw, C_in, C_out)
    bf = (b - mean) * scale + beta
    return w.astype(jnp.float32), bf.reshape(1, -1).astype(jnp.float32)


@jax.jit
def msag_forward(x, params):
    """x: (N, C, H, W) NCHW.  Returns MSAG(x) with the same shape."""
    N, C, H, W = x.shape

    w_pw4, b_pw = _fold_bn(params["pw_w"], params["pw_b"], params["pw_bn"])
    w_pw = w_pw4[0, 0]                                       # (C, C) in->out
    w_ord, b_ord = _fold_bn(params["ord_w"], params["ord_b"], params["ord_bn"])
    w_dil, b_dil = _fold_bn(params["dil_w"], params["dil_b"], params["dil_bn"])
    w_v4, b_v = _fold_bn(params["v_w"], params["v_b"], params["v_bn"])
    w_v = w_v4[0, 0].reshape(3, C, C)                        # per-branch (C_in, C_out)

    # NCHW -> NHWC (C on lanes), pad spatial by 2 (covers pad=1 and pad=2 convs).
    x_nhwc = jnp.transpose(x, (0, 2, 3, 1))
    x_pad = jnp.pad(x_nhwc, ((0, 0), (2, 2), (2, 2), (0, 0)))

    out_flat = pl.pallas_call(
        msag_kernel,
        out_shape=jax.ShapeDtypeStruct((N, H * W, C), x.dtype),
        grid=(N,),
        in_specs=[
            pl.BlockSpec((1, H + 4, W + 4, C), lambda n: (n, 0, 0, 0)),
            pl.BlockSpec((C, C), lambda n: (0, 0)),
            pl.BlockSpec((1, C), lambda n: (0, 0)),
            pl.BlockSpec((3, 3, C, C), lambda n: (0, 0, 0, 0)),
            pl.BlockSpec((1, C), lambda n: (0, 0)),
            pl.BlockSpec((3, 3, C, C), lambda n: (0, 0, 0, 0)),
            pl.BlockSpec((1, C), lambda n: (0, 0)),
            pl.BlockSpec((3, C, C), lambda n: (0, 0, 0)),
            pl.BlockSpec((1, C), lambda n: (0, 0)),
        ],
        out_specs=pl.BlockSpec((1, H * W, C), lambda n: (n, 0, 0)),
        compiler_params=pltpu.CompilerParams(
            dimension_semantics=("parallel",)),
    )(x_pad, w_pw, b_pw, w_ord, b_ord, w_dil, b_dil, w_v, b_v)

    out_nhwc = out_flat.reshape(N, H, W, C)
    return jnp.transpose(out_nhwc, (0, 3, 1, 2))


def reference_msag(x, p, eps=1e-5):
    """Pure-JAX reference mirroring the PyTorch forward (inference-mode BN)."""
    def conv(z, w, b, padding=0, dilation=1):
        y = jax.lax.conv_general_dilated(
            z, w, window_strides=(1, 1),
            padding=[(padding, padding), (padding, padding)],
            rhs_dilation=(dilation, dilation),
            dimension_numbers=("NCHW", "OIHW", "NCHW"),
            precision=jax.lax.Precision.HIGHEST)
        return y + b[None, :, None, None]

    def bn(y, stats):
        gamma, beta, mean, var = stats
        inv = gamma / jnp.sqrt(var + eps)
        return (y - mean[None, :, None, None]) * inv[None, :, None, None] \
            + beta[None, :, None, None]

    x1 = bn(conv(x, p["pw_w"], p["pw_b"]), p["pw_bn"])
    x2 = bn(conv(x, p["ord_w"], p["ord_b"], padding=1), p["ord_bn"])
    x3 = bn(conv(x, p["dil_w"], p["dil_b"], padding=2, dilation=2), p["dil_bn"])
    a = jax.nn.relu(jnp.concatenate([x1, x2, x3], axis=1))
    gate = jax.nn.sigmoid(bn(conv(a, p["v_w"], p["v_b"]), p["v_bn"]))
    return x + x * gate


if __name__ == "__main__":
    N, C, H, W = 2, 8, 16, 16

    key = jax.random.PRNGKey(0)
    (kx, k_pw_w, k_pw_b, k_pw_bn, k_ord_w, k_ord_b, k_ord_bn,
     k_dil_w, k_dil_b, k_dil_bn, k_v_w, k_v_b, k_v_bn) = jax.random.split(key, 13)

    def conv_w(k, co, ci, kh, kw):
        fan_in = ci * kh * kw
        return jax.random.normal(k, (co, ci, kh, kw), jnp.float32) * (2.0 / fan_in) ** 0.5

    def conv_b(k, co):
        return 0.1 * jax.random.normal(k, (co,), jnp.float32)

    def bn_p(k, c):
        k1, k2, k3, k4 = jax.random.split(k, 4)
        gamma = jax.random.uniform(k1, (c,), jnp.float32, minval=0.5, maxval=1.5)
        beta = 0.1 * jax.random.normal(k2, (c,), jnp.float32)
        mean = 0.1 * jax.random.normal(k3, (c,), jnp.float32)
        var = jax.random.uniform(k4, (c,), jnp.float32, minval=0.5, maxval=1.5)
        return (gamma, beta, mean, var)

    x = jax.random.normal(kx, (N, C, H, W), dtype=jnp.float32)
    params = {
        "pw_w": conv_w(k_pw_w, C, C, 1, 1), "pw_b": conv_b(k_pw_b, C), "pw_bn": bn_p(k_pw_bn, C),
        "ord_w": conv_w(k_ord_w, C, C, 3, 3), "ord_b": conv_b(k_ord_b, C), "ord_bn": bn_p(k_ord_bn, C),
        "dil_w": conv_w(k_dil_w, C, C, 3, 3), "dil_b": conv_b(k_dil_b, C), "dil_bn": bn_p(k_dil_bn, C),
        "v_w": conv_w(k_v_w, C, 3 * C, 1, 1), "v_b": conv_b(k_v_b, C), "v_bn": bn_p(k_v_bn, C),
    }

    out = msag_forward(x, params)
    out = jax.block_until_ready(out)

    ref = reference_msag(x, params)
    assert out.shape == x.shape
    assert jnp.allclose(out, ref, atol=1e-2, rtol=1e-2), (
        f"mismatch vs reference: max abs err {jnp.max(jnp.abs(out - ref))}")

    print("KERNEL_OK")
</pallas_src>

<mosaic_0001>
module attributes {stable_mosaic.version = 11 : i64} {
  func.func @msag_kernel(%arg0: i32, %arg1: memref<1x20x20x8xf32, #tpu.memory_space<vmem>>, %arg2: memref<8x8xf32, #tpu.memory_space<vmem>>, %arg3: memref<1x8xf32, #tpu.memory_space<vmem>>, %arg4: memref<3x3x8x8xf32, #tpu.memory_space<vmem>>, %arg5: memref<1x8xf32, #tpu.memory_space<vmem>>, %arg6: memref<3x3x8x8xf32, #tpu.memory_space<vmem>>, %arg7: memref<1x8xf32, #tpu.memory_space<vmem>>, %arg8: memref<3x8x8xf32, #tpu.memory_space<vmem>>, %arg9: memref<1x8xf32, #tpu.memory_space<vmem>>, %arg10: memref<1x256x8xf32, #tpu.memory_space<vmem>>) attributes {dimension_semantics = [#tpu.dimension_semantics<parallel>], iteration_bounds = array<i64: 2>, scalar_prefetch = 0 : i64, scratch_operands = 0 : i64, tpu.core_type = #tpu.core_type<tc>, window_params = [{transform_indices = @transform_0, window_bounds = array<i64: 1, 20, 20, 8>}, {pipeline_mode = #tpu.pipeline_mode<synchronous>, transform_indices = @transform_1, window_bounds = array<i64: 8, 8>}, {pipeline_mode = #tpu.pipeline_mode<synchronous>, transform_indices = @transform_2, window_bounds = array<i64: 1, 8>}, {pipeline_mode = #tpu.pipeline_mode<synchronous>, transform_indices = @transform_3, window_bounds = array<i64: 3, 3, 8, 8>}, {pipeline_mode = #tpu.pipeline_mode<synchronous>, transform_indices = @transform_4, window_bounds = array<i64: 1, 8>}, {pipeline_mode = #tpu.pipeline_mode<synchronous>, transform_indices = @transform_5, window_bounds = array<i64: 3, 3, 8, 8>}, {pipeline_mode = #tpu.pipeline_mode<synchronous>, transform_indices = @transform_6, window_bounds = array<i64: 1, 8>}, {pipeline_mode = #tpu.pipeline_mode<synchronous>, transform_indices = @transform_7, window_bounds = array<i64: 3, 8, 8>}, {pipeline_mode = #tpu.pipeline_mode<synchronous>, transform_indices = @transform_8, window_bounds = array<i64: 1, 8>}, {transform_indices = @transform_9, window_bounds = array<i64: 1, 256, 8>}]} {
    %c0 = arith.constant 0 : index
    %c2 = arith.constant 2 : index
    %c2_0 = arith.constant 2 : index
    %c0_1 = arith.constant 0 : index
    %0 = vector.load %arg1[%c0, %c2, %c2_0, %c0_1] : memref<1x20x20x8xf32, #tpu.memory_space<vmem>>, vector<1x16x16x8xf32>
    %1 = vector.shape_cast %0 : vector<1x16x16x8xf32> to vector<16x16x8xf32>
    %2 = vector.shape_cast %1 : vector<16x16x8xf32> to vector<256x8xf32>
    %c0_2 = arith.constant 0 : index
    %c0_3 = arith.constant 0 : index
    %3 = vector.load %arg2[%c0_2, %c0_3] : memref<8x8xf32, #tpu.memory_space<vmem>>, vector<8x8xf32>
    %cst = arith.constant dense<0.000000e+00> : vector<256x8xf32>
    %4 = tpu.matmul %2, %3, %cst {dimension_numbers = #tpu.dot_dimension_numbers<[1], [0], [0], [1], [0, 0, 1, 1], [], []>} : vector<256x8xf32>, vector<8x8xf32>, vector<256x8xf32> -> vector<256x8xf32>
    %c0_4 = arith.constant 0 : index
    %c0_5 = arith.constant 0 : index
    %5 = vector.load %arg3[%c0_4, %c0_5] : memref<1x8xf32, #tpu.memory_space<vmem>>, vector<1x8xf32>
    %6 = vector.broadcast %5 : vector<1x8xf32> to vector<256x8xf32>
    %7 = arith.addf %4, %6 : vector<256x8xf32>
    %c1 = arith.constant 1 : index
    %c1_6 = arith.constant 1 : index
    %c0_7 = arith.constant 0 : index
    %c0_8 = arith.constant 0 : index
    %8 = vector.load %arg4[%c1, %c1_6, %c0_7, %c0_8] : memref<3x3x8x8xf32, #tpu.memory_space<vmem>>, vector<1x1x8x8xf32>
    %9 = vector.shape_cast %8 : vector<1x1x8x8xf32> to vector<8x8xf32>
    %cst_9 = arith.constant dense<0.000000e+00> : vector<256x8xf32>
    %10 = tpu.matmul %2, %9, %cst_9 {dimension_numbers = #tpu.dot_dimension_numbers<[1], [0], [0], [1], [0, 0, 1, 1], [], []>} : vector<256x8xf32>, vector<8x8xf32>, vector<256x8xf32> -> vector<256x8xf32>
    %c1_10 = arith.constant 1 : index
    %c1_11 = arith.constant 1 : index
    %c0_12 = arith.constant 0 : index
    %c0_13 = arith.constant 0 : index
    %11 = vector.load %arg6[%c1_10, %c1_11, %c0_12, %c0_13] : memref<3x3x8x8xf32, #tpu.memory_space<vmem>>, vector<1x1x8x8xf32>
    %12 = vector.shape_cast %11 : vector<1x1x8x8xf32> to vector<8x8xf32>
    %cst_14 = arith.constant dense<0.000000e+00> : vector<256x8xf32>
    %13 = tpu.matmul %2, %12, %cst_14 {dimension_numbers = #tpu.dot_dimension_numbers<[1], [0], [0], [1], [0, 0, 1, 1], [], []>} : vector<256x8xf32>, vector<8x8xf32>, vector<256x8xf32> -> vector<256x8xf32>
    %c0_15 = arith.constant 0 : index
    %c1_16 = arith.constant 1 : index
    %c1_17 = arith.constant 1 : index
    %c0_18 = arith.constant 0 : index
    %14 = vector.load %arg1[%c0_15, %c1_16, %c1_17, %c0_18] : memref<1x20x20x8xf32, #tpu.memory_space<vmem>>, vector<1x16x16x8xf32>
    %15 = vector.shape_cast %14 : vector<1x16x16x8xf32> to vector<16x16x8xf32>
    %16 = vector.shape_cast %15 : vector<16x16x8xf32> to vector<256x8xf32>
    %c0_19 = arith.constant 0 : index
    %c0_20 = arith.constant 0 : index
    %c0_21 = arith.constant 0 : index
    %c0_22 = arith.constant 0 : index
    %17 = vector.load %arg4[%c0_19, %c0_20, %c0_21, %c0_22] : memref<3x3x8x8xf32, #tpu.memory_space<vmem>>, vector<1x1x8x8xf32>
    %18 = vector.shape_cast %17 : vector<1x1x8x8xf32> to vector<8x8xf32>
    %cst_23 = arith.constant dense<0.000000e+00> : vector<256x8xf32>
    %19 = tpu.matmul %16, %18, %cst_23 {dimension_numbers = #tpu.dot_dimension_numbers<[1], [0], [0], [1], [0, 0, 1, 1], [], []>} : vector<256x8xf32>, vector<8x8xf32>, vector<256x8xf32> -> vector<256x8xf32>
    %20 = arith.addf %10, %19 : vector<256x8xf32>
    %c0_24 = arith.constant 0 : index
    %c0_25 = arith.constant 0 : index
    %c0_26 = arith.constant 0 : index
    %c0_27 = arith.constant 0 : index
    %21 = vector.load %arg1[%c0_24, %c0_25, %c0_26, %c0_27] : memref<1x20x20x8xf32, #tpu.memory_space<vmem>>, vector<1x16x16x8xf32>
    %22 = vector.shape_cast %21 : vector<1x16x16x8xf32> to vector<16x16x8xf32>
    %23 = vector.shape_cast %22 : vector<16x16x8xf32> to vector<256x8xf32>
    %c0_28 = arith.constant 0 : index
    %c0_29 = arith.constant 0 : index
    %c0_30 = arith.constant 0 : index
    %c0_31 = arith.constant 0 : index
    %24 = vector.load %arg6[%c0_28, %c0_29, %c0_30, %c0_31] : memref<3x3x8x8xf32, #tpu.memory_space<vmem>>, vector<1x1x8x8xf32>
    %25 = vector.shape_cast %24 : vector<1x1x8x8xf32> to vector<8x8xf32>
    %cst_32 = arith.constant dense<0.000000e+00> : vector<256x8xf32>
    %26 = tpu.matmul %23, %25, %cst_32 {dimension_numbers = #tpu.dot_dimension_numbers<[1], [0], [0], [1], [0, 0, 1, 1], [], []>} : vector<256x8xf32>, vector<8x8xf32>, vector<256x8xf32> -> vector<256x8xf32>
    %27 = arith.addf %13, %26 : vector<256x8xf32>
    %c0_33 = arith.constant 0 : index
    %c1_34 = arith.constant 1 : index
    %c2_35 = arith.constant 2 : index
    %c0_36 = arith.constant 0 : index
    %28 = vector.load %arg1[%c0_33, %c1_34, %c2_35, %c0_36] : memref<1x20x20x8xf32, #tpu.memory_space<vmem>>, vector<1x16x16x8xf32>
    %29 = vector.shape_cast %28 : vector<1x16x16x8xf32> to vector<16x16x8xf32>
    %30 = vector.shape_cast %29 : vector<16x16x8xf32> to vector<256x8xf32>
    %c0_37 = arith.constant 0 : index
    %c1_38 = arith.constant 1 : index
    %c0_39 = arith.constant 0 : index
    %c0_40 = arith.constant 0 : index
    %31 = vector.load %arg4[%c0_37, %c1_38, %c0_39, %c0_40] : memref<3x3x8x8xf32, #tpu.memory_space<vmem>>, vector<1x1x8x8xf32>
    %32 = vector.shape_cast %31 : vector<1x1x8x8xf32> to vector<8x8xf32>
    %cst_41 = arith.constant dense<0.000000e+00> : vector<256x8xf32>
    %33 = tpu.matmul %30, %32, %cst_41 {dimension_numbers = #tpu.dot_dimension_numbers<[1], [0], [0], [1], [0, 0, 1, 1], [], []>} : vector<256x8xf32>, vector<8x8xf32>, vector<256x8xf32> -> vector<256x8xf32>
    %34 = arith.addf %20, %33 : vector<256x8xf32>
    %c0_42 = arith.constant 0 : index
    %c0_43 = arith.constant 0 : index
    %c2_44 = arith.constant 2 : index
    %c0_45 = arith.constant 0 : index
    %35 = vector.load %arg1[%c0_42, %c0_43, %c2_44, %c0_45] : memref<1x20x20x8xf32, #tpu.memory_space<vmem>>, vector<1x16x16x8xf32>
    %36 = vector.shape_cast %35 : vector<1x16x16x8xf32> to vector<16x16x8xf32>
    %37 = vector.shape_cast %36 : vector<16x16x8xf32> to vector<256x8xf32>
    %c0_46 = arith.constant 0 : index
    %c1_47 = arith.constant 1 : index
    %c0_48 = arith.constant 0 : index
    %c0_49 = arith.constant 0 : index
    %38 = vector.load %arg6[%c0_46, %c1_47, %c0_48, %c0_49] : memref<3x3x8x8xf32, #tpu.memory_space<vmem>>, vector<1x1x8x8xf32>
    %39 = vector.shape_cast %38 : vector<1x1x8x8xf32> to vector<8x8xf32>
    %cst_50 = arith.constant dense<0.000000e+00> : vector<256x8xf32>
    %40 = tpu.matmul %37, %39, %cst_50 {dimension_numbers = #tpu.dot_dimension_numbers<[1], [0], [0], [1], [0, 0, 1, 1], [], []>} : vector<256x8xf32>, vector<8x8xf32>, vector<256x8xf32> -> vector<256x8xf32>
    %41 = arith.addf %27, %40 : vector<256x8xf32>
    %c0_51 = arith.constant 0 : index
    %c1_52 = arith.constant 1 : index
    %c3 = arith.constant 3 : index
    %c0_53 = arith.constant 0 : index
    %42 = vector.load %arg1[%c0_51, %c1_52, %c3, %c0_53] : memref<1x20x20x8xf32, #tpu.memory_space<vmem>>, vector<1x16x16x8xf32>
    %43 = vector.shape_cast %42 : vector<1x16x16x8xf32> to vector<16x16x8xf32>
    %44 = vector.shape_cast %43 : vector<16x16x8xf32> to vector<256x8xf32>
    %c0_54 = arith.constant 0 : index
    %c2_55 = arith.constant 2 : index
    %c0_56 = arith.constant 0 : index
    %c0_57 = arith.constant 0 : index
    %45 = vector.load %arg4[%c0_54, %c2_55, %c0_56, %c0_57] : memref<3x3x8x8xf32, #tpu.memory_space<vmem>>, vector<1x1x8x8xf32>
    %46 = vector.shape_cast %45 : vector<1x1x8x8xf32> to vector<8x8xf32>
    %cst_58 = arith.constant dense<0.000000e+00> : vector<256x8xf32>
    %47 = tpu.matmul %44, %46, %cst_58 {dimension_numbers = #tpu.dot_dimension_numbers<[1], [0], [0], [1], [0, 0, 1, 1], [], []>} : vector<256x8xf32>, vector<8x8xf32>, vector<256x8xf32> -> vector<256x8xf32>
    %48 = arith.addf %34, %47 : vector<256x8xf32>
    %c0_59 = arith.constant 0 : index
    %c0_60 = arith.constant 0 : index
    %c4 = arith.constant 4 : index
    %c0_61 = arith.constant 0 : index
    %49 = vector.load %arg1[%c0_59, %c0_60, %c4, %c0_61] : memref<1x20x20x8xf32, #tpu.memory_space<vmem>>, vector<1x16x16x8xf32>
    %50 = vector.shape_cast %49 : vector<1x16x16x8xf32> to vector<16x16x8xf32>
    %51 = vector.shape_cast %50 : vector<16x16x8xf32> to vector<256x8xf32>
    %c0_62 = arith.constant 0 : index
    %c2_63 = arith.constant 2 : index
    %c0_64 = arith.constant 0 : index
    %c0_65 = arith.constant 0 : index
    %52 = vector.load %arg6[%c0_62, %c2_63, %c0_64, %c0_65] : memref<3x3x8x8xf32, #tpu.memory_space<vmem>>, vector<1x1x8x8xf32>
    %53 = vector.shape_cast %52 : vector<1x1x8x8xf32> to vector<8x8xf32>
    %cst_66 = arith.constant dense<0.000000e+00> : vector<256x8xf32>
    %54 = tpu.matmul %51, %53, %cst_66 {dimension_numbers = #tpu.dot_dimension_numbers<[1], [0], [0], [1], [0, 0, 1, 1], [], []>} : vector<256x8xf32>, vector<8x8xf32>, vector<256x8xf32> -> vector<256x8xf32>
    %55 = arith.addf %41, %54 : vector<256x8xf32>
    %c0_67 = arith.constant 0 : index
    %c2_68 = arith.constant 2 : index
    %c1_69 = arith.constant 1 : index
    %c0_70 = arith.constant 0 : index
    %56 = vector.load %arg1[%c0_67, %c2_68, %c1_69, %c0_70] : memref<1x20x20x8xf32, #tpu.memory_space<vmem>>, vector<1x16x16x8xf32>
    %57 = vector.shape_cast %56 : vector<1x16x16x8xf32> to vector<16x16x8xf32>
    %58 = vector.shape_cast %57 : vector<16x16x8xf32> to vector<256x8xf32>
    %c1_71 = arith.constant 1 : index
    %c0_72 = arith.constant 0 : index
    %c0_73 = arith.constant 0 : index
    %c0_74 = arith.constant 0 : index
    %59 = vector.load %arg4[%c1_71, %c0_72, %c0_73, %c0_74] : memref<3x3x8x8xf32, #tpu.memory_space<vmem>>, vector<1x1x8x8xf32>
    %60 = vector.shape_cast %59 : vector<1x1x8x8xf32> to vector<8x8xf32>
    %cst_75 = arith.constant dense<0.000000e+00> : vector<256x8xf32>
    %61 = tpu.matmul %58, %60, %cst_75 {dimension_numbers = #tpu.dot_dimension_numbers<[1], [0], [0], [1], [0, 0, 1, 1], [], []>} : vector<256x8xf32>, vector<8x8xf32>, vector<256x8xf32> -> vector<256x8xf32>
    %62 = arith.addf %48, %61 : vector<256x8xf32>
    %c0_76 = arith.constant 0 : index
    %c2_77 = arith.constant 2 : index
    %c0_78 = arith.constant 0 : index
    %c0_79 = arith.constant 0 : index
    %63 = vector.load %arg1[%c0_76, %c2_77, %c0_78, %c0_79] : memref<1x20x20x8xf32, #tpu.memory_space<vmem>>, vector<1x16x16x8xf32>
    %64 = vector.shape_cast %63 : vector<1x16x16x8xf32> to vector<16x16x8xf32>
    %65 = vector.shape_cast %64 : vector<16x16x8xf32> to vector<256x8xf32>
    %c1_80 = arith.constant 1 : index
    %c0_81 = arith.constant 0 : index
    %c0_82 = arith.constant 0 : index
    %c0_83 = arith.constant 0 : index
    %66 = vector.load %arg6[%c1_80, %c0_81, %c0_82, %c0_83] : memref<3x3x8x8xf32, #tpu.memory_space<vmem>>, vector<1x1x8x8xf32>
    %67 = vector.shape_cast %66 : vector<1x1x8x8xf32> to vector<8x8xf32>
    %cst_84 = arith.constant dense<0.000000e+00> : vector<256x8xf32>
    %68 = tpu.matmul %65, %67, %cst_84 {dimension_numbers = #tpu.dot_dimension_numbers<[1], [0], [0], [1], [0, 0, 1, 1], [], []>} : vector<256x8xf32>, vector<8x8xf32>, vector<256x8xf32> -> vector<256x8xf32>
    %69 = arith.addf %55, %68 : vector<256x8xf32>
    %c0_85 = arith.constant 0 : index
    %c2_86 = arith.constant 2 : index
    %c3_87 = arith.constant 3 : index
    %c0_88 = arith.constant 0 : index
    %70 = vector.load %arg1[%c0_85, %c2_86, %c3_87, %c0_88] : memref<1x20x20x8xf32, #tpu.memory_space<vmem>>, vector<1x16x16x8xf32>
    %71 = vector.shape_cast %70 : vector<1x16x16x8xf32> to vector<16x16x8xf32>
    %72 = vector.shape_cast %71 : vector<16x16x8xf32> to vector<256x8xf32>
    %c1_89 = arith.constant 1 : index
    %c2_90 = arith.constant 2 : index
    %c0_91 = arith.constant 0 : index
    %c0_92 = arith.constant 0 : index
    %73 = vector.load %arg4[%c1_89, %c2_90, %c0_91, %c0_92] : memref<3x3x8x8xf32, #tpu.memory_space<vmem>>, vector<1x1x8x8xf32>
    %74 = vector.shape_cast %73 : vector<1x1x8x8xf32> to vector<8x8xf32>
    %cst_93 = arith.constant dense<0.000000e+00> : vector<256x8xf32>
    %75 = tpu.matmul %72, %74, %cst_93 {dimension_numbers = #tpu.dot_dimension_numbers<[1], [0], [0], [1], [0, 0, 1, 1], [], []>} : vector<256x8xf32>, vector<8x8xf32>, vector<256x8xf32> -> vector<256x8xf32>
    %76 = arith.addf %62, %75 : vector<256x8xf32>
    %c0_94 = arith.constant 0 : index
    %c2_95 = arith.constant 2 : index
    %c4_96 = arith.constant 4 : index
    %c0_97 = arith.constant 0 : index
    %77 = vector.load %arg1[%c0_94, %c2_95, %c4_96, %c0_97] : memref<1x20x20x8xf32, #tpu.memory_space<vmem>>, vector<1x16x16x8xf32>
    %78 = vector.shape_cast %77 : vector<1x16x16x8xf32> to vector<16x16x8xf32>
    %79 = vector.shape_cast %78 : vector<16x16x8xf32> to vector<256x8xf32>
    %c1_98 = arith.constant 1 : index
    %c2_99 = arith.constant 2 : index
    %c0_100 = arith.constant 0 : index
    %c0_101 = arith.constant 0 : index
    %80 = vector.load %arg6[%c1_98, %c2_99, %c0_100, %c0_101] : memref<3x3x8x8xf32, #tpu.memory_space<vmem>>, vector<1x1x8x8xf32>
    %81 = vector.shape_cast %80 : vector<1x1x8x8xf32> to vector<8x8xf32>
    %cst_102 = arith.constant dense<0.000000e+00> : vector<256x8xf32>
    %82 = tpu.matmul %79, %81, %cst_102 {dimension_numbers = #tpu.dot_dimension_numbers<[1], [0], [0], [1], [0, 0, 1, 1], [], []>} : vector<256x8xf32>, vector<8x8xf32>, vector<256x8xf32> -> vector<256x8xf32>
    %83 = arith.addf %69, %82 : vector<256x8xf32>
    %c0_103 = arith.constant 0 : index
    %c3_104 = arith.constant 3 : index
    %c1_105 = arith.constant 1 : index
    %c0_106 = arith.constant 0 : index
    %84 = vector.load %arg1[%c0_103, %c3_104, %c1_105, %c0_106] : memref<1x20x20x8xf32, #tpu.memory_space<vmem>>, vector<1x16x16x8xf32>
    %85 = vector.shape_cast %84 : vector<1x16x16x8xf32> to vector<16x16x8xf32>
    %86 = vector.shape_cast %85 : vector<16x16x8xf32> to vector<256x8xf32>
    %c2_107 = arith.constant 2 : index
    %c0_108 = arith.constant 0 : index
    %c0_109 = arith.constant 0 : index
    %c0_110 = arith.constant 0 : index
    %87 = vector.load %arg4[%c2_107, %c0_108, %c0_109, %c0_110] : memref<3x3x8x8xf32, #tpu.memory_space<vmem>>, vector<1x1x8x8xf32>
    %88 = vector.shape_cast %87 : vector<1x1x8x8xf32> to vector<8x8xf32>
    %cst_111 = arith.constant dense<0.000000e+00> : vector<256x8xf32>
    %89 = tpu.matmul %86, %88, %cst_111 {dimension_numbers = #tpu.dot_dimension_numbers<[1], [0], [0], [1], [0, 0, 1, 1], [], []>} : vector<256x8xf32>, vector<8x8xf32>, vector<256x8xf32> -> vector<256x8xf32>
    %90 = arith.addf %76, %89 : vector<256x8xf32>
    %c0_112 = arith.constant 0 : index
    %c4_113 = arith.constant 4 : index
    %c0_114 = arith.constant 0 : index
    %c0_115 = arith.constant 0 : index
    %91 = vector.load %arg1[%c0_112, %c4_113, %c0_114, %c0_115] : memref<1x20x20x8xf32, #tpu.memory_space<vmem>>, vector<1x16x16x8xf32>
    %92 = vector.shape_cast %91 : vector<1x16x16x8xf32> to vector<16x16x8xf32>
    %93 = vector.shape_cast %92 : vector<16x16x8xf32> to vector<256x8xf32>
    %c2_116 = arith.constant 2 : index
    %c0_117 = arith.constant 0 : index
    %c0_118 = arith.constant 0 : index
    %c0_119 = arith.constant 0 : index
    %94 = vector.load %arg6[%c2_116, %c0_117, %c0_118, %c0_119] : memref<3x3x8x8xf32, #tpu.memory_space<vmem>>, vector<1x1x8x8xf32>
    %95 = vector.shape_cast %94 : vector<1x1x8x8xf32> to vector<8x8xf32>
    %cst_120 = arith.constant dense<0.000000e+00> : vector<256x8xf32>
    %96 = tpu.matmul %93, %95, %cst_120 {dimension_numbers = #tpu.dot_dimension_numbers<[1], [0], [0], [1], [0, 0, 1, 1], [], []>} : vector<256x8xf32>, vector<8x8xf32>, vector<256x8xf32> -> vector<256x8xf32>
    %97 = arith.addf %83, %96 : vector<256x8xf32>
    %c0_121 = arith.constant 0 : index
    %c3_122 = arith.constant 3 : index
    %c2_123 = arith.constant 2 : index
    %c0_124 = arith.constant 0 : index
    %98 = vector.load %arg1[%c0_121, %c3_122, %c2_123, %c0_124] : memref<1x20x20x8xf32, #tpu.memory_space<vmem>>, vector<1x16x16x8xf32>
    %99 = vector.shape_cast %98 : vector<1x16x16x8xf32> to vector<16x16x8xf32>
    %100 = vector.shape_cast %99 : vector<16x16x8xf32> to vector<256x8xf32>
    %c2_125 = arith.constant 2 : index
    %c1_126 = arith.constant 1 : index
    %c0_127 = arith.constant 0 : index
    %c0_128 = arith.constant 0 : index
    %101 = vector.load %arg4[%c2_125, %c1_126, %c0_127, %c0_128] : memref<3x3x8x8xf32, #tpu.memory_space<vmem>>, vector<1x1x8x8xf32>
    %102 = vector.shape_cast %101 : vector<1x1x8x8xf32> to vector<8x8xf32>
    %cst_129 = arith.constant dense<0.000000e+00> : vector<256x8xf32>
    %103 = tpu.matmul %100, %102, %cst_129 {dimension_numbers = #tpu.dot_dimension_numbers<[1], [0], [0], [1], [0, 0, 1, 1], [], []>} : vector<256x8xf32>, vector<8x8xf32>, vector<256x8xf32> -> vector<256x8xf32>
    %104 = arith.addf %90, %103 : vector<256x8xf32>
    %c0_130 = arith.constant 0 : index
    %c4_131 = arith.constant 4 : index
    %c2_132 = arith.constant 2 : index
    %c0_133 = arith.constant 0 : index
    %105 = vector.load %arg1[%c0_130, %c4_131, %c2_132, %c0_133] : memref<1x20x20x8xf32, #tpu.memory_space<vmem>>, vector<1x16x16x8xf32>
    %106 = vector.shape_cast %105 : vector<1x16x16x8xf32> to vector<16x16x8xf32>
    %107 = vector.shape_cast %106 : vector<16x16x8xf32> to vector<256x8xf32>
    %c2_134 = arith.constant 2 : index
    %c1_135 = arith.constant 1 : index
    %c0_136 = arith.constant 0 : index
    %c0_137 = arith.constant 0 : index
    %108 = vector.load %arg6[%c2_134, %c1_135, %c0_136, %c0_137] : memref<3x3x8x8xf32, #tpu.memory_space<vmem>>, vector<1x1x8x8xf32>
    %109 = vector.shape_cast %108 : vector<1x1x8x8xf32> to vector<8x8xf32>
    %cst_138 = arith.constant dense<0.000000e+00> : vector<256x8xf32>
    %110 = tpu.matmul %107, %109, %cst_138 {dimension_numbers = #tpu.dot_dimension_numbers<[1], [0], [0], [1], [0, 0, 1, 1], [], []>} : vector<256x8xf32>, vector<8x8xf32>, vector<256x8xf32> -> vector<256x8xf32>
    %111 = arith.addf %97, %110 : vector<256x8xf32>
    %c0_139 = arith.constant 0 : index
    %c3_140 = arith.constant 3 : index
    %c3_141 = arith.constant 3 : index
    %c0_142 = arith.constant 0 : index
    %112 = vector.load %arg1[%c0_139, %c3_140, %c3_141, %c0_142] : memref<1x20x20x8xf32, #tpu.memory_space<vmem>>, vector<1x16x16x8xf32>
    %113 = vector.shape_cast %112 : vector<1x16x16x8xf32> to vector<16x16x8xf32>
    %114 = vector.shape_cast %113 : vector<16x16x8xf32> to vector<256x8xf32>
    %c2_143 = arith.constant 2 : index
    %c2_144 = arith.constant 2 : index
    %c0_145 = arith.constant 0 : index
    %c0_146 = arith.constant 0 : index
    %115 = vector.load %arg4[%c2_143, %c2_144, %c0_145, %c0_146] : memref<3x3x8x8xf32, #tpu.memory_space<vmem>>, vector<1x1x8x8xf32>
    %116 = vector.shape_cast %115 : vector<1x1x8x8xf32> to vector<8x8xf32>
    %cst_147 = arith.constant dense<0.000000e+00> : vector<256x8xf32>
    %117 = tpu.matmul %114, %116, %cst_147 {dimension_numbers = #tpu.dot_dimension_numbers<[1], [0], [0], [1], [0, 0, 1, 1], [], []>} : vector<256x8xf32>, vector<8x8xf32>, vector<256x8xf32> -> vector<256x8xf32>
    %118 = arith.addf %104, %117 : vector<256x8xf32>
    %c0_148 = arith.constant 0 : index
    %c4_149 = arith.constant 4 : index
    %c4_150 = arith.constant 4 : index
    %c0_151 = arith.constant 0 : index
    %119 = vector.load %arg1[%c0_148, %c4_149, %c4_150, %c0_151] : memref<1x20x20x8xf32, #tpu.memory_space<vmem>>, vector<1x16x16x8xf32>
    %120 = vector.shape_cast %119 : vector<1x16x16x8xf32> to vector<16x16x8xf32>
    %121 = vector.shape_cast %120 : vector<16x16x8xf32> to vector<256x8xf32>
    %c2_152 = arith.constant 2 : index
    %c2_153 = arith.constant 2 : index
    %c0_154 = arith.constant 0 : index
    %c0_155 = arith.constant 0 : index
    %122 = vector.load %arg6[%c2_152, %c2_153, %c0_154, %c0_155] : memref<3x3x8x8xf32, #tpu.memory_space<vmem>>, vector<1x1x8x8xf32>
    %123 = vector.shape_cast %122 : vector<1x1x8x8xf32> to vector<8x8xf32>
    %cst_156 = arith.constant dense<0.000000e+00> : vector<256x8xf32>
    %124 = tpu.matmul %121, %123, %cst_156 {dimension_numbers = #tpu.dot_dimension_numbers<[1], [0], [0], [1], [0, 0, 1, 1], [], []>} : vector<256x8xf32>, vector<8x8xf32>, vector<256x8xf32> -> vector<256x8xf32>
    %125 = arith.addf %111, %124 : vector<256x8xf32>
    %c0_157 = arith.constant 0 : index
    %c0_158 = arith.constant 0 : index
    %126 = vector.load %arg5[%c0_157, %c0_158] : memref<1x8xf32, #tpu.memory_space<vmem>>, vector<1x8xf32>
    %127 = vector.broadcast %126 : vector<1x8xf32> to vector<256x8xf32>
    %128 = arith.addf %118, %127 : vector<256x8xf32>
    %c0_159 = arith.constant 0 : index
    %c0_160 = arith.constant 0 : index
    %129 = vector.load %arg7[%c0_159, %c0_160] : memref<1x8xf32, #tpu.memory_space<vmem>>, vector<1x8xf32>
    %130 = vector.broadcast %129 : vector<1x8xf32> to vector<256x8xf32>
    %131 = arith.addf %125, %130 : vector<256x8xf32>
    %cst_161 = arith.constant 0.000000e+00 : f32
    %132 = vector.broadcast %cst_161 : f32 to vector<256x8xf32>
    %133 = arith.maximumf %7, %132 : vector<256x8xf32>
    %cst_162 = arith.constant 0.000000e+00 : f32
    %134 = vector.broadcast %cst_162 : f32 to vector<256x8xf32>
    %135 = arith.maximumf %128, %134 : vector<256x8xf32>
    %cst_163 = arith.constant 0.000000e+00 : f32
    %136 = vector.broadcast %cst_163 : f32 to vector<256x8xf32>
    %137 = arith.maximumf %131, %136 : vector<256x8xf32>
    %c0_164 = arith.constant 0 : index
    %c0_165 = arith.constant 0 : index
    %c0_166 = arith.constant 0 : index
    %138 = vector.load %arg8[%c0_164, %c0_165, %c0_166] : memref<3x8x8xf32, #tpu.memory_space<vmem>>, vector<1x8x8xf32>
    %139 = vector.shape_cast %138 : vector<1x8x8xf32> to vector<8x8xf32>
    %cst_167 = arith.constant dense<0.000000e+00> : vector<256x8xf32>
    %140 = tpu.matmul %133, %139, %cst_167 {dimension_numbers = #tpu.dot_dimension_numbers<[1], [0], [0], [1], [0, 0, 1, 1], [], []>} : vector<256x8xf32>, vector<8x8xf32>, vector<256x8xf32> -> vector<256x8xf32>
    %c1_168 = arith.constant 1 : index
    %c0_169 = arith.constant 0 : index
    %c0_170 = arith.constant 0 : index
    %141 = vector.load %arg8[%c1_168, %c0_169, %c0_170] : memref<3x8x8xf32, #tpu.memory_space<vmem>>, vector<1x8x8xf32>
    %142 = vector.shape_cast %141 : vector<1x8x8xf32> to vector<8x8xf32>
    %cst_171 = arith.constant dense<0.000000e+00> : vector<256x8xf32>
    %143 = tpu.matmul %135, %142, %cst_171 {dimension_numbers = #tpu.dot_dimension_numbers<[1], [0], [0], [1], [0, 0, 1, 1], [], []>} : vector<256x8xf32>, vector<8x8xf32>, vector<256x8xf32> -> vector<256x8xf32>
    %144 = arith.addf %140, %143 : vector<256x8xf32>
    %c2_172 = arith.constant 2 : index
    %c0_173 = arith.constant 0 : index
    %c0_174 = arith.constant 0 : index
    %145 = vector.load %arg8[%c2_172, %c0_173, %c0_174] : memref<3x8x8xf32, #tpu.memory_space<vmem>>, vector<1x8x8xf32>
    %146 = vector.shape_cast %145 : vector<1x8x8xf32> to vector<8x8xf32>
    %cst_175 = arith.constant dense<0.000000e+00> : vector<256x8xf32>
    %147 = tpu.matmul %137, %146, %cst_175 {dimension_numbers = #tpu.dot_dimension_numbers<[1], [0], [0], [1], [0, 0, 1, 1], [], []>} : vector<256x8xf32>, vector<8x8xf32>, vector<256x8xf32> -> vector<256x8xf32>
    %148 = arith.addf %144, %147 : vector<256x8xf32>
    %c0_176 = arith.constant 0 : index
    %c0_177 = arith.constant 0 : index
    %149 = vector.load %arg9[%c0_176, %c0_177] : memref<1x8xf32, #tpu.memory_space<vmem>>, vector<1x8xf32>
    %150 = vector.broadcast %149 : vector<1x8xf32> to vector<256x8xf32>
    %151 = arith.addf %148, %150 : vector<256x8xf32>
    %cst_178 = arith.constant 0.000000e+00 : f32
    %152 = vector.broadcast %cst_178 : f32 to vector<256x8xf32>
    %153 = arith.subf %152, %151 : vector<256x8xf32>
    %154 = math.exp %153 : vector<256x8xf32>
    %cst_179 = arith.constant 1.000000e+00 : f32
    %155 = vector.broadcast %cst_179 : f32 to vector<256x8xf32>
    %156 = arith.addf %155, %154 : vector<256x8xf32>
    %157 = tpu.reciprocal %156 {approx = true} : vector<256x8xf32> -> vector<256x8xf32>
    %cst_180 = arith.constant 1.000000e+00 : f32
    %158 = vector.broadcast %cst_180 : f32 to vector<256x8xf32>
    %159 = arith.addf %158, %157 : vector<256x8xf32>
    %160 = arith.mulf %2, %159 : vector<256x8xf32>
    %c0_181 = arith.constant 0 : index
    %c0_182 = arith.constant 0 : index
    %c0_183 = arith.constant 0 : index
    %161 = vector.load %arg10[%c0_181, %c0_182, %c0_183] : memref<1x256x8xf32, #tpu.memory_space<vmem>>, vector<1x256x8xf32>
    %162 = vector.shape_cast %161 : vector<1x256x8xf32> to vector<256x8xf32>
    %163 = vector.shape_cast %160 : vector<256x8xf32> to vector<1x256x8xf32>
    tpu.vector_store %arg10[%c0_181, %c0_182, %c0_183], %163 {strides = array<i32>} : memref<1x256x8xf32, #tpu.memory_space<vmem>>, vector<1x256x8xf32>,
    return
  }
  func.func @transform_0(%arg0: i32) -> (i32, i32, i32, i32) {
    %c0_i32 = arith.constant 0 : i32
    %c0_i32_0 = arith.constant 0 : i32
    %c0_i32_1 = arith.constant 0 : i32
    %c0_i32_2 = arith.constant 0 : i32
    return %arg0, %c0_i32, %c0_i32_0, %c0_i32_1 : i32, i32, i32, i32
  }
  func.func @transform_1(%arg0: i32) -> (i32, i32) {
    %c0_i32 = arith.constant 0 : i32
    %c0_i32_0 = arith.constant 0 : i32
    %c0_i32_1 = arith.constant 0 : i32
    return %c0_i32, %c0_i32_0 : i32, i32
  }
  func.func @transform_2(%arg0: i32) -> (i32, i32) {
    %c0_i32 = arith.constant 0 : i32
    %c0_i32_0 = arith.constant 0 : i32
    %c0_i32_1 = arith.constant 0 : i32
    return %c0_i32, %c0_i32_0 : i32, i32
  }
  func.func @transform_3(%arg0: i32) -> (i32, i32, i32, i32) {
    %c0_i32 = arith.constant 0 : i32
    %c0_i32_0 = arith.constant 0 : i32
    %c0_i32_1 = arith.constant 0 : i32
    %c0_i32_2 = arith.constant 0 : i32
    %c0_i32_3 = arith.constant 0 : i32
    return %c0_i32, %c0_i32_0, %c0_i32_1, %c0_i32_2 : i32, i32, i32, i32
  }
  func.func @transform_4(%arg0: i32) -> (i32, i32) {
    %c0_i32 = arith.constant 0 : i32
    %c0_i32_0 = arith.constant 0 : i32
    %c0_i32_1 = arith.constant 0 : i32
    return %c0_i32, %c0_i32_0 : i32, i32
  }
  func.func @transform_5(%arg0: i32) -> (i32, i32, i32, i32) {
    %c0_i32 = arith.constant 0 : i32
    %c0_i32_0 = arith.constant 0 : i32
    %c0_i32_1 = arith.constant 0 : i32
    %c0_i32_2 = arith.constant 0 : i32
    %c0_i32_3 = arith.constant 0 : i32
    return %c0_i32, %c0_i32_0, %c0_i32_1, %c0_i32_2 : i32, i32, i32, i32
  }
  func.func @transform_6(%arg0: i32) -> (i32, i32) {
    %c0_i32 = arith.constant 0 : i32
    %c0_i32_0 = arith.constant 0 : i32
    %c0_i32_1 = arith.constant 0 : i32
    return %c0_i32, %c0_i32_0 : i32, i32
  }
  func.func @transform_7(%arg0: i32) -> (i32, i32, i32) {
    %c0_i32 = arith.constant 0 : i32
    %c0_i32_0 = arith.constant 0 : i32
    %c0_i32_1 = arith.constant 0 : i32
    %c0_i32_2 = arith.constant 0 : i32
    return %c0_i32, %c0_i32_0, %c0_i32_1 : i32, i32, i32
  }
  func.func @transform_8(%arg0: i32) -> (i32, i32) {
    %c0_i32 = arith.constant 0 : i32
    %c0_i32_0 = arith.constant 0 : i32
    %c0_i32_1 = arith.constant 0 : i32
    return %c0_i32, %c0_i32_0 : i32, i32
  }
  func.func @transform_9(%arg0: i32) -> (i32, i32, i32) {
    %c0_i32 = arith.constant 0 : i32
    %c0_i32_0 = arith.constant 0 : i32
    %c0_i32_1 = arith.constant 0 : i32
    return %arg0, %c0_i32, %c0_i32_0 : i32, i32, i32
  }
}

</mosaic_0001>

<llo_original>
// kernel: msag_forward.1
$region0: #{msag_forward.1}
  #allocation0 [shape = 'u32[]', space=smem, size = 0x4, offset = 0x4, fixed_abs, tag = 'smem constant byte address 0x4 - core index']
  #allocation1 [shape = 'u32[144,128]{1,0:T(1,128)}', space=vmem, size = 0x12000, scoped, tag = 'internal scratch']
  %s0 = inlined_call_operand.vmem [shape: f32[2,20,20,8], index: 0, kind: input, shape index: {}]
  %s1 = inlined_call_operand.vmem [shape: f32[8,8], index: 1, kind: input, shape index: {}]
  %s2 = inlined_call_operand.vmem [shape: f32[1,8], index: 2, kind: input, shape index: {}]
  %s3 = inlined_call_operand.vmem [shape: f32[3,3,8,8], index: 3, kind: input, shape index: {}]
  %s4 = inlined_call_operand.vmem [shape: f32[1,8], index: 4, kind: input, shape index: {}]
  %s5 = inlined_call_operand.vmem [shape: f32[3,3,8,8], index: 5, kind: input, shape index: {}]
  %s6 = inlined_call_operand.vmem [shape: f32[1,8], index: 6, kind: input, shape index: {}]
  %s7 = inlined_call_operand.vmem [shape: f32[3,8,8], index: 7, kind: input, shape index: {}]
  %s8 = inlined_call_operand.vmem [shape: f32[1,8], index: 8, kind: input, shape index: {}]
  %s9 = inlined_call_operand.vmem [shape: f32[2,256,8], index: 9, kind: output, shape index: {}]
  %s10 = sld [smem:[#allocation0]]
  $region69: #{msag_forward.1} parent=0
    _
  %s12 = ssub.s32 1, %s10
  %s13 = scalar_select 0, %s12, %s10
  loop: start=0, step=1, limit=4
  $region2: #{msag_forward.1} parent=0 // loop_pre_header
    _
  $region3: #{msag_forward.1} parent=0 // loop_header
    %s15 = sphi 0, %s19
    %p16 = scmp.ge.s32.totalorder %s15, 4
    %s25 = sphi 0, %s27
    %s28 = sphi 0, %s25
    %s29 = sphi 0, %s28
    %s45 = sphi 0, %s29
    %s49 = sphi 0, %s49
    %s51 = sphi 0, %s49
    %s52 = sphi 0, %s51
    %s66 = sphi 0, %s52
    %s70 = sphi 0, %s70
    %s72 = sphi 0, %s70
    %s73 = sphi 0, %s72
    %s87 = sphi 0, %s73
    %s91 = sphi 0, %s91
    %s93 = sphi 0, %s91
    %s94 = sphi 0, %s93
    %s108 = sphi 0, %s94
    %s112 = sphi 0, %s112
    %s114 = sphi 0, %s112
    %s115 = sphi 0, %s114
    %s129 = sphi 0, %s115
    %s133 = sphi 0, %s133
    %s135 = sphi 0, %s133
    %s136 = sphi 0, %s135
    %s150 = sphi 0, %s136
    %s154 = sphi 0, %s154
    %s156 = sphi 0, %s154
    %s157 = sphi 0, %s156
    %s171 = sphi 0, %s157
    %s175 = sphi 0, %s175
    %s177 = sphi 0, %s175
    %s178 = sphi 0, %s177
    %s192 = sphi 0, %s178
    %s196 = sphi 0, %s196
    %s198 = sphi 0, %s196
    %s199 = sphi 0, %s198
    %s213 = sphi 0, %s199
    %s219 = sphi 0, %s221
    %s222 = sphi 0, %s219
    %s223 = sphi 0, %s222
    %s239 = sphi 0, %s223
  $region4: #{msag_forward.1} parent=0 // loop_header_branch
    %18 = sbr.rel (%p16) target = $region8
  $region5: #{msag_forward.1} parent=0 // loop_body
    %s20 = ssub.s32 %s15, 1
    %s21 = ssub.s32 %s15, 2
    %s22 = sadd.s32 %s15, 1
    %s23 = ssub.s32 %s15, %s22
    %p24 = scmp.eq.s32.totalorder %s23, 0
    %s26 = sadd.s32 %s25, 1
    %s27 = scalar_select %p24, %s25, %s26
    %p30 = pneg %p24
    %p31 = scmp.eq.s32.totalorder %s15, 1
    %p32 = por %p30, %p31
    %p33 = scmp.ne.s32.totalorder %s25, %s28
    %p34 = scmp.eq.s32.totalorder %s15, 0
    %p35 = por %p33, %p34
    %p36 = scmp.ne.s32.totalorder %s25, %s28
    %p37 = scmp.eq.s32.totalorder %s20, 1
    %p38 = por %p36, %p37
    %p39 = scmp.ne.s32.totalorder %s28, %s29
    %p40 = scmp.eq.s32.totalorder %s20, 0
    %p41 = por %p39, %p40
    %p42 = scmp.ne.s32.totalorder %s28, %s29
    %p43 = scmp.eq.s32.totalorder %s21, 1
    %p44 = por %p42, %p43
    %p46 = scmp.ne.s32.totalorder %s29, %s45
    %p47 = scmp.eq.s32.totalorder %s21, 0
    %p48 = por %p46, %p47
    %s50 = sadd.s32 %s49, 1
    %p53 = scmp.eq.s32.totalorder %s15, 1
    %p54 = scmp.ne.s32.totalorder %s49, %s51
    %p55 = scmp.eq.s32.totalorder %s15, 0
    %p56 = por %p54, %p55
    %p57 = scmp.ne.s32.totalorder %s49, %s51
    %p58 = scmp.eq.s32.totalorder %s20, 1
    %p59 = por %p57, %p58
    %p60 = scmp.ne.s32.totalorder %s51, %s52
    %p61 = scmp.eq.s32.totalorder %s20, 0
    %p62 = por %p60, %p61
    %p63 = scmp.ne.s32.totalorder %s51, %s52
    %p64 = scmp.eq.s32.totalorder %s21, 1
    %p65 = por %p63, %p64
    %p67 = scmp.ne.s32.totalorder %s52, %s66
    %p68 = scmp.eq.s32.totalorder %s21, 0
    %p69 = por %p67, %p68
    %s71 = sadd.s32 %s70, 1
    %p74 = scmp.eq.s32.totalorder %s15, 1
    %p75 = scmp.ne.s32.totalorder %s70, %s72
    %p76 = scmp.eq.s32.totalorder %s15, 0
    %p77 = por %p75, %p76
    %p78 = scmp.ne.s32.totalorder %s70, %s72
    %p79 = scmp.eq.s32.totalorder %s20, 1
    %p80 = por %p78, %p79
    %p81 = scmp.ne.s32.totalorder %s72, %s73
    %p82 = scmp.eq.s32.totalorder %s20, 0
    %p83 = por %p81, %p82
    %p84 = scmp.ne.s32.totalorder %s72, %s73
    %p85 = scmp.eq.s32.totalorder %s21, 1
    %p86 = por %p84, %p85
    %p88 = scmp.ne.s32.totalorder %s73, %s87
    %p89 = scmp.eq.s32.totalorder %s21, 0
    %p90 = por %p88, %p89
    %s92 = sadd.s32 %s91, 1
    %p95 = scmp.eq.s32.totalorder %s15, 1
    %p96 = scmp.ne.s32.totalorder %s91, %s93
    %p97 = scmp.eq.s32.totalorder %s15, 0
    %p98 = por %p96, %p97
    %p99 = scmp.ne.s32.totalorder %s91, %s93
    %p100 = scmp.eq.s32.totalorder %s20, 1
    %p101 = por %p99, %p100
    %p102 = scmp.ne.s32.totalorder %s93, %s94
    %p103 = scmp.eq.s32.totalorder %s20, 0
    %p104 = por %p102, %p103
    %p105 = scmp.ne.s32.totalorder %s93, %s94
    %p106 = scmp.eq.s32.totalorder %s21, 1
    %p107 = por %p105, %p106
    %p109 = scmp.ne.s32.totalorder %s94, %s108
    %p110 = scmp.eq.s32.totalorder %s21, 0
    %p111 = por %p109, %p110
    %s113 = sadd.s32 %s112, 1
    %p116 = scmp.eq.s32.totalorder %s15, 1
    %p117 = scmp.ne.s32.totalorder %s112, %s114
    %p118 = scmp.eq.s32.totalorder %s15, 0
    %p119 = por %p117, %p118
    %p120 = scmp.ne.s32.totalorder %s112, %s114
    %p121 = scmp.eq.s32.totalorder %s20, 1
    %p122 = por %p120, %p121
    %p123 = scmp.ne.s32.totalorder %s114, %s115
    %p124 = scmp.eq.s32.totalorder %s20, 0
    %p125 = por %p123, %p124
    %p126 = scmp.ne.s32.totalorder %s114, %s115
    %p127 = scmp.eq.s32.totalorder %s21, 1
    %p128 = por %p126, %p127
    %p130 = scmp.ne.s32.totalorder %s115, %s129
    %p131 = scmp.eq.s32.totalorder %s21, 0
    %p132 = por %p130, %p131
    %s134 = sadd.s32 %s133, 1
    %p137 = scmp.eq.s32.totalorder %s15, 1
    %p138 = scmp.ne.s32.totalorder %s133, %s135
    %p139 = scmp.eq.s32.totalorder %s15, 0
    %p140 = por %p138, %p139
    %p141 = scmp.ne.s32.totalorder %s133, %s135
    %p142 = scmp.eq.s32.totalorder %s20, 1
    %p143 = por %p141, %p142
    %p144 = scmp.ne.s32.totalorder %s135, %s136
    %p145 = scmp.eq.s32.totalorder %s20, 0
    %p146 = por %p144, %p145
    %p147 = scmp.ne.s32.totalorder %s135, %s136
    %p148 = scmp.eq.s32.totalorder %s21, 1
    %p149 = por %p147, %p148
    %p151 = scmp.ne.s32.totalorder %s136, %s150
    %p152 = scmp.eq.s32.totalorder %s21, 0
    %p153 = por %p151, %p152
    %s155 = sadd.s32 %s154, 1
    %p158 = scmp.eq.s32.totalorder %s15, 1
    %p159 = scmp.ne.s32.totalorder %s154, %s156
    %p160 = scmp.eq.s32.totalorder %s15, 0
    %p161 = por %p159, %p160
    %p162 = scmp.ne.s32.totalorder %s154, %s156
    %p163 = scmp.eq.s32.totalorder %s20, 1
    %p164 = por %p162, %p163
    %p165 = scmp.ne.s32.totalorder %s156, %s157
    %p166 = scmp.eq.s32.totalorder %s20, 0
    %p167 = por %p165, %p166
    %p168 = scmp.ne.s32.totalorder %s156, %s157
    %p169 = scmp.eq.s32.totalorder %s21, 1
    %p170 = por %p168, %p169
    %p172 = scmp.ne.s32.totalorder %s157, %s171
    %p173 = scmp.eq.s32.totalorder %s21, 0
    %p174 = por %p172, %p173
    %s176 = sadd.s32 %s175, 1
    %p179 = scmp.eq.s32.totalorder %s15, 1
    %p180 = scmp.ne.s32.totalorder %s175, %s177
    %p181 = scmp.eq.s32.totalorder %s15, 0
    %p182 = por %p180, %p181
    %p183 = scmp.ne.s32.totalorder %s175, %s177
    %p184 = scmp.eq.s32.totalorder %s20, 1
    %p185 = por %p183, %p184
    %p186 = scmp.ne.s32.totalorder %s177, %s178
    %p187 = scmp.eq.s32.totalorder %s20, 0
    %p188 = por %p186, %p187
    %p189 = scmp.ne.s32.totalorder %s177, %s178
    %p190 = scmp.eq.s32.totalorder %s21, 1
    %p191 = por %p189, %p190
    %p193 = scmp.ne.s32.totalorder %s178, %s192
    %p194 = scmp.eq.s32.totalorder %s21, 0
    %p195 = por %p193, %p194
    %s197 = sadd.s32 %s196, 1
    %p200 = scmp.eq.s32.totalorder %s15, 1
    %p201 = scmp.ne.s32.totalorder %s196, %s198
    %p202 = scmp.eq.s32.totalorder %s15, 0
    %p203 = por %p201, %p202
    %p204 = scmp.ne.s32.totalorder %s196, %s198
    %p205 = scmp.eq.s32.totalorder %s20, 1
    %p206 = por %p204, %p205
    %p207 = scmp.ne.s32.totalorder %s198, %s199
    %p208 = scmp.eq.s32.totalorder %s20, 0
    %p209 = por %p207, %p208
    %p210 = scmp.ne.s32.totalorder %s198, %s199
    %p211 = scmp.eq.s32.totalorder %s21, 1
    %p212 = por %p210, %p211
    %p214 = scmp.ne.s32.totalorder %s199, %s213
    %p215 = scmp.eq.s32.totalorder %s21, 0
    %p216 = por %p214, %p215
    %s217 = ssub.s32 %s15, %s22
    %p218 = scmp.eq.s32.totalorder %s217, 0
    %s220 = sadd.s32 %s219, 1
    %s221 = scalar_select %p218, %s219, %s220
    %p224 = pneg %p218
    %p225 = scmp.eq.s32.totalorder %s15, 1
    %p226 = por %p224, %p225
    %p227 = scmp.ne.s32.totalorder %s219, %s222
    %p228 = scmp.eq.s32.totalorder %s15, 0
    %p229 = por %p227, %p228
    %p230 = scmp.ne.s32.totalorder %s219, %s222
    %p231 = scmp.eq.s32.totalorder %s20, 1
    %p232 = por %p230, %p231
    %p233 = scmp.ne.s32.totalorder %s222, %s223
    %p234 = scmp.eq.s32.totalorder %s20, 0
    %p235 = por %p233, %p234
    %p236 = scmp.ne.s32.totalorder %s222, %s223
    %p237 = scmp.eq.s32.totalorder %s21, 1
    %p238 = por %p236, %p237
    %p240 = scmp.ne.s32.totalorder %s223, %s239
    %p241 = scmp.eq.s32.totalorder %s21, 0
    %p242 = por %p240, %p241
    %p243 = scmp.le.s32.totalorder 1, %s15
    %p244 = scmp.lt.s32.totalorder %s15, 3
    %p245 = pnand %p243, %p244
    %p246 = pneg %p245
    // Predicated region
    $region9: #{msag_forward.1} parent=5 // pred_check
      _
    $region10: #{msag_forward.1} parent=5 // pred_check_branch
      %248 = sbr.rel (%p245) target = $region12
    $region11: #{msag_forward.1} parent=5 // pred_region
      %s249 = ssub.s32 %s15, 1
      // Predicated region
      $region13: #{msag_forward.1} parent=11 // pred_check
        %p250 = pneg %p62
      $region14: #{msag_forward.1} parent=11 // pred_check_branch
        %252 = sbr.rel (%p250) target = $region16
      $region15: #{msag_forward.1} parent=11 // pred_region
        _
      $region16: #{msag_forward.1} parent=11 // pred_fallthru
        _
      // Predicated region
      $region17: #{msag_forward.1} parent=11 // pred_check
        %p253 = pneg %p83
      $region18: #{msag_forward.1} parent=11 // pred_check_branch
        %255 = sbr.rel (%p253) target = $region20
      $region19: #{msag_forward.1} parent=11 // pred_region
        _
      $region20: #{msag_forward.1} parent=11 // pred_fallthru
        _
      // Predicated region
      $region21: #{msag_forward.1} parent=11 // pred_check
        %p256 = pneg %p104
      $region22: #{msag_forward.1} parent=11 // pred_check_branch
        %258 = sbr.rel (%p256) target = $region24
      $region23: #{msag_forward.1} parent=11 // pred_region
        _
      $region24: #{msag_forward.1} parent=11 // pred_fallthru
        _
      // Predicated region
      $region25: #{msag_forward.1} parent=11 // pred_check
        %p259 = pneg %p125
      $region26: #{msag_forward.1} parent=11 // pred_check_branch
        %261 = sbr.rel (%p259) target = $region28
      $region27: #{msag_forward.1} parent=11 // pred_region
        _
      $region28: #{msag_forward.1} parent=11 // pred_fallthru
        _
      // Predicated region
      $region29: #{msag_forward.1} parent=11 // pred_check
        %p262 = pneg %p146
      $region30: #{msag_forward.1} parent=11 // pred_check_branch
        %264 = sbr.rel (%p262) target = $region32
      $region31: #{msag_forward.1} parent=11 // pred_region
        _
      $region32: #{msag_forward.1} parent=11 // pred_fallthru
        _
      // Predicated region
      $region33: #{msag_forward.1} parent=11 // pred_check
        %p265 = pneg %p167
      $region34: #{msag_forward.1} parent=11 // pred_check_branch
        %267 = sbr.rel (%p265) target = $region36
      $region35: #{msag_forward.1} parent=11 // pred_region
        _
      $region36: #{msag_forward.1} parent=11 // pred_fallthru
        _
      // Predicated region
      $region37: #{msag_forward.1} parent=11 // pred_check
        %p268 = pneg %p188
      $region38: #{msag_forward.1} parent=11 // pred_check_branch
        %270 = sbr.rel (%p268) target = $region40
      $region39: #{msag_forward.1} parent=11 // pred_region
        _
      $region40: #{msag_forward.1} parent=11 // pred_fallthru
        _
      // Predicated region
      $region41: #{msag_forward.1} parent=11 // pred_check
        %p271 = pneg %p209
      $region42: #{msag_forward.1} parent=11 // pred_check_branch
        %273 = sbr.rel (%p271) target = $region44
      $region43: #{msag_forward.1} parent=11 // pred_region
        _
      $region44: #{msag_forward.1} parent=11 // pred_fallthru
        _
    $region12: #{msag_forward.1} parent=5 // pred_fallthru
      _
    %p274 = scmp.lt.s32.totalorder %s15, 2
    // Predicated region
    $region45: #{msag_forward.1} parent=5 // pred_check
      %p275 = pneg %p274
    $region46: #{msag_forward.1} parent=5 // pred_check_branch
      %277 = sbr.rel (%p275) target = $region48
    $region47: #{msag_forward.1} parent=5 // pred_region
      // Predicated region
      $region49: #{msag_forward.1} parent=47 // pred_check
        %p278 = pneg %p35
      $region50: #{msag_forward.1} parent=47 // pred_check_branch
        %280 = sbr.rel (%p278) target = $region52
      $region51: #{msag_forward.1} parent=47 // pred_region
        %p281 = scmp.lt.s32.totalorder %s15, 1
        %s282 = scalar_select %p281, %s15, 1
        %s283 = smul.addr %s282, 60
        %s284 = smul.addr %s283, 8
        %s285 = scalar_lea.vmem %s0, %s284
      $region52: #{msag_forward.1} parent=47 // pred_fallthru
        _
    $region48: #{msag_forward.1} parent=5 // pred_fallthru
      _
    %p286 = scmp.le.s32.totalorder 1, %s15
    %p287 = scmp.lt.s32.totalorder %s15, 3
    %p288 = pnand %p286, %p287
    %p289 = pneg %p288
    // Predicated region
    $region53: #{msag_forward.1} parent=5 // pred_check
      _
    $region54: #{msag_forward.1} parent=5 // pred_check_branch
      %291 = sbr.rel (%p288) target = $region56
    $region55: #{msag_forward.1} parent=5 // pred_region
      %s292 = ssub.s32 %s15, 1
      %p293 = scmp.lt.s32.totalorder %s20, 1
      %s294 = scalar_select %p293, %s20, 1
      %s295 = smul.addr %s294, 60
      %s296 = smul.addr %s295, 8
      %s297 = scalar_lea.vmem %s0, %s296
      %p298 = pneg %p41
      %p299 = pneg %p38
      %p300 = pneg %p62
      %p301 = pneg %p59
      %p302 = pneg %p83
      %p303 = pneg %p80
      %p304 = pneg %p104
      %p305 = pneg %p101
      %p306 = pneg %p125
      %p307 = pneg %p122
      %p308 = pneg %p146
      %p309 = pneg %p143
      %p310 = pneg %p167
      %p311 = pneg %p164
      %p312 = pneg %p188
      %p313 = pneg %p185
      %p314 = pneg %p209
      %p315 = pneg %p206
      %p316 = pneg %p235
      %p317 = pneg %p232
      %p318 = scmp.lt.s32.totalorder %s20, 1
      %s319 = scalar_select %p318, %s20, 1
      %s320 = smul.addr %s319, 32
      %s321 = smul.addr %s320, 8
      %s322 = scalar_lea.vmem %s9, %s321
      %p323 = scmp.lt.s32.totalorder %s20, 1
      %s324 = scalar_select %p323, %s20, 1
      %s325 = smul.addr %s324, 60
      %s326 = smul.addr %s325, 8
      %s327 = scalar_lea.vmem %s0, %s326
      %p328 = scmp.lt.s32.totalorder %s20, 1
      %s329 = scalar_select %p328, %s20, 1
      %s330 = smul.addr %s329, 32
      %s331 = smul.addr %s330, 8
      %s332 = scalar_lea.vmem %s9, %s331
      %s333 = scalar_lea.vmem %s327, 48
      %v334 = vld [vmem:[%s333 + $0x2] sm:$0xff]
      %v335 = vld [vmem:[%s333 + $0xa] sm:$0xff]
      %v336 = vld [vmem:[%s333 + $0x1a] sm:$0xff]
      %v337 = vld [vmem:[%s333 + $0x22] sm:$0xff]
      %v338 = vld [vmem:[%s333 + $0x32] sm:$0xff]
      %v339 = vld [vmem:[%s333 + $0x3a] sm:$0xff]
      %v340 = vld [vmem:[%s333 + $0x4a] sm:$0xff]
      %v341 = vld [vmem:[%s333 + $0x52] sm:$0xff]
      %v342 = vld [vmem:[%s333 + $0x62] sm:$0xff]
      %v343 = vld [vmem:[%s333 + $0x6a] sm:$0xff]
      %v344 = vld [vmem:[%s333 + $0x7a] sm:$0xff]
      %v345 = vld [vmem:[%s333 + $0x82] sm:$0xff]
      %v346 = vld [vmem:[%s333 + $0x92] sm:$0xff]
      %v347 = vld [vmem:[%s333 + $0x9a] sm:$0xff]
      %v348 = vld [vmem:[%s333 + $0xaa] sm:$0xff]
      %v349 = vld [vmem:[%s333 + $0xb2] sm:$0xff]
      %v350 = vld [vmem:[%s333 + $0xc2] sm:$0xff]
      %v351 = vld [vmem:[%s333 + $0xca] sm:$0xff]
      %v352 = vld [vmem:[%s333 + $0xda] sm:$0xff]
      %v353 = vld [vmem:[%s333 + $0xe2] sm:$0xff]
      %v354 = vld [vmem:[%s333 + $0xf2] sm:$0xff]
      %v355 = vld [vmem:[%s333 + $0xfa] sm:$0xff]
      %v356 = vld [vmem:[%s333 + $0x10a] sm:$0xff]
      %v357 = vld [vmem:[%s333 + $0x112] sm:$0xff]
      %v358 = vld [vmem:[%s333 + $0x122] sm:$0xff]
      %v359 = vld [vmem:[%s333 + $0x12a] sm:$0xff]
      %v360 = vld [vmem:[%s333 + $0x13a] sm:$0xff]
      %v361 = vld [vmem:[%s333 + $0x142] sm:$0xff]
      %v362 = vld [vmem:[%s333 + $0x152] sm:$0xff]
      %v363 = vld [vmem:[%s333 + $0x15a] sm:$0xff]
      %v364 = vld [vmem:[%s333 + $0x16a] sm:$0xff]
      %v365 = vld [vmem:[%s333 + $0x172] sm:$0xff]
      %v366 = vld [vmem:[%s1] sm:$0xff]
      %v367 = vld [vmem:[%s2] sm:$0x1]
      %v369 = vlaneseq
      %v370 = vshrl.u32 %v369, 7
      %v371 = vsub.s32 0, %v370
      %v372 = vrot.slane %v367, %v371
      %vm374 = vcmask 64512
      %v376 = vsel %vm374, %v334, 0
      %v379 = vsel %vm374, %v335, 0
      %v382 = vsel %vm374, %v336, 0
      %v385 = vsel %vm374, %v337, 0
      %v388 = vsel %vm374, %v338, 0
      %v391 = vsel %vm374, %v339, 0
      %v394 = vsel %vm374, %v340, 0
      %v397 = vsel %vm374, %v341, 0
      %v400 = vsel %vm374, %v342, 0
      %v403 = vsel %vm374, %v343, 0
      %v406 = vsel %vm374, %v344, 0
      %v409 = vsel %vm374, %v345, 0
      %v412 = vsel %vm374, %v346, 0
      %v415 = vsel %vm374, %v347, 0
      %v418 = vsel %vm374, %v348, 0
      %v421 = vsel %vm374, %v349, 0
      %v424 = vsel %vm374, %v350, 0
      %v427 = vsel %vm374, %v351, 0
      %v430 = vsel %vm374, %v352, 0
      %v433 = vsel %vm374, %v353, 0
      %v436 = vsel %vm374, %v354, 0
      %v439 = vsel %vm374, %v355, 0
      %v442 = vsel %vm374, %v356, 0
      %v445 = vsel %vm374, %v357, 0
      %v448 = vsel %vm374, %v358, 0
      %v451 = vsel %vm374, %v359, 0
      %v454 = vsel %vm374, %v360, 0
      %v457 = vsel %vm374, %v361, 0
      %v460 = vsel %vm374, %v362, 0
      %v463 = vsel %vm374, %v363, 0
      %v466 = vsel %vm374, %v364, 0
      %v469 = vsel %vm374, %v365, 0
      %471 = vmatprep.subr.mxu0 0.0
      %472 = vmatpush1.msra.mxu0 0.0
      %473 = vmatprep.subr.mxu0 0.0
      %474 = vmatpush1.msra.mxu0 0.0
      %475 = vmatprep.subr.mxu0 0.0
      %476 = vmatpush1.msra.mxu0 0.0
      %477 = vmatprep.subr.mxu0 0.0
      %478 = vmatpush1.msra.mxu0 0.0
      %479 = vmatprep.subr.mxu0 0.0
      %480 = vmatpush1.msra.mxu0 0.0
      %481 = vmatprep.subr.mxu0 0.0
      %482 = vmatpush1.msra.mxu0 0.0
      %483 = vmatprep.subr.mxu0 0.0
      %484 = vmatpush1.msra.mxu0 0.0
      %485 = vmatprep.subr.mxu0 0.0
      %486 = vmatpush1.msra.mxu0 0.0
      %487 = vmatprep.subr.mxu0 0.0
      %488 = vmatpush1.msra.mxu0 0.0
      %489 = vmatprep.subr.mxu0 0.0
      %490 = vmatpush1.msra.mxu0 0.0
      %491 = vmatprep.subr.mxu0 0.0
      %492 = vmatpush1.msra.mxu0 0.0
      %493 = vmatprep.subr.mxu0 0.0
      %494 = vmatpush1.msra.mxu0 0.0
      %495 = vmatprep.subr.mxu0 0.0
      %496 = vmatpush1.msra.mxu0 0.0
      %497 = vmatprep.subr.mxu0 0.0
      %498 = vmatpush1.msra.mxu0 0.0
      %499 = vmatprep.subr.mxu0 0.0
      %500 = vmatpush1.msra.mxu0 0.0
      %501 = vmatprep.subr.mxu0 0.0
      %502 = vmatpush1.msra.mxu0 %v366
      %503 = vmatprep.subr.mxu0 0.0
      %504 = vmatpush2.msra.mxu0 0.0
      %505 = vmatprep.subr.mxu0 0.0
      %506 = vmatpush2.msra.mxu0 0.0
      %507 = vmatprep.subr.mxu0 0.0
      %508 = vmatpush2.msra.mxu0 0.0
      %509 = vmatprep.subr.mxu0 0.0
      %510 = vmatpush2.msra.mxu0 0.0
      %511 = vmatprep.subr.mxu0 0.0
      %512 = vmatpush2.msra.mxu0 0.0
      %513 = vmatprep.subr.mxu0 0.0
      %514 = vmatpush2.msra.mxu0 0.0
      %515 = vmatprep.subr.mxu0 0.0
      %516 = vmatpush2.msra.mxu0 0.0
      %517 = vmatprep.subr.mxu0 0.0
      %518 = vmatpush2.msra.mxu0 0.0
      %519 = vmatprep.subr.mxu0 0.0
      %520 = vmatpush2.msra.mxu0 0.0
      %521 = vmatprep.subr.mxu0 0.0
      %522 = vmatpush2.msra.mxu0 0.0
      %523 = vmatprep.subr.mxu0 0.0
      %524 = vmatpush2.msra.mxu0 0.0
      %525 = vmatprep.subr.mxu0 0.0
      %526 = vmatpush2.msra.mxu0 0.0
      %527 = vmatprep.subr.mxu0 0.0
      %528 = vmatpush2.msra.mxu0 0.0
      %529 = vmatprep.subr.mxu0 0.0
      %530 = vmatpush2.msra.mxu0 0.0
      %531 = vmatprep.subr.mxu0 0.0
      %532 = vmatpush2.msra.mxu0 0.0
      %533 = vmatprep.subr.mxu0 0.0
      %534 = vmatpush2.msra.mxu0 0.0
      %535 = vmatprep.mubr.f32.mxu0 0.0
      %536 = vmatmul.mubr.f32.gmra.mxu0 %v376
      %v537 = vpop.f32.mrf.mxu0
      %v538 = vadd.f32 %v372, %v537
      %v539 = vpop.f32.mrf.mxu0
      %540 = vmatprep.mubr.f32.mxu0 0.0
      %541 = vmatmul.mubr.f32.gmra.mxu0 %v379
      %v542 = vpop.f32.mrf.mxu0
      %v543 = vadd.f32 %v372, %v542
      %v544 = vpop.f32.mrf.mxu0
      %545 = vmatprep.mubr.f32.mxu0 0.0
      %546 = vmatmul.mubr.f32.gmra.mxu0 %v382
      %v547 = vpop.f32.mrf.mxu0
      %v548 = vadd.f32 %v372, %v547
      %v549 = vpop.f32.mrf.mxu0
      %550 = vmatprep.mubr.f32.mxu0 0.0
      %551 = vmatmul.mubr.f32.gmra.mxu0 %v385
      %v552 = vpop.f32.mrf.mxu0
      %v553 = vadd.f32 %v372, %v552
      %v554 = vpop.f32.mrf.mxu0
      %555 = vmatprep.mubr.f32.mxu0 0.0
      %556 = vmatmul.mubr.f32.gmra.mxu0 %v388
      %v557 = vpop.f32.mrf.mxu0
      %v558 = vadd.f32 %v372, %v557
      %v559 = vpop.f32.mrf.mxu0
      %560 = vmatprep.mubr.f32.mxu0 0.0
      %561 = vmatmul.mubr.f32.gmra.mxu0 %v391
      %v562 = vpop.f32.mrf.mxu0
      %v563 = vadd.f32 %v372, %v562
      %v564 = vpop.f32.mrf.mxu0
      %565 = vmatprep.mubr.f32.mxu0 0.0
      %566 = vmatmul.mubr.f32.gmra.mxu0 %v394
      %v567 = vpop.f32.mrf.mxu0
      %v568 = vadd.f32 %v372, %v567
      %v569 = vpop.f32.mrf.mxu0
      %570 = vmatprep.mubr.f32.mxu0 0.0
      %571 = vmatmul.mubr.f32.gmra.mxu0 %v397
      %v572 = vpop.f32.mrf.mxu0
      %v573 = vadd.f32 %v372, %v572
      %v574 = vpop.f32.mrf.mxu0
      %575 = vmatprep.mubr.f32.mxu0 0.0
      %576 = vmatmul.mubr.f32.gmra.mxu0 %v400
      %v577 = vpop.f32.mrf.mxu0
      %v578 = vadd.f32 %v372, %v577
      %v579 = vpop.f32.mrf.mxu0
      %580 = vmatprep.mubr.f32.mxu0 0.0
      %581 = vmatmul.mubr.f32.gmra.mxu0 %v403
      %v582 = vpop.f32.mrf.mxu0
      %v583 = vadd.f32 %v372, %v582
      %v584 = vpop.f32.mrf.mxu0
      %585 = vmatprep.mubr.f32.mxu0 0.0
      %586 = vmatmul.mubr.f32.gmra.mxu0 %v406
      %v587 = vpop.f32.mrf.mxu0
      %v588 = vadd.f32 %v372, %v587
      %v589 = vpop.f32.mrf.mxu0
      %590 = vmatprep.mubr.f32.mxu0 0.0
      %591 = vmatmul.mubr.f32.gmra.mxu0 %v409
      %v592 = vpop.f32.mrf.mxu0
      %v593 = vadd.f32 %v372, %v592
      %v594 = vpop.f32.mrf.mxu0
      %595 = vmatprep.mubr.f32.mxu0 0.0
      %596 = vmatmul.mubr.f32.gmra.mxu0 %v412
      %v597 = vpop.f32.mrf.mxu0
      %v598 = vadd.f32 %v372, %v597
      %v599 = vpop.f32.mrf.mxu0
      %600 = vmatprep.mubr.f32.mxu0 0.0
      %601 = vmatmul.mubr.f32.gmra.mxu0 %v415
      %v602 = vpop.f32.mrf.mxu0
      %v603 = vadd.f32 %v372, %v602
      %v604 = vpop.f32.mrf.mxu0
      %605 = vmatprep.mubr.f32.mxu0 0.0
      %606 = vmatmul.mubr.f32.gmra.mxu0 %v418
      %v607 = vpop.f32.mrf.mxu0
      %v608 = vadd.f32 %v372, %v607
      %v609 = vpop.f32.mrf.mxu0
      %610 = vmatprep.mubr.f32.mxu0 0.0
      %611 = vmatmul.mubr.f32.gmra.mxu0 %v421
      %v612 = vpop.f32.mrf.mxu0
      %v613 = vadd.f32 %v372, %v612
      %v614 = vpop.f32.mrf.mxu0
      %615 = vmatprep.mubr.f32.mxu0 0.0
      %616 = vmatmul.mubr.f32.gmra.mxu0 %v424
      %v617 = vpop.f32.mrf.mxu0
      %v618 = vadd.f32 %v372, %v617
      %v619 = vpop.f32.mrf.mxu0
      %620 = vmatprep.mubr.f32.mxu0 0.0
      %621 = vmatmul.mubr.f32.gmra.mxu0 %v427
      %v622 = vpop.f32.mrf.mxu0
      %v623 = vadd.f32 %v372, %v622
      %v624 = vpop.f32.mrf.mxu0
      %625 = vmatprep.mubr.f32.mxu0 0.0
      %626 = vmatmul.mubr.f32.gmra.mxu0 %v430
      %v627 = vpop.f32.mrf.mxu0
      %v628 = vadd.f32 %v372, %v627
      %v629 = vpop.f32.mrf.mxu0
      %630 = vmatprep.mubr.f32.mxu0 0.0
      %631 = vmatmul.mubr.f32.gmra.mxu0 %v433
      %v632 = vpop.f32.mrf.mxu0
      %v633 = vadd.f32 %v372, %v632
      %v634 = vpop.f32.mrf.mxu0
      %635 = vmatprep.mubr.f32.mxu0 0.0
      %636 = vmatmul.mubr.f32.gmra.mxu0 %v436
      %v637 = vpop.f32.mrf.mxu0
      %v638 = vadd.f32 %v372, %v637
      %v639 = vpop.f32.mrf.mxu0
      %640 = vmatprep.mubr.f32.mxu0 0.0
      %641 = vmatmul.mubr.f32.gmra.mxu0 %v439
      %v642 = vpop.f32.mrf.mxu0
      %v643 = vadd.f32 %v372, %v642
      %v644 = vpop.f32.mrf.mxu0
      %645 = vmatprep.mubr.f32.mxu0 0.0
      %646 = vmatmul.mubr.f32.gmra.mxu0 %v442
      %v647 = vpop.f32.mrf.mxu0
      %v648 = vadd.f32 %v372, %v647
      %v649 = vpop.f32.mrf.mxu0
      %650 = vmatprep.mubr.f32.mxu0 0.0
      %651 = vmatmul.mubr.f32.gmra.mxu0 %v445
      %v652 = vpop.f32.mrf.mxu0
      %v653 = vadd.f32 %v372, %v652
      %v654 = vpop.f32.mrf.mxu0
      %655 = vmatprep.mubr.f32.mxu0 0.0
      %656 = vmatmul.mubr.f32.gmra.mxu0 %v448
      %v657 = vpop.f32.mrf.mxu0
      %v658 = vadd.f32 %v372, %v657
      %v659 = vpop.f32.mrf.mxu0
      %660 = vmatprep.mubr.f32.mxu0 0.0
      %661 = vmatmul.mubr.f32.gmra.mxu0 %v451
      %v662 = vpop.f32.mrf.mxu0
      %v663 = vadd.f32 %v372, %v662
      %v664 = vpop.f32.mrf.mxu0
      %665 = vmatprep.mubr.f32.mxu0 0.0
      %666 = vmatmul.mubr.f32.gmra.mxu0 %v454
      %v667 = vpop.f32.mrf.mxu0
      %v668 = vadd.f32 %v372, %v667
      %v669 = vpop.f32.mrf.mxu0
      %670 = vmatprep.mubr.f32.mxu0 0.0
      %671 = vmatmul.mubr.f32.gmra.mxu0 %v457
      %v672 = vpop.f32.mrf.mxu0
      %v673 = vadd.f32 %v372, %v672
      %v674 = vpop.f32.mrf.mxu0
      %675 = vmatprep.mubr.f32.mxu0 0.0
      %676 = vmatmul.mubr.f32.gmra.mxu0 %v460
      %v677 = vpop.f32.mrf.mxu0
      %v678 = vadd.f32 %v372, %v677
      %v679 = vpop.f32.mrf.mxu0
      %680 = vmatprep.mubr.f32.mxu0 0.0
      %681 = vmatmul.mubr.f32.gmra.mxu0 %v463
      %v682 = vpop.f32.mrf.mxu0
      %v683 = vadd.f32 %v372, %v682
      %v684 = vpop.f32.mrf.mxu0
      %685 = vmatprep.mubr.f32.mxu0 0.0
      %686 = vmatmul.mubr.f32.gmra.mxu0 %v466
      %v687 = vpop.f32.mrf.mxu0
      %v688 = vadd.f32 %v372, %v687
      %v689 = vpop.f32.mrf.mxu0
      %690 = vmatprep.mubr.f32.mxu0 0.0
      %691 = vmatmul.mubr.f32.gmra.mxu0 %v469
      %v692 = vpop.f32.mrf.mxu0
      %v693 = vadd.f32 %v372, %v692
      %v694 = vpop.f32.mrf.mxu0
      %695 = vdwg.mxu0
      %s696 = scalar_lea.vmem %s3, 32
      %v697 = vld [vmem:[%s696] sm:$0xff]
      %s698 = scalar_lea.vmem %s5, 32
      %v699 = vld [vmem:[%s698] sm:$0xff]
      %s700 = scalar_lea.vmem %s327, 24
      %v701 = vld [vmem:[%s700 + $0x1] sm:$0xff]
      %v702 = vld [vmem:[%s700 + $0x9] sm:$0xff]
      %v703 = vld [vmem:[%s700 + $0x19] sm:$0xff]
      %v704 = vld [vmem:[%s700 + $0x21] sm:$0xff]
      %v705 = vld [vmem:[%s700 + $0x31] sm:$0xff]
      %v706 = vld [vmem:[%s700 + $0x39] sm:$0xff]
      %v707 = vld [vmem:[%s700 + $0x49] sm:$0xff]
      %v708 = vld [vmem:[%s700 + $0x51] sm:$0xff]
      %v709 = vld [vmem:[%s700 + $0x61] sm:$0xff]
      %v710 = vld [vmem:[%s700 + $0x69] sm:$0xff]
      %v711 = vld [vmem:[%s700 + $0x79] sm:$0xff]
      %v712 = vld [vmem:[%s700 + $0x81] sm:$0xff]
      %v713 = vld [vmem:[%s700 + $0x91] sm:$0xff]
      %v714 = vld [vmem:[%s700 + $0x99] sm:$0xff]
      %v715 = vld [vmem:[%s700 + $0xa9] sm:$0xff]
      %v716 = vld [vmem:[%s700 + $0xb1] sm:$0xff]
      %v717 = vld [vmem:[%s700 + $0xc1] sm:$0xff]
      %v718 = vld [vmem:[%s700 + $0xc9] sm:$0xff]
      %v719 = vld [vmem:[%s700 + $0xd9] sm:$0xff]
      %v720 = vld [vmem:[%s700 + $0xe1] sm:$0xff]
      %v721 = vld [vmem:[%s700 + $0xf1] sm:$0xff]
      %v722 = vld [vmem:[%s700 + $0xf9] sm:$0xff]
      %v723 = vld [vmem:[%s700 + $0x109] sm:$0xff]
      %v724 = vld [vmem:[%s700 + $0x111] sm:$0xff]
      %v725 = vld [vmem:[%s700 + $0x121] sm:$0xff]
      %v726 = vld [vmem:[%s700 + $0x129] sm:$0xff]
      %v727 = vld [vmem:[%s700 + $0x139] sm:$0xff]
      %v728 = vld [vmem:[%s700 + $0x141] sm:$0xff]
      %v729 = vld [vmem:[%s700 + $0x151] sm:$0xff]
      %v730 = vld [vmem:[%s700 + $0x159] sm:$0xff]
      %v731 = vld [vmem:[%s700 + $0x169] sm:$0xff]
      %v732 = vld [vmem:[%s700 + $0x171] sm:$0xff]
      %v733 = vld [vmem:[%s3] sm:$0xff]
      %v735 = vsel %vm374, %v701, 0
      %v738 = vsel %vm374, %v702, 0
      %v741 = vsel %vm374, %v703, 0
      %v744 = vsel %vm374, %v704, 0
      %v747 = vsel %vm374, %v705, 0
      %v750 = vsel %vm374, %v706, 0
      %v753 = vsel %vm374, %v707, 0
      %v756 = vsel %vm374, %v708, 0
      %v759 = vsel %vm374, %v709, 0
      %v762 = vsel %vm374, %v710, 0
      %v765 = vsel %vm374, %v711, 0
      %v768 = vsel %vm374, %v712, 0
      %v771 = vsel %vm374, %v713, 0
      %v774 = vsel %vm374, %v714, 0
      %v777 = vsel %vm374, %v715, 0
      %v780 = vsel %vm374, %v716, 0
      %v783 = vsel %vm374, %v717, 0
      %v786 = vsel %vm374, %v718, 0
      %v789 = vsel %vm374, %v719, 0
      %v792 = vsel %vm374, %v720, 0
      %v795 = vsel %vm374, %v721, 0
      %v798 = vsel %vm374, %v722, 0
      %v801 = vsel %vm374, %v723, 0
      %v804 = vsel %vm374, %v724, 0
      %v807 = vsel %vm374, %v725, 0
      %v810 = vsel %vm374, %v726, 0
      %v813 = vsel %vm374, %v727, 0
      %v816 = vsel %vm374, %v728, 0
      %v819 = vsel %vm374, %v729, 0
      %v822 = vsel %vm374, %v730, 0
      %v825 = vsel %vm374, %v731, 0
      %v828 = vsel %vm374, %v732, 0
      %830 = vmatprep.subr.mxu0 0.0
      %831 = vmatpush1.msra.mxu0 0.0
      %832 = vmatprep.subr.mxu0 0.0
      %833 = vmatpush1.msra.mxu0 0.0
      %834 = vmatprep.subr.mxu0 0.0
      %835 = vmatpush1.msra.mxu0 0.0
      %836 = vmatprep.subr.mxu0 0.0
      %837 = vmatpush1.msra.mxu0 0.0
      %838 = vmatprep.subr.mxu0 0.0
      %839 = vmatpush1.msra.mxu0 0.0
      %840 = vmatprep.subr.mxu0 0.0
      %841 = vmatpush1.msra.mxu0 0.0
      %842 = vmatprep.subr.mxu0 0.0
      %843 = vmatpush1.msra.mxu0 0.0
      %844 = vmatprep.subr.mxu0 0.0
      %845 = vmatpush1.msra.mxu0 0.0
      %846 = vmatprep.subr.mxu0 0.0
      %847 = vmatpush1.msra.mxu0 0.0
      %848 = vmatprep.subr.mxu0 0.0
      %849 = vmatpush1.msra.mxu0 0.0
      %850 = vmatprep.subr.mxu0 0.0
      %851 = vmatpush1.msra.mxu0 0.0
      %852 = vmatprep.subr.mxu0 0.0
      %853 = vmatpush1.msra.mxu0 0.0
      %854 = vmatprep.subr.mxu0 0.0
      %855 = vmatpush1.msra.mxu0 0.0
      %856 = vmatprep.subr.mxu0 0.0
      %857 = vmatpush1.msra.mxu0 0.0
      %858 = vmatprep.subr.mxu0 0.0
      %859 = vmatpush1.msra.mxu0 0.0
      %860 = vmatprep.subr.mxu0 0.0
      %861 = vmatpush1.msra.mxu0 %v733
      %862 = vmatprep.subr.mxu0 0.0
      %863 = vmatpush2.msra.mxu0 0.0
      %864 = vmatprep.subr.mxu0 0.0
      %865 = vmatpush2.msra.mxu0 0.0
      %866 = vmatprep.subr.mxu0 0.0
      %867 = vmatpush2.msra.mxu0 0.0
      %868 = vmatprep.subr.mxu0 0.0
      %869 = vmatpush2.msra.mxu0 0.0
      %870 = vmatprep.subr.mxu0 0.0
      %871 = vmatpush2.msra.mxu0 0.0
      %872 = vmatprep.subr.mxu0 0.0
      %873 = vmatpush2.msra.mxu0 0.0
      %874 = vmatprep.subr.mxu0 0.0
      %875 = vmatpush2.msra.mxu0 0.0
      %876 = vmatprep.subr.mxu0 0.0
      %877 = vmatpush2.msra.mxu0 0.0
      %878 = vmatprep.subr.mxu0 0.0
      %879 = vmatpush2.msra.mxu0 0.0
      %880 = vmatprep.subr.mxu0 0.0
      %881 = vmatpush2.msra.mxu0 0.0
      %882 = vmatprep.subr.mxu0 0.0
      %883 = vmatpush2.msra.mxu0 0.0
      %884 = vmatprep.subr.mxu0 0.0
      %885 = vmatpush2.msra.mxu0 0.0
      %886 = vmatprep.subr.mxu0 0.0
      %887 = vmatpush2.msra.mxu0 0.0
      %888 = vmatprep.subr.mxu0 0.0
      %889 = vmatpush2.msra.mxu0 0.0
      %890 = vmatprep.subr.mxu0 0.0
      %891 = vmatpush2.msra.mxu0 0.0
      %892 = vmatprep.subr.mxu0 0.0
      %893 = vmatpush2.msra.mxu0 0.0
      %894 = vmatprep.mubr.f32.mxu0 0.0
      %895 = vmatmul.mubr.f32.gmra.mxu0 %v735
      %v896 = vpop.f32.mrf.mxu0
      %v897 = vadd.f32 0.0, %v896
      %v898 = vpop.f32.mrf.mxu0
      %899 = vmatprep.mubr.f32.mxu0 0.0
      %900 = vmatmul.mubr.f32.gmra.mxu0 %v738
      %v901 = vpop.f32.mrf.mxu0
      %v902 = vadd.f32 0.0, %v901
      %v903 = vpop.f32.mrf.mxu0
      %904 = vmatprep.mubr.f32.mxu0 0.0
      %905 = vmatmul.mubr.f32.gmra.mxu0 %v741
      %v906 = vpop.f32.mrf.mxu0
      %v907 = vadd.f32 0.0, %v906
      %v908 = vpop.f32.mrf.mxu0
      %909 = vmatprep.mubr.f32.mxu0 0.0
      %910 = vmatmul.mubr.f32.gmra.mxu0 %v744
      %v911 = vpop.f32.mrf.mxu0
      %v912 = vadd.f32 0.0, %v911
      %v913 = vpop.f32.mrf.mxu0
      %914 = vmatprep.mubr.f32.mxu0 0.0
      %915 = vmatmul.mubr.f32.gmra.mxu0 %v747
      %v916 = vpop.f32.mrf.mxu0
      %v917 = vadd.f32 0.0, %v916
      %v918 = vpop.f32.mrf.mxu0
      %919 = vmatprep.mubr.f32.mxu0 0.0
      %920 = vmatmul.mubr.f32.gmra.mxu0 %v750
      %v921 = vpop.f32.mrf.mxu0
      %v922 = vadd.f32 0.0, %v921
      %v923 = vpop.f32.mrf.mxu0
      %924 = vmatprep.mubr.f32.mxu0 0.0
      %925 = vmatmul.mubr.f32.gmra.mxu0 %v753
      %v926 = vpop.f32.mrf.mxu0
      %v927 = vadd.f32 0.0, %v926
      %v928 = vpop.f32.mrf.mxu0
      %929 = vmatprep.mubr.f32.mxu0 0.0
      %930 = vmatmul.mubr.f32.gmra.mxu0 %v756
      %v931 = vpop.f32.mrf.mxu0
      %v932 = vadd.f32 0.0, %v931
      %v933 = vpop.f32.mrf.mxu0
      %934 = vmatprep.mubr.f32.mxu0 0.0
      %935 = vmatmul.mubr.f32.gmra.mxu0 %v759
      %v936 = vpop.f32.mrf.mxu0
      %v937 = vadd.f32 0.0, %v936
      %v938 = vpop.f32.mrf.mxu0
      %939 = vmatprep.mubr.f32.mxu0 0.0
      %940 = vmatmul.mubr.f32.gmra.mxu0 %v762
      %v941 = vpop.f32.mrf.mxu0
      %v942 = vadd.f32 0.0, %v941
      %v943 = vpop.f32.mrf.mxu0
      %944 = vmatprep.mubr.f32.mxu0 0.0
      %945 = vmatmul.mubr.f32.gmra.mxu0 %v765
      %v946 = vpop.f32.mrf.mxu0
      %v947 = vadd.f32 0.0, %v946
      %v948 = vpop.f32.mrf.mxu0
      %949 = vmatprep.mubr.f32.mxu0 0.0
      %950 = vmatmul.mubr.f32.gmra.mxu0 %v768
      %v951 = vpop.f32.mrf.mxu0
      %v952 = vadd.f32 0.0, %v951
      %v953 = vpop.f32.mrf.mxu0
      %954 = vmatprep.mubr.f32.mxu0 0.0
      %955 = vmatmul.mubr.f32.gmra.mxu0 %v771
      %v956 = vpop.f32.mrf.mxu0
      %v957 = vadd.f32 0.0, %v956
      %v958 = vpop.f32.mrf.mxu0
      %959 = vmatprep.mubr.f32.mxu0 0.0
      %960 = vmatmul.mubr.f32.gmra.mxu0 %v774
      %v961 = vpop.f32.mrf.mxu0
      %v962 = vadd.f32 0.0, %v961
      %v963 = vpop.f32.mrf.mxu0
      %964 = vmatprep.mubr.f32.mxu0 0.0
      %965 = vmatmul.mubr.f32.gmra.mxu0 %v777
      %v966 = vpop.f32.mrf.mxu0
      %v967 = vadd.f32 0.0, %v966
      %v968 = vpop.f32.mrf.mxu0
      %969 = vmatprep.mubr.f32.mxu0 0.0
      %970 = vmatmul.mubr.f32.gmra.mxu0 %v780
      %v971 = vpop.f32.mrf.mxu0
      %v972 = vadd.f32 0.0, %v971
      %v973 = vpop.f32.mrf.mxu0
      %974 = vmatprep.mubr.f32.mxu0 0.0
      %975 = vmatmul.mubr.f32.gmra.mxu0 %v783
      %v976 = vpop.f32.mrf.mxu0
      %v977 = vadd.f32 0.0, %v976
      %v978 = vpop.f32.mrf.mxu0
      %979 = vmatprep.mubr.f32.mxu0 0.0
      %980 = vmatmul.mubr.f32.gmra.mxu0 %v786
      %v981 = vpop.f32.mrf.mxu0
      %v982 = vadd.f32 0.0, %v981
      %v983 = vpop.f32.mrf.mxu0
      %984 = vmatprep.mubr.f32.mxu0 0.0
      %985 = vmatmul.mubr.f32.gmra.mxu0 %v789
      %v986 = vpop.f32.mrf.mxu0
      %v987 = vadd.f32 0.0, %v986
      %v988 = vpop.f32.mrf.mxu0
      %989 = vmatprep.mubr.f32.mxu0 0.0
      %990 = vmatmul.mubr.f32.gmra.mxu0 %v792
      %v991 = vpop.f32.mrf.mxu0
      %v992 = vadd.f32 0.0, %v991
      %v993 = vpop.f32.mrf.mxu0
      %994 = vmatprep.mubr.f32.mxu0 0.0
      %995 = vmatmul.mubr.f32.gmra.mxu0 %v795
      %v996 = vpop.f32.mrf.mxu0
      %v997 = vadd.f32 0.0, %v996
      %v998 = vpop.f32.mrf.mxu0
      %999 = vmatprep.mubr.f32.mxu0 0.0
      %1000 = vmatmul.mubr.f32.gmra.mxu0 %v798
      %v1001 = vpop.f32.mrf.mxu0
      %v1002 = vadd.f32 0.0, %v1001
      %v1003 = vpop.f32.mrf.mxu0
      %1004 = vmatprep.mubr.f32.mxu0 0.0
      %1005 = vmatmul.mubr.f32.gmra.mxu0 %v801
      %v1006 = vpop.f32.mrf.mxu0
      %v1007 = vadd.f32 0.0, %v1006
      %v1008 = vpop.f32.mrf.mxu0
      %1009 = vmatprep.mubr.f32.mxu0 0.0
      %1010 = vmatmul.mubr.f32.gmra.mxu0 %v804
      %v1011 = vpop.f32.mrf.mxu0
      %v1012 = vadd.f32 0.0, %v1011
      %v1013 = vpop.f32.mrf.mxu0
      %1014 = vmatprep.mubr.f32.mxu0 0.0
      %1015 = vmatmul.mubr.f32.gmra.mxu0 %v807
      %v1016 = vpop.f32.mrf.mxu0
      %v1017 = vadd.f32 0.0, %v1016
      %v1018 = vpop.f32.mrf.mxu0
      %1019 = vmatprep.mubr.f32.mxu0 0.0
      %1020 = vmatmul.mubr.f32.gmra.mxu0 %v810
      %v1021 = vpop.f32.mrf.mxu0
      %v1022 = vadd.f32 0.0, %v1021
      %v1023 = vpop.f32.mrf.mxu0
      %1024 = vmatprep.mubr.f32.mxu0 0.0
      %1025 = vmatmul.mubr.f32.gmra.mxu0 %v813
      %v1026 = vpop.f32.mrf.mxu0
      %v1027 = vadd.f32 0.0, %v1026
      %v1028 = vpop.f32.mrf.mxu0
      %1029 = vmatprep.mubr.f32.mxu0 0.0
      %1030 = vmatmul.mubr.f32.gmra.mxu0 %v816
      %v1031 = vpop.f32.mrf.mxu0
      %v1032 = vadd.f32 0.0, %v1031
      %v1033 = vpop.f32.mrf.mxu0
      %1034 = vmatprep.mubr.f32.mxu0 0.0
      %1035 = vmatmul.mubr.f32.gmra.mxu0 %v819
      %v1036 = vpop.f32.mrf.mxu0
      %v1037 = vadd.f32 0.0, %v1036
      %v1038 = vpop.f32.mrf.mxu0
      %1039 = vmatprep.mubr.f32.mxu0 0.0
      %1040 = vmatmul.mubr.f32.gmra.mxu0 %v822
      %v1041 = vpop.f32.mrf.mxu0
      %v1042 = vadd.f32 0.0, %v1041
      %v1043 = vpop.f32.mrf.mxu0
      %1044 = vmatprep.mubr.f32.mxu0 0.0
      %1045 = vmatmul.mubr.f32.gmra.mxu0 %v825
      %v1046 = vpop.f32.mrf.mxu0
      %v1047 = vadd.f32 0.0, %v1046
      %v1048 = vpop.f32.mrf.mxu0
      %1049 = vmatprep.mubr.f32.mxu0 0.0
      %1050 = vmatmul.mubr.f32.gmra.mxu0 %v828
      %v1051 = vpop.f32.mrf.mxu0
      %v1052 = vadd.f32 0.0, %v1051
      %v1053 = vpop.f32.mrf.mxu0
      %1054 = vdwg.mxu0
      %1055 = vmatprep.subr.mxu0 0.0
      %1056 = vmatpush1.msra.mxu0 0.0
      %1057 = vmatprep.subr.mxu0 0.0
      %1058 = vmatpush1.msra.mxu0 0.0
      %1059 = vmatprep.subr.mxu0 0.0
      %1060 = vmatpush1.msra.mxu0 0.0
      %1061 = vmatprep.subr.mxu0 0.0
      %1062 = vmatpush1.msra.mxu0 0.0
      %1063 = vmatprep.subr.mxu0 0.0
      %1064 = vmatpush1.msra.mxu0 0.0
      %1065 = vmatprep.subr.mxu0 0.0
      %1066 = vmatpush1.msra.mxu0 0.0
      %1067 = vmatprep.subr.mxu0 0.0
      %1068 = vmatpush1.msra.mxu0 0.0
      %1069 = vmatprep.subr.mxu0 0.0
      %1070 = vmatpush1.msra.mxu0 0.0
      %1071 = vmatprep.subr.mxu0 0.0
      %1072 = vmatpush1.msra.mxu0 0.0
      %1073 = vmatprep.subr.mxu0 0.0
      %1074 = vmatpush1.msra.mxu0 0.0
      %1075 = vmatprep.subr.mxu0 0.0
      %1076 = vmatpush1.msra.mxu0 0.0
      %1077 = vmatprep.subr.mxu0 0.0
      %1078 = vmatpush1.msra.mxu0 0.0
      %1079 = vmatprep.subr.mxu0 0.0
      %1080 = vmatpush1.msra.mxu0 0.0
      %1081 = vmatprep.subr.mxu0 0.0
      %1082 = vmatpush1.msra.mxu0 0.0
      %1083 = vmatprep.subr.mxu0 0.0
      %1084 = vmatpush1.msra.mxu0 0.0
      %1085 = vmatprep.subr.mxu0 0.0
      %1086 = vmatpush1.msra.mxu0 %v697
      %1087 = vmatprep.subr.mxu0 0.0
      %1088 = vmatpush2.msra.mxu0 0.0
      %1089 = vmatprep.subr.mxu0 0.0
      %1090 = vmatpush2.msra.mxu0 0.0
      %1091 = vmatprep.subr.mxu0 0.0
      %1092 = vmatpush2.msra.mxu0 0.0
      %1093 = vmatprep.subr.mxu0 0.0
      %1094 = vmatpush2.msra.mxu0 0.0
      %1095 = vmatprep.subr.mxu0 0.0
      %1096 = vmatpush2.msra.mxu0 0.0
      %1097 = vmatprep.subr.mxu0 0.0
      %1098 = vmatpush2.msra.mxu0 0.0
      %1099 = vmatprep.subr.mxu0 0.0
      %1100 = vmatpush2.msra.mxu0 0.0
      %1101 = vmatprep.subr.mxu0 0.0
      %1102 = vmatpush2.msra.mxu0 0.0
      %1103 = vmatprep.subr.mxu0 0.0
      %1104 = vmatpush2.msra.mxu0 0.0
      %1105 = vmatprep.subr.mxu0 0.0
      %1106 = vmatpush2.msra.mxu0 0.0
      %1107 = vmatprep.subr.mxu0 0.0
      %1108 = vmatpush2.msra.mxu0 0.0
      %1109 = vmatprep.subr.mxu0 0.0
      %1110 = vmatpush2.msra.mxu0 0.0
      %1111 = vmatprep.subr.mxu0 0.0
      %1112 = vmatpush2.msra.mxu0 0.0
      %1113 = vmatprep.subr.mxu0 0.0
      %1114 = vmatpush2.msra.mxu0 0.0
      %1115 = vmatprep.subr.mxu0 0.0
      %1116 = vmatpush2.msra.mxu0 0.0
      %1117 = vmatprep.subr.mxu0 0.0
      %1118 = vmatpush2.msra.mxu0 0.0
      %1119 = vmatprep.mubr.f32.mxu0 0.0
      %1120 = vmatmul.mubr.f32.gmra.mxu0 %v376
      %v1121 = vpop.f32.mrf.mxu0
      %v1122 = vadd.f32 %v897, %v1121
      %v1123 = vpop.f32.mrf.mxu0
      %1124 = vmatprep.mubr.f32.mxu0 0.0
      %1125 = vmatmul.mubr.f32.gmra.mxu0 %v379
      %v1126 = vpop.f32.mrf.mxu0
      %v1127 = vadd.f32 %v902, %v1126
      %v1128 = vpop.f32.mrf.mxu0
      %1129 = vmatprep.mubr.f32.mxu0 0.0
      %1130 = vmatmul.mubr.f32.gmra.mxu0 %v382
      %v1131 = vpop.f32.mrf.mxu0
      %v1132 = vadd.f32 %v907, %v1131
      %v1133 = vpop.f32.mrf.mxu0
      %1134 = vmatprep.mubr.f32.mxu0 0.0
      %1135 = vmatmul.mubr.f32.gmra.mxu0 %v385
      %v1136 = vpop.f32.mrf.mxu0
      %v1137 = vadd.f32 %v912, %v1136
      %v1138 = vpop.f32.mrf.mxu0
      %1139 = vmatprep.mubr.f32.mxu0 0.0
      %1140 = vmatmul.mubr.f32.gmra.mxu0 %v388
      %v1141 = vpop.f32.mrf.mxu0
      %v1142 = vadd.f32 %v917, %v1141
      %v1143 = vpop.f32.mrf.mxu0
      %1144 = vmatprep.mubr.f32.mxu0 0.0
      %1145 = vmatmul.mubr.f32.gmra.mxu0 %v391
      %v1146 = vpop.f32.mrf.mxu0
      %v1147 = vadd.f32 %v922, %v1146
      %v1148 = vpop.f32.mrf.mxu0
      %1149 = vmatprep.mubr.f32.mxu0 0.0
      %1150 = vmatmul.mubr.f32.gmra.mxu0 %v394
      %v1151 = vpop.f32.mrf.mxu0
      %v1152 = vadd.f32 %v927, %v1151
      %v1153 = vpop.f32.mrf.mxu0
      %1154 = vmatprep.mubr.f32.mxu0 0.0
      %1155 = vmatmul.mubr.f32.gmra.mxu0 %v397
      %v1156 = vpop.f32.mrf.mxu0
      %v1157 = vadd.f32 %v932, %v1156
      %v1158 = vpop.f32.mrf.mxu0
      %1159 = vmatprep.mubr.f32.mxu0 0.0
      %1160 = vmatmul.mubr.f32.gmra.mxu0 %v400
      %v1161 = vpop.f32.mrf.mxu0
      %v1162 = vadd.f32 %v937, %v1161
      %v1163 = vpop.f32.mrf.mxu0
      %1164 = vmatprep.mubr.f32.mxu0 0.0
      %1165 = vmatmul.mubr.f32.gmra.mxu0 %v403
      %v1166 = vpop.f32.mrf.mxu0
      %v1167 = vadd.f32 %v942, %v1166
      %v1168 = vpop.f32.mrf.mxu0
      %1169 = vmatprep.mubr.f32.mxu0 0.0
      %1170 = vmatmul.mubr.f32.gmra.mxu0 %v406
      %v1171 = vpop.f32.mrf.mxu0
      %v1172 = vadd.f32 %v947, %v1171
      %v1173 = vpop.f32.mrf.mxu0
      %1174 = vmatprep.mubr.f32.mxu0 0.0
      %1175 = vmatmul.mubr.f32.gmra.mxu0 %v409
      %v1176 = vpop.f32.mrf.mxu0
      %v1177 = vadd.f32 %v952, %v1176
      %v1178 = vpop.f32.mrf.mxu0
      %1179 = vmatprep.mubr.f32.mxu0 0.0
      %1180 = vmatmul.mubr.f32.gmra.mxu0 %v412
      %v1181 = vpop.f32.mrf.mxu0
      %v1182 = vadd.f32 %v957, %v1181
      %v1183 = vpop.f32.mrf.mxu0
      %1184 = vmatprep.mubr.f32.mxu0 0.0
      %1185 = vmatmul.mubr.f32.gmra.mxu0 %v415
      %v1186 = vpop.f32.mrf.mxu0
      %v1187 = vadd.f32 %v962, %v1186
      %v1188 = vpop.f32.mrf.mxu0
      %1189 = vmatprep.mubr.f32.mxu0 0.0
      %1190 = vmatmul.mubr.f32.gmra.mxu0 %v418
      %v1191 = vpop.f32.mrf.mxu0
      %v1192 = vadd.f32 %v967, %v1191
      %v1193 = vpop.f32.mrf.mxu0
      %1194 = vmatprep.mubr.f32.mxu0 0.0
      %1195 = vmatmul.mubr.f32.gmra.mxu0 %v421
      %v1196 = vpop.f32.mrf.mxu0
      %v1197 = vadd.f32 %v972, %v1196
      %v1198 = vpop.f32.mrf.mxu0
      %1199 = vmatprep.mubr.f32.mxu0 0.0
      %1200 = vmatmul.mubr.f32.gmra.mxu0 %v424
      %v1201 = vpop.f32.mrf.mxu0
      %v1202 = vadd.f32 %v977, %v1201
      %v1203 = vpop.f32.mrf.mxu0
      %1204 = vmatprep.mubr.f32.mxu0 0.0
      %1205 = vmatmul.mubr.f32.gmra.mxu0 %v427
      %v1206 = vpop.f32.mrf.mxu0
      %v1207 = vadd.f32 %v982, %v1206
      %v1208 = vpop.f32.mrf.mxu0
      %1209 = vmatprep.mubr.f32.mxu0 0.0
      %1210 = vmatmul.mubr.f32.gmra.mxu0 %v430
      %v1211 = vpop.f32.mrf.mxu0
      %v1212 = vadd.f32 %v987, %v1211
      %v1213 = vpop.f32.mrf.mxu0
      %1214 = vmatprep.mubr.f32.mxu0 0.0
      %1215 = vmatmul.mubr.f32.gmra.mxu0 %v433
      %v1216 = vpop.f32.mrf.mxu0
      %v1217 = vadd.f32 %v992, %v1216
      %v1218 = vpop.f32.mrf.mxu0
      %1219 = vmatprep.mubr.f32.mxu0 0.0
      %1220 = vmatmul.mubr.f32.gmra.mxu0 %v436
      %v1221 = vpop.f32.mrf.mxu0
      %v1222 = vadd.f32 %v997, %v1221
      %v1223 = vpop.f32.mrf.mxu0
      %1224 = vmatprep.mubr.f32.mxu0 0.0
      %1225 = vmatmul.mubr.f32.gmra.mxu0 %v439
      %v1226 = vpop.f32.mrf.mxu0
      %v1227 = vadd.f32 %v1002, %v1226
      %v1228 = vpop.f32.mrf.mxu0
      %1229 = vmatprep.mubr.f32.mxu0 0.0
      %1230 = vmatmul.mubr.f32.gmra.mxu0 %v442
      %v1231 = vpop.f32.mrf.mxu0
      %v1232 = vadd.f32 %v1007, %v1231
      %v1233 = vpop.f32.mrf.mxu0
      %1234 = vmatprep.mubr.f32.mxu0 0.0
      %1235 = vmatmul.mubr.f32.gmra.mxu0 %v445
      %v1236 = vpop.f32.mrf.mxu0
      %v1237 = vadd.f32 %v1012, %v1236
      %v1238 = vpop.f32.mrf.mxu0
      %1239 = vmatprep.mubr.f32.mxu0 0.0
      %1240 = vmatmul.mubr.f32.gmra.mxu0 %v448
      %v1241 = vpop.f32.mrf.mxu0
      %v1242 = vadd.f32 %v1017, %v1241
      %v1243 = vpop.f32.mrf.mxu0
      %1244 = vmatprep.mubr.f32.mxu0 0.0
      %1245 = vmatmul.mubr.f32.gmra.mxu0 %v451
      %v1246 = vpop.f32.mrf.mxu0
      %v1247 = vadd.f32 %v1022, %v1246
      %v1248 = vpop.f32.mrf.mxu0
      %1249 = vmatprep.mubr.f32.mxu0 0.0
      %1250 = vmatmul.mubr.f32.gmra.mxu0 %v454
      %v1251 = vpop.f32.mrf.mxu0
      %v1252 = vadd.f32 %v1027, %v1251
      %v1253 = vpop.f32.mrf.mxu0
      %1254 = vmatprep.mubr.f32.mxu0 0.0
      %1255 = vmatmul.mubr.f32.gmra.mxu0 %v457
      %v1256 = vpop.f32.mrf.mxu0
      %v1257 = vadd.f32 %v1032, %v1256
      %v1258 = vpop.f32.mrf.mxu0
      %1259 = vmatprep.mubr.f32.mxu0 0.0
      %1260 = vmatmul.mubr.f32.gmra.mxu0 %v460
      %v1261 = vpop.f32.mrf.mxu0
      %v1262 = vadd.f32 %v1037, %v1261
      %v1263 = vpop.f32.mrf.mxu0
      %1264 = vmatprep.mubr.f32.mxu0 0.0
      %1265 = vmatmul.mubr.f32.gmra.mxu0 %v463
      %v1266 = vpop.f32.mrf.mxu0
      %v1267 = vadd.f32 %v1042, %v1266
      %v1268 = vpop.f32.mrf.mxu0
      %1269 = vmatprep.mubr.f32.mxu0 0.0
      %1270 = vmatmul.mubr.f32.gmra.mxu0 %v466
      %v1271 = vpop.f32.mrf.mxu0
      %v1272 = vadd.f32 %v1047, %v1271
      %v1273 = vpop.f32.mrf.mxu0
      %1274 = vmatprep.mubr.f32.mxu0 0.0
      %1275 = vmatmul.mubr.f32.gmra.mxu0 %v469
      %v1276 = vpop.f32.mrf.mxu0
      %v1277 = vadd.f32 %v1052, %v1276
      %v1278 = vpop.f32.mrf.mxu0
      %1279 = vdwg.mxu0
      %v1280 = vld [vmem:[%s327] sm:$0xff]
      %v1281 = vld [vmem:[%s327 + $0x8] sm:$0xff]
      %v1282 = vld [vmem:[%s327 + $0x18] sm:$0xff]
      %v1283 = vld [vmem:[%s327 + $0x20] sm:$0xff]
      %v1284 = vld [vmem:[%s327 + $0x30] sm:$0xff]
      %v1285 = vld [vmem:[%s327 + $0x38] sm:$0xff]
      %v1286 = vld [vmem:[%s327 + $0x48] sm:$0xff]
      %v1287 = vld [vmem:[%s327 + $0x50] sm:$0xff]
      %v1288 = vld [vmem:[%s327 + $0x60] sm:$0xff]
      %v1289 = vld [vmem:[%s327 + $0x68] sm:$0xff]
      %v1290 = vld [vmem:[%s327 + $0x78] sm:$0xff]
      %v1291 = vld [vmem:[%s327 + $0x80] sm:$0xff]
      %v1292 = vld [vmem:[%s327 + $0x90] sm:$0xff]
      %v1293 = vld [vmem:[%s327 + $0x98] sm:$0xff]
      %v1294 = vld [vmem:[%s327 + $0xa8] sm:$0xff]
      %v1295 = vld [vmem:[%s327 + $0xb0] sm:$0xff]
      %v1296 = vld [vmem:[%s327 + $0xc0] sm:$0xff]
      %v1297 = vld [vmem:[%s327 + $0xc8] sm:$0xff]
      %v1298 = vld [vmem:[%s327 + $0xd8] sm:$0xff]
      %v1299 = vld [vmem:[%s327 + $0xe0] sm:$0xff]
      %v1300 = vld [vmem:[%s327 + $0xf0] sm:$0xff]
      %v1301 = vld [vmem:[%s327 + $0xf8] sm:$0xff]
      %v1302 = vld [vmem:[%s327 + $0x108] sm:$0xff]
      %v1303 = vld [vmem:[%s327 + $0x110] sm:$0xff]
      %v1304 = vld [vmem:[%s327 + $0x120] sm:$0xff]
      %v1305 = vld [vmem:[%s327 + $0x128] sm:$0xff]
      %v1306 = vld [vmem:[%s327 + $0x138] sm:$0xff]
      %v1307 = vld [vmem:[%s327 + $0x140] sm:$0xff]
      %v1308 = vld [vmem:[%s327 + $0x150] sm:$0xff]
      %v1309 = vld [vmem:[%s327 + $0x158] sm:$0xff]
      %v1310 = vld [vmem:[%s327 + $0x168] sm:$0xff]
      %v1311 = vld [vmem:[%s327 + $0x170] sm:$0xff]
      %v1312 = vld [vmem:[%s5] sm:$0xff]
      %v1314 = vsel %vm374, %v1280, 0
      %v1317 = vsel %vm374, %v1281, 0
      %v1320 = vsel %vm374, %v1282, 0
      %v1323 = vsel %vm374, %v1283, 0
      %v1326 = vsel %vm374, %v1284, 0
      %v1329 = vsel %vm374, %v1285, 0
      %v1332 = vsel %vm374, %v1286, 0
      %v1335 = vsel %vm374, %v1287, 0
      %v1338 = vsel %vm374, %v1288, 0
      %v1341 = vsel %vm374, %v1289, 0
      %v1344 = vsel %vm374, %v1290, 0
      %v1347 = vsel %vm374, %v1291, 0
      %v1350 = vsel %vm374, %v1292, 0
      %v1353 = vsel %vm374, %v1293, 0
      %v1356 = vsel %vm374, %v1294, 0
      %v1359 = vsel %vm374, %v1295, 0
      %v1362 = vsel %vm374, %v1296, 0
      %v1365 = vsel %vm374, %v1297, 0
      %v1368 = vsel %vm374, %v1298, 0
      %v1371 = vsel %vm374, %v1299, 0
      %v1374 = vsel %vm374, %v1300, 0
      %v1377 = vsel %vm374, %v1301, 0
      %v1380 = vsel %vm374, %v1302, 0
      %v1383 = vsel %vm374, %v1303, 0
      %v1386 = vsel %vm374, %v1304, 0
      %v1389 = vsel %vm374, %v1305, 0
      %v1392 = vsel %vm374, %v1306, 0
      %v1395 = vsel %vm374, %v1307, 0
      %v1398 = vsel %vm374, %v1308, 0
      %v1401 = vsel %vm374, %v1309, 0
      %v1404 = vsel %vm374, %v1310, 0
      %v1407 = vsel %vm374, %v1311, 0
      %1409 = vmatprep.subr.mxu0 0.0
      %1410 = vmatpush1.msra.mxu0 0.0
      %1411 = vmatprep.subr.mxu0 0.0
      %1412 = vmatpush1.msra.mxu0 0.0
      %1413 = vmatprep.subr.mxu0 0.0
      %1414 = vmatpush1.msra.mxu0 0.0
      %1415 = vmatprep.subr.mxu0 0.0
      %1416 = vmatpush1.msra.mxu0 0.0
      %1417 = vmatprep.subr.mxu0 0.0
      %1418 = vmatpush1.msra.mxu0 0.0
      %1419 = vmatprep.subr.mxu0 0.0
      %1420 = vmatpush1.msra.mxu0 0.0
      %1421 = vmatprep.subr.mxu0 0.0
      %1422 = vmatpush1.msra.mxu0 0.0
      %1423 = vmatprep.subr.mxu0 0.0
      %1424 = vmatpush1.msra.mxu0 0.0
      %1425 = vmatprep.subr.mxu0 0.0
      %1426 = vmatpush1.msra.mxu0 0.0
      %1427 = vmatprep.subr.mxu0 0.0
      %1428 = vmatpush1.msra.mxu0 0.0
      %1429 = vmatprep.subr.mxu0 0.0
      %1430 = vmatpush1.msra.mxu0 0.0
      %1431 = vmatprep.subr.mxu0 0.0
      %1432 = vmatpush1.msra.mxu0 0.0
      %1433 = vmatprep.subr.mxu0 0.0
      %1434 = vmatpush1.msra.mxu0 0.0
      %1435 = vmatprep.subr.mxu0 0.0
      %1436 = vmatpush1.msra.mxu0 0.0
      %1437 = vmatprep.subr.mxu0 0.0
      %1438 = vmatpush1.msra.mxu0 0.0
      %1439 = vmatprep.subr.mxu0 0.0
      %1440 = vmatpush1.msra.mxu0 %v1312
      %1441 = vmatprep.subr.mxu0 0.0
      %1442 = vmatpush2.msra.mxu0 0.0
      %1443 = vmatprep.subr.mxu0 0.0
      %1444 = vmatpush2.msra.mxu0 0.0
      %1445 = vmatprep.subr.mxu0 0.0
      %1446 = vmatpush2.msra.mxu0 0.0
      %1447 = vmatprep.subr.mxu0 0.0
      %1448 = vmatpush2.msra.mxu0 0.0
      %1449 = vmatprep.subr.mxu0 0.0
      %1450 = vmatpush2.msra.mxu0 0.0
      %1451 = vmatprep.subr.mxu0 0.0
      %1452 = vmatpush2.msra.mxu0 0.0
      %1453 = vmatprep.subr.mxu0 0.0
      %1454 = vmatpush2.msra.mxu0 0.0
      %1455 = vmatprep.subr.mxu0 0.0
      %1456 = vmatpush2.msra.mxu0 0.0
      %1457 = vmatprep.subr.mxu0 0.0
      %1458 = vmatpush2.msra.mxu0 0.0
      %1459 = vmatprep.subr.mxu0 0.0
      %1460 = vmatpush2.msra.mxu0 0.0
      %1461 = vmatprep.subr.mxu0 0.0
      %1462 = vmatpush2.msra.mxu0 0.0
      %1463 = vmatprep.subr.mxu0 0.0
      %1464 = vmatpush2.msra.mxu0 0.0
      %1465 = vmatprep.subr.mxu0 0.0
      %1466 = vmatpush2.msra.mxu0 0.0
      %1467 = vmatprep.subr.mxu0 0.0
      %1468 = vmatpush2.msra.mxu0 0.0
      %1469 = vmatprep.subr.mxu0 0.0
      %1470 = vmatpush2.msra.mxu0 0.0
      %1471 = vmatprep.subr.mxu0 0.0
      %1472 = vmatpush2.msra.mxu0 0.0
      %1473 = vmatprep.mubr.f32.mxu0 0.0
      %1474 = vmatmul.mubr.f32.gmra.mxu0 %v1314
      %v1475 = vpop.f32.mrf.mxu0
      %v1476 = vadd.f32 0.0, %v1475
      %v1477 = vpop.f32.mrf.mxu0
      %1478 = vmatprep.mubr.f32.mxu0 0.0
      %1479 = vmatmul.mubr.f32.gmra.mxu0 %v1317
      %v1480 = vpop.f32.mrf.mxu0
      %v1481 = vadd.f32 0.0, %v1480
      %v1482 = vpop.f32.mrf.mxu0
      %1483 = vmatprep.mubr.f32.mxu0 0.0
      %1484 = vmatmul.mubr.f32.gmra.mxu0 %v1320
      %v1485 = vpop.f32.mrf.mxu0
      %v1486 = vadd.f32 0.0, %v1485
      %v1487 = vpop.f32.mrf.mxu0
      %1488 = vmatprep.mubr.f32.mxu0 0.0
      %1489 = vmatmul.mubr.f32.gmra.mxu0 %v1323
      %v1490 = vpop.f32.mrf.mxu0
      %v1491 = vadd.f32 0.0, %v1490
      %v1492 = vpop.f32.mrf.mxu0
      %1493 = vmatprep.mubr.f32.mxu0 0.0
      %1494 = vmatmul.mubr.f32.gmra.mxu0 %v1326
      %v1495 = vpop.f32.mrf.mxu0
      %v1496 = vadd.f32 0.0, %v1495
      %v1497 = vpop.f32.mrf.mxu0
      %1498 = vmatprep.mubr.f32.mxu0 0.0
      %1499 = vmatmul.mubr.f32.gmra.mxu0 %v1329
      %v1500 = vpop.f32.mrf.mxu0
      %v1501 = vadd.f32 0.0, %v1500
      %v1502 = vpop.f32.mrf.mxu0
      %1503 = vmatprep.mubr.f32.mxu0 0.0
      %1504 = vmatmul.mubr.f32.gmra.mxu0 %v1332
      %v1505 = vpop.f32.mrf.mxu0
      %v1506 = vadd.f32 0.0, %v1505
      %v1507 = vpop.f32.mrf.mxu0
      %1508 = vmatprep.mubr.f32.mxu0 0.0
      %1509 = vmatmul.mubr.f32.gmra.mxu0 %v1335
      %v1510 = vpop.f32.mrf.mxu0
      %v1511 = vadd.f32 0.0, %v1510
      %v1512 = vpop.f32.mrf.mxu0
      %1513 = vmatprep.mubr.f32.mxu0 0.0
      %1514 = vmatmul.mubr.f32.gmra.mxu0 %v1338
      %v1515 = vpop.f32.mrf.mxu0
      %v1516 = vadd.f32 0.0, %v1515
      %v1517 = vpop.f32.mrf.mxu0
      %1518 = vmatprep.mubr.f32.mxu0 0.0
      %1519 = vmatmul.mubr.f32.gmra.mxu0 %v1341
      %v1520 = vpop.f32.mrf.mxu0
      %v1521 = vadd.f32 0.0, %v1520
      %v1522 = vpop.f32.mrf.mxu0
      %1523 = vmatprep.mubr.f32.mxu0 0.0
      %1524 = vmatmul.mubr.f32.gmra.mxu0 %v1344
      %v1525 = vpop.f32.mrf.mxu0
      %v1526 = vadd.f32 0.0, %v1525
      %v1527 = vpop.f32.mrf.mxu0
      %1528 = vmatprep.mubr.f32.mxu0 0.0
      %1529 = vmatmul.mubr.f32.gmra.mxu0 %v1347
      %v1530 = vpop.f32.mrf.mxu0
      %v1531 = vadd.f32 0.0, %v1530
      %v1532 = vpop.f32.mrf.mxu0
      %1533 = vmatprep.mubr.f32.mxu0 0.0
      %1534 = vmatmul.mubr.f32.gmra.mxu0 %v1350
      %v1535 = vpop.f32.mrf.mxu0
      %v1536 = vadd.f32 0.0, %v1535
      %v1537 = vpop.f32.mrf.mxu0
      %1538 = vmatprep.mubr.f32.mxu0 0.0
      %1539 = vmatmul.mubr.f32.gmra.mxu0 %v1353
      %v1540 = vpop.f32.mrf.mxu0
      %v1541 = vadd.f32 0.0, %v1540
      %v1542 = vpop.f32.mrf.mxu0
      %1543 = vmatprep.mubr.f32.mxu0 0.0
      %1544 = vmatmul.mubr.f32.gmra.mxu0 %v1356
      %v1545 = vpop.f32.mrf.mxu0
      %v1546 = vadd.f32 0.0, %v1545
      %v1547 = vpop.f32.mrf.mxu0
      %1548 = vmatprep.mubr.f32.mxu0 0.0
      %1549 = vmatmul.mubr.f32.gmra.mxu0 %v1359
      %v1550 = vpop.f32.mrf.mxu0
      %v1551 = vadd.f32 0.0, %v1550
      %v1552 = vpop.f32.mrf.mxu0
      %1553 = vmatprep.mubr.f32.mxu0 0.0
      %1554 = vmatmul.mubr.f32.gmra.mxu0 %v1362
      %v1555 = vpop.f32.mrf.mxu0
      %v1556 = vadd.f32 0.0, %v1555
      %v1557 = vpop.f32.mrf.mxu0
      %1558 = vmatprep.mubr.f32.mxu0 0.0
      %1559 = vmatmul.mubr.f32.gmra.mxu0 %v1365
      %v1560 = vpop.f32.mrf.mxu0
      %v1561 = vadd.f32 0.0, %v1560
      %v1562 = vpop.f32.mrf.mxu0
      %1563 = vmatprep.mubr.f32.mxu0 0.0
      %1564 = vmatmul.mubr.f32.gmra.mxu0 %v1368
      %v1565 = vpop.f32.mrf.mxu0
      %v1566 = vadd.f32 0.0, %v1565
      %v1567 = vpop.f32.mrf.mxu0
      %1568 = vmatprep.mubr.f32.mxu0 0.0
      %1569 = vmatmul.mubr.f32.gmra.mxu0 %v1371
      %v1570 = vpop.f32.mrf.mxu0
      %v1571 = vadd.f32 0.0, %v1570
      %v1572 = vpop.f32.mrf.mxu0
      %1573 = vmatprep.mubr.f32.mxu0 0.0
      %1574 = vmatmul.mubr.f32.gmra.mxu0 %v1374
      %v1575 = vpop.f32.mrf.mxu0
      %v1576 = vadd.f32 0.0, %v1575
      %v1577 = vpop.f32.mrf.mxu0
      %1578 = vmatprep.mubr.f32.mxu0 0.0
      %1579 = vmatmul.mubr.f32.gmra.mxu0 %v1377
      %v1580 = vpop.f32.mrf.mxu0
      %v1581 = vadd.f32 0.0, %v1580
      %v1582 = vpop.f32.mrf.mxu0
      %1583 = vmatprep.mubr.f32.mxu0 0.0
      %1584 = vmatmul.mubr.f32.gmra.mxu0 %v1380
      %v1585 = vpop.f32.mrf.mxu0
      %v1586 = vadd.f32 0.0, %v1585
      %v1587 = vpop.f32.mrf.mxu0
      %1588 = vmatprep.mubr.f32.mxu0 0.0
      %1589 = vmatmul.mubr.f32.gmra.mxu0 %v1383
      %v1590 = vpop.f32.mrf.mxu0
      %v1591 = vadd.f32 0.0, %v1590
      %v1592 = vpop.f32.mrf.mxu0
      %1593 = vmatprep.mubr.f32.mxu0 0.0
      %1594 = vmatmul.mubr.f32.gmra.mxu0 %v1386
      %v1595 = vpop.f32.mrf.mxu0
      %v1596 = vadd.f32 0.0, %v1595
      %v1597 = vpop.f32.mrf.mxu0
      %1598 = vmatprep.mubr.f32.mxu0 0.0
      %1599 = vmatmul.mubr.f32.gmra.mxu0 %v1389
      %v1600 = vpop.f32.mrf.mxu0
      %v1601 = vadd.f32 0.0, %v1600
      %v1602 = vpop.f32.mrf.mxu0
      %1603 = vmatprep.mubr.f32.mxu0 0.0
      %1604 = vmatmul.mubr.f32.gmra.mxu0 %v1392
      %v1605 = vpop.f32.mrf.mxu0
      %v1606 = vadd.f32 0.0, %v1605
      %v1607 = vpop.f32.mrf.mxu0
      %1608 = vmatprep.mubr.f32.mxu0 0.0
      %1609 = vmatmul.mubr.f32.gmra.mxu0 %v1395
      %v1610 = vpop.f32.mrf.mxu0
      %v1611 = vadd.f32 0.0, %v1610
      %v1612 = vpop.f32.mrf.mxu0
      %1613 = vmatprep.mubr.f32.mxu0 0.0
      %1614 = vmatmul.mubr.f32.gmra.mxu0 %v1398
      %v1615 = vpop.f32.mrf.mxu0
      %v1616 = vadd.f32 0.0, %v1615
      %v1617 = vpop.f32.mrf.mxu0
      %1618 = vmatprep.mubr.f32.mxu0 0.0
      %1619 = vmatmul.mubr.f32.gmra.mxu0 %v1401
      %v1620 = vpop.f32.mrf.mxu0
      %v1621 = vadd.f32 0.0, %v1620
      %v1622 = vpop.f32.mrf.mxu0
      %1623 = vmatprep.mubr.f32.mxu0 0.0
      %1624 = vmatmul.mubr.f32.gmra.mxu0 %v1404
      %v1625 = vpop.f32.mrf.mxu0
      %v1626 = vadd.f32 0.0, %v1625
      %v1627 = vpop.f32.mrf.mxu0
      %1628 = vmatprep.mubr.f32.mxu0 0.0
      %1629 = vmatmul.mubr.f32.gmra.mxu0 %v1407
      %v1630 = vpop.f32.mrf.mxu0
      %v1631 = vadd.f32 0.0, %v1630
      %v1632 = vpop.f32.mrf.mxu0
      %1633 = vdwg.mxu0
      %1634 = vmatprep.subr.mxu0 0.0
      %1635 = vmatpush1.msra.mxu0 0.0
      %1636 = vmatprep.subr.mxu0 0.0
      %1637 = vmatpush1.msra.mxu0 0.0
      %1638 = vmatprep.subr.mxu0 0.0
      %1639 = vmatpush1.msra.mxu0 0.0
      %1640 = vmatprep.subr.mxu0 0.0
      %1641 = vmatpush1.msra.mxu0 0.0
      %1642 = vmatprep.subr.mxu0 0.0
      %1643 = vmatpush1.msra.mxu0 0.0
      %1644 = vmatprep.subr.mxu0 0.0
      %1645 = vmatpush1.msra.mxu0 0.0
      %1646 = vmatprep.subr.mxu0 0.0
      %1647 = vmatpush1.msra.mxu0 0.0
      %1648 = vmatprep.subr.mxu0 0.0
      %1649 = vmatpush1.msra.mxu0 0.0
      %1650 = vmatprep.subr.mxu0 0.0
      %1651 = vmatpush1.msra.mxu0 0.0
      %1652 = vmatprep.subr.mxu0 0.0
      %1653 = vmatpush1.msra.mxu0 0.0
      %1654 = vmatprep.subr.mxu0 0.0
      %1655 = vmatpush1.msra.mxu0 0.0
      %1656 = vmatprep.subr.mxu0 0.0
      %1657 = vmatpush1.msra.mxu0 0.0
      %1658 = vmatprep.subr.mxu0 0.0
      %1659 = vmatpush1.msra.mxu0 0.0
      %1660 = vmatprep.subr.mxu0 0.0
      %1661 = vmatpush1.msra.mxu0 0.0
      %1662 = vmatprep.subr.mxu0 0.0
      %1663 = vmatpush1.msra.mxu0 0.0
      %1664 = vmatprep.subr.mxu0 0.0
      %1665 = vmatpush1.msra.mxu0 %v699
      %1666 = vmatprep.subr.mxu0 0.0
      %1667 = vmatpush2.msra.mxu0 0.0
      %1668 = vmatprep.subr.mxu0 0.0
      %1669 = vmatpush2.msra.mxu0 0.0
      %1670 = vmatprep.subr.mxu0 0.0
      %1671 = vmatpush2.msra.mxu0 0.0
      %1672 = vmatprep.subr.mxu0 0.0
      %1673 = vmatpush2.msra.mxu0 0.0
      %1674 = vmatprep.subr.mxu0 0.0
      %1675 = vmatpush2.msra.mxu0 0.0
      %1676 = vmatprep.subr.mxu0 0.0
      %1677 = vmatpush2.msra.mxu0 0.0
      %1678 = vmatprep.subr.mxu0 0.0
      %1679 = vmatpush2.msra.mxu0 0.0
      %1680 = vmatprep.subr.mxu0 0.0
      %1681 = vmatpush2.msra.mxu0 0.0
      %1682 = vmatprep.subr.mxu0 0.0
      %1683 = vmatpush2.msra.mxu0 0.0
      %1684 = vmatprep.subr.mxu0 0.0
      %1685 = vmatpush2.msra.mxu0 0.0
      %1686 = vmatprep.subr.mxu0 0.0
      %1687 = vmatpush2.msra.mxu0 0.0
      %1688 = vmatprep.subr.mxu0 0.0
      %1689 = vmatpush2.msra.mxu0 0.0
      %1690 = vmatprep.subr.mxu0 0.0
      %1691 = vmatpush2.msra.mxu0 0.0
      %1692 = vmatprep.subr.mxu0 0.0
      %1693 = vmatpush2.msra.mxu0 0.0
      %1694 = vmatprep.subr.mxu0 0.0
      %1695 = vmatpush2.msra.mxu0 0.0
      %1696 = vmatprep.subr.mxu0 0.0
      %1697 = vmatpush2.msra.mxu0 0.0
      %1698 = vmatprep.mubr.f32.mxu0 0.0
      %1699 = vmatmul.mubr.f32.gmra.mxu0 %v376
      %v1700 = vpop.f32.mrf.mxu0
      %v1701 = vadd.f32 %v1476, %v1700
      %v1702 = vpop.f32.mrf.mxu0
      %1703 = vmatprep.mubr.f32.mxu0 0.0
      %1704 = vmatmul.mubr.f32.gmra.mxu0 %v379
      %v1705 = vpop.f32.mrf.mxu0
      %v1706 = vadd.f32 %v1481, %v1705
      %v1707 = vpop.f32.mrf.mxu0
      %1708 = vmatprep.mubr.f32.mxu0 0.0
      %1709 = vmatmul.mubr.f32.gmra.mxu0 %v382
      %v1710 = vpop.f32.mrf.mxu0
      %v1711 = vadd.f32 %v1486, %v1710
      %v1712 = vpop.f32.mrf.mxu0
      %1713 = vmatprep.mubr.f32.mxu0 0.0
      %1714 = vmatmul.mubr.f32.gmra.mxu0 %v385
      %v1715 = vpop.f32.mrf.mxu0
      %v1716 = vadd.f32 %v1491, %v1715
      %v1717 = vpop.f32.mrf.mxu0
      %1718 = vmatprep.mubr.f32.mxu0 0.0
      %1719 = vmatmul.mubr.f32.gmra.mxu0 %v388
      %v1720 = vpop.f32.mrf.mxu0
      %v1721 = vadd.f32 %v1496, %v1720
      %v1722 = vpop.f32.mrf.mxu0
      %1723 = vmatprep.mubr.f32.mxu0 0.0
      %1724 = vmatmul.mubr.f32.gmra.mxu0 %v391
      %v1725 = vpop.f32.mrf.mxu0
      %v1726 = vadd.f32 %v1501, %v1725
      %v1727 = vpop.f32.mrf.mxu0
      %1728 = vmatprep.mubr.f32.mxu0 0.0
      %1729 = vmatmul.mubr.f32.gmra.mxu0 %v394
      %v1730 = vpop.f32.mrf.mxu0
      %v1731 = vadd.f32 %v1506, %v1730
      %v1732 = vpop.f32.mrf.mxu0
      %1733 = vmatprep.mubr.f32.mxu0 0.0
      %1734 = vmatmul.mubr.f32.gmra.mxu0 %v397
      %v1735 = vpop.f32.mrf.mxu0
      %v1736 = vadd.f32 %v1511, %v1735
      %v1737 = vpop.f32.mrf.mxu0
      %1738 = vmatprep.mubr.f32.mxu0 0.0
      %1739 = vmatmul.mubr.f32.gmra.mxu0 %v400
      %v1740 = vpop.f32.mrf.mxu0
      %v1741 = vadd.f32 %v1516, %v1740
      %v1742 = vpop.f32.mrf.mxu0
      %1743 = vmatprep.mubr.f32.mxu0 0.0
      %1744 = vmatmul.mubr.f32.gmra.mxu0 %v403
      %v1745 = vpop.f32.mrf.mxu0
      %v1746 = vadd.f32 %v1521, %v1745
      %v1747 = vpop.f32.mrf.mxu0
      %1748 = vmatprep.mubr.f32.mxu0 0.0
      %1749 = vmatmul.mubr.f32.gmra.mxu0 %v406
      %v1750 = vpop.f32.mrf.mxu0
      %v1751 = vadd.f32 %v1526, %v1750
      %v1752 = vpop.f32.mrf.mxu0
      %1753 = vmatprep.mubr.f32.mxu0 0.0
      %1754 = vmatmul.mubr.f32.gmra.mxu0 %v409
      %v1755 = vpop.f32.mrf.mxu0
      %v1756 = vadd.f32 %v1531, %v1755
      %v1757 = vpop.f32.mrf.mxu0
      %1758 = vmatprep.mubr.f32.mxu0 0.0
      %1759 = vmatmul.mubr.f32.gmra.mxu0 %v412
      %v1760 = vpop.f32.mrf.mxu0
      %v1761 = vadd.f32 %v1536, %v1760
      %v1762 = vpop.f32.mrf.mxu0
      %1763 = vmatprep.mubr.f32.mxu0 0.0
      %1764 = vmatmul.mubr.f32.gmra.mxu0 %v415
      %v1765 = vpop.f32.mrf.mxu0
      %v1766 = vadd.f32 %v1541, %v1765
      %v1767 = vpop.f32.mrf.mxu0
      %1768 = vmatprep.mubr.f32.mxu0 0.0
      %1769 = vmatmul.mubr.f32.gmra.mxu0 %v418
      %v1770 = vpop.f32.mrf.mxu0
      %v1771 = vadd.f32 %v1546, %v1770
      %v1772 = vpop.f32.mrf.mxu0
      %1773 = vmatprep.mubr.f32.mxu0 0.0
      %1774 = vmatmul.mubr.f32.gmra.mxu0 %v421
      %v1775 = vpop.f32.mrf.mxu0
      %v1776 = vadd.f32 %v1551, %v1775
      %v1777 = vpop.f32.mrf.mxu0
      %1778 = vmatprep.mubr.f32.mxu0 0.0
      %1779 = vmatmul.mubr.f32.gmra.mxu0 %v424
      %v1780 = vpop.f32.mrf.mxu0
      %v1781 = vadd.f32 %v1556, %v1780
      %v1782 = vpop.f32.mrf.mxu0
      %1783 = vmatprep.mubr.f32.mxu0 0.0
      %1784 = vmatmul.mubr.f32.gmra.mxu0 %v427
      %v1785 = vpop.f32.mrf.mxu0
      %v1786 = vadd.f32 %v1561, %v1785
      %v1787 = vpop.f32.mrf.mxu0
      %1788 = vmatprep.mubr.f32.mxu0 0.0
      %1789 = vmatmul.mubr.f32.gmra.mxu0 %v430
      %v1790 = vpop.f32.mrf.mxu0
      %v1791 = vadd.f32 %v1566, %v1790
      %v1792 = vpop.f32.mrf.mxu0
      %1793 = vmatprep.mubr.f32.mxu0 0.0
      %1794 = vmatmul.mubr.f32.gmra.mxu0 %v433
      %v1795 = vpop.f32.mrf.mxu0
      %v1796 = vadd.f32 %v1571, %v1795
      %v1797 = vpop.f32.mrf.mxu0
      %1798 = vmatprep.mubr.f32.mxu0 0.0
      %1799 = vmatmul.mubr.f32.gmra.mxu0 %v436
      %v1800 = vpop.f32.mrf.mxu0
      %v1801 = vadd.f32 %v1576, %v1800
      %v1802 = vpop.f32.mrf.mxu0
      %1803 = vmatprep.mubr.f32.mxu0 0.0
      %1804 = vmatmul.mubr.f32.gmra.mxu0 %v439
      %v1805 = vpop.f32.mrf.mxu0
      %v1806 = vadd.f32 %v1581, %v1805
      %v1807 = vpop.f32.mrf.mxu0
      %1808 = vmatprep.mubr.f32.mxu0 0.0
      %1809 = vmatmul.mubr.f32.gmra.mxu0 %v442
      %v1810 = vpop.f32.mrf.mxu0
      %v1811 = vadd.f32 %v1586, %v1810
      %v1812 = vpop.f32.mrf.mxu0
      %1813 = vmatprep.mubr.f32.mxu0 0.0
      %1814 = vmatmul.mubr.f32.gmra.mxu0 %v445
      %v1815 = vpop.f32.mrf.mxu0
      %v1816 = vadd.f32 %v1591, %v1815
      %v1817 = vpop.f32.mrf.mxu0
      %1818 = vmatprep.mubr.f32.mxu0 0.0
      %1819 = vmatmul.mubr.f32.gmra.mxu0 %v448
      %v1820 = vpop.f32.mrf.mxu0
      %v1821 = vadd.f32 %v1596, %v1820
      %v1822 = vpop.f32.mrf.mxu0
      %1823 = vmatprep.mubr.f32.mxu0 0.0
      %1824 = vmatmul.mubr.f32.gmra.mxu0 %v451
      %v1825 = vpop.f32.mrf.mxu0
      %v1826 = vadd.f32 %v1601, %v1825
      %v1827 = vpop.f32.mrf.mxu0
      %1828 = vmatprep.mubr.f32.mxu0 0.0
      %1829 = vmatmul.mubr.f32.gmra.mxu0 %v454
      %v1830 = vpop.f32.mrf.mxu0
      %v1831 = vadd.f32 %v1606, %v1830
      %v1832 = vpop.f32.mrf.mxu0
      %1833 = vmatprep.mubr.f32.mxu0 0.0
      %1834 = vmatmul.mubr.f32.gmra.mxu0 %v457
      %v1835 = vpop.f32.mrf.mxu0
      %v1836 = vadd.f32 %v1611, %v1835
      %v1837 = vpop.f32.mrf.mxu0
      %1838 = vmatprep.mubr.f32.mxu0 0.0
      %1839 = vmatmul.mubr.f32.gmra.mxu0 %v460
      %v1840 = vpop.f32.mrf.mxu0
      %v1841 = vadd.f32 %v1616, %v1840
      %v1842 = vpop.f32.mrf.mxu0
      %1843 = vmatprep.mubr.f32.mxu0 0.0
      %1844 = vmatmul.mubr.f32.gmra.mxu0 %v463
      %v1845 = vpop.f32.mrf.mxu0
      %v1846 = vadd.f32 %v1621, %v1845
      %v1847 = vpop.f32.mrf.mxu0
      %1848 = vmatprep.mubr.f32.mxu0 0.0
      %1849 = vmatmul.mubr.f32.gmra.mxu0 %v466
      %v1850 = vpop.f32.mrf.mxu0
      %v1851 = vadd.f32 %v1626, %v1850
      %v1852 = vpop.f32.mrf.mxu0
      %1853 = vmatprep.mubr.f32.mxu0 0.0
      %1854 = vmatmul.mubr.f32.gmra.mxu0 %v469
      %v1855 = vpop.f32.mrf.mxu0
      %v1856 = vadd.f32 %v1631, %v1855
      %v1857 = vpop.f32.mrf.mxu0
      %1858 = vdwg.mxu0
      %v1859 = vld [vmem:[%s700 + $0x2] sm:$0xff]
      %v1860 = vld [vmem:[%s700 + $0xa] sm:$0xff]
      %v1861 = vld [vmem:[%s700 + $0x1a] sm:$0xff]
      %v1862 = vld [vmem:[%s700 + $0x22] sm:$0xff]
      %v1863 = vld [vmem:[%s700 + $0x32] sm:$0xff]
      %v1864 = vld [vmem:[%s700 + $0x3a] sm:$0xff]
      %v1865 = vld [vmem:[%s700 + $0x4a] sm:$0xff]
      %v1866 = vld [vmem:[%s700 + $0x52] sm:$0xff]
      %v1867 = vld [vmem:[%s700 + $0x62] sm:$0xff]
      %v1868 = vld [vmem:[%s700 + $0x6a] sm:$0xff]
      %v1869 = vld [vmem:[%s700 + $0x7a] sm:$0xff]
      %v1870 = vld [vmem:[%s700 + $0x82] sm:$0xff]
      %v1871 = vld [vmem:[%s700 + $0x92] sm:$0xff]
      %v1872 = vld [vmem:[%s700 + $0x9a] sm:$0xff]
      %v1873 = vld [vmem:[%s700 + $0xaa] sm:$0xff]
      %v1874 = vld [vmem:[%s700 + $0xb2] sm:$0xff]
      %v1875 = vld [vmem:[%s700 + $0xc2] sm:$0xff]
      %v1876 = vld [vmem:[%s700 + $0xca] sm:$0xff]
      %v1877 = vld [vmem:[%s700 + $0xda] sm:$0xff]
      %v1878 = vld [vmem:[%s700 + $0xe2] sm:$0xff]
      %v1879 = vld [vmem:[%s700 + $0xf2] sm:$0xff]
      %v1880 = vld [vmem:[%s700 + $0xfa] sm:$0xff]
      %v1881 = vld [vmem:[%s700 + $0x10a] sm:$0xff]
      %v1882 = vld [vmem:[%s700 + $0x112] sm:$0xff]
      %v1883 = vld [vmem:[%s700 + $0x122] sm:$0xff]
      %v1884 = vld [vmem:[%s700 + $0x12a] sm:$0xff]
      %v1885 = vld [vmem:[%s700 + $0x13a] sm:$0xff]
      %v1886 = vld [vmem:[%s700 + $0x142] sm:$0xff]
      %v1887 = vld [vmem:[%s700 + $0x152] sm:$0xff]
      %v1888 = vld [vmem:[%s700 + $0x15a] sm:$0xff]
      %v1889 = vld [vmem:[%s700 + $0x16a] sm:$0xff]
      %v1890 = vld [vmem:[%s700 + $0x172] sm:$0xff]
      %s1891 = scalar_lea.vmem %s3, 8
      %v1892 = vld [vmem:[%s1891] sm:$0xff]
      %v1894 = vsel %vm374, %v1859, 0
      %v1897 = vsel %vm374, %v1860, 0
      %v1900 = vsel %vm374, %v1861, 0
      %v1903 = vsel %vm374, %v1862, 0
      %v1906 = vsel %vm374, %v1863, 0
      %v1909 = vsel %vm374, %v1864, 0
      %v1912 = vsel %vm374, %v1865, 0
      %v1915 = vsel %vm374, %v1866, 0
      %v1918 = vsel %vm374, %v1867, 0
      %v1921 = vsel %vm374, %v1868, 0
      %v1924 = vsel %vm374, %v1869, 0
      %v1927 = vsel %vm374, %v1870, 0
      %v1930 = vsel %vm374, %v1871, 0
      %v1933 = vsel %vm374, %v1872, 0
      %v1936 = vsel %vm374, %v1873, 0
      %v1939 = vsel %vm374, %v1874, 0
      %v1942 = vsel %vm374, %v1875, 0
      %v1945 = vsel %vm374, %v1876, 0
      %v1948 = vsel %vm374, %v1877, 0
      %v1951 = vsel %vm374, %v1878, 0
      %v1954 = vsel %vm374, %v1879, 0
      %v1957 = vsel %vm374, %v1880, 0
      %v1960 = vsel %vm374, %v1881, 0
      %v1963 = vsel %vm374, %v1882, 0
      %v1966 = vsel %vm374, %v1883, 0
      %v1969 = vsel %vm374, %v1884, 0
      %v1972 = vsel %vm374, %v1885, 0
      %v1975 = vsel %vm374, %v1886, 0
      %v1978 = vsel %vm374, %v1887, 0
      %v1981 = vsel %vm374, %v1888, 0
      %v1984 = vsel %vm374, %v1889, 0
      %v1987 = vsel %vm374, %v1890, 0
      %1989 = vmatprep.subr.mxu0 0.0
      %1990 = vmatpush1.msra.mxu0 0.0
      %1991 = vmatprep.subr.mxu0 0.0
      %1992 = vmatpush1.msra.mxu0 0.0
      %1993 = vmatprep.subr.mxu0 0.0
      %1994 = vmatpush1.msra.mxu0 0.0
      %1995 = vmatprep.subr.mxu0 0.0
      %1996 = vmatpush1.msra.mxu0 0.0
      %1997 = vmatprep.subr.mxu0 0.0
      %1998 = vmatpush1.msra.mxu0 0.0
      %1999 = vmatprep.subr.mxu0 0.0
      %2000 = vmatpush1.msra.mxu0 0.0
      %2001 = vmatprep.subr.mxu0 0.0
      %2002 = vmatpush1.msra.mxu0 0.0
      %2003 = vmatprep.subr.mxu0 0.0
      %2004 = vmatpush1.msra.mxu0 0.0
      %2005 = vmatprep.subr.mxu0 0.0
      %2006 = vmatpush1.msra.mxu0 0.0
      %2007 = vmatprep.subr.mxu0 0.0
      %2008 = vmatpush1.msra.mxu0 0.0
      %2009 = vmatprep.subr.mxu0 0.0
      %2010 = vmatpush1.msra.mxu0 0.0
      %2011 = vmatprep.subr.mxu0 0.0
      %2012 = vmatpush1.msra.mxu0 0.0
      %2013 = vmatprep.subr.mxu0 0.0
      %2014 = vmatpush1.msra.mxu0 0.0
      %2015 = vmatprep.subr.mxu0 0.0
      %2016 = vmatpush1.msra.mxu0 0.0
      %2017 = vmatprep.subr.mxu0 0.0
      %2018 = vmatpush1.msra.mxu0 0.0
      %2019 = vmatprep.subr.mxu0 0.0
      %2020 = vmatpush1.msra.mxu0 %v1892
      %2021 = vmatprep.subr.mxu0 0.0
      %2022 = vmatpush2.msra.mxu0 0.0
      %2023 = vmatprep.subr.mxu0 0.0
      %2024 = vmatpush2.msra.mxu0 0.0
      %2025 = vmatprep.subr.mxu0 0.0
      %2026 = vmatpush2.msra.mxu0 0.0
      %2027 = vmatprep.subr.mxu0 0.0
      %2028 = vmatpush2.msra.mxu0 0.0
      %2029 = vmatprep.subr.mxu0 0.0
      %2030 = vmatpush2.msra.mxu0 0.0
      %2031 = vmatprep.subr.mxu0 0.0
      %2032 = vmatpush2.msra.mxu0 0.0
      %2033 = vmatprep.subr.mxu0 0.0
      %2034 = vmatpush2.msra.mxu0 0.0
      %2035 = vmatprep.subr.mxu0 0.0
      %2036 = vmatpush2.msra.mxu0 0.0
      %2037 = vmatprep.subr.mxu0 0.0
      %2038 = vmatpush2.msra.mxu0 0.0
      %2039 = vmatprep.subr.mxu0 0.0
      %2040 = vmatpush2.msra.mxu0 0.0
      %2041 = vmatprep.subr.mxu0 0.0
      %2042 = vmatpush2.msra.mxu0 0.0
      %2043 = vmatprep.subr.mxu0 0.0
      %2044 = vmatpush2.msra.mxu0 0.0
      %2045 = vmatprep.subr.mxu0 0.0
      %2046 = vmatpush2.msra.mxu0 0.0
      %2047 = vmatprep.subr.mxu0 0.0
      %2048 = vmatpush2.msra.mxu0 0.0
      %2049 = vmatprep.subr.mxu0 0.0
      %2050 = vmatpush2.msra.mxu0 0.0
      %2051 = vmatprep.subr.mxu0 0.0
      %2052 = vmatpush2.msra.mxu0 0.0
      %2053 = vmatprep.mubr.f32.mxu0 0.0
      %2054 = vmatmul.mubr.f32.gmra.mxu0 %v1894
      %v2055 = vpop.f32.mrf.mxu0
      %v2056 = vadd.f32 0.0, %v2055
      %v2057 = vpop.f32.mrf.mxu0
      %2058 = vmatprep.mubr.f32.mxu0 0.0
      %2059 = vmatmul.mubr.f32.gmra.mxu0 %v1897
      %v2060 = vpop.f32.mrf.mxu0
      %v2061 = vadd.f32 0.0, %v2060
      %v2062 = vpop.f32.mrf.mxu0
      %2063 = vmatprep.mubr.f32.mxu0 0.0
      %2064 = vmatmul.mubr.f32.gmra.mxu0 %v1900
      %v2065 = vpop.f32.mrf.mxu0
      %v2066 = vadd.f32 0.0, %v2065
      %v2067 = vpop.f32.mrf.mxu0
      %2068 = vmatprep.mubr.f32.mxu0 0.0
      %2069 = vmatmul.mubr.f32.gmra.mxu0 %v1903
      %v2070 = vpop.f32.mrf.mxu0
      %v2071 = vadd.f32 0.0, %v2070
      %v2072 = vpop.f32.mrf.mxu0
      %2073 = vmatprep.mubr.f32.mxu0 0.0
      %2074 = vmatmul.mubr.f32.gmra.mxu0 %v1906
      %v2075 = vpop.f32.mrf.mxu0
      %v2076 = vadd.f32 0.0, %v2075
      %v2077 = vpop.f32.mrf.mxu0
      %2078 = vmatprep.mubr.f32.mxu0 0.0
      %2079 = vmatmul.mubr.f32.gmra.mxu0 %v1909
      %v2080 = vpop.f32.mrf.mxu0
      %v2081 = vadd.f32 0.0, %v2080
      %v2082 = vpop.f32.mrf.mxu0
      %2083 = vmatprep.mubr.f32.mxu0 0.0
      %2084 = vmatmul.mubr.f32.gmra.mxu0 %v1912
      %v2085 = vpop.f32.mrf.mxu0
      %v2086 = vadd.f32 0.0, %v2085
      %v2087 = vpop.f32.mrf.mxu0
      %2088 = vmatprep.mubr.f32.mxu0 0.0
      %2089 = vmatmul.mubr.f32.gmra.mxu0 %v1915
      %v2090 = vpop.f32.mrf.mxu0
      %v2091 = vadd.f32 0.0, %v2090
      %v2092 = vpop.f32.mrf.mxu0
      %2093 = vmatprep.mubr.f32.mxu0 0.0
      %2094 = vmatmul.mubr.f32.gmra.mxu0 %v1918
      %v2095 = vpop.f32.mrf.mxu0
      %v2096 = vadd.f32 0.0, %v2095
      %v2097 = vpop.f32.mrf.mxu0
      %2098 = vmatprep.mubr.f32.mxu0 0.0
      %2099 = vmatmul.mubr.f32.gmra.mxu0 %v1921
      %v2100 = vpop.f32.mrf.mxu0
      %v2101 = vadd.f32 0.0, %v2100
      %v2102 = vpop.f32.mrf.mxu0
      %2103 = vmatprep.mubr.f32.mxu0 0.0
      %2104 = vmatmul.mubr.f32.gmra.mxu0 %v1924
      %v2105 = vpop.f32.mrf.mxu0
      %v2106 = vadd.f32 0.0, %v2105
      %v2107 = vpop.f32.mrf.mxu0
      %2108 = vmatprep.mubr.f32.mxu0 0.0
      %2109 = vmatmul.mubr.f32.gmra.mxu0 %v1927
      %v2110 = vpop.f32.mrf.mxu0
      %v2111 = vadd.f32 0.0, %v2110
      %v2112 = vpop.f32.mrf.mxu0
      %2113 = vmatprep.mubr.f32.mxu0 0.0
      %2114 = vmatmul.mubr.f32.gmra.mxu0 %v1930
      %v2115 = vpop.f32.mrf.mxu0
      %v2116 = vadd.f32 0.0, %v2115
      %v2117 = vpop.f32.mrf.mxu0
      %2118 = vmatprep.mubr.f32.mxu0 0.0
      %2119 = vmatmul.mubr.f32.gmra.mxu0 %v1933
      %v2120 = vpop.f32.mrf.mxu0
      %v2121 = vadd.f32 0.0, %v2120
      %v2122 = vpop.f32.mrf.mxu0
      %2123 = vmatprep.mubr.f32.mxu0 0.0
      %2124 = vmatmul.mubr.f32.gmra.mxu0 %v1936
      %v2125 = vpop.f32.mrf.mxu0
      %v2126 = vadd.f32 0.0, %v2125
      %v2127 = vpop.f32.mrf.mxu0
      %2128 = vmatprep.mubr.f32.mxu0 0.0
      %2129 = vmatmul.mubr.f32.gmra.mxu0 %v1939
      %v2130 = vpop.f32.mrf.mxu0
      %v2131 = vadd.f32 0.0, %v2130
      %v2132 = vpop.f32.mrf.mxu0
      %2133 = vmatprep.mubr.f32.mxu0 0.0
      %2134 = vmatmul.mubr.f32.gmra.mxu0 %v1942
      %v2135 = vpop.f32.mrf.mxu0
      %v2136 = vadd.f32 0.0, %v2135
      %v2137 = vpop.f32.mrf.mxu0
      %2138 = vmatprep.mubr.f32.mxu0 0.0
      %2139 = vmatmul.mubr.f32.gmra.mxu0 %v1945
      %v2140 = vpop.f32.mrf.mxu0
      %v2141 = vadd.f32 0.0, %v2140
      %v2142 = vpop.f32.mrf.mxu0
      %2143 = vmatprep.mubr.f32.mxu0 0.0
      %2144 = vmatmul.mubr.f32.gmra.mxu0 %v1948
      %v2145 = vpop.f32.mrf.mxu0
      %v2146 = vadd.f32 0.0, %v2145
      %v2147 = vpop.f32.mrf.mxu0
      %2148 = vmatprep.mubr.f32.mxu0 0.0
      %2149 = vmatmul.mubr.f32.gmra.mxu0 %v1951
      %v2150 = vpop.f32.mrf.mxu0
      %v2151 = vadd.f32 0.0, %v2150
      %v2152 = vpop.f32.mrf.mxu0
      %2153 = vmatprep.mubr.f32.mxu0 0.0
      %2154 = vmatmul.mubr.f32.gmra.mxu0 %v1954
      %v2155 = vpop.f32.mrf.mxu0
      %v2156 = vadd.f32 0.0, %v2155
      %v2157 = vpop.f32.mrf.mxu0
      %2158 = vmatprep.mubr.f32.mxu0 0.0
      %2159 = vmatmul.mubr.f32.gmra.mxu0 %v1957
      %v2160 = vpop.f32.mrf.mxu0
      %v2161 = vadd.f32 0.0, %v2160
      %v2162 = vpop.f32.mrf.mxu0
      %2163 = vmatprep.mubr.f32.mxu0 0.0
      %2164 = vmatmul.mubr.f32.gmra.mxu0 %v1960
      %v2165 = vpop.f32.mrf.mxu0
      %v2166 = vadd.f32 0.0, %v2165
      %v2167 = vpop.f32.mrf.mxu0
      %2168 = vmatprep.mubr.f32.mxu0 0.0
      %2169 = vmatmul.mubr.f32.gmra.mxu0 %v1963
      %v2170 = vpop.f32.mrf.mxu0
      %v2171 = vadd.f32 0.0, %v2170
      %v2172 = vpop.f32.mrf.mxu0
      %2173 = vmatprep.mubr.f32.mxu0 0.0
      %2174 = vmatmul.mubr.f32.gmra.mxu0 %v1966
      %v2175 = vpop.f32.mrf.mxu0
      %v2176 = vadd.f32 0.0, %v2175
      %v2177 = vpop.f32.mrf.mxu0
      %2178 = vmatprep.mubr.f32.mxu0 0.0
      %2179 = vmatmul.mubr.f32.gmra.mxu0 %v1969
      %v2180 = vpop.f32.mrf.mxu0
      %v2181 = vadd.f32 0.0, %v2180
      %v2182 = vpop.f32.mrf.mxu0
      %2183 = vmatprep.mubr.f32.mxu0 0.0
      %2184 = vmatmul.mubr.f32.gmra.mxu0 %v1972
      %v2185 = vpop.f32.mrf.mxu0
      %v2186 = vadd.f32 0.0, %v2185
      %v2187 = vpop.f32.mrf.mxu0
      %2188 = vmatprep.mubr.f32.mxu0 0.0
      %2189 = vmatmul.mubr.f32.gmra.mxu0 %v1975
      %v2190 = vpop.f32.mrf.mxu0
      %v2191 = vadd.f32 0.0, %v2190
      %v2192 = vpop.f32.mrf.mxu0
      %2193 = vmatprep.mubr.f32.mxu0 0.0
      %2194 = vmatmul.mubr.f32.gmra.mxu0 %v1978
      %v2195 = vpop.f32.mrf.mxu0
      %v2196 = vadd.f32 0.0, %v2195
      %v2197 = vpop.f32.mrf.mxu0
      %2198 = vmatprep.mubr.f32.mxu0 0.0
      %2199 = vmatmul.mubr.f32.gmra.mxu0 %v1981
      %v2200 = vpop.f32.mrf.mxu0
      %v2201 = vadd.f32 0.0, %v2200
      %v2202 = vpop.f32.mrf.mxu0
      %2203 = vmatprep.mubr.f32.mxu0 0.0
      %2204 = vmatmul.mubr.f32.gmra.mxu0 %v1984
      %v2205 = vpop.f32.mrf.mxu0
      %v2206 = vadd.f32 0.0, %v2205
      %v2207 = vpop.f32.mrf.mxu0
      %2208 = vmatprep.mubr.f32.mxu0 0.0
      %2209 = vmatmul.mubr.f32.gmra.mxu0 %v1987
      %v2210 = vpop.f32.mrf.mxu0
      %v2211 = vadd.f32 0.0, %v2210
      %v2212 = vpop.f32.mrf.mxu0
      %2213 = vdwg.mxu0
      %v2214 = vadd.f32 %v1122, %v2056
      %v2215 = vadd.f32 %v1127, %v2061
      %v2216 = vadd.f32 %v1132, %v2066
      %v2217 = vadd.f32 %v1137, %v2071
      %v2218 = vadd.f32 %v1142, %v2076
      %v2219 = vadd.f32 %v1147, %v2081
      %v2220 = vadd.f32 %v1152, %v2086
      %v2221 = vadd.f32 %v1157, %v2091
      %v2222 = vadd.f32 %v1162, %v2096
      %v2223 = vadd.f32 %v1167, %v2101
      %v2224 = vadd.f32 %v1172, %v2106
      %v2225 = vadd.f32 %v1177, %v2111
      %v2226 = vadd.f32 %v1182, %v2116
      %v2227 = vadd.f32 %v1187, %v2121
      %v2228 = vadd.f32 %v1192, %v2126
      %v2229 = vadd.f32 %v1197, %v2131
      %v2230 = vadd.f32 %v1202, %v2136
      %v2231 = vadd.f32 %v1207, %v2141
      %v2232 = vadd.f32 %v1212, %v2146
      %v2233 = vadd.f32 %v1217, %v2151
      %v2234 = vadd.f32 %v1222, %v2156
      %v2235 = vadd.f32 %v1227, %v2161
      %v2236 = vadd.f32 %v1232, %v2166
      %v2237 = vadd.f32 %v1237, %v2171
      %v2238 = vadd.f32 %v1242, %v2176
      %v2239 = vadd.f32 %v1247, %v2181
      %v2240 = vadd.f32 %v1252, %v2186
      %v2241 = vadd.f32 %v1257, %v2191
      %v2242 = vadd.f32 %v1262, %v2196
      %v2243 = vadd.f32 %v1267, %v2201
      %v2244 = vadd.f32 %v1272, %v2206
      %v2245 = vadd.f32 %v1277, %v2211
      %v2246 = vld [vmem:[%s327 + $0x2] sm:$0xff]
      %v2247 = vld [vmem:[%s327 + $0xa] sm:$0xff]
      %v2248 = vld [vmem:[%s327 + $0x1a] sm:$0xff]
      %v2249 = vld [vmem:[%s327 + $0x22] sm:$0xff]
      %v2250 = vld [vmem:[%s327 + $0x32] sm:$0xff]
      %v2251 = vld [vmem:[%s327 + $0x3a] sm:$0xff]
      %v2252 = vld [vmem:[%s327 + $0x4a] sm:$0xff]
      %v2253 = vld [vmem:[%s327 + $0x52] sm:$0xff]
      %v2254 = vld [vmem:[%s327 + $0x62] sm:$0xff]
      %v2255 = vld [vmem:[%s327 + $0x6a] sm:$0xff]
      %v2256 = vld [vmem:[%s327 + $0x7a] sm:$0xff]
      %v2257 = vld [vmem:[%s327 + $0x82] sm:$0xff]
      %v2258 = vld [vmem:[%s327 + $0x92] sm:$0xff]
      %v2259 = vld [vmem:[%s327 + $0x9a] sm:$0xff]
      %v2260 = vld [vmem:[%s327 + $0xaa] sm:$0xff]
      %v2261 = vld [vmem:[%s327 + $0xb2] sm:$0xff]
      %v2262 = vld [vmem:[%s327 + $0xc2] sm:$0xff]
      %v2263 = vld [vmem:[%s327 + $0xca] sm:$0xff]
      %v2264 = vld [vmem:[%s327 + $0xda] sm:$0xff]
      %v2265 = vld [vmem:[%s327 + $0xe2] sm:$0xff]
      %v2266 = vld [vmem:[%s327 + $0xf2] sm:$0xff]
      %v2267 = vld [vmem:[%s327 + $0xfa] sm:$0xff]
      %v2268 = vld [vmem:[%s327 + $0x10a] sm:$0xff]
      %v2269 = vld [vmem:[%s327 + $0x112] sm:$0xff]
      %v2270 = vld [vmem:[%s327 + $0x122] sm:$0xff]
      %v2271 = vld [vmem:[%s327 + $0x12a] sm:$0xff]
      %v2272 = vld [vmem:[%s327 + $0x13a] sm:$0xff]
      %v2273 = vld [vmem:[%s327 + $0x142] sm:$0xff]
      %v2274 = vld [vmem:[%s327 + $0x152] sm:$0xff]
      %v2275 = vld [vmem:[%s327 + $0x15a] sm:$0xff]
      %v2276 = vld [vmem:[%s327 + $0x16a] sm:$0xff]
      %v2277 = vld [vmem:[%s327 + $0x172] sm:$0xff]
      %s2278 = scalar_lea.vmem %s5, 8
      %v2279 = vld [vmem:[%s2278] sm:$0xff]
      %v2281 = vsel %vm374, %v2246, 0
      %v2284 = vsel %vm374, %v2247, 0
      %v2287 = vsel %vm374, %v2248, 0
      %v2290 = vsel %vm374, %v2249, 0
      %v2293 = vsel %vm374, %v2250, 0
      %v2296 = vsel %vm374, %v2251, 0
      %v2299 = vsel %vm374, %v2252, 0
      %v2302 = vsel %vm374, %v2253, 0
      %v2305 = vsel %vm374, %v2254, 0
      %v2308 = vsel %vm374, %v2255, 0
      %v2311 = vsel %vm374, %v2256, 0
      %v2314 = vsel %vm374, %v2257, 0
      %v2317 = vsel %vm374, %v2258, 0
      %v2320 = vsel %vm374, %v2259, 0
      %v2323 = vsel %vm374, %v2260, 0
      %v2326 = vsel %vm374, %v2261, 0
      %v2329 = vsel %vm374, %v2262, 0
      %v2332 = vsel %vm374, %v2263, 0
      %v2335 = vsel %vm374, %v2264, 0
      %v2338 = vsel %vm374, %v2265, 0
      %v2341 = vsel %vm374, %v2266, 0
      %v2344 = vsel %vm374, %v2267, 0
      %v2347 = vsel %vm374, %v2268, 0
      %v2350 = vsel %vm374, %v2269, 0
      %v2353 = vsel %vm374, %v2270, 0
      %v2356 = vsel %vm374, %v2271, 0
      %v2359 = vsel %vm374, %v2272, 0
      %v2362 = vsel %vm374, %v2273, 0
      %v2365 = vsel %vm374, %v2274, 0
      %v2368 = vsel %vm374, %v2275, 0
      %v2371 = vsel %vm374, %v2276, 0
      %v2374 = vsel %vm374, %v2277, 0
      %2376 = vmatprep.subr.mxu0 0.0
      %2377 = vmatpush1.msra.mxu0 0.0
      %2378 = vmatprep.subr.mxu0 0.0
      %2379 = vmatpush1.msra.mxu0 0.0
      %2380 = vmatprep.subr.mxu0 0.0
      %2381 = vmatpush1.msra.mxu0 0.0
      %2382 = vmatprep.subr.mxu0 0.0
      %2383 = vmatpush1.msra.mxu0 0.0
      %2384 = vmatprep.subr.mxu0 0.0
      %2385 = vmatpush1.msra.mxu0 0.0
      %2386 = vmatprep.subr.mxu0 0.0
      %2387 = vmatpush1.msra.mxu0 0.0
      %2388 = vmatprep.subr.mxu0 0.0
      %2389 = vmatpush1.msra.mxu0 0.0
      %2390 = vmatprep.subr.mxu0 0.0
      %2391 = vmatpush1.msra.mxu0 0.0
      %2392 = vmatprep.subr.mxu0 0.0
      %2393 = vmatpush1.msra.mxu0 0.0
      %2394 = vmatprep.subr.mxu0 0.0
      %2395 = vmatpush1.msra.mxu0 0.0
      %2396 = vmatprep.subr.mxu0 0.0
      %2397 = vmatpush1.msra.mxu0 0.0
      %2398 = vmatprep.subr.mxu0 0.0
      %2399 = vmatpush1.msra.mxu0 0.0
      %2400 = vmatprep.subr.mxu0 0.0
      %2401 = vmatpush1.msra.mxu0 0.0
      %2402 = vmatprep.subr.mxu0 0.0
      %2403 = vmatpush1.msra.mxu0 0.0
      %2404 = vmatprep.subr.mxu0 0.0
      %2405 = vmatpush1.msra.mxu0 0.0
      %2406 = vmatprep.subr.mxu0 0.0
      %2407 = vmatpush1.msra.mxu0 %v2279
      %2408 = vmatprep.subr.mxu0 0.0
      %2409 = vmatpush2.msra.mxu0 0.0
      %2410 = vmatprep.subr.mxu0 0.0
      %2411 = vmatpush2.msra.mxu0 0.0
      %2412 = vmatprep.subr.mxu0 0.0
      %2413 = vmatpush2.msra.mxu0 0.0
      %2414 = vmatprep.subr.mxu0 0.0
      %2415 = vmatpush2.msra.mxu0 0.0
      %2416 = vmatprep.subr.mxu0 0.0
      %2417 = vmatpush2.msra.mxu0 0.0
      %2418 = vmatprep.subr.mxu0 0.0
      %2419 = vmatpush2.msra.mxu0 0.0
      %2420 = vmatprep.subr.mxu0 0.0
      %2421 = vmatpush2.msra.mxu0 0.0
      %2422 = vmatprep.subr.mxu0 0.0
      %2423 = vmatpush2.msra.mxu0 0.0
      %2424 = vmatprep.subr.mxu0 0.0
      %2425 = vmatpush2.msra.mxu0 0.0
      %2426 = vmatprep.subr.mxu0 0.0
      %2427 = vmatpush2.msra.mxu0 0.0
      %2428 = vmatprep.subr.mxu0 0.0
      %2429 = vmatpush2.msra.mxu0 0.0
      %2430 = vmatprep.subr.mxu0 0.0
      %2431 = vmatpush2.msra.mxu0 0.0
      %2432 = vmatprep.subr.mxu0 0.0
      %2433 = vmatpush2.msra.mxu0 0.0
      %2434 = vmatprep.subr.mxu0 0.0
      %2435 = vmatpush2.msra.mxu0 0.0
      %2436 = vmatprep.subr.mxu0 0.0
      %2437 = vmatpush2.msra.mxu0 0.0
      %2438 = vmatprep.subr.mxu0 0.0
      %2439 = vmatpush2.msra.mxu0 0.0
      %2440 = vmatprep.mubr.f32.mxu0 0.0
      %2441 = vmatmul.mubr.f32.gmra.mxu0 %v2281
      %v2442 = vpop.f32.mrf.mxu0
      %v2443 = vadd.f32 0.0, %v2442
      %v2444 = vpop.f32.mrf.mxu0
      %2445 = vmatprep.mubr.f32.mxu0 0.0
      %2446 = vmatmul.mubr.f32.gmra.mxu0 %v2284
      %v2447 = vpop.f32.mrf.mxu0
      %v2448 = vadd.f32 0.0, %v2447
      %v2449 = vpop.f32.mrf.mxu0
      %2450 = vmatprep.mubr.f32.mxu0 0.0
      %2451 = vmatmul.mubr.f32.gmra.mxu0 %v2287
      %v2452 = vpop.f32.mrf.mxu0
      %v2453 = vadd.f32 0.0, %v2452
      %v2454 = vpop.f32.mrf.mxu0
      %2455 = vmatprep.mubr.f32.mxu0 0.0
      %2456 = vmatmul.mubr.f32.gmra.mxu0 %v2290
      %v2457 = vpop.f32.mrf.mxu0
      %v2458 = vadd.f32 0.0, %v2457
      %v2459 = vpop.f32.mrf.mxu0
      %2460 = vmatprep.mubr.f32.mxu0 0.0
      %2461 = vmatmul.mubr.f32.gmra.mxu0 %v2293
      %v2462 = vpop.f32.mrf.mxu0
      %v2463 = vadd.f32 0.0, %v2462
      %v2464 = vpop.f32.mrf.mxu0
      %2465 = vmatprep.mubr.f32.mxu0 0.0
      %2466 = vmatmul.mubr.f32.gmra.mxu0 %v2296
      %v2467 = vpop.f32.mrf.mxu0
      %v2468 = vadd.f32 0.0, %v2467
      %v2469 = vpop.f32.mrf.mxu0
      %2470 = vmatprep.mubr.f32.mxu0 0.0
      %2471 = vmatmul.mubr.f32.gmra.mxu0 %v2299
      %v2472 = vpop.f32.mrf.mxu0
      %v2473 = vadd.f32 0.0, %v2472
      %v2474 = vpop.f32.mrf.mxu0
      %2475 = vmatprep.mubr.f32.mxu0 0.0
      %2476 = vmatmul.mubr.f32.gmra.mxu0 %v2302
      %v2477 = vpop.f32.mrf.mxu0
      %v2478 = vadd.f32 0.0, %v2477
      %v2479 = vpop.f32.mrf.mxu0
      %2480 = vmatprep.mubr.f32.mxu0 0.0
      %2481 = vmatmul.mubr.f32.gmra.mxu0 %v2305
      %v2482 = vpop.f32.mrf.mxu0
      %v2483 = vadd.f32 0.0, %v2482
      %v2484 = vpop.f32.mrf.mxu0
      %2485 = vmatprep.mubr.f32.mxu0 0.0
      %2486 = vmatmul.mubr.f32.gmra.mxu0 %v2308
      %v2487 = vpop.f32.mrf.mxu0
      %v2488 = vadd.f32 0.0, %v2487
      %v2489 = vpop.f32.mrf.mxu0
      %2490 = vmatprep.mubr.f32.mxu0 0.0
      %2491 = vmatmul.mubr.f32.gmra.mxu0 %v2311
      %v2492 = vpop.f32.mrf.mxu0
      %v2493 = vadd.f32 0.0, %v2492
      %v2494 = vpop.f32.mrf.mxu0
      %2495 = vmatprep.mubr.f32.mxu0 0.0
      %2496 = vmatmul.mubr.f32.gmra.mxu0 %v2314
      %v2497 = vpop.f32.mrf.mxu0
      %v2498 = vadd.f32 0.0, %v2497
      %v2499 = vpop.f32.mrf.mxu0
      %2500 = vmatprep.mubr.f32.mxu0 0.0
      %2501 = vmatmul.mubr.f32.gmra.mxu0 %v2317
      %v2502 = vpop.f32.mrf.mxu0
      %v2503 = vadd.f32 0.0, %v2502
      %v2504 = vpop.f32.mrf.mxu0
      %2505 = vmatprep.mubr.f32.mxu0 0.0
      %2506 = vmatmul.mubr.f32.gmra.mxu0 %v2320
      %v2507 = vpop.f32.mrf.mxu0
      %v2508 = vadd.f32 0.0, %v2507
      %v2509 = vpop.f32.mrf.mxu0
      %2510 = vmatprep.mubr.f32.mxu0 0.0
      %2511 = vmatmul.mubr.f32.gmra.mxu0 %v2323
      %v2512 = vpop.f32.mrf.mxu0
      %v2513 = vadd.f32 0.0, %v2512
      %v2514 = vpop.f32.mrf.mxu0
      %2515 = vmatprep.mubr.f32.mxu0 0.0
      %2516 = vmatmul.mubr.f32.gmra.mxu0 %v2326
      %v2517 = vpop.f32.mrf.mxu0
      %v2518 = vadd.f32 0.0, %v2517
      %v2519 = vpop.f32.mrf.mxu0
      %2520 = vmatprep.mubr.f32.mxu0 0.0
      %2521 = vmatmul.mubr.f32.gmra.mxu0 %v2329
      %v2522 = vpop.f32.mrf.mxu0
      %v2523 = vadd.f32 0.0, %v2522
      %v2524 = vpop.f32.mrf.mxu0
      %2525 = vmatprep.mubr.f32.mxu0 0.0
      %2526 = vmatmul.mubr.f32.gmra.mxu0 %v2332
      %v2527 = vpop.f32.mrf.mxu0
      %v2528 = vadd.f32 0.0, %v2527
      %v2529 = vpop.f32.mrf.mxu0
      %2530 = vmatprep.mubr.f32.mxu0 0.0
      %2531 = vmatmul.mubr.f32.gmra.mxu0 %v2335
      %v2532 = vpop.f32.mrf.mxu0
      %v2533 = vadd.f32 0.0, %v2532
      %v2534 = vpop.f32.mrf.mxu0
      %2535 = vmatprep.mubr.f32.mxu0 0.0
      %2536 = vmatmul.mubr.f32.gmra.mxu0 %v2338
      %v2537 = vpop.f32.mrf.mxu0
      %v2538 = vadd.f32 0.0, %v2537
      %v2539 = vpop.f32.mrf.mxu0
      %2540 = vmatprep.mubr.f32.mxu0 0.0
      %2541 = vmatmul.mubr.f32.gmra.mxu0 %v2341
      %v2542 = vpop.f32.mrf.mxu0
      %v2543 = vadd.f32 0.0, %v2542
      %v2544 = vpop.f32.mrf.mxu0
      %2545 = vmatprep.mubr.f32.mxu0 0.0
      %2546 = vmatmul.mubr.f32.gmra.mxu0 %v2344
      %v2547 = vpop.f32.mrf.mxu0
      %v2548 = vadd.f32 0.0, %v2547
      %v2549 = vpop.f32.mrf.mxu0
      %2550 = vmatprep.mubr.f32.mxu0 0.0
      %2551 = vmatmul.mubr.f32.gmra.mxu0 %v2347
      %v2552 = vpop.f32.mrf.mxu0
      %v2553 = vadd.f32 0.0, %v2552
      %v2554 = vpop.f32.mrf.mxu0
      %2555 = vmatprep.mubr.f32.mxu0 0.0
      %2556 = vmatmul.mubr.f32.gmra.mxu0 %v2350
      %v2557 = vpop.f32.mrf.mxu0
      %v2558 = vadd.f32 0.0, %v2557
      %v2559 = vpop.f32.mrf.mxu0
      %2560 = vmatprep.mubr.f32.mxu0 0.0
      %2561 = vmatmul.mubr.f32.gmra.mxu0 %v2353
      %v2562 = vpop.f32.mrf.mxu0
      %v2563 = vadd.f32 0.0, %v2562
      %v2564 = vpop.f32.mrf.mxu0
      %2565 = vmatprep.mubr.f32.mxu0 0.0
      %2566 = vmatmul.mubr.f32.gmra.mxu0 %v2356
      %v2567 = vpop.f32.mrf.mxu0
      %v2568 = vadd.f32 0.0, %v2567
      %v2569 = vpop.f32.mrf.mxu0
      %2570 = vmatprep.mubr.f32.mxu0 0.0
      %2571 = vmatmul.mubr.f32.gmra.mxu0 %v2359
      %v2572 = vpop.f32.mrf.mxu0
      %v2573 = vadd.f32 0.0, %v2572
      %v2574 = vpop.f32.mrf.mxu0
      %2575 = vmatprep.mubr.f32.mxu0 0.0
      %2576 = vmatmul.mubr.f32.gmra.mxu0 %v2362
      %v2577 = vpop.f32.mrf.mxu0
      %v2578 = vadd.f32 0.0, %v2577
      %v2579 = vpop.f32.mrf.mxu0
      %2580 = vmatprep.mubr.f32.mxu0 0.0
      %2581 = vmatmul.mubr.f32.gmra.mxu0 %v2365
      %v2582 = vpop.f32.mrf.mxu0
      %v2583 = vadd.f32 0.0, %v2582
      %v2584 = vpop.f32.mrf.mxu0
      %2585 = vmatprep.mubr.f32.mxu0 0.0
      %2586 = vmatmul.mubr.f32.gmra.mxu0 %v2368
      %v2587 = vpop.f32.mrf.mxu0
      %v2588 = vadd.f32 0.0, %v2587
      %v2589 = vpop.f32.mrf.mxu0
      %2590 = vmatprep.mubr.f32.mxu0 0.0
      %2591 = vmatmul.mubr.f32.gmra.mxu0 %v2371
      %v2592 = vpop.f32.mrf.mxu0
      %v2593 = vadd.f32 0.0, %v2592
      %v2594 = vpop.f32.mrf.mxu0
      %2595 = vmatprep.mubr.f32.mxu0 0.0
      %2596 = vmatmul.mubr.f32.gmra.mxu0 %v2374
      %v2597 = vpop.f32.mrf.mxu0
      %v2598 = vadd.f32 0.0, %v2597
      %v2599 = vpop.f32.mrf.mxu0
      %2600 = vdwg.mxu0
      %v2601 = vadd.f32 %v1701, %v2443
      %v2602 = vadd.f32 %v1706, %v2448
      %v2603 = vadd.f32 %v1711, %v2453
      %v2604 = vadd.f32 %v1716, %v2458
      %v2605 = vadd.f32 %v1721, %v2463
      %v2606 = vadd.f32 %v1726, %v2468
      %v2607 = vadd.f32 %v1731, %v2473
      %v2608 = vadd.f32 %v1736, %v2478
      %v2609 = vadd.f32 %v1741, %v2483
      %v2610 = vadd.f32 %v1746, %v2488
      %v2611 = vadd.f32 %v1751, %v2493
      %v2612 = vadd.f32 %v1756, %v2498
      %v2613 = vadd.f32 %v1761, %v2503
      %v2614 = vadd.f32 %v1766, %v2508
      %v2615 = vadd.f32 %v1771, %v2513
      %v2616 = vadd.f32 %v1776, %v2518
      %v2617 = vadd.f32 %v1781, %v2523
      %v2618 = vadd.f32 %v1786, %v2528
      %v2619 = vadd.f32 %v1791, %v2533
      %v2620 = vadd.f32 %v1796, %v2538
      %v2621 = vadd.f32 %v1801, %v2543
      %v2622 = vadd.f32 %v1806, %v2548
      %v2623 = vadd.f32 %v1811, %v2553
      %v2624 = vadd.f32 %v1816, %v2558
      %v2625 = vadd.f32 %v1821, %v2563
      %v2626 = vadd.f32 %v1826, %v2568
      %v2627 = vadd.f32 %v1831, %v2573
      %v2628 = vadd.f32 %v1836, %v2578
      %v2629 = vadd.f32 %v1841, %v2583
      %v2630 = vadd.f32 %v1846, %v2588
      %v2631 = vadd.f32 %v1851, %v2593
      %v2632 = vadd.f32 %v1856, %v2598
      %v2633 = vld [vmem:[%s700 + $0x3] sm:$0xff]
      %v2634 = vld [vmem:[%s700 + $0xb] sm:$0xff]
      %v2635 = vld [vmem:[%s700 + $0x1b] sm:$0xff]
      %v2636 = vld [vmem:[%s700 + $0x23] sm:$0xff]
      %v2637 = vld [vmem:[%s700 + $0x33] sm:$0xff]
      %v2638 = vld [vmem:[%s700 + $0x3b] sm:$0xff]
      %v2639 = vld [vmem:[%s700 + $0x4b] sm:$0xff]
      %v2640 = vld [vmem:[%s700 + $0x53] sm:$0xff]
      %v2641 = vld [vmem:[%s700 + $0x63] sm:$0xff]
      %v2642 = vld [vmem:[%s700 + $0x6b] sm:$0xff]
      %v2643 = vld [vmem:[%s700 + $0x7b] sm:$0xff]
      %v2644 = vld [vmem:[%s700 + $0x83] sm:$0xff]
      %v2645 = vld [vmem:[%s700 + $0x93] sm:$0xff]
      %v2646 = vld [vmem:[%s700 + $0x9b] sm:$0xff]
      %v2647 = vld [vmem:[%s700 + $0xab] sm:$0xff]
      %v2648 = vld [vmem:[%s700 + $0xb3] sm:$0xff]
      %v2649 = vld [vmem:[%s700 + $0xc3] sm:$0xff]
      %v2650 = vld [vmem:[%s700 + $0xcb] sm:$0xff]
      %v2651 = vld [vmem:[%s700 + $0xdb] sm:$0xff]
      %v2652 = vld [vmem:[%s700 + $0xe3] sm:$0xff]
      %v2653 = vld [vmem:[%s700 + $0xf3] sm:$0xff]
      %v2654 = vld [vmem:[%s700 + $0xfb] sm:$0xff]
      %v2655 = vld [vmem:[%s700 + $0x10b] sm:$0xff]
      %v2656 = vld [vmem:[%s700 + $0x113] sm:$0xff]
      %v2657 = vld [vmem:[%s700 + $0x123] sm:$0xff]
      %v2658 = vld [vmem:[%s700 + $0x12b] sm:$0xff]
      %v2659 = vld [vmem:[%s700 + $0x13b] sm:$0xff]
      %v2660 = vld [vmem:[%s700 + $0x143] sm:$0xff]
      %v2661 = vld [vmem:[%s700 + $0x153] sm:$0xff]
      %v2662 = vld [vmem:[%s700 + $0x15b] sm:$0xff]
      %v2663 = vld [vmem:[%s700 + $0x16b] sm:$0xff]
      %v2664 = vld [vmem:[%s700 + $0x173] sm:$0xff]
      %s2665 = scalar_lea.vmem %s3, 16
      %v2666 = vld [vmem:[%s2665] sm:$0xff]
      %v2668 = vsel %vm374, %v2633, 0
      %v2671 = vsel %vm374, %v2634, 0
      %v2674 = vsel %vm374, %v2635, 0
      %v2677 = vsel %vm374, %v2636, 0
      %v2680 = vsel %vm374, %v2637, 0
      %v2683 = vsel %vm374, %v2638, 0
      %v2686 = vsel %vm374, %v2639, 0
      %v2689 = vsel %vm374, %v2640, 0
      %v2692 = vsel %vm374, %v2641, 0
      %v2695 = vsel %vm374, %v2642, 0
      %v2698 = vsel %vm374, %v2643, 0
      %v2701 = vsel %vm374, %v2644, 0
      %v2704 = vsel %vm374, %v2645, 0
      %v2707 = vsel %vm374, %v2646, 0
      %v2710 = vsel %vm374, %v2647, 0
      %v2713 = vsel %vm374, %v2648, 0
      %v2716 = vsel %vm374, %v2649, 0
      %v2719 = vsel %vm374, %v2650, 0
      %v2722 = vsel %vm374, %v2651, 0
      %v2725 = vsel %vm374, %v2652, 0
      %v2728 = vsel %vm374, %v2653, 0
      %v2731 = vsel %vm374, %v2654, 0
      %v2734 = vsel %vm374, %v2655, 0
      %v2737 = vsel %vm374, %v2656, 0
      %v2740 = vsel %vm374, %v2657, 0
      %v2743 = vsel %vm374, %v2658, 0
      %v2746 = vsel %vm374, %v2659, 0
      %v2749 = vsel %vm374, %v2660, 0
      %v2752 = vsel %vm374, %v2661, 0
      %v2755 = vsel %vm374, %v2662, 0
      %v2758 = vsel %vm374, %v2663, 0
      %v2761 = vsel %vm374, %v2664, 0
      %2763 = vmatprep.subr.mxu0 0.0
      %2764 = vmatpush1.msra.mxu0 0.0
      %2765 = vmatprep.subr.mxu0 0.0
      %2766 = vmatpush1.msra.mxu0 0.0
      %2767 = vmatprep.subr.mxu0 0.0
      %2768 = vmatpush1.msra.mxu0 0.0
      %2769 = vmatprep.subr.mxu0 0.0
      %2770 = vmatpush1.msra.mxu0 0.0
      %2771 = vmatprep.subr.mxu0 0.0
      %2772 = vmatpush1.msra.mxu0 0.0
      %2773 = vmatprep.subr.mxu0 0.0
      %2774 = vmatpush1.msra.mxu0 0.0
      %2775 = vmatprep.subr.mxu0 0.0
      %2776 = vmatpush1.msra.mxu0 0.0
      %2777 = vmatprep.subr.mxu0 0.0
      %2778 = vmatpush1.msra.mxu0 0.0
      %2779 = vmatprep.subr.mxu0 0.0
      %2780 = vmatpush1.msra.mxu0 0.0
      %2781 = vmatprep.subr.mxu0 0.0
      %2782 = vmatpush1.msra.mxu0 0.0
      %2783 = vmatprep.subr.mxu0 0.0
      %2784 = vmatpush1.msra.mxu0 0.0
      %2785 = vmatprep.subr.mxu0 0.0
      %2786 = vmatpush1.msra.mxu0 0.0
      %2787 = vmatprep.subr.mxu0 0.0
      %2788 = vmatpush1.msra.mxu0 0.0
      %2789 = vmatprep.subr.mxu0 0.0
      %2790 = vmatpush1.msra.mxu0 0.0
      %2791 = vmatprep.subr.mxu0 0.0
      %2792 = vmatpush1.msra.mxu0 0.0
      %2793 = vmatprep.subr.mxu0 0.0
      %2794 = vmatpush1.msra.mxu0 %v2666
      %2795 = vmatprep.subr.mxu0 0.0
      %2796 = vmatpush2.msra.mxu0 0.0
      %2797 = vmatprep.subr.mxu0 0.0
      %2798 = vmatpush2.msra.mxu0 0.0
      %2799 = vmatprep.subr.mxu0 0.0
      %2800 = vmatpush2.msra.mxu0 0.0
      %2801 = vmatprep.subr.mxu0 0.0
      %2802 = vmatpush2.msra.mxu0 0.0
      %2803 = vmatprep.subr.mxu0 0.0
      %2804 = vmatpush2.msra.mxu0 0.0
      %2805 = vmatprep.subr.mxu0 0.0
      %2806 = vmatpush2.msra.mxu0 0.0
      %2807 = vmatprep.subr.mxu0 0.0
      %2808 = vmatpush2.msra.mxu0 0.0
      %2809 = vmatprep.subr.mxu0 0.0
      %2810 = vmatpush2.msra.mxu0 0.0
      %2811 = vmatprep.subr.mxu0 0.0
      %2812 = vmatpush2.msra.mxu0 0.0
      %2813 = vmatprep.subr.mxu0 0.0
      %2814 = vmatpush2.msra.mxu0 0.0
      %2815 = vmatprep.subr.mxu0 0.0
      %2816 = vmatpush2.msra.mxu0 0.0
      %2817 = vmatprep.subr.mxu0 0.0
      %2818 = vmatpush2.msra.mxu0 0.0
      %2819 = vmatprep.subr.mxu0 0.0
      %2820 = vmatpush2.msra.mxu0 0.0
      %2821 = vmatprep.subr.mxu0 0.0
      %2822 = vmatpush2.msra.mxu0 0.0
      %2823 = vmatprep.subr.mxu0 0.0
      %2824 = vmatpush2.msra.mxu0 0.0
      %2825 = vmatprep.subr.mxu0 0.0
      %2826 = vmatpush2.msra.mxu0 0.0
      %2827 = vmatprep.mubr.f32.mxu0 0.0
      %2828 = vmatmul.mubr.f32.gmra.mxu0 %v2668
      %v2829 = vpop.f32.mrf.mxu0
      %v2830 = vadd.f32 0.0, %v2829
      %v2831 = vpop.f32.mrf.mxu0
      %2832 = vmatprep.mubr.f32.mxu0 0.0
      %2833 = vmatmul.mubr.f32.gmra.mxu0 %v2671
      %v2834 = vpop.f32.mrf.mxu0
      %v2835 = vadd.f32 0.0, %v2834
      %v2836 = vpop.f32.mrf.mxu0
      %2837 = vmatprep.mubr.f32.mxu0 0.0
      %2838 = vmatmul.mubr.f32.gmra.mxu0 %v2674
      %v2839 = vpop.f32.mrf.mxu0
      %v2840 = vadd.f32 0.0, %v2839
      %v2841 = vpop.f32.mrf.mxu0
      %2842 = vmatprep.mubr.f32.mxu0 0.0
      %2843 = vmatmul.mubr.f32.gmra.mxu0 %v2677
      %v2844 = vpop.f32.mrf.mxu0
      %v2845 = vadd.f32 0.0, %v2844
      %v2846 = vpop.f32.mrf.mxu0
      %2847 = vmatprep.mubr.f32.mxu0 0.0
      %2848 = vmatmul.mubr.f32.gmra.mxu0 %v2680
      %v2849 = vpop.f32.mrf.mxu0
      %v2850 = vadd.f32 0.0, %v2849
      %v2851 = vpop.f32.mrf.mxu0
      %2852 = vmatprep.mubr.f32.mxu0 0.0
      %2853 = vmatmul.mubr.f32.gmra.mxu0 %v2683
      %v2854 = vpop.f32.mrf.mxu0
      %v2855 = vadd.f32 0.0, %v2854
      %v2856 = vpop.f32.mrf.mxu0
      %2857 = vmatprep.mubr.f32.mxu0 0.0
      %2858 = vmatmul.mubr.f32.gmra.mxu0 %v2686
      %v2859 = vpop.f32.mrf.mxu0
      %v2860 = vadd.f32 0.0, %v2859
      %v2861 = vpop.f32.mrf.mxu0
      %2862 = vmatprep.mubr.f32.mxu0 0.0
      %2863 = vmatmul.mubr.f32.gmra.mxu0 %v2689
      %v2864 = vpop.f32.mrf.mxu0
      %v2865 = vadd.f32 0.0, %v2864
      %v2866 = vpop.f32.mrf.mxu0
      %2867 = vmatprep.mubr.f32.mxu0 0.0
      %2868 = vmatmul.mubr.f32.gmra.mxu0 %v2692
      %v2869 = vpop.f32.mrf.mxu0
      %v2870 = vadd.f32 0.0, %v2869
      %v2871 = vpop.f32.mrf.mxu0
      %2872 = vmatprep.mubr.f32.mxu0 0.0
      %2873 = vmatmul.mubr.f32.gmra.mxu0 %v2695
      %v2874 = vpop.f32.mrf.mxu0
      %v2875 = vadd.f32 0.0, %v2874
      %v2876 = vpop.f32.mrf.mxu0
      %2877 = vmatprep.mubr.f32.mxu0 0.0
      %2878 = vmatmul.mubr.f32.gmra.mxu0 %v2698
      %v2879 = vpop.f32.mrf.mxu0
      %v2880 = vadd.f32 0.0, %v2879
      %v2881 = vpop.f32.mrf.mxu0
      %2882 = vmatprep.mubr.f32.mxu0 0.0
      %2883 = vmatmul.mubr.f32.gmra.mxu0 %v2701
      %v2884 = vpop.f32.mrf.mxu0
      %v2885 = vadd.f32 0.0, %v2884
      %v2886 = vpop.f32.mrf.mxu0
      %2887 = vmatprep.mubr.f32.mxu0 0.0
      %2888 = vmatmul.mubr.f32.gmra.mxu0 %v2704
      %v2889 = vpop.f32.mrf.mxu0
      %v2890 = vadd.f32 0.0, %v2889
      %v2891 = vpop.f32.mrf.mxu0
      %2892 = vmatprep.mubr.f32.mxu0 0.0
      %2893 = vmatmul.mubr.f32.gmra.mxu0 %v2707
      %v2894 = vpop.f32.mrf.mxu0
      %v2895 = vadd.f32 0.0, %v2894
      %v2896 = vpop.f32.mrf.mxu0
      %2897 = vmatprep.mubr.f32.mxu0 0.0
      %2898 = vmatmul.mubr.f32.gmra.mxu0 %v2710
      %v2899 = vpop.f32.mrf.mxu0
      %v2900 = vadd.f32 0.0, %v2899
      %v2901 = vpop.f32.mrf.mxu0
      %2902 = vmatprep.mubr.f32.mxu0 0.0
      %2903 = vmatmul.mubr.f32.gmra.mxu0 %v2713
      %v2904 = vpop.f32.mrf.mxu0
      %v2905 = vadd.f32 0.0, %v2904
      %v2906 = vpop.f32.mrf.mxu0
      %2907 = vmatprep.mubr.f32.mxu0 0.0
      %2908 = vmatmul.mubr.f32.gmra.mxu0 %v2716
      %v2909 = vpop.f32.mrf.mxu0
      %v2910 = vadd.f32 0.0, %v2909
      %v2911 = vpop.f32.mrf.mxu0
      %2912 = vmatprep.mubr.f32.mxu0 0.0
      %2913 = vmatmul.mubr.f32.gmra.mxu0 %v2719
      %v2914 = vpop.f32.mrf.mxu0
      %v2915 = vadd.f32 0.0, %v2914
      %v2916 = vpop.f32.mrf.mxu0
      %2917 = vmatprep.mubr.f32.mxu0 0.0
      %2918 = vmatmul.mubr.f32.gmra.mxu0 %v2722
      %v2919 = vpop.f32.mrf.mxu0
      %v2920 = vadd.f32 0.0, %v2919
      %v2921 = vpop.f32.mrf.mxu0
      %2922 = vmatprep.mubr.f32.mxu0 0.0
      %2923 = vmatmul.mubr.f32.gmra.mxu0 %v2725
      %v2924 = vpop.f32.mrf.mxu0
      %v2925 = vadd.f32 0.0, %v2924
      %v2926 = vpop.f32.mrf.mxu0
      %2927 = vmatprep.mubr.f32.mxu0 0.0
      %2928 = vmatmul.mubr.f32.gmra.mxu0 %v2728
      %v2929 = vpop.f32.mrf.mxu0
      %v2930 = vadd.f32 0.0, %v2929
      %v2931 = vpop.f32.mrf.mxu0
      %2932 = vmatprep.mubr.f32.mxu0 0.0
      %2933 = vmatmul.mubr.f32.gmra.mxu0 %v2731
      %v2934 = vpop.f32.mrf.mxu0
      %v2935 = vadd.f32 0.0, %v2934
      %v2936 = vpop.f32.mrf.mxu0
      %2937 = vmatprep.mubr.f32.mxu0 0.0
      %2938 = vmatmul.mubr.f32.gmra.mxu0 %v2734
      %v2939 = vpop.f32.mrf.mxu0
      %v2940 = vadd.f32 0.0, %v2939
      %v2941 = vpop.f32.mrf.mxu0
      %2942 = vmatprep.mubr.f32.mxu0 0.0
      %2943 = vmatmul.mubr.f32.gmra.mxu0 %v2737
      %v2944 = vpop.f32.mrf.mxu0
      %v2945 = vadd.f32 0.0, %v2944
      %v2946 = vpop.f32.mrf.mxu0
      %2947 = vmatprep.mubr.f32.mxu0 0.0
      %2948 = vmatmul.mubr.f32.gmra.mxu0 %v2740
      %v2949 = vpop.f32.mrf.mxu0
      %v2950 = vadd.f32 0.0, %v2949
      %v2951 = vpop.f32.mrf.mxu0
      %2952 = vmatprep.mubr.f32.mxu0 0.0
      %2953 = vmatmul.mubr.f32.gmra.mxu0 %v2743
      %v2954 = vpop.f32.mrf.mxu0
      %v2955 = vadd.f32 0.0, %v2954
      %v2956 = vpop.f32.mrf.mxu0
      %2957 = vmatprep.mubr.f32.mxu0 0.0
      %2958 = vmatmul.mubr.f32.gmra.mxu0 %v2746
      %v2959 = vpop.f32.mrf.mxu0
      %v2960 = vadd.f32 0.0, %v2959
      %v2961 = vpop.f32.mrf.mxu0
      %2962 = vmatprep.mubr.f32.mxu0 0.0
      %2963 = vmatmul.mubr.f32.gmra.mxu0 %v2749
      %v2964 = vpop.f32.mrf.mxu0
      %v2965 = vadd.f32 0.0, %v2964
      %v2966 = vpop.f32.mrf.mxu0
      %2967 = vmatprep.mubr.f32.mxu0 0.0
      %2968 = vmatmul.mubr.f32.gmra.mxu0 %v2752
      %v2969 = vpop.f32.mrf.mxu0
      %v2970 = vadd.f32 0.0, %v2969
      %v2971 = vpop.f32.mrf.mxu0
      %2972 = vmatprep.mubr.f32.mxu0 0.0
      %2973 = vmatmul.mubr.f32.gmra.mxu0 %v2755
      %v2974 = vpop.f32.mrf.mxu0
      %v2975 = vadd.f32 0.0, %v2974
      %v2976 = vpop.f32.mrf.mxu0
      %2977 = vmatprep.mubr.f32.mxu0 0.0
      %2978 = vmatmul.mubr.f32.gmra.mxu0 %v2758
      %v2979 = vpop.f32.mrf.mxu0
      %v2980 = vadd.f32 0.0, %v2979
      %v2981 = vpop.f32.mrf.mxu0
      %2982 = vmatprep.mubr.f32.mxu0 0.0
      %2983 = vmatmul.mubr.f32.gmra.mxu0 %v2761
      %v2984 = vpop.f32.mrf.mxu0
      %v2985 = vadd.f32 0.0, %v2984
      %v2986 = vpop.f32.mrf.mxu0
      %2987 = vdwg.mxu0
      %v2988 = vadd.f32 %v2214, %v2830
      %v2989 = vadd.f32 %v2215, %v2835
      %v2990 = vadd.f32 %v2216, %v2840
      %v2991 = vadd.f32 %v2217, %v2845
      %v2992 = vadd.f32 %v2218, %v2850
      %v2993 = vadd.f32 %v2219, %v2855
      %v2994 = vadd.f32 %v2220, %v2860
      %v2995 = vadd.f32 %v2221, %v2865
      %v2996 = vadd.f32 %v2222, %v2870
      %v2997 = vadd.f32 %v2223, %v2875
      %v2998 = vadd.f32 %v2224, %v2880
      %v2999 = vadd.f32 %v2225, %v2885
      %v3000 = vadd.f32 %v2226, %v2890
      %v3001 = vadd.f32 %v2227, %v2895
      %v3002 = vadd.f32 %v2228, %v2900
      %v3003 = vadd.f32 %v2229, %v2905
      %v3004 = vadd.f32 %v2230, %v2910
      %v3005 = vadd.f32 %v2231, %v2915
      %v3006 = vadd.f32 %v2232, %v2920
      %v3007 = vadd.f32 %v2233, %v2925
      %v3008 = vadd.f32 %v2234, %v2930
      %v3009 = vadd.f32 %v2235, %v2935
      %v3010 = vadd.f32 %v2236, %v2940
      %v3011 = vadd.f32 %v2237, %v2945
      %v3012 = vadd.f32 %v2238, %v2950
      %v3013 = vadd.f32 %v2239, %v2955
      %v3014 = vadd.f32 %v2240, %v2960
      %v3015 = vadd.f32 %v2241, %v2965
      %v3016 = vadd.f32 %v2242, %v2970
      %v3017 = vadd.f32 %v2243, %v2975
      %v3018 = vadd.f32 %v2244, %v2980
      %v3019 = vadd.f32 %v2245, %v2985
      %v3020 = vld [vmem:[%s327 + $0x4] sm:$0xff]
      %v3021 = vld [vmem:[%s327 + $0xc] sm:$0xff]
      %v3022 = vld [vmem:[%s327 + $0x1c] sm:$0xff]
      %v3023 = vld [vmem:[%s327 + $0x24] sm:$0xff]
      %v3024 = vld [vmem:[%s327 + $0x34] sm:$0xff]
      %v3025 = vld [vmem:[%s327 + $0x3c] sm:$0xff]
      %v3026 = vld [vmem:[%s327 + $0x4c] sm:$0xff]
      %v3027 = vld [vmem:[%s327 + $0x54] sm:$0xff]
      %v3028 = vld [vmem:[%s327 + $0x64] sm:$0xff]
      %v3029 = vld [vmem:[%s327 + $0x6c] sm:$0xff]
      %v3030 = vld [vmem:[%s327 + $0x7c] sm:$0xff]
      %v3031 = vld [vmem:[%s327 + $0x84] sm:$0xff]
      %v3032 = vld [vmem:[%s327 + $0x94] sm:$0xff]
      %v3033 = vld [vmem:[%s327 + $0x9c] sm:$0xff]
      %v3034 = vld [vmem:[%s327 + $0xac] sm:$0xff]
      %v3035 = vld [vmem:[%s327 + $0xb4] sm:$0xff]
      %v3036 = vld [vmem:[%s327 + $0xc4] sm:$0xff]
      %v3037 = vld [vmem:[%s327 + $0xcc] sm:$0xff]
      %v3038 = vld [vmem:[%s327 + $0xdc] sm:$0xff]
      %v3039 = vld [vmem:[%s327 + $0xe4] sm:$0xff]
      %v3040 = vld [vmem:[%s327 + $0xf4] sm:$0xff]
      %v3041 = vld [vmem:[%s327 + $0xfc] sm:$0xff]
      %v3042 = vld [vmem:[%s327 + $0x10c] sm:$0xff]
      %v3043 = vld [vmem:[%s327 + $0x114] sm:$0xff]
      %v3044 = vld [vmem:[%s327 + $0x124] sm:$0xff]
      %v3045 = vld [vmem:[%s327 + $0x12c] sm:$0xff]
      %v3046 = vld [vmem:[%s327 + $0x13c] sm:$0xff]
      %v3047 = vld [vmem:[%s327 + $0x144] sm:$0xff]
      %v3048 = vld [vmem:[%s327 + $0x154] sm:$0xff]
      %v3049 = vld [vmem:[%s327 + $0x15c] sm:$0xff]
      %v3050 = vld [vmem:[%s327 + $0x16c] sm:$0xff]
      %v3051 = vld [vmem:[%s327 + $0x174] sm:$0xff]
      %s3052 = scalar_lea.vmem %s5, 16
      %v3053 = vld [vmem:[%s3052] sm:$0xff]
      %v3055 = vsel %vm374, %v3020, 0
      %v3058 = vsel %vm374, %v3021, 0
      %v3061 = vsel %vm374, %v3022, 0
      %v3064 = vsel %vm374, %v3023, 0
      %v3067 = vsel %vm374, %v3024, 0
      %v3070 = vsel %vm374, %v3025, 0
      %v3073 = vsel %vm374, %v3026, 0
      %v3076 = vsel %vm374, %v3027, 0
      %v3079 = vsel %vm374, %v3028, 0
      %v3082 = vsel %vm374, %v3029, 0
      %v3085 = vsel %vm374, %v3030, 0
      %v3088 = vsel %vm374, %v3031, 0
      %v3091 = vsel %vm374, %v3032, 0
      %v3094 = vsel %vm374, %v3033, 0
      %v3097 = vsel %vm374, %v3034, 0
      %v3100 = vsel %vm374, %v3035, 0
      %v3103 = vsel %vm374, %v3036, 0
      %v3106 = vsel %vm374, %v3037, 0
      %v3109 = vsel %vm374, %v3038, 0
      %v3112 = vsel %vm374, %v3039, 0
      %v3115 = vsel %vm374, %v3040, 0
      %v3118 = vsel %vm374, %v3041, 0
      %v3121 = vsel %vm374, %v3042, 0
      %v3124 = vsel %vm374, %v3043, 0
      %v3127 = vsel %vm374, %v3044, 0
      %v3130 = vsel %vm374, %v3045, 0
      %v3133 = vsel %vm374, %v3046, 0
      %v3136 = vsel %vm374, %v3047, 0
      %v3139 = vsel %vm374, %v3048, 0
      %v3142 = vsel %vm374, %v3049, 0
      %v3145 = vsel %vm374, %v3050, 0
      %v3148 = vsel %vm374, %v3051, 0
      %3150 = vmatprep.subr.mxu0 0.0
      %3151 = vmatpush1.msra.mxu0 0.0
      %3152 = vmatprep.subr.mxu0 0.0
      %3153 = vmatpush1.msra.mxu0 0.0
      %3154 = vmatprep.subr.mxu0 0.0
      %3155 = vmatpush1.msra.mxu0 0.0
      %3156 = vmatprep.subr.mxu0 0.0
      %3157 = vmatpush1.msra.mxu0 0.0
      %3158 = vmatprep.subr.mxu0 0.0
      %3159 = vmatpush1.msra.mxu0 0.0
      %3160 = vmatprep.subr.mxu0 0.0
      %3161 = vmatpush1.msra.mxu0 0.0
      %3162 = vmatprep.subr.mxu0 0.0
      %3163 = vmatpush1.msra.mxu0 0.0
      %3164 = vmatprep.subr.mxu0 0.0
      %3165 = vmatpush1.msra.mxu0 0.0
      %3166 = vmatprep.subr.mxu0 0.0
      %3167 = vmatpush1.msra.mxu0 0.0
      %3168 = vmatprep.subr.mxu0 0.0
      %3169 = vmatpush1.msra.mxu0 0.0
      %3170 = vmatprep.subr.mxu0 0.0
      %3171 = vmatpush1.msra.mxu0 0.0
      %3172 = vmatprep.subr.mxu0 0.0
      %3173 = vmatpush1.msra.mxu0 0.0
      %3174 = vmatprep.subr.mxu0 0.0
      %3175 = vmatpush1.msra.mxu0 0.0
      %3176 = vmatprep.subr.mxu0 0.0
      %3177 = vmatpush1.msra.mxu0 0.0
      %3178 = vmatprep.subr.mxu0 0.0
      %3179 = vmatpush1.msra.mxu0 0.0
      %3180 = vmatprep.subr.mxu0 0.0
      %3181 = vmatpush1.msra.mxu0 %v3053
      %3182 = vmatprep.subr.mxu0 0.0
      %3183 = vmatpush2.msra.mxu0 0.0
      %3184 = vmatprep.subr.mxu0 0.0
      %3185 = vmatpush2.msra.mxu0 0.0
      %3186 = vmatprep.subr.mxu0 0.0
      %3187 = vmatpush2.msra.mxu0 0.0
      %3188 = vmatprep.subr.mxu0 0.0
      %3189 = vmatpush2.msra.mxu0 0.0
      %3190 = vmatprep.subr.mxu0 0.0
      %3191 = vmatpush2.msra.mxu0 0.0
      %3192 = vmatprep.subr.mxu0 0.0
      %3193 = vmatpush2.msra.mxu0 0.0
      %3194 = vmatprep.subr.mxu0 0.0
      %3195 = vmatpush2.msra.mxu0 0.0
      %3196 = vmatprep.subr.mxu0 0.0
      %3197 = vmatpush2.msra.mxu0 0.0
      %3198 = vmatprep.subr.mxu0 0.0
      %3199 = vmatpush2.msra.mxu0 0.0
      %3200 = vmatprep.subr.mxu0 0.0
      %3201 = vmatpush2.msra.mxu0 0.0
      %3202 = vmatprep.subr.mxu0 0.0
      %3203 = vmatpush2.msra.mxu0 0.0
      %3204 = vmatprep.subr.mxu0 0.0
      %3205 = vmatpush2.msra.mxu0 0.0
      %3206 = vmatprep.subr.mxu0 0.0
      %3207 = vmatpush2.msra.mxu0 0.0
      %3208 = vmatprep.subr.mxu0 0.0
      %3209 = vmatpush2.msra.mxu0 0.0
      %3210 = vmatprep.subr.mxu0 0.0
      %3211 = vmatpush2.msra.mxu0 0.0
      %3212 = vmatprep.subr.mxu0 0.0
      %3213 = vmatpush2.msra.mxu0 0.0
      %3214 = vmatprep.mubr.f32.mxu0 0.0
      %3215 = vmatmul.mubr.f32.gmra.mxu0 %v3055
      %v3216 = vpop.f32.mrf.mxu0
      %v3217 = vadd.f32 0.0, %v3216
      %v3218 = vpop.f32.mrf.mxu0
      %3219 = vmatprep.mubr.f32.mxu0 0.0
      %3220 = vmatmul.mubr.f32.gmra.mxu0 %v3058
      %v3221 = vpop.f32.mrf.mxu0
      %v3222 = vadd.f32 0.0, %v3221
      %v3223 = vpop.f32.mrf.mxu0
      %3224 = vmatprep.mubr.f32.mxu0 0.0
      %3225 = vmatmul.mubr.f32.gmra.mxu0 %v3061
      %v3226 = vpop.f32.mrf.mxu0
      %v3227 = vadd.f32 0.0, %v3226
      %v3228 = vpop.f32.mrf.mxu0
      %3229 = vmatprep.mubr.f32.mxu0 0.0
      %3230 = vmatmul.mubr.f32.gmra.mxu0 %v3064
      %v3231 = vpop.f32.mrf.mxu0
      %v3232 = vadd.f32 0.0, %v3231
      %v3233 = vpop.f32.mrf.mxu0
      %3234 = vmatprep.mubr.f32.mxu0 0.0
      %3235 = vmatmul.mubr.f32.gmra.mxu0 %v3067
      %v3236 = vpop.f32.mrf.mxu0
      %v3237 = vadd.f32 0.0, %v3236
      %v3238 = vpop.f32.mrf.mxu0
      %3239 = vmatprep.mubr.f32.mxu0 0.0
      %3240 = vmatmul.mubr.f32.gmra.mxu0 %v3070
      %v3241 = vpop.f32.mrf.mxu0
      %v3242 = vadd.f32 0.0, %v3241
      %v3243 = vpop.f32.mrf.mxu0
      %3244 = vmatprep.mubr.f32.mxu0 0.0
      %3245 = vmatmul.mubr.f32.gmra.mxu0 %v3073
      %v3246 = vpop.f32.mrf.mxu0
      %v3247 = vadd.f32 0.0, %v3246
      %v3248 = vpop.f32.mrf.mxu0
      %3249 = vmatprep.mubr.f32.mxu0 0.0
      %3250 = vmatmul.mubr.f32.gmra.mxu0 %v3076
      %v3251 = vpop.f32.mrf.mxu0
      %v3252 = vadd.f32 0.0, %v3251
      %v3253 = vpop.f32.mrf.mxu0
      %3254 = vmatprep.mubr.f32.mxu0 0.0
      %3255 = vmatmul.mubr.f32.gmra.mxu0 %v3079
      %v3256 = vpop.f32.mrf.mxu0
      %v3257 = vadd.f32 0.0, %v3256
      %v3258 = vpop.f32.mrf.mxu0
      %3259 = vmatprep.mubr.f32.mxu0 0.0
      %3260 = vmatmul.mubr.f32.gmra.mxu0 %v3082
      %v3261 = vpop.f32.mrf.mxu0
      %v3262 = vadd.f32 0.0, %v3261
      %v3263 = vpop.f32.mrf.mxu0
      %3264 = vmatprep.mubr.f32.mxu0 0.0
      %3265 = vmatmul.mubr.f32.gmra.mxu0 %v3085
      %v3266 = vpop.f32.mrf.mxu0
      %v3267 = vadd.f32 0.0, %v3266
      %v3268 = vpop.f32.mrf.mxu0
      %3269 = vmatprep.mubr.f32.mxu0 0.0
      %3270 = vmatmul.mubr.f32.gmra.mxu0 %v3088
      %v3271 = vpop.f32.mrf.mxu0
      %v3272 = vadd.f32 0.0, %v3271
      %v3273 = vpop.f32.mrf.mxu0
      %3274 = vmatprep.mubr.f32.mxu0 0.0
      %3275 = vmatmul.mubr.f32.gmra.mxu0 %v3091
      %v3276 = vpop.f32.mrf.mxu0
      %v3277 = vadd.f32 0.0, %v3276
      %v3278 = vpop.f32.mrf.mxu0
      %3279 = vmatprep.mubr.f32.mxu0 0.0
      %3280 = vmatmul.mubr.f32.gmra.mxu0 %v3094
      %v3281 = vpop.f32.mrf.mxu0
      %v3282 = vadd.f32 0.0, %v3281
      %v3283 = vpop.f32.mrf.mxu0
      %3284 = vmatprep.mubr.f32.mxu0 0.0
      %3285 = vmatmul.mubr.f32.gmra.mxu0 %v3097
      %v3286 = vpop.f32.mrf.mxu0
      %v3287 = vadd.f32 0.0, %v3286
      %v3288 = vpop.f32.mrf.mxu0
      %3289 = vmatprep.mubr.f32.mxu0 0.0
      %3290 = vmatmul.mubr.f32.gmra.mxu0 %v3100
      %v3291 = vpop.f32.mrf.mxu0
      %v3292 = vadd.f32 0.0, %v3291
      %v3293 = vpop.f32.mrf.mxu0
      %3294 = vmatprep.mubr.f32.mxu0 0.0
      %3295 = vmatmul.mubr.f32.gmra.mxu0 %v3103
      %v3296 = vpop.f32.mrf.mxu0
      %v3297 = vadd.f32 0.0, %v3296
      %v3298 = vpop.f32.mrf.mxu0
      %3299 = vmatprep.mubr.f32.mxu0 0.0
      %3300 = vmatmul.mubr.f32.gmra.mxu0 %v3106
      %v3301 = vpop.f32.mrf.mxu0
      %v3302 = vadd.f32 0.0, %v3301
      %v3303 = vpop.f32.mrf.mxu0
      %3304 = vmatprep.mubr.f32.mxu0 0.0
      %3305 = vmatmul.mubr.f32.gmra.mxu0 %v3109
      %v3306 = vpop.f32.mrf.mxu0
      %v3307 = vadd.f32 0.0, %v3306
      %v3308 = vpop.f32.mrf.mxu0
      %3309 = vmatprep.mubr.f32.mxu0 0.0
      %3310 = vmatmul.mubr.f32.gmra.mxu0 %v3112
      %v3311 = vpop.f32.mrf.mxu0
      %v3312 = vadd.f32 0.0, %v3311
      %v3313 = vpop.f32.mrf.mxu0
      %3314 = vmatprep.mubr.f32.mxu0 0.0
      %3315 = vmatmul.mubr.f32.gmra.mxu0 %v3115
      %v3316 = vpop.f32.mrf.mxu0
      %v3317 = vadd.f32 0.0, %v3316
      %v3318 = vpop.f32.mrf.mxu0
      %3319 = vmatprep.mubr.f32.mxu0 0.0
      %3320 = vmatmul.mubr.f32.gmra.mxu0 %v3118
      %v3321 = vpop.f32.mrf.mxu0
      %v3322 = vadd.f32 0.0, %v3321
      %v3323 = vpop.f32.mrf.mxu0
      %3324 = vmatprep.mubr.f32.mxu0 0.0
      %3325 = vmatmul.mubr.f32.gmra.mxu0 %v3121
      %v3326 = vpop.f32.mrf.mxu0
      %v3327 = vadd.f32 0.0, %v3326
      %v3328 = vpop.f32.mrf.mxu0
      %3329 = vmatprep.mubr.f32.mxu0 0.0
      %3330 = vmatmul.mubr.f32.gmra.mxu0 %v3124
      %v3331 = vpop.f32.mrf.mxu0
      %v3332 = vadd.f32 0.0, %v3331
      %v3333 = vpop.f32.mrf.mxu0
      %3334 = vmatprep.mubr.f32.mxu0 0.0
      %3335 = vmatmul.mubr.f32.gmra.mxu0 %v3127
      %v3336 = vpop.f32.mrf.mxu0
      %v3337 = vadd.f32 0.0, %v3336
      %v3338 = vpop.f32.mrf.mxu0
      %3339 = vmatprep.mubr.f32.mxu0 0.0
      %3340 = vmatmul.mubr.f32.gmra.mxu0 %v3130
      %v3341 = vpop.f32.mrf.mxu0
      %v3342 = vadd.f32 0.0, %v3341
      %v3343 = vpop.f32.mrf.mxu0
      %3344 = vmatprep.mubr.f32.mxu0 0.0
      %3345 = vmatmul.mubr.f32.gmra.mxu0 %v3133
      %v3346 = vpop.f32.mrf.mxu0
      %v3347 = vadd.f32 0.0, %v3346
      %v3348 = vpop.f32.mrf.mxu0
      %3349 = vmatprep.mubr.f32.mxu0 0.0
      %3350 = vmatmul.mubr.f32.gmra.mxu0 %v3136
      %v3351 = vpop.f32.mrf.mxu0
      %v3352 = vadd.f32 0.0, %v3351
      %v3353 = vpop.f32.mrf.mxu0
      %3354 = vmatprep.mubr.f32.mxu0 0.0
      %3355 = vmatmul.mubr.f32.gmra.mxu0 %v3139
      %v3356 = vpop.f32.mrf.mxu0
      %v3357 = vadd.f32 0.0, %v3356
      %v3358 = vpop.f32.mrf.mxu0
      %3359 = vmatprep.mubr.f32.mxu0 0.0
      %3360 = vmatmul.mubr.f32.gmra.mxu0 %v3142
      %v3361 = vpop.f32.mrf.mxu0
      %v3362 = vadd.f32 0.0, %v3361
      %v3363 = vpop.f32.mrf.mxu0
      %3364 = vmatprep.mubr.f32.mxu0 0.0
      %3365 = vmatmul.mubr.f32.gmra.mxu0 %v3145
      %v3366 = vpop.f32.mrf.mxu0
      %v3367 = vadd.f32 0.0, %v3366
      %v3368 = vpop.f32.mrf.mxu0
      %3369 = vmatprep.mubr.f32.mxu0 0.0
      %3370 = vmatmul.mubr.f32.gmra.mxu0 %v3148
      %v3371 = vpop.f32.mrf.mxu0
      %v3372 = vadd.f32 0.0, %v3371
      %v3373 = vpop.f32.mrf.mxu0
      %3374 = vdwg.mxu0
      %v3375 = vadd.f32 %v2601, %v3217
      %v3376 = vadd.f32 %v2602, %v3222
      %v3377 = vadd.f32 %v2603, %v3227
      %v3378 = vadd.f32 %v2604, %v3232
      %v3379 = vadd.f32 %v2605, %v3237
      %v3380 = vadd.f32 %v2606, %v3242
      %v3381 = vadd.f32 %v2607, %v3247
      %v3382 = vadd.f32 %v2608, %v3252
      %v3383 = vadd.f32 %v2609, %v3257
      %v3384 = vadd.f32 %v2610, %v3262
      %v3385 = vadd.f32 %v2611, %v3267
      %v3386 = vadd.f32 %v2612, %v3272
      %v3387 = vadd.f32 %v2613, %v3277
      %v3388 = vadd.f32 %v2614, %v3282
      %v3389 = vadd.f32 %v2615, %v3287
      %v3390 = vadd.f32 %v2616, %v3292
      %v3391 = vadd.f32 %v2617, %v3297
      %v3392 = vadd.f32 %v2618, %v3302
      %v3393 = vadd.f32 %v2619, %v3307
      %v3394 = vadd.f32 %v2620, %v3312
      %v3395 = vadd.f32 %v2621, %v3317
      %v3396 = vadd.f32 %v2622, %v3322
      %v3397 = vadd.f32 %v2623, %v3327
      %v3398 = vadd.f32 %v2624, %v3332
      %v3399 = vadd.f32 %v2625, %v3337
      %v3400 = vadd.f32 %v2626, %v3342
      %v3401 = vadd.f32 %v2627, %v3347
      %v3402 = vadd.f32 %v2628, %v3352
      %v3403 = vadd.f32 %v2629, %v3357
      %v3404 = vadd.f32 %v2630, %v3362
      %v3405 = vadd.f32 %v2631, %v3367
      %v3406 = vadd.f32 %v2632, %v3372
      %v3407 = vld [vmem:[%s333 + $0x1] sm:$0xff]
      %v3408 = vld [vmem:[%s333 + $0x9] sm:$0xff]
      %v3409 = vld [vmem:[%s333 + $0x19] sm:$0xff]
      %v3410 = vld [vmem:[%s333 + $0x21] sm:$0xff]
      %v3411 = vld [vmem:[%s333 + $0x31] sm:$0xff]
      %v3412 = vld [vmem:[%s333 + $0x39] sm:$0xff]
      %v3413 = vld [vmem:[%s333 + $0x49] sm:$0xff]
      %v3414 = vld [vmem:[%s333 + $0x51] sm:$0xff]
      %v3415 = vld [vmem:[%s333 + $0x61] sm:$0xff]
      %v3416 = vld [vmem:[%s333 + $0x69] sm:$0xff]
      %v3417 = vld [vmem:[%s333 + $0x79] sm:$0xff]
      %v3418 = vld [vmem:[%s333 + $0x81] sm:$0xff]
      %v3419 = vld [vmem:[%s333 + $0x91] sm:$0xff]
      %v3420 = vld [vmem:[%s333 + $0x99] sm:$0xff]
      %v3421 = vld [vmem:[%s333 + $0xa9] sm:$0xff]
      %v3422 = vld [vmem:[%s333 + $0xb1] sm:$0xff]
      %v3423 = vld [vmem:[%s333 + $0xc1] sm:$0xff]
      %v3424 = vld [vmem:[%s333 + $0xc9] sm:$0xff]
      %v3425 = vld [vmem:[%s333 + $0xd9] sm:$0xff]
      %v3426 = vld [vmem:[%s333 + $0xe1] sm:$0xff]
      %v3427 = vld [vmem:[%s333 + $0xf1] sm:$0xff]
      %v3428 = vld [vmem:[%s333 + $0xf9] sm:$0xff]
      %v3429 = vld [vmem:[%s333 + $0x109] sm:$0xff]
      %v3430 = vld [vmem:[%s333 + $0x111] sm:$0xff]
      %v3431 = vld [vmem:[%s333 + $0x121] sm:$0xff]
      %v3432 = vld [vmem:[%s333 + $0x129] sm:$0xff]
      %v3433 = vld [vmem:[%s333 + $0x139] sm:$0xff]
      %v3434 = vld [vmem:[%s333 + $0x141] sm:$0xff]
      %v3435 = vld [vmem:[%s333 + $0x151] sm:$0xff]
      %v3436 = vld [vmem:[%s333 + $0x159] sm:$0xff]
      %v3437 = vld [vmem:[%s333 + $0x169] sm:$0xff]
      %v3438 = vld [vmem:[%s333 + $0x171] sm:$0xff]
      %s3439 = scalar_lea.vmem %s3, 24
      %v3440 = vld [vmem:[%s3439] sm:$0xff]
      %v3442 = vsel %vm374, %v3407, 0
      %v3445 = vsel %vm374, %v3408, 0
      %v3448 = vsel %vm374, %v3409, 0
      %v3451 = vsel %vm374, %v3410, 0
      %v3454 = vsel %vm374, %v3411, 0
      %v3457 = vsel %vm374, %v3412, 0
      %v3460 = vsel %vm374, %v3413, 0
      %v3463 = vsel %vm374, %v3414, 0
      %v3466 = vsel %vm374, %v3415, 0
      %v3469 = vsel %vm374, %v3416, 0
      %v3472 = vsel %vm374, %v3417, 0
      %v3475 = vsel %vm374, %v3418, 0
      %v3478 = vsel %vm374, %v3419, 0
      %v3481 = vsel %vm374, %v3420, 0
      %v3484 = vsel %vm374, %v3421, 0
      %v3487 = vsel %vm374, %v3422, 0
      %v3490 = vsel %vm374, %v3423, 0
      %v3493 = vsel %vm374, %v3424, 0
      %v3496 = vsel %vm374, %v3425, 0
      %v3499 = vsel %vm374, %v3426, 0
      %v3502 = vsel %vm374, %v3427, 0
      %v3505 = vsel %vm374, %v3428, 0
      %v3508 = vsel %vm374, %v3429, 0
      %v3511 = vsel %vm374, %v3430, 0
      %v3514 = vsel %vm374, %v3431, 0
      %v3517 = vsel %vm374, %v3432, 0
      %v3520 = vsel %vm374, %v3433, 0
      %v3523 = vsel %vm374, %v3434, 0
      %v3526 = vsel %vm374, %v3435, 0
      %v3529 = vsel %vm374, %v3436, 0
      %v3532 = vsel %vm374, %v3437, 0
      %v3535 = vsel %vm374, %v3438, 0
      %3537 = vmatprep.subr.mxu0 0.0
      %3538 = vmatpush1.msra.mxu0 0.0
      %3539 = vmatprep.subr.mxu0 0.0
      %3540 = vmatpush1.msra.mxu0 0.0
      %3541 = vmatprep.subr.mxu0 0.0
      %3542 = vmatpush1.msra.mxu0 0.0
      %3543 = vmatprep.subr.mxu0 0.0
      %3544 = vmatpush1.msra.mxu0 0.0
      %3545 = vmatprep.subr.mxu0 0.0
      %3546 = vmatpush1.msra.mxu0 0.0
      %3547 = vmatprep.subr.mxu0 0.0
      %3548 = vmatpush1.msra.mxu0 0.0
      %3549 = vmatprep.subr.mxu0 0.0
      %3550 = vmatpush1.msra.mxu0 0.0
      %3551 = vmatprep.subr.mxu0 0.0
      %3552 = vmatpush1.msra.mxu0 0.0
      %3553 = vmatprep.subr.mxu0 0.0
      %3554 = vmatpush1.msra.mxu0 0.0
      %3555 = vmatprep.subr.mxu0 0.0
      %3556 = vmatpush1.msra.mxu0 0.0
      %3557 = vmatprep.subr.mxu0 0.0
      %3558 = vmatpush1.msra.mxu0 0.0
      %3559 = vmatprep.subr.mxu0 0.0
      %3560 = vmatpush1.msra.mxu0 0.0
      %3561 = vmatprep.subr.mxu0 0.0
      %3562 = vmatpush1.msra.mxu0 0.0
      %3563 = vmatprep.subr.mxu0 0.0
      %3564 = vmatpush1.msra.mxu0 0.0
      %3565 = vmatprep.subr.mxu0 0.0
      %3566 = vmatpush1.msra.mxu0 0.0
      %3567 = vmatprep.subr.mxu0 0.0
      %3568 = vmatpush1.msra.mxu0 %v3440
      %3569 = vmatprep.subr.mxu0 0.0
      %3570 = vmatpush2.msra.mxu0 0.0
      %3571 = vmatprep.subr.mxu0 0.0
      %3572 = vmatpush2.msra.mxu0 0.0
      %3573 = vmatprep.subr.mxu0 0.0
      %3574 = vmatpush2.msra.mxu0 0.0
      %3575 = vmatprep.subr.mxu0 0.0
      %3576 = vmatpush2.msra.mxu0 0.0
      %3577 = vmatprep.subr.mxu0 0.0
      %3578 = vmatpush2.msra.mxu0 0.0
      %3579 = vmatprep.subr.mxu0 0.0
      %3580 = vmatpush2.msra.mxu0 0.0
      %3581 = vmatprep.subr.mxu0 0.0
      %3582 = vmatpush2.msra.mxu0 0.0
      %3583 = vmatprep.subr.mxu0 0.0
      %3584 = vmatpush2.msra.mxu0 0.0
      %3585 = vmatprep.subr.mxu0 0.0
      %3586 = vmatpush2.msra.mxu0 0.0
      %3587 = vmatprep.subr.mxu0 0.0
      %3588 = vmatpush2.msra.mxu0 0.0
      %3589 = vmatprep.subr.mxu0 0.0
      %3590 = vmatpush2.msra.mxu0 0.0
      %3591 = vmatprep.subr.mxu0 0.0
      %3592 = vmatpush2.msra.mxu0 0.0
      %3593 = vmatprep.subr.mxu0 0.0
      %3594 = vmatpush2.msra.mxu0 0.0
      %3595 = vmatprep.subr.mxu0 0.0
      %3596 = vmatpush2.msra.mxu0 0.0
      %3597 = vmatprep.subr.mxu0 0.0
      %3598 = vmatpush2.msra.mxu0 0.0
      %3599 = vmatprep.subr.mxu0 0.0
      %3600 = vmatpush2.msra.mxu0 0.0
      %3601 = vmatprep.mubr.f32.mxu0 0.0
      %3602 = vmatmul.mubr.f32.gmra.mxu0 %v3442
      %v3603 = vpop.f32.mrf.mxu0
      %v3604 = vadd.f32 0.0, %v3603
      %v3605 = vpop.f32.mrf.mxu0
      %3606 = vmatprep.mubr.f32.mxu0 0.0
      %3607 = vmatmul.mubr.f32.gmra.mxu0 %v3445
      %v3608 = vpop.f32.mrf.mxu0
      %v3609 = vadd.f32 0.0, %v3608
      %v3610 = vpop.f32.mrf.mxu0
      %3611 = vmatprep.mubr.f32.mxu0 0.0
      %3612 = vmatmul.mubr.f32.gmra.mxu0 %v3448
      %v3613 = vpop.f32.mrf.mxu0
      %v3614 = vadd.f32 0.0, %v3613
      %v3615 = vpop.f32.mrf.mxu0
      %3616 = vmatprep.mubr.f32.mxu0 0.0
      %3617 = vmatmul.mubr.f32.gmra.mxu0 %v3451
      %v3618 = vpop.f32.mrf.mxu0
      %v3619 = vadd.f32 0.0, %v3618
      %v3620 = vpop.f32.mrf.mxu0
      %3621 = vmatprep.mubr.f32.mxu0 0.0
      %3622 = vmatmul.mubr.f32.gmra.mxu0 %v3454
      %v3623 = vpop.f32.mrf.mxu0
      %v3624 = vadd.f32 0.0, %v3623
      %v3625 = vpop.f32.mrf.mxu0
      %3626 = vmatprep.mubr.f32.mxu0 0.0
      %3627 = vmatmul.mubr.f32.gmra.mxu0 %v3457
      %v3628 = vpop.f32.mrf.mxu0
      %v3629 = vadd.f32 0.0, %v3628
      %v3630 = vpop.f32.mrf.mxu0
      %3631 = vmatprep.mubr.f32.mxu0 0.0
      %3632 = vmatmul.mubr.f32.gmra.mxu0 %v3460
      %v3633 = vpop.f32.mrf.mxu0
      %v3634 = vadd.f32 0.0, %v3633
      %v3635 = vpop.f32.mrf.mxu0
      %3636 = vmatprep.mubr.f32.mxu0 0.0
      %3637 = vmatmul.mubr.f32.gmra.mxu0 %v3463
      %v3638 = vpop.f32.mrf.mxu0
      %v3639 = vadd.f32 0.0, %v3638
      %v3640 = vpop.f32.mrf.mxu0
      %3641 = vmatprep.mubr.f32.mxu0 0.0
      %3642 = vmatmul.mubr.f32.gmra.mxu0 %v3466
      %v3643 = vpop.f32.mrf.mxu0
      %v3644 = vadd.f32 0.0, %v3643
      %v3645 = vpop.f32.mrf.mxu0
      %3646 = vmatprep.mubr.f32.mxu0 0.0
      %3647 = vmatmul.mubr.f32.gmra.mxu0 %v3469
      %v3648 = vpop.f32.mrf.mxu0
      %v3649 = vadd.f32 0.0, %v3648
      %v3650 = vpop.f32.mrf.mxu0
      %3651 = vmatprep.mubr.f32.mxu0 0.0
      %3652 = vmatmul.mubr.f32.gmra.mxu0 %v3472
      %v3653 = vpop.f32.mrf.mxu0
      %v3654 = vadd.f32 0.0, %v3653
      %v3655 = vpop.f32.mrf.mxu0
      %3656 = vmatprep.mubr.f32.mxu0 0.0
      %3657 = vmatmul.mubr.f32.gmra.mxu0 %v3475
      %v3658 = vpop.f32.mrf.mxu0
      %v3659 = vadd.f32 0.0, %v3658
      %v3660 = vpop.f32.mrf.mxu0
      %3661 = vmatprep.mubr.f32.mxu0 0.0
      %3662 = vmatmul.mubr.f32.gmra.mxu0 %v3478
      %v3663 = vpop.f32.mrf.mxu0
      %v3664 = vadd.f32 0.0, %v3663
      %v3665 = vpop.f32.mrf.mxu0
      %3666 = vmatprep.mubr.f32.mxu0 0.0
      %3667 = vmatmul.mubr.f32.gmra.mxu0 %v3481
      %v3668 = vpop.f32.mrf.mxu0
      %v3669 = vadd.f32 0.0, %v3668
      %v3670 = vpop.f32.mrf.mxu0
      %3671 = vmatprep.mubr.f32.mxu0 0.0
      %3672 = vmatmul.mubr.f32.gmra.mxu0 %v3484
      %v3673 = vpop.f32.mrf.mxu0
      %v3674 = vadd.f32 0.0, %v3673
      %v3675 = vpop.f32.mrf.mxu0
      %3676 = vmatprep.mubr.f32.mxu0 0.0
      %3677 = vmatmul.mubr.f32.gmra.mxu0 %v3487
      %v3678 = vpop.f32.mrf.mxu0
      %v3679 = vadd.f32 0.0, %v3678
      %v3680 = vpop.f32.mrf.mxu0
      %3681 = vmatprep.mubr.f32.mxu0 0.0
      %3682 = vmatmul.mubr.f32.gmra.mxu0 %v3490
      %v3683 = vpop.f32.mrf.mxu0
      %v3684 = vadd.f32 0.0, %v3683
      %v3685 = vpop.f32.mrf.mxu0
      %3686 = vmatprep.mubr.f32.mxu0 0.0
      %3687 = vmatmul.mubr.f32.gmra.mxu0 %v3493
      %v3688 = vpop.f32.mrf.mxu0
      %v3689 = vadd.f32 0.0, %v3688
      %v3690 = vpop.f32.mrf.mxu0
      %3691 = vmatprep.mubr.f32.mxu0 0.0
      %3692 = vmatmul.mubr.f32.gmra.mxu0 %v3496
      %v3693 = vpop.f32.mrf.mxu0
      %v3694 = vadd.f32 0.0, %v3693
      %v3695 = vpop.f32.mrf.mxu0
      %3696 = vmatprep.mubr.f32.mxu0 0.0
      %3697 = vmatmul.mubr.f32.gmra.mxu0 %v3499
      %v3698 = vpop.f32.mrf.mxu0
      %v3699 = vadd.f32 0.0, %v3698
      %v3700 = vpop.f32.mrf.mxu0
      %3701 = vmatprep.mubr.f32.mxu0 0.0
      %3702 = vmatmul.mubr.f32.gmra.mxu0 %v3502
      %v3703 = vpop.f32.mrf.mxu0
      %v3704 = vadd.f32 0.0, %v3703
      %v3705 = vpop.f32.mrf.mxu0
      %3706 = vmatprep.mubr.f32.mxu0 0.0
      %3707 = vmatmul.mubr.f32.gmra.mxu0 %v3505
      %v3708 = vpop.f32.mrf.mxu0
      %v3709 = vadd.f32 0.0, %v3708
      %v3710 = vpop.f32.mrf.mxu0
      %3711 = vmatprep.mubr.f32.mxu0 0.0
      %3712 = vmatmul.mubr.f32.gmra.mxu0 %v3508
      %v3713 = vpop.f32.mrf.mxu0
      %v3714 = vadd.f32 0.0, %v3713
      %v3715 = vpop.f32.mrf.mxu0
      %3716 = vmatprep.mubr.f32.mxu0 0.0
      %3717 = vmatmul.mubr.f32.gmra.mxu0 %v3511
      %v3718 = vpop.f32.mrf.mxu0
      %v3719 = vadd.f32 0.0, %v3718
      %v3720 = vpop.f32.mrf.mxu0
      %3721 = vmatprep.mubr.f32.mxu0 0.0
      %3722 = vmatmul.mubr.f32.gmra.mxu0 %v3514
      %v3723 = vpop.f32.mrf.mxu0
      %v3724 = vadd.f32 0.0, %v3723
      %v3725 = vpop.f32.mrf.mxu0
      %3726 = vmatprep.mubr.f32.mxu0 0.0
      %3727 = vmatmul.mubr.f32.gmra.mxu0 %v3517
      %v3728 = vpop.f32.mrf.mxu0
      %v3729 = vadd.f32 0.0, %v3728
      %v3730 = vpop.f32.mrf.mxu0
      %3731 = vmatprep.mubr.f32.mxu0 0.0
      %3732 = vmatmul.mubr.f32.gmra.mxu0 %v3520
      %v3733 = vpop.f32.mrf.mxu0
      %v3734 = vadd.f32 0.0, %v3733
      %v3735 = vpop.f32.mrf.mxu0
      %3736 = vmatprep.mubr.f32.mxu0 0.0
      %3737 = vmatmul.mubr.f32.gmra.mxu0 %v3523
      %v3738 = vpop.f32.mrf.mxu0
      %v3739 = vadd.f32 0.0, %v3738
      %v3740 = vpop.f32.mrf.mxu0
      %3741 = vmatprep.mubr.f32.mxu0 0.0
      %3742 = vmatmul.mubr.f32.gmra.mxu0 %v3526
      %v3743 = vpop.f32.mrf.mxu0
      %v3744 = vadd.f32 0.0, %v3743
      %v3745 = vpop.f32.mrf.mxu0
      %3746 = vmatprep.mubr.f32.mxu0 0.0
      %3747 = vmatmul.mubr.f32.gmra.mxu0 %v3529
      %v3748 = vpop.f32.mrf.mxu0
      %v3749 = vadd.f32 0.0, %v3748
      %v3750 = vpop.f32.mrf.mxu0
      %3751 = vmatprep.mubr.f32.mxu0 0.0
      %3752 = vmatmul.mubr.f32.gmra.mxu0 %v3532
      %v3753 = vpop.f32.mrf.mxu0
      %v3754 = vadd.f32 0.0, %v3753
      %v3755 = vpop.f32.mrf.mxu0
      %3756 = vmatprep.mubr.f32.mxu0 0.0
      %3757 = vmatmul.mubr.f32.gmra.mxu0 %v3535
      %v3758 = vpop.f32.mrf.mxu0
      %v3759 = vadd.f32 0.0, %v3758
      %v3760 = vpop.f32.mrf.mxu0
      %3761 = vdwg.mxu0
      %v3762 = vadd.f32 %v2988, %v3604
      %v3763 = vadd.f32 %v2989, %v3609
      %v3764 = vadd.f32 %v2990, %v3614
      %v3765 = vadd.f32 %v2991, %v3619
      %v3766 = vadd.f32 %v2992, %v3624
      %v3767 = vadd.f32 %v2993, %v3629
      %v3768 = vadd.f32 %v2994, %v3634
      %v3769 = vadd.f32 %v2995, %v3639
      %v3770 = vadd.f32 %v2996, %v3644
      %v3771 = vadd.f32 %v2997, %v3649
      %v3772 = vadd.f32 %v2998, %v3654
      %v3773 = vadd.f32 %v2999, %v3659
      %v3774 = vadd.f32 %v3000, %v3664
      %v3775 = vadd.f32 %v3001, %v3669
      %v3776 = vadd.f32 %v3002, %v3674
      %v3777 = vadd.f32 %v3003, %v3679
      %v3778 = vadd.f32 %v3004, %v3684
      %v3779 = vadd.f32 %v3005, %v3689
      %v3780 = vadd.f32 %v3006, %v3694
      %v3781 = vadd.f32 %v3007, %v3699
      %v3782 = vadd.f32 %v3008, %v3704
      %v3783 = vadd.f32 %v3009, %v3709
      %v3784 = vadd.f32 %v3010, %v3714
      %v3785 = vadd.f32 %v3011, %v3719
      %v3786 = vadd.f32 %v3012, %v3724
      %v3787 = vadd.f32 %v3013, %v3729
      %v3788 = vadd.f32 %v3014, %v3734
      %v3789 = vadd.f32 %v3015, %v3739
      %v3790 = vadd.f32 %v3016, %v3744
      %v3791 = vadd.f32 %v3017, %v3749
      %v3792 = vadd.f32 %v3018, %v3754
      %v3793 = vadd.f32 %v3019, %v3759
      %v3794 = vld [vmem:[%s333] sm:$0xff]
      %v3795 = vld [vmem:[%s333 + $0x8] sm:$0xff]
      %v3796 = vld [vmem:[%s333 + $0x18] sm:$0xff]
      %v3797 = vld [vmem:[%s333 + $0x20] sm:$0xff]
      %v3798 = vld [vmem:[%s333 + $0x30] sm:$0xff]
      %v3799 = vld [vmem:[%s333 + $0x38] sm:$0xff]
      %v3800 = vld [vmem:[%s333 + $0x48] sm:$0xff]
      %v3801 = vld [vmem:[%s333 + $0x50] sm:$0xff]
      %v3802 = vld [vmem:[%s333 + $0x60] sm:$0xff]
      %v3803 = vld [vmem:[%s333 + $0x68] sm:$0xff]
      %v3804 = vld [vmem:[%s333 + $0x78] sm:$0xff]
      %v3805 = vld [vmem:[%s333 + $0x80] sm:$0xff]
      %v3806 = vld [vmem:[%s333 + $0x90] sm:$0xff]
      %v3807 = vld [vmem:[%s333 + $0x98] sm:$0xff]
      %v3808 = vld [vmem:[%s333 + $0xa8] sm:$0xff]
      %v3809 = vld [vmem:[%s333 + $0xb0] sm:$0xff]
      %v3810 = vld [vmem:[%s333 + $0xc0] sm:$0xff]
      %v3811 = vld [vmem:[%s333 + $0xc8] sm:$0xff]
      %v3812 = vld [vmem:[%s333 + $0xd8] sm:$0xff]
      %v3813 = vld [vmem:[%s333 + $0xe0] sm:$0xff]
      %v3814 = vld [vmem:[%s333 + $0xf0] sm:$0xff]
      %v3815 = vld [vmem:[%s333 + $0xf8] sm:$0xff]
      %v3816 = vld [vmem:[%s333 + $0x108] sm:$0xff]
      %v3817 = vld [vmem:[%s333 + $0x110] sm:$0xff]
      %v3818 = vld [vmem:[%s333 + $0x120] sm:$0xff]
      %v3819 = vld [vmem:[%s333 + $0x128] sm:$0xff]
      %v3820 = vld [vmem:[%s333 + $0x138] sm:$0xff]
      %v3821 = vld [vmem:[%s333 + $0x140] sm:$0xff]
      %v3822 = vld [vmem:[%s333 + $0x150] sm:$0xff]
      %v3823 = vld [vmem:[%s333 + $0x158] sm:$0xff]
      %v3824 = vld [vmem:[%s333 + $0x168] sm:$0xff]
      %v3825 = vld [vmem:[%s333 + $0x170] sm:$0xff]
      %s3826 = scalar_lea.vmem %s5, 24
      %v3827 = vld [vmem:[%s3826] sm:$0xff]
      %v3829 = vsel %vm374, %v3794, 0
      %v3832 = vsel %vm374, %v3795, 0
      %v3835 = vsel %vm374, %v3796, 0
      %v3838 = vsel %vm374, %v3797, 0
      %v3841 = vsel %vm374, %v3798, 0
      %v3844 = vsel %vm374, %v3799, 0
      %v3847 = vsel %vm374, %v3800, 0
      %v3850 = vsel %vm374, %v3801, 0
      %v3853 = vsel %vm374, %v3802, 0
      %v3856 = vsel %vm374, %v3803, 0
      %v3859 = vsel %vm374, %v3804, 0
      %v3862 = vsel %vm374, %v3805, 0
      %v3865 = vsel %vm374, %v3806, 0
      %v3868 = vsel %vm374, %v3807, 0
      %v3871 = vsel %vm374, %v3808, 0
      %v3874 = vsel %vm374, %v3809, 0
      %v3877 = vsel %vm374, %v3810, 0
      %v3880 = vsel %vm374, %v3811, 0
      %v3883 = vsel %vm374, %v3812, 0
      %v3886 = vsel %vm374, %v3813, 0
      %v3889 = vsel %vm374, %v3814, 0
      %v3892 = vsel %vm374, %v3815, 0
      %v3895 = vsel %vm374, %v3816, 0
      %v3898 = vsel %vm374, %v3817, 0
      %v3901 = vsel %vm374, %v3818, 0
      %v3904 = vsel %vm374, %v3819, 0
      %v3907 = vsel %vm374, %v3820, 0
      %v3910 = vsel %vm374, %v3821, 0
      %v3913 = vsel %vm374, %v3822, 0
      %v3916 = vsel %vm374, %v3823, 0
      %v3919 = vsel %vm374, %v3824, 0
      %v3922 = vsel %vm374, %v3825, 0
      %3924 = vmatprep.subr.mxu0 0.0
      %3925 = vmatpush1.msra.mxu0 0.0
      %3926 = vmatprep.subr.mxu0 0.0
      %3927 = vmatpush1.msra.mxu0 0.0
      %3928 = vmatprep.subr.mxu0 0.0
      %3929 = vmatpush1.msra.mxu0 0.0
      %3930 = vmatprep.subr.mxu0 0.0
      %3931 = vmatpush1.msra.mxu0 0.0
      %3932 = vmatprep.subr.mxu0 0.0
      %3933 = vmatpush1.msra.mxu0 0.0
      %3934 = vmatprep.subr.mxu0 0.0
      %3935 = vmatpush1.msra.mxu0 0.0
      %3936 = vmatprep.subr.mxu0 0.0
      %3937 = vmatpush1.msra.mxu0 0.0
      %3938 = vmatprep.subr.mxu0 0.0
      %3939 = vmatpush1.msra.mxu0 0.0
      %3940 = vmatprep.subr.mxu0 0.0
      %3941 = vmatpush1.msra.mxu0 0.0
      %3942 = vmatprep.subr.mxu0 0.0
      %3943 = vmatpush1.msra.mxu0 0.0
      %3944 = vmatprep.subr.mxu0 0.0
      %3945 = vmatpush1.msra.mxu0 0.0
      %3946 = vmatprep.subr.mxu0 0.0
      %3947 = vmatpush1.msra.mxu0 0.0
      %3948 = vmatprep.subr.mxu0 0.0
      %3949 = vmatpush1.msra.mxu0 0.0
      %3950 = vmatprep.subr.mxu0 0.0
      %3951 = vmatpush1.msra.mxu0 0.0
      %3952 = vmatprep.subr.mxu0 0.0
      %3953 = vmatpush1.msra.mxu0 0.0
      %3954 = vmatprep.subr.mxu0 0.0
      %3955 = vmatpush1.msra.mxu0 %v3827
      %3956 = vmatprep.subr.mxu0 0.0
      %3957 = vmatpush2.msra.mxu0 0.0
      %3958 = vmatprep.subr.mxu0 0.0
      %3959 = vmatpush2.msra.mxu0 0.0
      %3960 = vmatprep.subr.mxu0 0.0
      %3961 = vmatpush2.msra.mxu0 0.0
      %3962 = vmatprep.subr.mxu0 0.0
      %3963 = vmatpush2.msra.mxu0 0.0
      %3964 = vmatprep.subr.mxu0 0.0
      %3965 = vmatpush2.msra.mxu0 0.0
      %3966 = vmatprep.subr.mxu0 0.0
      %3967 = vmatpush2.msra.mxu0 0.0
      %3968 = vmatprep.subr.mxu0 0.0
      %3969 = vmatpush2.msra.mxu0 0.0
      %3970 = vmatprep.subr.mxu0 0.0
      %3971 = vmatpush2.msra.mxu0 0.0
      %3972 = vmatprep.subr.mxu0 0.0
      %3973 = vmatpush2.msra.mxu0 0.0
      %3974 = vmatprep.subr.mxu0 0.0
      %3975 = vmatpush2.msra.mxu0 0.0
      %3976 = vmatprep.subr.mxu0 0.0
      %3977 = vmatpush2.msra.mxu0 0.0
      %3978 = vmatprep.subr.mxu0 0.0
      %3979 = vmatpush2.msra.mxu0 0.0
      %3980 = vmatprep.subr.mxu0 0.0
      %3981 = vmatpush2.msra.mxu0 0.0
      %3982 = vmatprep.subr.mxu0 0.0
      %3983 = vmatpush2.msra.mxu0 0.0
      %3984 = vmatprep.subr.mxu0 0.0
      %3985 = vmatpush2.msra.mxu0 0.0
      %3986 = vmatprep.subr.mxu0 0.0
      %3987 = vmatpush2.msra.mxu0 0.0
      %3988 = vmatprep.mubr.f32.mxu0 0.0
      %3989 = vmatmul.mubr.f32.gmra.mxu0 %v3829
      %v3990 = vpop.f32.mrf.mxu0
      %v3991 = vadd.f32 0.0, %v3990
      %v3992 = vpop.f32.mrf.mxu0
      %3993 = vmatprep.mubr.f32.mxu0 0.0
      %3994 = vmatmul.mubr.f32.gmra.mxu0 %v3832
      %v3995 = vpop.f32.mrf.mxu0
      %v3996 = vadd.f32 0.0, %v3995
      %v3997 = vpop.f32.mrf.mxu0
      %3998 = vmatprep.mubr.f32.mxu0 0.0
      %3999 = vmatmul.mubr.f32.gmra.mxu0 %v3835
      %v4000 = vpop.f32.mrf.mxu0
      %v4001 = vadd.f32 0.0, %v4000
      %v4002 = vpop.f32.mrf.mxu0
      %4003 = vmatprep.mubr.f32.mxu0 0.0
      %4004 = vmatmul.mubr.f32.gmra.mxu0 %v3838
      %v4005 = vpop.f32.mrf.mxu0
      %v4006 = vadd.f32 0.0, %v4005
      %v4007 = vpop.f32.mrf.mxu0
      %4008 = vmatprep.mubr.f32.mxu0 0.0
      %4009 = vmatmul.mubr.f32.gmra.mxu0 %v3841
      %v4010 = vpop.f32.mrf.mxu0
      %v4011 = vadd.f32 0.0, %v4010
      %v4012 = vpop.f32.mrf.mxu0
      %4013 = vmatprep.mubr.f32.mxu0 0.0
      %4014 = vmatmul.mubr.f32.gmra.mxu0 %v3844
      %v4015 = vpop.f32.mrf.mxu0
      %v4016 = vadd.f32 0.0, %v4015
      %v4017 = vpop.f32.mrf.mxu0
      %4018 = vmatprep.mubr.f32.mxu0 0.0
      %4019 = vmatmul.mubr.f32.gmra.mxu0 %v3847
      %v4020 = vpop.f32.mrf.mxu0
      %v4021 = vadd.f32 0.0, %v4020
      %v4022 = vpop.f32.mrf.mxu0
      %4023 = vmatprep.mubr.f32.mxu0 0.0
      %4024 = vmatmul.mubr.f32.gmra.mxu0 %v3850
      %v4025 = vpop.f32.mrf.mxu0
      %v4026 = vadd.f32 0.0, %v4025
      %v4027 = vpop.f32.mrf.mxu0
      %4028 = vmatprep.mubr.f32.mxu0 0.0
      %4029 = vmatmul.mubr.f32.gmra.mxu0 %v3853
      %v4030 = vpop.f32.mrf.mxu0
      %v4031 = vadd.f32 0.0, %v4030
      %v4032 = vpop.f32.mrf.mxu0
      %4033 = vmatprep.mubr.f32.mxu0 0.0
      %4034 = vmatmul.mubr.f32.gmra.mxu0 %v3856
      %v4035 = vpop.f32.mrf.mxu0
      %v4036 = vadd.f32 0.0, %v4035
      %v4037 = vpop.f32.mrf.mxu0
      %4038 = vmatprep.mubr.f32.mxu0 0.0
      %4039 = vmatmul.mubr.f32.gmra.mxu0 %v3859
      %v4040 = vpop.f32.mrf.mxu0
      %v4041 = vadd.f32 0.0, %v4040
      %v4042 = vpop.f32.mrf.mxu0
      %4043 = vmatprep.mubr.f32.mxu0 0.0
      %4044 = vmatmul.mubr.f32.gmra.mxu0 %v3862
      %v4045 = vpop.f32.mrf.mxu0
      %v4046 = vadd.f32 0.0, %v4045
      %v4047 = vpop.f32.mrf.mxu0
      %4048 = vmatprep.mubr.f32.mxu0 0.0
      %4049 = vmatmul.mubr.f32.gmra.mxu0 %v3865
      %v4050 = vpop.f32.mrf.mxu0
      %v4051 = vadd.f32 0.0, %v4050
      %v4052 = vpop.f32.mrf.mxu0
      %4053 = vmatprep.mubr.f32.mxu0 0.0
      %4054 = vmatmul.mubr.f32.gmra.mxu0 %v3868
      %v4055 = vpop.f32.mrf.mxu0
      %v4056 = vadd.f32 0.0, %v4055
      %v4057 = vpop.f32.mrf.mxu0
      %4058 = vmatprep.mubr.f32.mxu0 0.0
      %4059 = vmatmul.mubr.f32.gmra.mxu0 %v3871
      %v4060 = vpop.f32.mrf.mxu0
      %v4061 = vadd.f32 0.0, %v4060
      %v4062 = vpop.f32.mrf.mxu0
      %4063 = vmatprep.mubr.f32.mxu0 0.0
      %4064 = vmatmul.mubr.f32.gmra.mxu0 %v3874
      %v4065 = vpop.f32.mrf.mxu0
      %v4066 = vadd.f32 0.0, %v4065
      %v4067 = vpop.f32.mrf.mxu0
      %4068 = vmatprep.mubr.f32.mxu0 0.0
      %4069 = vmatmul.mubr.f32.gmra.mxu0 %v3877
      %v4070 = vpop.f32.mrf.mxu0
      %v4071 = vadd.f32 0.0, %v4070
      %v4072 = vpop.f32.mrf.mxu0
      %4073 = vmatprep.mubr.f32.mxu0 0.0
      %4074 = vmatmul.mubr.f32.gmra.mxu0 %v3880
      %v4075 = vpop.f32.mrf.mxu0
      %v4076 = vadd.f32 0.0, %v4075
      %v4077 = vpop.f32.mrf.mxu0
      %4078 = vmatprep.mubr.f32.mxu0 0.0
      %4079 = vmatmul.mubr.f32.gmra.mxu0 %v3883
      %v4080 = vpop.f32.mrf.mxu0
      %v4081 = vadd.f32 0.0, %v4080
      %v4082 = vpop.f32.mrf.mxu0
      %4083 = vmatprep.mubr.f32.mxu0 0.0
      %4084 = vmatmul.mubr.f32.gmra.mxu0 %v3886
      %v4085 = vpop.f32.mrf.mxu0
      %v4086 = vadd.f32 0.0, %v4085
      %v4087 = vpop.f32.mrf.mxu0
      %4088 = vmatprep.mubr.f32.mxu0 0.0
      %4089 = vmatmul.mubr.f32.gmra.mxu0 %v3889
      %v4090 = vpop.f32.mrf.mxu0
      %v4091 = vadd.f32 0.0, %v4090
      %v4092 = vpop.f32.mrf.mxu0
      %4093 = vmatprep.mubr.f32.mxu0 0.0
      %4094 = vmatmul.mubr.f32.gmra.mxu0 %v3892
      %v4095 = vpop.f32.mrf.mxu0
      %v4096 = vadd.f32 0.0, %v4095
      %v4097 = vpop.f32.mrf.mxu0
      %4098 = vmatprep.mubr.f32.mxu0 0.0
      %4099 = vmatmul.mubr.f32.gmra.mxu0 %v3895
      %v4100 = vpop.f32.mrf.mxu0
      %v4101 = vadd.f32 0.0, %v4100
      %v4102 = vpop.f32.mrf.mxu0
      %4103 = vmatprep.mubr.f32.mxu0 0.0
      %4104 = vmatmul.mubr.f32.gmra.mxu0 %v3898
      %v4105 = vpop.f32.mrf.mxu0
      %v4106 = vadd.f32 0.0, %v4105
      %v4107 = vpop.f32.mrf.mxu0
      %4108 = vmatprep.mubr.f32.mxu0 0.0
      %4109 = vmatmul.mubr.f32.gmra.mxu0 %v3901
      %v4110 = vpop.f32.mrf.mxu0
      %v4111 = vadd.f32 0.0, %v4110
      %v4112 = vpop.f32.mrf.mxu0
      %4113 = vmatprep.mubr.f32.mxu0 0.0
      %4114 = vmatmul.mubr.f32.gmra.mxu0 %v3904
      %v4115 = vpop.f32.mrf.mxu0
      %v4116 = vadd.f32 0.0, %v4115
      %v4117 = vpop.f32.mrf.mxu0
      %4118 = vmatprep.mubr.f32.mxu0 0.0
      %4119 = vmatmul.mubr.f32.gmra.mxu0 %v3907
      %v4120 = vpop.f32.mrf.mxu0
      %v4121 = vadd.f32 0.0, %v4120
      %v4122 = vpop.f32.mrf.mxu0
      %4123 = vmatprep.mubr.f32.mxu0 0.0
      %4124 = vmatmul.mubr.f32.gmra.mxu0 %v3910
      %v4125 = vpop.f32.mrf.mxu0
      %v4126 = vadd.f32 0.0, %v4125
      %v4127 = vpop.f32.mrf.mxu0
      %4128 = vmatprep.mubr.f32.mxu0 0.0
      %4129 = vmatmul.mubr.f32.gmra.mxu0 %v3913
      %v4130 = vpop.f32.mrf.mxu0
      %v4131 = vadd.f32 0.0, %v4130
      %v4132 = vpop.f32.mrf.mxu0
      %4133 = vmatprep.mubr.f32.mxu0 0.0
      %4134 = vmatmul.mubr.f32.gmra.mxu0 %v3916
      %v4135 = vpop.f32.mrf.mxu0
      %v4136 = vadd.f32 0.0, %v4135
      %v4137 = vpop.f32.mrf.mxu0
      %4138 = vmatprep.mubr.f32.mxu0 0.0
      %4139 = vmatmul.mubr.f32.gmra.mxu0 %v3919
      %v4140 = vpop.f32.mrf.mxu0
      %v4141 = vadd.f32 0.0, %v4140
      %v4142 = vpop.f32.mrf.mxu0
      %4143 = vmatprep.mubr.f32.mxu0 0.0
      %4144 = vmatmul.mubr.f32.gmra.mxu0 %v3922
      %v4145 = vpop.f32.mrf.mxu0
      %v4146 = vadd.f32 0.0, %v4145
      %v4147 = vpop.f32.mrf.mxu0
      %4148 = vdwg.mxu0
      %v4149 = vadd.f32 %v3375, %v3991
      %v4150 = vadd.f32 %v3376, %v3996
      %v4151 = vadd.f32 %v3377, %v4001
      %v4152 = vadd.f32 %v3378, %v4006
      %v4153 = vadd.f32 %v3379, %v4011
      %v4154 = vadd.f32 %v3380, %v4016
      %v4155 = vadd.f32 %v3381, %v4021
      %v4156 = vadd.f32 %v3382, %v4026
      %v4157 = vadd.f32 %v3383, %v4031
      %v4158 = vadd.f32 %v3384, %v4036
      %v4159 = vadd.f32 %v3385, %v4041
      %v4160 = vadd.f32 %v3386, %v4046
      %v4161 = vadd.f32 %v3387, %v4051
      %v4162 = vadd.f32 %v3388, %v4056
      %v4163 = vadd.f32 %v3389, %v4061
      %v4164 = vadd.f32 %v3390, %v4066
      %v4165 = vadd.f32 %v3391, %v4071
      %v4166 = vadd.f32 %v3392, %v4076
      %v4167 = vadd.f32 %v3393, %v4081
      %v4168 = vadd.f32 %v3394, %v4086
      %v4169 = vadd.f32 %v3395, %v4091
      %v4170 = vadd.f32 %v3396, %v4096
      %v4171 = vadd.f32 %v3397, %v4101
      %v4172 = vadd.f32 %v3398, %v4106
      %v4173 = vadd.f32 %v3399, %v4111
      %v4174 = vadd.f32 %v3400, %v4116
      %v4175 = vadd.f32 %v3401, %v4121
      %v4176 = vadd.f32 %v3402, %v4126
      %v4177 = vadd.f32 %v3403, %v4131
      %v4178 = vadd.f32 %v3404, %v4136
      %v4179 = vadd.f32 %v3405, %v4141
      %v4180 = vadd.f32 %v3406, %v4146
      %v4181 = vld [vmem:[%s333 + $0x3] sm:$0xff]
      %v4182 = vld [vmem:[%s333 + $0xb] sm:$0xff]
      %v4183 = vld [vmem:[%s333 + $0x1b] sm:$0xff]
      %v4184 = vld [vmem:[%s333 + $0x23] sm:$0xff]
      %v4185 = vld [vmem:[%s333 + $0x33] sm:$0xff]
      %v4186 = vld [vmem:[%s333 + $0x3b] sm:$0xff]
      %v4187 = vld [vmem:[%s333 + $0x4b] sm:$0xff]
      %v4188 = vld [vmem:[%s333 + $0x53] sm:$0xff]
      %v4189 = vld [vmem:[%s333 + $0x63] sm:$0xff]
      %v4190 = vld [vmem:[%s333 + $0x6b] sm:$0xff]
      %v4191 = vld [vmem:[%s333 + $0x7b] sm:$0xff]
      %v4192 = vld [vmem:[%s333 + $0x83] sm:$0xff]
      %v4193 = vld [vmem:[%s333 + $0x93] sm:$0xff]
      %v4194 = vld [vmem:[%s333 + $0x9b] sm:$0xff]
      %v4195 = vld [vmem:[%s333 + $0xab] sm:$0xff]
      %v4196 = vld [vmem:[%s333 + $0xb3] sm:$0xff]
      %v4197 = vld [vmem:[%s333 + $0xc3] sm:$0xff]
      %v4198 = vld [vmem:[%s333 + $0xcb] sm:$0xff]
      %v4199 = vld [vmem:[%s333 + $0xdb] sm:$0xff]
      %v4200 = vld [vmem:[%s333 + $0xe3] sm:$0xff]
      %v4201 = vld [vmem:[%s333 + $0xf3] sm:$0xff]
      %v4202 = vld [vmem:[%s333 + $0xfb] sm:$0xff]
      %v4203 = vld [vmem:[%s333 + $0x10b] sm:$0xff]
      %v4204 = vld [vmem:[%s333 + $0x113] sm:$0xff]
      %v4205 = vld [vmem:[%s333 + $0x123] sm:$0xff]
      %v4206 = vld [vmem:[%s333 + $0x12b] sm:$0xff]
      %v4207 = vld [vmem:[%s333 + $0x13b] sm:$0xff]
      %v4208 = vld [vmem:[%s333 + $0x143] sm:$0xff]
      %v4209 = vld [vmem:[%s333 + $0x153] sm:$0xff]
      %v4210 = vld [vmem:[%s333 + $0x15b] sm:$0xff]
      %v4211 = vld [vmem:[%s333 + $0x16b] sm:$0xff]
      %v4212 = vld [vmem:[%s333 + $0x173] sm:$0xff]
      %s4213 = scalar_lea.vmem %s3, 40
      %v4214 = vld [vmem:[%s4213] sm:$0xff]
      %v4216 = vsel %vm374, %v4181, 0
      %v4219 = vsel %vm374, %v4182, 0
      %v4222 = vsel %vm374, %v4183, 0
      %v4225 = vsel %vm374, %v4184, 0
      %v4228 = vsel %vm374, %v4185, 0
      %v4231 = vsel %vm374, %v4186, 0
      %v4234 = vsel %vm374, %v4187, 0
      %v4237 = vsel %vm374, %v4188, 0
      %v4240 = vsel %vm374, %v4189, 0
      %v4243 = vsel %vm374, %v4190, 0
      %v4246 = vsel %vm374, %v4191, 0
      %v4249 = vsel %vm374, %v4192, 0
      %v4252 = vsel %vm374, %v4193, 0
      %v4255 = vsel %vm374, %v4194, 0
      %v4258 = vsel %vm374, %v4195, 0
      %v4261 = vsel %vm374, %v4196, 0
      %v4264 = vsel %vm374, %v4197, 0
      %v4267 = vsel %vm374, %v4198, 0
      %v4270 = vsel %vm374, %v4199, 0
      %v4273 = vsel %vm374, %v4200, 0
      %v4276 = vsel %vm374, %v4201, 0
      %v4279 = vsel %vm374, %v4202, 0
      %v4282 = vsel %vm374, %v4203, 0
      %v4285 = vsel %vm374, %v4204, 0
      %v4288 = vsel %vm374, %v4205, 0
      %v4291 = vsel %vm374, %v4206, 0
      %v4294 = vsel %vm374, %v4207, 0
      %v4297 = vsel %vm374, %v4208, 0
      %v4300 = vsel %vm374, %v4209, 0
      %v4303 = vsel %vm374, %v4210, 0
      %v4306 = vsel %vm374, %v4211, 0
      %v4309 = vsel %vm374, %v4212, 0
      %4311 = vmatprep.subr.mxu0 0.0
      %4312 = vmatpush1.msra.mxu0 0.0
      %4313 = vmatprep.subr.mxu0 0.0
      %4314 = vmatpush1.msra.mxu0 0.0
      %4315 = vmatprep.subr.mxu0 0.0
      %4316 = vmatpush1.msra.mxu0 0.0
      %4317 = vmatprep.subr.mxu0 0.0
      %4318 = vmatpush1.msra.mxu0 0.0
      %4319 = vmatprep.subr.mxu0 0.0
      %4320 = vmatpush1.msra.mxu0 0.0
      %4321 = vmatprep.subr.mxu0 0.0
      %4322 = vmatpush1.msra.mxu0 0.0
      %4323 = vmatprep.subr.mxu0 0.0
      %4324 = vmatpush1.msra.mxu0 0.0
      %4325 = vmatprep.subr.mxu0 0.0
      %4326 = vmatpush1.msra.mxu0 0.0
      %4327 = vmatprep.subr.mxu0 0.0
      %4328 = vmatpush1.msra.mxu0 0.0
      %4329 = vmatprep.subr.mxu0 0.0
      %4330 = vmatpush1.msra.mxu0 0.0
      %4331 = vmatprep.subr.mxu0 0.0
      %4332 = vmatpush1.msra.mxu0 0.0
      %4333 = vmatprep.subr.mxu0 0.0
      %4334 = vmatpush1.msra.mxu0 0.0
      %4335 = vmatprep.subr.mxu0 0.0
      %4336 = vmatpush1.msra.mxu0 0.0
      %4337 = vmatprep.subr.mxu0 0.0
      %4338 = vmatpush1.msra.mxu0 0.0
      %4339 = vmatprep.subr.mxu0 0.0
      %4340 = vmatpush1.msra.mxu0 0.0
      %4341 = vmatprep.subr.mxu0 0.0
      %4342 = vmatpush1.msra.mxu0 %v4214
      %4343 = vmatprep.subr.mxu0 0.0
      %4344 = vmatpush2.msra.mxu0 0.0
      %4345 = vmatprep.subr.mxu0 0.0
      %4346 = vmatpush2.msra.mxu0 0.0
      %4347 = vmatprep.subr.mxu0 0.0
      %4348 = vmatpush2.msra.mxu0 0.0
      %4349 = vmatprep.subr.mxu0 0.0
      %4350 = vmatpush2.msra.mxu0 0.0
      %4351 = vmatprep.subr.mxu0 0.0
      %4352 = vmatpush2.msra.mxu0 0.0
      %4353 = vmatprep.subr.mxu0 0.0
      %4354 = vmatpush2.msra.mxu0 0.0
      %4355 = vmatprep.subr.mxu0 0.0
      %4356 = vmatpush2.msra.mxu0 0.0
      %4357 = vmatprep.subr.mxu0 0.0
      %4358 = vmatpush2.msra.mxu0 0.0
      %4359 = vmatprep.subr.mxu0 0.0
      %4360 = vmatpush2.msra.mxu0 0.0
      %4361 = vmatprep.subr.mxu0 0.0
      %4362 = vmatpush2.msra.mxu0 0.0
      %4363 = vmatprep.subr.mxu0 0.0
      %4364 = vmatpush2.msra.mxu0 0.0
      %4365 = vmatprep.subr.mxu0 0.0
      %4366 = vmatpush2.msra.mxu0 0.0
      %4367 = vmatprep.subr.mxu0 0.0
      %4368 = vmatpush2.msra.mxu0 0.0
      %4369 = vmatprep.subr.mxu0 0.0
      %4370 = vmatpush2.msra.mxu0 0.0
      %4371 = vmatprep.subr.mxu0 0.0
      %4372 = vmatpush2.msra.mxu0 0.0
      %4373 = vmatprep.subr.mxu0 0.0
      %4374 = vmatpush2.msra.mxu0 0.0
      %4375 = vmatprep.mubr.f32.mxu0 0.0
      %4376 = vmatmul.mubr.f32.gmra.mxu0 %v4216
      %v4377 = vpop.f32.mrf.mxu0
      %v4378 = vadd.f32 0.0, %v4377
      %v4379 = vpop.f32.mrf.mxu0
      %4380 = vmatprep.mubr.f32.mxu0 0.0
      %4381 = vmatmul.mubr.f32.gmra.mxu0 %v4219
      %v4382 = vpop.f32.mrf.mxu0
      %v4383 = vadd.f32 0.0, %v4382
      %v4384 = vpop.f32.mrf.mxu0
      %4385 = vmatprep.mubr.f32.mxu0 0.0
      %4386 = vmatmul.mubr.f32.gmra.mxu0 %v4222
      %v4387 = vpop.f32.mrf.mxu0
      %v4388 = vadd.f32 0.0, %v4387
      %v4389 = vpop.f32.mrf.mxu0
      %4390 = vmatprep.mubr.f32.mxu0 0.0
      %4391 = vmatmul.mubr.f32.gmra.mxu0 %v4225
      %v4392 = vpop.f32.mrf.mxu0
      %v4393 = vadd.f32 0.0, %v4392
      %v4394 = vpop.f32.mrf.mxu0
      %4395 = vmatprep.mubr.f32.mxu0 0.0
      %4396 = vmatmul.mubr.f32.gmra.mxu0 %v4228
      %v4397 = vpop.f32.mrf.mxu0
      %v4398 = vadd.f32 0.0, %v4397
      %v4399 = vpop.f32.mrf.mxu0
      %4400 = vmatprep.mubr.f32.mxu0 0.0
      %4401 = vmatmul.mubr.f32.gmra.mxu0 %v4231
      %v4402 = vpop.f32.mrf.mxu0
      %v4403 = vadd.f32 0.0, %v4402
      %v4404 = vpop.f32.mrf.mxu0
      %4405 = vmatprep.mubr.f32.mxu0 0.0
      %4406 = vmatmul.mubr.f32.gmra.mxu0 %v4234
      %v4407 = vpop.f32.mrf.mxu0
      %v4408 = vadd.f32 0.0, %v4407
      %v4409 = vpop.f32.mrf.mxu0
      %4410 = vmatprep.mubr.f32.mxu0 0.0
      %4411 = vmatmul.mubr.f32.gmra.mxu0 %v4237
      %v4412 = vpop.f32.mrf.mxu0
      %v4413 = vadd.f32 0.0, %v4412
      %v4414 = vpop.f32.mrf.mxu0
      %4415 = vmatprep.mubr.f32.mxu0 0.0
      %4416 = vmatmul.mubr.f32.gmra.mxu0 %v4240
      %v4417 = vpop.f32.mrf.mxu0
      %v4418 = vadd.f32 0.0, %v4417
      %v4419 = vpop.f32.mrf.mxu0
      %4420 = vmatprep.mubr.f32.mxu0 0.0
      %4421 = vmatmul.mubr.f32.gmra.mxu0 %v4243
      %v4422 = vpop.f32.mrf.mxu0
      %v4423 = vadd.f32 0.0, %v4422
      %v4424 = vpop.f32.mrf.mxu0
      %4425 = vmatprep.mubr.f32.mxu0 0.0
      %4426 = vmatmul.mubr.f32.gmra.mxu0 %v4246
      %v4427 = vpop.f32.mrf.mxu0
      %v4428 = vadd.f32 0.0, %v4427
      %v4429 = vpop.f32.mrf.mxu0
      %4430 = vmatprep.mubr.f32.mxu0 0.0
      %4431 = vmatmul.mubr.f32.gmra.mxu0 %v4249
      %v4432 = vpop.f32.mrf.mxu0
      %v4433 = vadd.f32 0.0, %v4432
      %v4434 = vpop.f32.mrf.mxu0
      %4435 = vmatprep.mubr.f32.mxu0 0.0
      %4436 = vmatmul.mubr.f32.gmra.mxu0 %v4252
      %v4437 = vpop.f32.mrf.mxu0
      %v4438 = vadd.f32 0.0, %v4437
      %v4439 = vpop.f32.mrf.mxu0
      %4440 = vmatprep.mubr.f32.mxu0 0.0
      %4441 = vmatmul.mubr.f32.gmra.mxu0 %v4255
      %v4442 = vpop.f32.mrf.mxu0
      %v4443 = vadd.f32 0.0, %v4442
      %v4444 = vpop.f32.mrf.mxu0
      %4445 = vmatprep.mubr.f32.mxu0 0.0
      %4446 = vmatmul.mubr.f32.gmra.mxu0 %v4258
      %v4447 = vpop.f32.mrf.mxu0
      %v4448 = vadd.f32 0.0, %v4447
      %v4449 = vpop.f32.mrf.mxu0
      %4450 = vmatprep.mubr.f32.mxu0 0.0
      %4451 = vmatmul.mubr.f32.gmra.mxu0 %v4261
      %v4452 = vpop.f32.mrf.mxu0
      %v4453 = vadd.f32 0.0, %v4452
      %v4454 = vpop.f32.mrf.mxu0
      %4455 = vmatprep.mubr.f32.mxu0 0.0
      %4456 = vmatmul.mubr.f32.gmra.mxu0 %v4264
      %v4457 = vpop.f32.mrf.mxu0
      %v4458 = vadd.f32 0.0, %v4457
      %v4459 = vpop.f32.mrf.mxu0
      %4460 = vmatprep.mubr.f32.mxu0 0.0
      %4461 = vmatmul.mubr.f32.gmra.mxu0 %v4267
      %v4462 = vpop.f32.mrf.mxu0
      %v4463 = vadd.f32 0.0, %v4462
      %v4464 = vpop.f32.mrf.mxu0
      %4465 = vmatprep.mubr.f32.mxu0 0.0
      %4466 = vmatmul.mubr.f32.gmra.mxu0 %v4270
      %v4467 = vpop.f32.mrf.mxu0
      %v4468 = vadd.f32 0.0, %v4467
      %v4469 = vpop.f32.mrf.mxu0
      %4470 = vmatprep.mubr.f32.mxu0 0.0
      %4471 = vmatmul.mubr.f32.gmra.mxu0 %v4273
      %v4472 = vpop.f32.mrf.mxu0
      %v4473 = vadd.f32 0.0, %v4472
      %v4474 = vpop.f32.mrf.mxu0
      %4475 = vmatprep.mubr.f32.mxu0 0.0
      %4476 = vmatmul.mubr.f32.gmra.mxu0 %v4276
      %v4477 = vpop.f32.mrf.mxu0
      %v4478 = vadd.f32 0.0, %v4477
      %v4479 = vpop.f32.mrf.mxu0
      %4480 = vmatprep.mubr.f32.mxu0 0.0
      %4481 = vmatmul.mubr.f32.gmra.mxu0 %v4279
      %v4482 = vpop.f32.mrf.mxu0
      %v4483 = vadd.f32 0.0, %v4482
      %v4484 = vpop.f32.mrf.mxu0
      %4485 = vmatprep.mubr.f32.mxu0 0.0
      %4486 = vmatmul.mubr.f32.gmra.mxu0 %v4282
      %v4487 = vpop.f32.mrf.mxu0
      %v4488 = vadd.f32 0.0, %v4487
      %v4489 = vpop.f32.mrf.mxu0
      %4490 = vmatprep.mubr.f32.mxu0 0.0
      %4491 = vmatmul.mubr.f32.gmra.mxu0 %v4285
      %v4492 = vpop.f32.mrf.mxu0
      %v4493 = vadd.f32 0.0, %v4492
      %v4494 = vpop.f32.mrf.mxu0
      %4495 = vmatprep.mubr.f32.mxu0 0.0
      %4496 = vmatmul.mubr.f32.gmra.mxu0 %v4288
      %v4497 = vpop.f32.mrf.mxu0
      %v4498 = vadd.f32 0.0, %v4497
      %v4499 = vpop.f32.mrf.mxu0
      %4500 = vmatprep.mubr.f32.mxu0 0.0
      %4501 = vmatmul.mubr.f32.gmra.mxu0 %v4291
      %v4502 = vpop.f32.mrf.mxu0
      %v4503 = vadd.f32 0.0, %v4502
      %v4504 = vpop.f32.mrf.mxu0
      %4505 = vmatprep.mubr.f32.mxu0 0.0
      %4506 = vmatmul.mubr.f32.gmra.mxu0 %v4294
      %v4507 = vpop.f32.mrf.mxu0
      %v4508 = vadd.f32 0.0, %v4507
      %v4509 = vpop.f32.mrf.mxu0
      %4510 = vmatprep.mubr.f32.mxu0 0.0
      %4511 = vmatmul.mubr.f32.gmra.mxu0 %v4297
      %v4512 = vpop.f32.mrf.mxu0
      %v4513 = vadd.f32 0.0, %v4512
      %v4514 = vpop.f32.mrf.mxu0
      %4515 = vmatprep.mubr.f32.mxu0 0.0
      %4516 = vmatmul.mubr.f32.gmra.mxu0 %v4300
      %v4517 = vpop.f32.mrf.mxu0
      %v4518 = vadd.f32 0.0, %v4517
      %v4519 = vpop.f32.mrf.mxu0
      %4520 = vmatprep.mubr.f32.mxu0 0.0
      %4521 = vmatmul.mubr.f32.gmra.mxu0 %v4303
      %v4522 = vpop.f32.mrf.mxu0
      %v4523 = vadd.f32 0.0, %v4522
      %v4524 = vpop.f32.mrf.mxu0
      %4525 = vmatprep.mubr.f32.mxu0 0.0
      %4526 = vmatmul.mubr.f32.gmra.mxu0 %v4306
      %v4527 = vpop.f32.mrf.mxu0
      %v4528 = vadd.f32 0.0, %v4527
      %v4529 = vpop.f32.mrf.mxu0
      %4530 = vmatprep.mubr.f32.mxu0 0.0
      %4531 = vmatmul.mubr.f32.gmra.mxu0 %v4309
      %v4532 = vpop.f32.mrf.mxu0
      %v4533 = vadd.f32 0.0, %v4532
      %v4534 = vpop.f32.mrf.mxu0
      %4535 = vdwg.mxu0
      %v4536 = vadd.f32 %v3762, %v4378
      %v4537 = vadd.f32 %v3763, %v4383
      %v4538 = vadd.f32 %v3764, %v4388
      %v4539 = vadd.f32 %v3765, %v4393
      %v4540 = vadd.f32 %v3766, %v4398
      %v4541 = vadd.f32 %v3767, %v4403
      %v4542 = vadd.f32 %v3768, %v4408
      %v4543 = vadd.f32 %v3769, %v4413
      %v4544 = vadd.f32 %v3770, %v4418
      %v4545 = vadd.f32 %v3771, %v4423
      %v4546 = vadd.f32 %v3772, %v4428
      %v4547 = vadd.f32 %v3773, %v4433
      %v4548 = vadd.f32 %v3774, %v4438
      %v4549 = vadd.f32 %v3775, %v4443
      %v4550 = vadd.f32 %v3776, %v4448
      %v4551 = vadd.f32 %v3777, %v4453
      %v4552 = vadd.f32 %v3778, %v4458
      %v4553 = vadd.f32 %v3779, %v4463
      %v4554 = vadd.f32 %v3780, %v4468
      %v4555 = vadd.f32 %v3781, %v4473
      %v4556 = vadd.f32 %v3782, %v4478
      %v4557 = vadd.f32 %v3783, %v4483
      %v4558 = vadd.f32 %v3784, %v4488
      %v4559 = vadd.f32 %v3785, %v4493
      %v4560 = vadd.f32 %v3786, %v4498
      %v4561 = vadd.f32 %v3787, %v4503
      %v4562 = vadd.f32 %v3788, %v4508
      %v4563 = vadd.f32 %v3789, %v4513
      %v4564 = vadd.f32 %v3790, %v4518
      %v4565 = vadd.f32 %v3791, %v4523
      %v4566 = vadd.f32 %v3792, %v4528
      %v4567 = vadd.f32 %v3793, %v4533
      %v4568 = vld [vmem:[%s333 + $0x4] sm:$0xff]
      %v4569 = vld [vmem:[%s333 + $0xc] sm:$0xff]
      %v4570 = vld [vmem:[%s333 + $0x1c] sm:$0xff]
      %v4571 = vld [vmem:[%s333 + $0x24] sm:$0xff]
      %v4572 = vld [vmem:[%s333 + $0x34] sm:$0xff]
      %v4573 = vld [vmem:[%s333 + $0x3c] sm:$0xff]
      %v4574 = vld [vmem:[%s333 + $0x4c] sm:$0xff]
      %v4575 = vld [vmem:[%s333 + $0x54] sm:$0xff]
      %v4576 = vld [vmem:[%s333 + $0x64] sm:$0xff]
      %v4577 = vld [vmem:[%s333 + $0x6c] sm:$0xff]
      %v4578 = vld [vmem:[%s333 + $0x7c] sm:$0xff]
      %v4579 = vld [vmem:[%s333 + $0x84] sm:$0xff]
      %v4580 = vld [vmem:[%s333 + $0x94] sm:$0xff]
      %v4581 = vld [vmem:[%s333 + $0x9c] sm:$0xff]
      %v4582 = vld [vmem:[%s333 + $0xac] sm:$0xff]
      %v4583 = vld [vmem:[%s333 + $0xb4] sm:$0xff]
      %v4584 = vld [vmem:[%s333 + $0xc4] sm:$0xff]
      %v4585 = vld [vmem:[%s333 + $0xcc] sm:$0xff]
      %v4586 = vld [vmem:[%s333 + $0xdc] sm:$0xff]
      %v4587 = vld [vmem:[%s333 + $0xe4] sm:$0xff]
      %v4588 = vld [vmem:[%s333 + $0xf4] sm:$0xff]
      %v4589 = vld [vmem:[%s333 + $0xfc] sm:$0xff]
      %v4590 = vld [vmem:[%s333 + $0x10c] sm:$0xff]
      %v4591 = vld [vmem:[%s333 + $0x114] sm:$0xff]
      %v4592 = vld [vmem:[%s333 + $0x124] sm:$0xff]
      %v4593 = vld [vmem:[%s333 + $0x12c] sm:$0xff]
      %v4594 = vld [vmem:[%s333 + $0x13c] sm:$0xff]
      %v4595 = vld [vmem:[%s333 + $0x144] sm:$0xff]
      %v4596 = vld [vmem:[%s333 + $0x154] sm:$0xff]
      %v4597 = vld [vmem:[%s333 + $0x15c] sm:$0xff]
      %v4598 = vld [vmem:[%s333 + $0x16c] sm:$0xff]
      %v4599 = vld [vmem:[%s333 + $0x174] sm:$0xff]
      %s4600 = scalar_lea.vmem %s5, 40
      %v4601 = vld [vmem:[%s4600] sm:$0xff]
      %v4603 = vsel %vm374, %v4568, 0
      %v4606 = vsel %vm374, %v4569, 0
      %v4609 = vsel %vm374, %v4570, 0
      %v4612 = vsel %vm374, %v4571, 0
      %v4615 = vsel %vm374, %v4572, 0
      %v4618 = vsel %vm374, %v4573, 0
      %v4621 = vsel %vm374, %v4574, 0
      %v4624 = vsel %vm374, %v4575, 0
      %v4627 = vsel %vm374, %v4576, 0
      %v4630 = vsel %vm374, %v4577, 0
      %v4633 = vsel %vm374, %v4578, 0
      %v4636 = vsel %vm374, %v4579, 0
      %v4639 = vsel %vm374, %v4580, 0
      %v4642 = vsel %vm374, %v4581, 0
      %v4645 = vsel %vm374, %v4582, 0
      %v4648 = vsel %vm374, %v4583, 0
      %v4651 = vsel %vm374, %v4584, 0
      %v4654 = vsel %vm374, %v4585, 0
      %v4657 = vsel %vm374, %v4586, 0
      %v4660 = vsel %vm374, %v4587, 0
      %v4663 = vsel %vm374, %v4588, 0
      %v4666 = vsel %vm374, %v4589, 0
      %v4669 = vsel %vm374, %v4590, 0
      %v4672 = vsel %vm374, %v4591, 0
      %v4675 = vsel %vm374, %v4592, 0
      %v4678 = vsel %vm374, %v4593, 0
      %v4681 = vsel %vm374, %v4594, 0
      %v4684 = vsel %vm374, %v4595, 0
      %v4687 = vsel %vm374, %v4596, 0
      %v4690 = vsel %vm374, %v4597, 0
      %v4693 = vsel %vm374, %v4598, 0
      %v4696 = vsel %vm374, %v4599, 0
      %4698 = vmatprep.subr.mxu0 0.0
      %4699 = vmatpush1.msra.mxu0 0.0
      %4700 = vmatprep.subr.mxu0 0.0
      %4701 = vmatpush1.msra.mxu0 0.0
      %4702 = vmatprep.subr.mxu0 0.0
      %4703 = vmatpush1.msra.mxu0 0.0
      %4704 = vmatprep.subr.mxu0 0.0
      %4705 = vmatpush1.msra.mxu0 0.0
      %4706 = vmatprep.subr.mxu0 0.0
      %4707 = vmatpush1.msra.mxu0 0.0
      %4708 = vmatprep.subr.mxu0 0.0
      %4709 = vmatpush1.msra.mxu0 0.0
      %4710 = vmatprep.subr.mxu0 0.0
      %4711 = vmatpush1.msra.mxu0 0.0
      %4712 = vmatprep.subr.mxu0 0.0
      %4713 = vmatpush1.msra.mxu0 0.0
      %4714 = vmatprep.subr.mxu0 0.0
      %4715 = vmatpush1.msra.mxu0 0.0
      %4716 = vmatprep.subr.mxu0 0.0
      %4717 = vmatpush1.msra.mxu0 0.0
      %4718 = vmatprep.subr.mxu0 0.0
      %4719 = vmatpush1.msra.mxu0 0.0
      %4720 = vmatprep.subr.mxu0 0.0
      %4721 = vmatpush1.msra.mxu0 0.0
      %4722 = vmatprep.subr.mxu0 0.0
      %4723 = vmatpush1.msra.mxu0 0.0
      %4724 = vmatprep.subr.mxu0 0.0
      %4725 = vmatpush1.msra.mxu0 0.0
      %4726 = vmatprep.subr.mxu0 0.0
      %4727 = vmatpush1.msra.mxu0 0.0
      %4728 = vmatprep.subr.mxu0 0.0
      %4729 = vmatpush1.msra.mxu0 %v4601
      %4730 = vmatprep.subr.mxu0 0.0
      %4731 = vmatpush2.msra.mxu0 0.0
      %4732 = vmatprep.subr.mxu0 0.0
      %4733 = vmatpush2.msra.mxu0 0.0
      %4734 = vmatprep.subr.mxu0 0.0
      %4735 = vmatpush2.msra.mxu0 0.0
      %4736 = vmatprep.subr.mxu0 0.0
      %4737 = vmatpush2.msra.mxu0 0.0
      %4738 = vmatprep.subr.mxu0 0.0
      %4739 = vmatpush2.msra.mxu0 0.0
      %4740 = vmatprep.subr.mxu0 0.0
      %4741 = vmatpush2.msra.mxu0 0.0
      %4742 = vmatprep.subr.mxu0 0.0
      %4743 = vmatpush2.msra.mxu0 0.0
      %4744 = vmatprep.subr.mxu0 0.0
      %4745 = vmatpush2.msra.mxu0 0.0
      %4746 = vmatprep.subr.mxu0 0.0
      %4747 = vmatpush2.msra.mxu0 0.0
      %4748 = vmatprep.subr.mxu0 0.0
      %4749 = vmatpush2.msra.mxu0 0.0
      %4750 = vmatprep.subr.mxu0 0.0
      %4751 = vmatpush2.msra.mxu0 0.0
      %4752 = vmatprep.subr.mxu0 0.0
      %4753 = vmatpush2.msra.mxu0 0.0
      %4754 = vmatprep.subr.mxu0 0.0
      %4755 = vmatpush2.msra.mxu0 0.0
      %4756 = vmatprep.subr.mxu0 0.0
      %4757 = vmatpush2.msra.mxu0 0.0
      %4758 = vmatprep.subr.mxu0 0.0
      %4759 = vmatpush2.msra.mxu0 0.0
      %4760 = vmatprep.subr.mxu0 0.0
      %4761 = vmatpush2.msra.mxu0 0.0
      %4762 = vmatprep.mubr.f32.mxu0 0.0
      %4763 = vmatmul.mubr.f32.gmra.mxu0 %v4603
      %v4764 = vpop.f32.mrf.mxu0
      %v4765 = vadd.f32 0.0, %v4764
      %v4766 = vpop.f32.mrf.mxu0
      %4767 = vmatprep.mubr.f32.mxu0 0.0
      %4768 = vmatmul.mubr.f32.gmra.mxu0 %v4606
      %v4769 = vpop.f32.mrf.mxu0
      %v4770 = vadd.f32 0.0, %v4769
      %v4771 = vpop.f32.mrf.mxu0
      %4772 = vmatprep.mubr.f32.mxu0 0.0
      %4773 = vmatmul.mubr.f32.gmra.mxu0 %v4609
      %v4774 = vpop.f32.mrf.mxu0
      %v4775 = vadd.f32 0.0, %v4774
      %v4776 = vpop.f32.mrf.mxu0
      %4777 = vmatprep.mubr.f32.mxu0 0.0
      %4778 = vmatmul.mubr.f32.gmra.mxu0 %v4612
      %v4779 = vpop.f32.mrf.mxu0
      %v4780 = vadd.f32 0.0, %v4779
      %v4781 = vpop.f32.mrf.mxu0
      %4782 = vmatprep.mubr.f32.mxu0 0.0
      %4783 = vmatmul.mubr.f32.gmra.mxu0 %v4615
      %v4784 = vpop.f32.mrf.mxu0
      %v4785 = vadd.f32 0.0, %v4784
      %v4786 = vpop.f32.mrf.mxu0
      %4787 = vmatprep.mubr.f32.mxu0 0.0
      %4788 = vmatmul.mubr.f32.gmra.mxu0 %v4618
      %v4789 = vpop.f32.mrf.mxu0
      %v4790 = vadd.f32 0.0, %v4789
      %v4791 = vpop.f32.mrf.mxu0
      %4792 = vmatprep.mubr.f32.mxu0 0.0
      %4793 = vmatmul.mubr.f32.gmra.mxu0 %v4621
      %v4794 = vpop.f32.mrf.mxu0
      %v4795 = vadd.f32 0.0, %v4794
      %v4796 = vpop.f32.mrf.mxu0
      %4797 = vmatprep.mubr.f32.mxu0 0.0
      %4798 = vmatmul.mubr.f32.gmra.mxu0 %v4624
      %v4799 = vpop.f32.mrf.mxu0
      %v4800 = vadd.f32 0.0, %v4799
      %v4801 = vpop.f32.mrf.mxu0
      %4802 = vmatprep.mubr.f32.mxu0 0.0
      %4803 = vmatmul.mubr.f32.gmra.mxu0 %v4627
      %v4804 = vpop.f32.mrf.mxu0
      %v4805 = vadd.f32 0.0, %v4804
      %v4806 = vpop.f32.mrf.mxu0
      %4807 = vmatprep.mubr.f32.mxu0 0.0
      %4808 = vmatmul.mubr.f32.gmra.mxu0 %v4630
      %v4809 = vpop.f32.mrf.mxu0
      %v4810 = vadd.f32 0.0, %v4809
      %v4811 = vpop.f32.mrf.mxu0
      %4812 = vmatprep.mubr.f32.mxu0 0.0
      %4813 = vmatmul.mubr.f32.gmra.mxu0 %v4633
      %v4814 = vpop.f32.mrf.mxu0
      %v4815 = vadd.f32 0.0, %v4814
      %v4816 = vpop.f32.mrf.mxu0
      %4817 = vmatprep.mubr.f32.mxu0 0.0
      %4818 = vmatmul.mubr.f32.gmra.mxu0 %v4636
      %v4819 = vpop.f32.mrf.mxu0
      %v4820 = vadd.f32 0.0, %v4819
      %v4821 = vpop.f32.mrf.mxu0
      %4822 = vmatprep.mubr.f32.mxu0 0.0
      %4823 = vmatmul.mubr.f32.gmra.mxu0 %v4639
      %v4824 = vpop.f32.mrf.mxu0
      %v4825 = vadd.f32 0.0, %v4824
      %v4826 = vpop.f32.mrf.mxu0
      %4827 = vmatprep.mubr.f32.mxu0 0.0
      %4828 = vmatmul.mubr.f32.gmra.mxu0 %v4642
      %v4829 = vpop.f32.mrf.mxu0
      %v4830 = vadd.f32 0.0, %v4829
      %v4831 = vpop.f32.mrf.mxu0
      %4832 = vmatprep.mubr.f32.mxu0 0.0
      %4833 = vmatmul.mubr.f32.gmra.mxu0 %v4645
      %v4834 = vpop.f32.mrf.mxu0
      %v4835 = vadd.f32 0.0, %v4834
      %v4836 = vpop.f32.mrf.mxu0
      %4837 = vmatprep.mubr.f32.mxu0 0.0
      %4838 = vmatmul.mubr.f32.gmra.mxu0 %v4648
      %v4839 = vpop.f32.mrf.mxu0
      %v4840 = vadd.f32 0.0, %v4839
      %v4841 = vpop.f32.mrf.mxu0
      %4842 = vmatprep.mubr.f32.mxu0 0.0
      %4843 = vmatmul.mubr.f32.gmra.mxu0 %v4651
      %v4844 = vpop.f32.mrf.mxu0
      %v4845 = vadd.f32 0.0, %v4844
      %v4846 = vpop.f32.mrf.mxu0
      %4847 = vmatprep.mubr.f32.mxu0 0.0
      %4848 = vmatmul.mubr.f32.gmra.mxu0 %v4654
      %v4849 = vpop.f32.mrf.mxu0
      %v4850 = vadd.f32 0.0, %v4849
      %v4851 = vpop.f32.mrf.mxu0
      %4852 = vmatprep.mubr.f32.mxu0 0.0
      %4853 = vmatmul.mubr.f32.gmra.mxu0 %v4657
      %v4854 = vpop.f32.mrf.mxu0
      %v4855 = vadd.f32 0.0, %v4854
      %v4856 = vpop.f32.mrf.mxu0
      %4857 = vmatprep.mubr.f32.mxu0 0.0
      %4858 = vmatmul.mubr.f32.gmra.mxu0 %v4660
      %v4859 = vpop.f32.mrf.mxu0
      %v4860 = vadd.f32 0.0, %v4859
      %v4861 = vpop.f32.mrf.mxu0
      %4862 = vmatprep.mubr.f32.mxu0 0.0
      %4863 = vmatmul.mubr.f32.gmra.mxu0 %v4663
      %v4864 = vpop.f32.mrf.mxu0
      %v4865 = vadd.f32 0.0, %v4864
      %v4866 = vpop.f32.mrf.mxu0
      %4867 = vmatprep.mubr.f32.mxu0 0.0
      %4868 = vmatmul.mubr.f32.gmra.mxu0 %v4666
      %v4869 = vpop.f32.mrf.mxu0
      %v4870 = vadd.f32 0.0, %v4869
      %v4871 = vpop.f32.mrf.mxu0
      %4872 = vmatprep.mubr.f32.mxu0 0.0
      %4873 = vmatmul.mubr.f32.gmra.mxu0 %v4669
      %v4874 = vpop.f32.mrf.mxu0
      %v4875 = vadd.f32 0.0, %v4874
      %v4876 = vpop.f32.mrf.mxu0
      %4877 = vmatprep.mubr.f32.mxu0 0.0
      %4878 = vmatmul.mubr.f32.gmra.mxu0 %v4672
      %v4879 = vpop.f32.mrf.mxu0
      %v4880 = vadd.f32 0.0, %v4879
      %v4881 = vpop.f32.mrf.mxu0
      %4882 = vmatprep.mubr.f32.mxu0 0.0
      %4883 = vmatmul.mubr.f32.gmra.mxu0 %v4675
      %v4884 = vpop.f32.mrf.mxu0
      %v4885 = vadd.f32 0.0, %v4884
      %v4886 = vpop.f32.mrf.mxu0
      %4887 = vmatprep.mubr.f32.mxu0 0.0
      %4888 = vmatmul.mubr.f32.gmra.mxu0 %v4678
      %v4889 = vpop.f32.mrf.mxu0
      %v4890 = vadd.f32 0.0, %v4889
      %v4891 = vpop.f32.mrf.mxu0
      %4892 = vmatprep.mubr.f32.mxu0 0.0
      %4893 = vmatmul.mubr.f32.gmra.mxu0 %v4681
      %v4894 = vpop.f32.mrf.mxu0
      %v4895 = vadd.f32 0.0, %v4894
      %v4896 = vpop.f32.mrf.mxu0
      %4897 = vmatprep.mubr.f32.mxu0 0.0
      %4898 = vmatmul.mubr.f32.gmra.mxu0 %v4684
      %v4899 = vpop.f32.mrf.mxu0
      %v4900 = vadd.f32 0.0, %v4899
      %v4901 = vpop.f32.mrf.mxu0
      %4902 = vmatprep.mubr.f32.mxu0 0.0
      %4903 = vmatmul.mubr.f32.gmra.mxu0 %v4687
      %v4904 = vpop.f32.mrf.mxu0
      %v4905 = vadd.f32 0.0, %v4904
      %v4906 = vpop.f32.mrf.mxu0
      %4907 = vmatprep.mubr.f32.mxu0 0.0
      %4908 = vmatmul.mubr.f32.gmra.mxu0 %v4690
      %v4909 = vpop.f32.mrf.mxu0
      %v4910 = vadd.f32 0.0, %v4909
      %v4911 = vpop.f32.mrf.mxu0
      %4912 = vmatprep.mubr.f32.mxu0 0.0
      %4913 = vmatmul.mubr.f32.gmra.mxu0 %v4693
      %v4914 = vpop.f32.mrf.mxu0
      %v4915 = vadd.f32 0.0, %v4914
      %v4916 = vpop.f32.mrf.mxu0
      %4917 = vmatprep.mubr.f32.mxu0 0.0
      %4918 = vmatmul.mubr.f32.gmra.mxu0 %v4696
      %v4919 = vpop.f32.mrf.mxu0
      %v4920 = vadd.f32 0.0, %v4919
      %v4921 = vpop.f32.mrf.mxu0
      %4922 = vdwg.mxu0
      %v4923 = vadd.f32 %v4149, %v4765
      %v4924 = vadd.f32 %v4150, %v4770
      %v4925 = vadd.f32 %v4151, %v4775
      %v4926 = vadd.f32 %v4152, %v4780
      %v4927 = vadd.f32 %v4153, %v4785
      %v4928 = vadd.f32 %v4154, %v4790
      %v4929 = vadd.f32 %v4155, %v4795
      %v4930 = vadd.f32 %v4156, %v4800
      %v4931 = vadd.f32 %v4157, %v4805
      %v4932 = vadd.f32 %v4158, %v4810
      %v4933 = vadd.f32 %v4159, %v4815
      %v4934 = vadd.f32 %v4160, %v4820
      %v4935 = vadd.f32 %v4161, %v4825
      %v4936 = vadd.f32 %v4162, %v4830
      %v4937 = vadd.f32 %v4163, %v4835
      %v4938 = vadd.f32 %v4164, %v4840
      %v4939 = vadd.f32 %v4165, %v4845
      %v4940 = vadd.f32 %v4166, %v4850
      %v4941 = vadd.f32 %v4167, %v4855
      %v4942 = vadd.f32 %v4168, %v4860
      %v4943 = vadd.f32 %v4169, %v4865
      %v4944 = vadd.f32 %v4170, %v4870
      %v4945 = vadd.f32 %v4171, %v4875
      %v4946 = vadd.f32 %v4172, %v4880
      %v4947 = vadd.f32 %v4173, %v4885
      %v4948 = vadd.f32 %v4174, %v4890
      %v4949 = vadd.f32 %v4175, %v4895
      %v4950 = vadd.f32 %v4176, %v4900
      %v4951 = vadd.f32 %v4177, %v4905
      %v4952 = vadd.f32 %v4178, %v4910
      %v4953 = vadd.f32 %v4179, %v4915
      %v4954 = vadd.f32 %v4180, %v4920
      %s4955 = scalar_lea.vmem %s327, 72
      %v4956 = vld [vmem:[%s4955 + $0x1] sm:$0xff]
      %v4957 = vld [vmem:[%s4955 + $0x9] sm:$0xff]
      %v4958 = vld [vmem:[%s4955 + $0x19] sm:$0xff]
      %v4959 = vld [vmem:[%s4955 + $0x21] sm:$0xff]
      %v4960 = vld [vmem:[%s4955 + $0x31] sm:$0xff]
      %v4961 = vld [vmem:[%s4955 + $0x39] sm:$0xff]
      %v4962 = vld [vmem:[%s4955 + $0x49] sm:$0xff]
      %v4963 = vld [vmem:[%s4955 + $0x51] sm:$0xff]
      %v4964 = vld [vmem:[%s4955 + $0x61] sm:$0xff]
      %v4965 = vld [vmem:[%s4955 + $0x69] sm:$0xff]
      %v4966 = vld [vmem:[%s4955 + $0x79] sm:$0xff]
      %v4967 = vld [vmem:[%s4955 + $0x81] sm:$0xff]
      %v4968 = vld [vmem:[%s4955 + $0x91] sm:$0xff]
      %v4969 = vld [vmem:[%s4955 + $0x99] sm:$0xff]
      %v4970 = vld [vmem:[%s4955 + $0xa9] sm:$0xff]
      %v4971 = vld [vmem:[%s4955 + $0xb1] sm:$0xff]
      %v4972 = vld [vmem:[%s4955 + $0xc1] sm:$0xff]
      %v4973 = vld [vmem:[%s4955 + $0xc9] sm:$0xff]
      %v4974 = vld [vmem:[%s4955 + $0xd9] sm:$0xff]
      %v4975 = vld [vmem:[%s4955 + $0xe1] sm:$0xff]
      %v4976 = vld [vmem:[%s4955 + $0xf1] sm:$0xff]
      %v4977 = vld [vmem:[%s4955 + $0xf9] sm:$0xff]
      %v4978 = vld [vmem:[%s4955 + $0x109] sm:$0xff]
      %v4979 = vld [vmem:[%s4955 + $0x111] sm:$0xff]
      %v4980 = vld [vmem:[%s4955 + $0x121] sm:$0xff]
      %v4981 = vld [vmem:[%s4955 + $0x129] sm:$0xff]
      %v4982 = vld [vmem:[%s4955 + $0x139] sm:$0xff]
      %v4983 = vld [vmem:[%s4955 + $0x141] sm:$0xff]
      %v4984 = vld [vmem:[%s4955 + $0x151] sm:$0xff]
      %v4985 = vld [vmem:[%s4955 + $0x159] sm:$0xff]
      %v4986 = vld [vmem:[%s4955 + $0x169] sm:$0xff]
      %v4987 = vld [vmem:[%s4955 + $0x171] sm:$0xff]
      %s4988 = scalar_lea.vmem %s3, 48
      %v4989 = vld [vmem:[%s4988] sm:$0xff]
      %v4991 = vsel %vm374, %v4956, 0
      %v4994 = vsel %vm374, %v4957, 0
      %v4997 = vsel %vm374, %v4958, 0
      %v5000 = vsel %vm374, %v4959, 0
      %v5003 = vsel %vm374, %v4960, 0
      %v5006 = vsel %vm374, %v4961, 0
      %v5009 = vsel %vm374, %v4962, 0
      %v5012 = vsel %vm374, %v4963, 0
      %v5015 = vsel %vm374, %v4964, 0
      %v5018 = vsel %vm374, %v4965, 0
      %v5021 = vsel %vm374, %v4966, 0
      %v5024 = vsel %vm374, %v4967, 0
      %v5027 = vsel %vm374, %v4968, 0
      %v5030 = vsel %vm374, %v4969, 0
      %v5033 = vsel %vm374, %v4970, 0
      %v5036 = vsel %vm374, %v4971, 0
      %v5039 = vsel %vm374, %v4972, 0
      %v5042 = vsel %vm374, %v4973, 0
      %v5045 = vsel %vm374, %v4974, 0
      %v5048 = vsel %vm374, %v4975, 0
      %v5051 = vsel %vm374, %v4976, 0
      %v5054 = vsel %vm374, %v4977, 0
      %v5057 = vsel %vm374, %v4978, 0
      %v5060 = vsel %vm374, %v4979, 0
      %v5063 = vsel %vm374, %v4980, 0
      %v5066 = vsel %vm374, %v4981, 0
      %v5069 = vsel %vm374, %v4982, 0
      %v5072 = vsel %vm374, %v4983, 0
      %v5075 = vsel %vm374, %v4984, 0
      %v5078 = vsel %vm374, %v4985, 0
      %v5081 = vsel %vm374, %v4986, 0
      %v5084 = vsel %vm374, %v4987, 0
      %5086 = vmatprep.subr.mxu0 0.0
      %5087 = vmatpush1.msra.mxu0 0.0
      %5088 = vmatprep.subr.mxu0 0.0
      %5089 = vmatpush1.msra.mxu0 0.0
      %5090 = vmatprep.subr.mxu0 0.0
      %5091 = vmatpush1.msra.mxu0 0.0
      %5092 = vmatprep.subr.mxu0 0.0
      %5093 = vmatpush1.msra.mxu0 0.0
      %5094 = vmatprep.subr.mxu0 0.0
      %5095 = vmatpush1.msra.mxu0 0.0
      %5096 = vmatprep.subr.mxu0 0.0
      %5097 = vmatpush1.msra.mxu0 0.0
      %5098 = vmatprep.subr.mxu0 0.0
      %5099 = vmatpush1.msra.mxu0 0.0
      %5100 = vmatprep.subr.mxu0 0.0
      %5101 = vmatpush1.msra.mxu0 0.0
      %5102 = vmatprep.subr.mxu0 0.0
      %5103 = vmatpush1.msra.mxu0 0.0
      %5104 = vmatprep.subr.mxu0 0.0
      %5105 = vmatpush1.msra.mxu0 0.0
      %5106 = vmatprep.subr.mxu0 0.0
      %5107 = vmatpush1.msra.mxu0 0.0
      %5108 = vmatprep.subr.mxu0 0.0
      %5109 = vmatpush1.msra.mxu0 0.0
      %5110 = vmatprep.subr.mxu0 0.0
      %5111 = vmatpush1.msra.mxu0 0.0
      %5112 = vmatprep.subr.mxu0 0.0
      %5113 = vmatpush1.msra.mxu0 0.0
      %5114 = vmatprep.subr.mxu0 0.0
      %5115 = vmatpush1.msra.mxu0 0.0
      %5116 = vmatprep.subr.mxu0 0.0
      %5117 = vmatpush1.msra.mxu0 %v4989
      %5118 = vmatprep.subr.mxu0 0.0
      %5119 = vmatpush2.msra.mxu0 0.0
      %5120 = vmatprep.subr.mxu0 0.0
      %5121 = vmatpush2.msra.mxu0 0.0
      %5122 = vmatprep.subr.mxu0 0.0
      %5123 = vmatpush2.msra.mxu0 0.0
      %5124 = vmatprep.subr.mxu0 0.0
      %5125 = vmatpush2.msra.mxu0 0.0
      %5126 = vmatprep.subr.mxu0 0.0
      %5127 = vmatpush2.msra.mxu0 0.0
      %5128 = vmatprep.subr.mxu0 0.0
      %5129 = vmatpush2.msra.mxu0 0.0
      %5130 = vmatprep.subr.mxu0 0.0
      %5131 = vmatpush2.msra.mxu0 0.0
      %5132 = vmatprep.subr.mxu0 0.0
      %5133 = vmatpush2.msra.mxu0 0.0
      %5134 = vmatprep.subr.mxu0 0.0
      %5135 = vmatpush2.msra.mxu0 0.0
      %5136 = vmatprep.subr.mxu0 0.0
      %5137 = vmatpush2.msra.mxu0 0.0
      %5138 = vmatprep.subr.mxu0 0.0
      %5139 = vmatpush2.msra.mxu0 0.0
      %5140 = vmatprep.subr.mxu0 0.0
      %5141 = vmatpush2.msra.mxu0 0.0
      %5142 = vmatprep.subr.mxu0 0.0
      %5143 = vmatpush2.msra.mxu0 0.0
      %5144 = vmatprep.subr.mxu0 0.0
      %5145 = vmatpush2.msra.mxu0 0.0
      %5146 = vmatprep.subr.mxu0 0.0
      %5147 = vmatpush2.msra.mxu0 0.0
      %5148 = vmatprep.subr.mxu0 0.0
      %5149 = vmatpush2.msra.mxu0 0.0
      %5150 = vmatprep.mubr.f32.mxu0 0.0
      %5151 = vmatmul.mubr.f32.gmra.mxu0 %v4991
      %v5152 = vpop.f32.mrf.mxu0
      %v5153 = vadd.f32 0.0, %v5152
      %v5154 = vpop.f32.mrf.mxu0
      %5155 = vmatprep.mubr.f32.mxu0 0.0
      %5156 = vmatmul.mubr.f32.gmra.mxu0 %v4994
      %v5157 = vpop.f32.mrf.mxu0
      %v5158 = vadd.f32 0.0, %v5157
      %v5159 = vpop.f32.mrf.mxu0
      %5160 = vmatprep.mubr.f32.mxu0 0.0
      %5161 = vmatmul.mubr.f32.gmra.mxu0 %v4997
      %v5162 = vpop.f32.mrf.mxu0
      %v5163 = vadd.f32 0.0, %v5162
      %v5164 = vpop.f32.mrf.mxu0
      %5165 = vmatprep.mubr.f32.mxu0 0.0
      %5166 = vmatmul.mubr.f32.gmra.mxu0 %v5000
      %v5167 = vpop.f32.mrf.mxu0
      %v5168 = vadd.f32 0.0, %v5167
      %v5169 = vpop.f32.mrf.mxu0
      %5170 = vmatprep.mubr.f32.mxu0 0.0
      %5171 = vmatmul.mubr.f32.gmra.mxu0 %v5003
      %v5172 = vpop.f32.mrf.mxu0
      %v5173 = vadd.f32 0.0, %v5172
      %v5174 = vpop.f32.mrf.mxu0
      %5175 = vmatprep.mubr.f32.mxu0 0.0
      %5176 = vmatmul.mubr.f32.gmra.mxu0 %v5006
      %v5177 = vpop.f32.mrf.mxu0
      %v5178 = vadd.f32 0.0, %v5177
      %v5179 = vpop.f32.mrf.mxu0
      %5180 = vmatprep.mubr.f32.mxu0 0.0
      %5181 = vmatmul.mubr.f32.gmra.mxu0 %v5009
      %v5182 = vpop.f32.mrf.mxu0
      %v5183 = vadd.f32 0.0, %v5182
      %v5184 = vpop.f32.mrf.mxu0
      %5185 = vmatprep.mubr.f32.mxu0 0.0
      %5186 = vmatmul.mubr.f32.gmra.mxu0 %v5012
      %v5187 = vpop.f32.mrf.mxu0
      %v5188 = vadd.f32 0.0, %v5187
      %v5189 = vpop.f32.mrf.mxu0
      %5190 = vmatprep.mubr.f32.mxu0 0.0
      %5191 = vmatmul.mubr.f32.gmra.mxu0 %v5015
      %v5192 = vpop.f32.mrf.mxu0
      %v5193 = vadd.f32 0.0, %v5192
      %v5194 = vpop.f32.mrf.mxu0
      %5195 = vmatprep.mubr.f32.mxu0 0.0
      %5196 = vmatmul.mubr.f32.gmra.mxu0 %v5018
      %v5197 = vpop.f32.mrf.mxu0
      %v5198 = vadd.f32 0.0, %v5197
      %v5199 = vpop.f32.mrf.mxu0
      %5200 = vmatprep.mubr.f32.mxu0 0.0
      %5201 = vmatmul.mubr.f32.gmra.mxu0 %v5021
      %v5202 = vpop.f32.mrf.mxu0
      %v5203 = vadd.f32 0.0, %v5202
      %v5204 = vpop.f32.mrf.mxu0
      %5205 = vmatprep.mubr.f32.mxu0 0.0
      %5206 = vmatmul.mubr.f32.gmra.mxu0 %v5024
      %v5207 = vpop.f32.mrf.mxu0
      %v5208 = vadd.f32 0.0, %v5207
      %v5209 = vpop.f32.mrf.mxu0
      %5210 = vmatprep.mubr.f32.mxu0 0.0
      %5211 = vmatmul.mubr.f32.gmra.mxu0 %v5027
      %v5212 = vpop.f32.mrf.mxu0
      %v5213 = vadd.f32 0.0, %v5212
      %v5214 = vpop.f32.mrf.mxu0
      %5215 = vmatprep.mubr.f32.mxu0 0.0
      %5216 = vmatmul.mubr.f32.gmra.mxu0 %v5030
      %v5217 = vpop.f32.mrf.mxu0
      %v5218 = vadd.f32 0.0, %v5217
      %v5219 = vpop.f32.mrf.mxu0
      %5220 = vmatprep.mubr.f32.mxu0 0.0
      %5221 = vmatmul.mubr.f32.gmra.mxu0 %v5033
      %v5222 = vpop.f32.mrf.mxu0
      %v5223 = vadd.f32 0.0, %v5222
      %v5224 = vpop.f32.mrf.mxu0
      %5225 = vmatprep.mubr.f32.mxu0 0.0
      %5226 = vmatmul.mubr.f32.gmra.mxu0 %v5036
      %v5227 = vpop.f32.mrf.mxu0
      %v5228 = vadd.f32 0.0, %v5227
      %v5229 = vpop.f32.mrf.mxu0
      %5230 = vmatprep.mubr.f32.mxu0 0.0
      %5231 = vmatmul.mubr.f32.gmra.mxu0 %v5039
      %v5232 = vpop.f32.mrf.mxu0
      %v5233 = vadd.f32 0.0, %v5232
      %v5234 = vpop.f32.mrf.mxu0
      %5235 = vmatprep.mubr.f32.mxu0 0.0
      %5236 = vmatmul.mubr.f32.gmra.mxu0 %v5042
      %v5237 = vpop.f32.mrf.mxu0
      %v5238 = vadd.f32 0.0, %v5237
      %v5239 = vpop.f32.mrf.mxu0
      %5240 = vmatprep.mubr.f32.mxu0 0.0
      %5241 = vmatmul.mubr.f32.gmra.mxu0 %v5045
      %v5242 = vpop.f32.mrf.mxu0
      %v5243 = vadd.f32 0.0, %v5242
      %v5244 = vpop.f32.mrf.mxu0
      %5245 = vmatprep.mubr.f32.mxu0 0.0
      %5246 = vmatmul.mubr.f32.gmra.mxu0 %v5048
      %v5247 = vpop.f32.mrf.mxu0
      %v5248 = vadd.f32 0.0, %v5247
      %v5249 = vpop.f32.mrf.mxu0
      %5250 = vmatprep.mubr.f32.mxu0 0.0
      %5251 = vmatmul.mubr.f32.gmra.mxu0 %v5051
      %v5252 = vpop.f32.mrf.mxu0
      %v5253 = vadd.f32 0.0, %v5252
      %v5254 = vpop.f32.mrf.mxu0
      %5255 = vmatprep.mubr.f32.mxu0 0.0
      %5256 = vmatmul.mubr.f32.gmra.mxu0 %v5054
      %v5257 = vpop.f32.mrf.mxu0
      %v5258 = vadd.f32 0.0, %v5257
      %v5259 = vpop.f32.mrf.mxu0
      %5260 = vmatprep.mubr.f32.mxu0 0.0
      %5261 = vmatmul.mubr.f32.gmra.mxu0 %v5057
      %v5262 = vpop.f32.mrf.mxu0
      %v5263 = vadd.f32 0.0, %v5262
      %v5264 = vpop.f32.mrf.mxu0
      %5265 = vmatprep.mubr.f32.mxu0 0.0
      %5266 = vmatmul.mubr.f32.gmra.mxu0 %v5060
      %v5267 = vpop.f32.mrf.mxu0
      %v5268 = vadd.f32 0.0, %v5267
      %v5269 = vpop.f32.mrf.mxu0
      %5270 = vmatprep.mubr.f32.mxu0 0.0
      %5271 = vmatmul.mubr.f32.gmra.mxu0 %v5063
      %v5272 = vpop.f32.mrf.mxu0
      %v5273 = vadd.f32 0.0, %v5272
      %v5274 = vpop.f32.mrf.mxu0
      %5275 = vmatprep.mubr.f32.mxu0 0.0
      %5276 = vmatmul.mubr.f32.gmra.mxu0 %v5066
      %v5277 = vpop.f32.mrf.mxu0
      %v5278 = vadd.f32 0.0, %v5277
      %v5279 = vpop.f32.mrf.mxu0
      %5280 = vmatprep.mubr.f32.mxu0 0.0
      %5281 = vmatmul.mubr.f32.gmra.mxu0 %v5069
      %v5282 = vpop.f32.mrf.mxu0
      %v5283 = vadd.f32 0.0, %v5282
      %v5284 = vpop.f32.mrf.mxu0
      %5285 = vmatprep.mubr.f32.mxu0 0.0
      %5286 = vmatmul.mubr.f32.gmra.mxu0 %v5072
      %v5287 = vpop.f32.mrf.mxu0
      %v5288 = vadd.f32 0.0, %v5287
      %v5289 = vpop.f32.mrf.mxu0
      %5290 = vmatprep.mubr.f32.mxu0 0.0
      %5291 = vmatmul.mubr.f32.gmra.mxu0 %v5075
      %v5292 = vpop.f32.mrf.mxu0
      %v5293 = vadd.f32 0.0, %v5292
      %v5294 = vpop.f32.mrf.mxu0
      %5295 = vmatprep.mubr.f32.mxu0 0.0
      %5296 = vmatmul.mubr.f32.gmra.mxu0 %v5078
      %v5297 = vpop.f32.mrf.mxu0
      %v5298 = vadd.f32 0.0, %v5297
      %v5299 = vpop.f32.mrf.mxu0
      %5300 = vmatprep.mubr.f32.mxu0 0.0
      %5301 = vmatmul.mubr.f32.gmra.mxu0 %v5081
      %v5302 = vpop.f32.mrf.mxu0
      %v5303 = vadd.f32 0.0, %v5302
      %v5304 = vpop.f32.mrf.mxu0
      %5305 = vmatprep.mubr.f32.mxu0 0.0
      %5306 = vmatmul.mubr.f32.gmra.mxu0 %v5084
      %v5307 = vpop.f32.mrf.mxu0
      %v5308 = vadd.f32 0.0, %v5307
      %v5309 = vpop.f32.mrf.mxu0
      %5310 = vdwg.mxu0
      %v5311 = vadd.f32 %v4536, %v5153
      %v5312 = vadd.f32 %v4537, %v5158
      %v5313 = vadd.f32 %v4538, %v5163
      %v5314 = vadd.f32 %v4539, %v5168
      %v5315 = vadd.f32 %v4540, %v5173
      %v5316 = vadd.f32 %v4541, %v5178
      %v5317 = vadd.f32 %v4542, %v5183
      %v5318 = vadd.f32 %v4543, %v5188
      %v5319 = vadd.f32 %v4544, %v5193
      %v5320 = vadd.f32 %v4545, %v5198
      %v5321 = vadd.f32 %v4546, %v5203
      %v5322 = vadd.f32 %v4547, %v5208
      %v5323 = vadd.f32 %v4548, %v5213
      %v5324 = vadd.f32 %v4549, %v5218
      %v5325 = vadd.f32 %v4550, %v5223
      %v5326 = vadd.f32 %v4551, %v5228
      %v5327 = vadd.f32 %v4552, %v5233
      %v5328 = vadd.f32 %v4553, %v5238
      %v5329 = vadd.f32 %v4554, %v5243
      %v5330 = vadd.f32 %v4555, %v5248
      %v5331 = vadd.f32 %v4556, %v5253
      %v5332 = vadd.f32 %v4557, %v5258
      %v5333 = vadd.f32 %v4558, %v5263
      %v5334 = vadd.f32 %v4559, %v5268
      %v5335 = vadd.f32 %v4560, %v5273
      %v5336 = vadd.f32 %v4561, %v5278
      %v5337 = vadd.f32 %v4562, %v5283
      %v5338 = vadd.f32 %v4563, %v5288
      %v5339 = vadd.f32 %v4564, %v5293
      %v5340 = vadd.f32 %v4565, %v5298
      %v5341 = vadd.f32 %v4566, %v5303
      %v5342 = vadd.f32 %v4567, %v5308
      %s5343 = scalar_lea.vmem %s327, 96
      %v5344 = vld [vmem:[%s5343] sm:$0xff]
      %v5345 = vld [vmem:[%s5343 + $0x8] sm:$0xff]
      %v5346 = vld [vmem:[%s5343 + $0x18] sm:$0xff]
      %v5347 = vld [vmem:[%s5343 + $0x20] sm:$0xff]
      %v5348 = vld [vmem:[%s5343 + $0x30] sm:$0xff]
      %v5349 = vld [vmem:[%s5343 + $0x38] sm:$0xff]
      %v5350 = vld [vmem:[%s5343 + $0x48] sm:$0xff]
      %v5351 = vld [vmem:[%s5343 + $0x50] sm:$0xff]
      %v5352 = vld [vmem:[%s5343 + $0x60] sm:$0xff]
      %v5353 = vld [vmem:[%s5343 + $0x68] sm:$0xff]
      %v5354 = vld [vmem:[%s5343 + $0x78] sm:$0xff]
      %v5355 = vld [vmem:[%s5343 + $0x80] sm:$0xff]
      %v5356 = vld [vmem:[%s5343 + $0x90] sm:$0xff]
      %v5357 = vld [vmem:[%s5343 + $0x98] sm:$0xff]
      %v5358 = vld [vmem:[%s5343 + $0xa8] sm:$0xff]
      %v5359 = vld [vmem:[%s5343 + $0xb0] sm:$0xff]
      %v5360 = vld [vmem:[%s5343 + $0xc0] sm:$0xff]
      %v5361 = vld [vmem:[%s5343 + $0xc8] sm:$0xff]
      %v5362 = vld [vmem:[%s5343 + $0xd8] sm:$0xff]
      %v5363 = vld [vmem:[%s5343 + $0xe0] sm:$0xff]
      %v5364 = vld [vmem:[%s5343 + $0xf0] sm:$0xff]
      %v5365 = vld [vmem:[%s5343 + $0xf8] sm:$0xff]
      %v5366 = vld [vmem:[%s5343 + $0x108] sm:$0xff]
      %v5367 = vld [vmem:[%s5343 + $0x110] sm:$0xff]
      %v5368 = vld [vmem:[%s5343 + $0x120] sm:$0xff]
      %v5369 = vld [vmem:[%s5343 + $0x128] sm:$0xff]
      %v5370 = vld [vmem:[%s5343 + $0x138] sm:$0xff]
      %v5371 = vld [vmem:[%s5343 + $0x140] sm:$0xff]
      %v5372 = vld [vmem:[%s5343 + $0x150] sm:$0xff]
      %v5373 = vld [vmem:[%s5343 + $0x158] sm:$0xff]
      %v5374 = vld [vmem:[%s5343 + $0x168] sm:$0xff]
      %v5375 = vld [vmem:[%s5343 + $0x170] sm:$0xff]
      %s5376 = scalar_lea.vmem %s5, 48
      %v5377 = vld [vmem:[%s5376] sm:$0xff]
      %v5379 = vsel %vm374, %v5344, 0
      %v5382 = vsel %vm374, %v5345, 0
      %v5385 = vsel %vm374, %v5346, 0
      %v5388 = vsel %vm374, %v5347, 0
      %v5391 = vsel %vm374, %v5348, 0
      %v5394 = vsel %vm374, %v5349, 0
      %v5397 = vsel %vm374, %v5350, 0
      %v5400 = vsel %vm374, %v5351, 0
      %v5403 = vsel %vm374, %v5352, 0
      %v5406 = vsel %vm374, %v5353, 0
      %v5409 = vsel %vm374, %v5354, 0
      %v5412 = vsel %vm374, %v5355, 0
      %v5415 = vsel %vm374, %v5356, 0
      %v5418 = vsel %vm374, %v5357, 0
      %v5421 = vsel %vm374, %v5358, 0
      %v5424 = vsel %vm374, %v5359, 0
      %v5427 = vsel %vm374, %v5360, 0
      %v5430 = vsel %vm374, %v5361, 0
      %v5433 = vsel %vm374, %v5362, 0
      %v5436 = vsel %vm374, %v5363, 0
      %v5439 = vsel %vm374, %v5364, 0
      %v5442 = vsel %vm374, %v5365, 0
      %v5445 = vsel %vm374, %v5366, 0
      %v5448 = vsel %vm374, %v5367, 0
      %v5451 = vsel %vm374, %v5368, 0
      %v5454 = vsel %vm374, %v5369, 0
      %v5457 = vsel %vm374, %v5370, 0
      %v5460 = vsel %vm374, %v5371, 0
      %v5463 = vsel %vm374, %v5372, 0
      %v5466 = vsel %vm374, %v5373, 0
      %v5469 = vsel %vm374, %v5374, 0
      %v5472 = vsel %vm374, %v5375, 0
      %5474 = vmatprep.subr.mxu0 0.0
      %5475 = vmatpush1.msra.mxu0 0.0
      %5476 = vmatprep.subr.mxu0 0.0
      %5477 = vmatpush1.msra.mxu0 0.0
      %5478 = vmatprep.subr.mxu0 0.0
      %5479 = vmatpush1.msra.mxu0 0.0
      %5480 = vmatprep.subr.mxu0 0.0
      %5481 = vmatpush1.msra.mxu0 0.0
      %5482 = vmatprep.subr.mxu0 0.0
      %5483 = vmatpush1.msra.mxu0 0.0
      %5484 = vmatprep.subr.mxu0 0.0
      %5485 = vmatpush1.msra.mxu0 0.0
      %5486 = vmatprep.subr.mxu0 0.0
      %5487 = vmatpush1.msra.mxu0 0.0
      %5488 = vmatprep.subr.mxu0 0.0
      %5489 = vmatpush1.msra.mxu0 0.0
      %5490 = vmatprep.subr.mxu0 0.0
      %5491 = vmatpush1.msra.mxu0 0.0
      %5492 = vmatprep.subr.mxu0 0.0
      %5493 = vmatpush1.msra.mxu0 0.0
      %5494 = vmatprep.subr.mxu0 0.0
      %5495 = vmatpush1.msra.mxu0 0.0
      %5496 = vmatprep.subr.mxu0 0.0
      %5497 = vmatpush1.msra.mxu0 0.0
      %5498 = vmatprep.subr.mxu0 0.0
      %5499 = vmatpush1.msra.mxu0 0.0
      %5500 = vmatprep.subr.mxu0 0.0
      %5501 = vmatpush1.msra.mxu0 0.0
      %5502 = vmatprep.subr.mxu0 0.0
      %5503 = vmatpush1.msra.mxu0 0.0
      %5504 = vmatprep.subr.mxu0 0.0
      %5505 = vmatpush1.msra.mxu0 %v5377
      %5506 = vmatprep.subr.mxu0 0.0
      %5507 = vmatpush2.msra.mxu0 0.0
      %5508 = vmatprep.subr.mxu0 0.0
      %5509 = vmatpush2.msra.mxu0 0.0
      %5510 = vmatprep.subr.mxu0 0.0
      %5511 = vmatpush2.msra.mxu0 0.0
      %5512 = vmatprep.subr.mxu0 0.0
      %5513 = vmatpush2.msra.mxu0 0.0
      %5514 = vmatprep.subr.mxu0 0.0
      %5515 = vmatpush2.msra.mxu0 0.0
      %5516 = vmatprep.subr.mxu0 0.0
      %5517 = vmatpush2.msra.mxu0 0.0
      %5518 = vmatprep.subr.mxu0 0.0
      %5519 = vmatpush2.msra.mxu0 0.0
      %5520 = vmatprep.subr.mxu0 0.0
      %5521 = vmatpush2.msra.mxu0 0.0
      %5522 = vmatprep.subr.mxu0 0.0
      %5523 = vmatpush2.msra.mxu0 0.0
      %5524 = vmatprep.subr.mxu0 0.0
      %5525 = vmatpush2.msra.mxu0 0.0
      %5526 = vmatprep.subr.mxu0 0.0
      %5527 = vmatpush2.msra.mxu0 0.0
      %5528 = vmatprep.subr.mxu0 0.0
      %5529 = vmatpush2.msra.mxu0 0.0
      %5530 = vmatprep.subr.mxu0 0.0
      %5531 = vmatpush2.msra.mxu0 0.0
      %5532 = vmatprep.subr.mxu0 0.0
      %5533 = vmatpush2.msra.mxu0 0.0
      %5534 = vmatprep.subr.mxu0 0.0
      %5535 = vmatpush2.msra.mxu0 0.0
      %5536 = vmatprep.subr.mxu0 0.0
      %5537 = vmatpush2.msra.mxu0 0.0
      %5538 = vmatprep.mubr.f32.mxu0 0.0
      %5539 = vmatmul.mubr.f32.gmra.mxu0 %v5379
      %v5540 = vpop.f32.mrf.mxu0
      %v5541 = vadd.f32 0.0, %v5540
      %v5542 = vpop.f32.mrf.mxu0
      %5543 = vmatprep.mubr.f32.mxu0 0.0
      %5544 = vmatmul.mubr.f32.gmra.mxu0 %v5382
      %v5545 = vpop.f32.mrf.mxu0
      %v5546 = vadd.f32 0.0, %v5545
      %v5547 = vpop.f32.mrf.mxu0
      %5548 = vmatprep.mubr.f32.mxu0 0.0
      %5549 = vmatmul.mubr.f32.gmra.mxu0 %v5385
      %v5550 = vpop.f32.mrf.mxu0
      %v5551 = vadd.f32 0.0, %v5550
      %v5552 = vpop.f32.mrf.mxu0
      %5553 = vmatprep.mubr.f32.mxu0 0.0
      %5554 = vmatmul.mubr.f32.gmra.mxu0 %v5388
      %v5555 = vpop.f32.mrf.mxu0
      %v5556 = vadd.f32 0.0, %v5555
      %v5557 = vpop.f32.mrf.mxu0
      %5558 = vmatprep.mubr.f32.mxu0 0.0
      %5559 = vmatmul.mubr.f32.gmra.mxu0 %v5391
      %v5560 = vpop.f32.mrf.mxu0
      %v5561 = vadd.f32 0.0, %v5560
      %v5562 = vpop.f32.mrf.mxu0
      %5563 = vmatprep.mubr.f32.mxu0 0.0
      %5564 = vmatmul.mubr.f32.gmra.mxu0 %v5394
      %v5565 = vpop.f32.mrf.mxu0
      %v5566 = vadd.f32 0.0, %v5565
      %v5567 = vpop.f32.mrf.mxu0
      %5568 = vmatprep.mubr.f32.mxu0 0.0
      %5569 = vmatmul.mubr.f32.gmra.mxu0 %v5397
      %v5570 = vpop.f32.mrf.mxu0
      %v5571 = vadd.f32 0.0, %v5570
      %v5572 = vpop.f32.mrf.mxu0
      %5573 = vmatprep.mubr.f32.mxu0 0.0
      %5574 = vmatmul.mubr.f32.gmra.mxu0 %v5400
      %v5575 = vpop.f32.mrf.mxu0
      %v5576 = vadd.f32 0.0, %v5575
      %v5577 = vpop.f32.mrf.mxu0
      %5578 = vmatprep.mubr.f32.mxu0 0.0
      %5579 = vmatmul.mubr.f32.gmra.mxu0 %v5403
      %v5580 = vpop.f32.mrf.mxu0
      %v5581 = vadd.f32 0.0, %v5580
      %v5582 = vpop.f32.mrf.mxu0
      %5583 = vmatprep.mubr.f32.mxu0 0.0
      %5584 = vmatmul.mubr.f32.gmra.mxu0 %v5406
      %v5585 = vpop.f32.mrf.mxu0
      %v5586 = vadd.f32 0.0, %v5585
      %v5587 = vpop.f32.mrf.mxu0
      %5588 = vmatprep.mubr.f32.mxu0 0.0
      %5589 = vmatmul.mubr.f32.gmra.mxu0 %v5409
      %v5590 = vpop.f32.mrf.mxu0
      %v5591 = vadd.f32 0.0, %v5590
      %v5592 = vpop.f32.mrf.mxu0
      %5593 = vmatprep.mubr.f32.mxu0 0.0
      %5594 = vmatmul.mubr.f32.gmra.mxu0 %v5412
      %v5595 = vpop.f32.mrf.mxu0
      %v5596 = vadd.f32 0.0, %v5595
      %v5597 = vpop.f32.mrf.mxu0
      %5598 = vmatprep.mubr.f32.mxu0 0.0
      %5599 = vmatmul.mubr.f32.gmra.mxu0 %v5415
      %v5600 = vpop.f32.mrf.mxu0
      %v5601 = vadd.f32 0.0, %v5600
      %v5602 = vpop.f32.mrf.mxu0
      %5603 = vmatprep.mubr.f32.mxu0 0.0
      %5604 = vmatmul.mubr.f32.gmra.mxu0 %v5418
      %v5605 = vpop.f32.mrf.mxu0
      %v5606 = vadd.f32 0.0, %v5605
      %v5607 = vpop.f32.mrf.mxu0
      %5608 = vmatprep.mubr.f32.mxu0 0.0
      %5609 = vmatmul.mubr.f32.gmra.mxu0 %v5421
      %v5610 = vpop.f32.mrf.mxu0
      %v5611 = vadd.f32 0.0, %v5610
      %v5612 = vpop.f32.mrf.mxu0
      %5613 = vmatprep.mubr.f32.mxu0 0.0
      %5614 = vmatmul.mubr.f32.gmra.mxu0 %v5424
      %v5615 = vpop.f32.mrf.mxu0
      %v5616 = vadd.f32 0.0, %v5615
      %v5617 = vpop.f32.mrf.mxu0
      %5618 = vmatprep.mubr.f32.mxu0 0.0
      %5619 = vmatmul.mubr.f32.gmra.mxu0 %v5427
      %v5620 = vpop.f32.mrf.mxu0
      %v5621 = vadd.f32 0.0, %v5620
      %v5622 = vpop.f32.mrf.mxu0
      %5623 = vmatprep.mubr.f32.mxu0 0.0
      %5624 = vmatmul.mubr.f32.gmra.mxu0 %v5430
      %v5625 = vpop.f32.mrf.mxu0
      %v5626 = vadd.f32 0.0, %v5625
      %v5627 = vpop.f32.mrf.mxu0
      %5628 = vmatprep.mubr.f32.mxu0 0.0
      %5629 = vmatmul.mubr.f32.gmra.mxu0 %v5433
      %v5630 = vpop.f32.mrf.mxu0
      %v5631 = vadd.f32 0.0, %v5630
      %v5632 = vpop.f32.mrf.mxu0
      %5633 = vmatprep.mubr.f32.mxu0 0.0
      %5634 = vmatmul.mubr.f32.gmra.mxu0 %v5436
      %v5635 = vpop.f32.mrf.mxu0
      %v5636 = vadd.f32 0.0, %v5635
      %v5637 = vpop.f32.mrf.mxu0
      %5638 = vmatprep.mubr.f32.mxu0 0.0
      %5639 = vmatmul.mubr.f32.gmra.mxu0 %v5439
      %v5640 = vpop.f32.mrf.mxu0
      %v5641 = vadd.f32 0.0, %v5640
      %v5642 = vpop.f32.mrf.mxu0
      %5643 = vmatprep.mubr.f32.mxu0 0.0
      %5644 = vmatmul.mubr.f32.gmra.mxu0 %v5442
      %v5645 = vpop.f32.mrf.mxu0
      %v5646 = vadd.f32 0.0, %v5645
      %v5647 = vpop.f32.mrf.mxu0
      %5648 = vmatprep.mubr.f32.mxu0 0.0
      %5649 = vmatmul.mubr.f32.gmra.mxu0 %v5445
      %v5650 = vpop.f32.mrf.mxu0
      %v5651 = vadd.f32 0.0, %v5650
      %v5652 = vpop.f32.mrf.mxu0
      %5653 = vmatprep.mubr.f32.mxu0 0.0
      %5654 = vmatmul.mubr.f32.gmra.mxu0 %v5448
      %v5655 = vpop.f32.mrf.mxu0
      %v5656 = vadd.f32 0.0, %v5655
      %v5657 = vpop.f32.mrf.mxu0
      %5658 = vmatprep.mubr.f32.mxu0 0.0
      %5659 = vmatmul.mubr.f32.gmra.mxu0 %v5451
      %v5660 = vpop.f32.mrf.mxu0
      %v5661 = vadd.f32 0.0, %v5660
      %v5662 = vpop.f32.mrf.mxu0
      %5663 = vmatprep.mubr.f32.mxu0 0.0
      %5664 = vmatmul.mubr.f32.gmra.mxu0 %v5454
      %v5665 = vpop.f32.mrf.mxu0
      %v5666 = vadd.f32 0.0, %v5665
      %v5667 = vpop.f32.mrf.mxu0
      %5668 = vmatprep.mubr.f32.mxu0 0.0
      %5669 = vmatmul.mubr.f32.gmra.mxu0 %v5457
      %v5670 = vpop.f32.mrf.mxu0
      %v5671 = vadd.f32 0.0, %v5670
      %v5672 = vpop.f32.mrf.mxu0
      %5673 = vmatprep.mubr.f32.mxu0 0.0
      %5674 = vmatmul.mubr.f32.gmra.mxu0 %v5460
      %v5675 = vpop.f32.mrf.mxu0
      %v5676 = vadd.f32 0.0, %v5675
      %v5677 = vpop.f32.mrf.mxu0
      %5678 = vmatprep.mubr.f32.mxu0 0.0
      %5679 = vmatmul.mubr.f32.gmra.mxu0 %v5463
      %v5680 = vpop.f32.mrf.mxu0
      %v5681 = vadd.f32 0.0, %v5680
      %v5682 = vpop.f32.mrf.mxu0
      %5683 = vmatprep.mubr.f32.mxu0 0.0
      %5684 = vmatmul.mubr.f32.gmra.mxu0 %v5466
      %v5685 = vpop.f32.mrf.mxu0
      %v5686 = vadd.f32 0.0, %v5685
      %v5687 = vpop.f32.mrf.mxu0
      %5688 = vmatprep.mubr.f32.mxu0 0.0
      %5689 = vmatmul.mubr.f32.gmra.mxu0 %v5469
      %v5690 = vpop.f32.mrf.mxu0
      %v5691 = vadd.f32 0.0, %v5690
      %v5692 = vpop.f32.mrf.mxu0
      %5693 = vmatprep.mubr.f32.mxu0 0.0
      %5694 = vmatmul.mubr.f32.gmra.mxu0 %v5472
      %v5695 = vpop.f32.mrf.mxu0
      %v5696 = vadd.f32 0.0, %v5695
      %v5697 = vpop.f32.mrf.mxu0
      %5698 = vdwg.mxu0
      %v5699 = vadd.f32 %v4923, %v5541
      %v5700 = vadd.f32 %v4924, %v5546
      %v5701 = vadd.f32 %v4925, %v5551
      %v5702 = vadd.f32 %v4926, %v5556
      %v5703 = vadd.f32 %v4927, %v5561
      %v5704 = vadd.f32 %v4928, %v5566
      %v5705 = vadd.f32 %v4929, %v5571
      %v5706 = vadd.f32 %v4930, %v5576
      %v5707 = vadd.f32 %v4931, %v5581
      %v5708 = vadd.f32 %v4932, %v5586
      %v5709 = vadd.f32 %v4933, %v5591
      %v5710 = vadd.f32 %v4934, %v5596
      %v5711 = vadd.f32 %v4935, %v5601
      %v5712 = vadd.f32 %v4936, %v5606
      %v5713 = vadd.f32 %v4937, %v5611
      %v5714 = vadd.f32 %v4938, %v5616
      %v5715 = vadd.f32 %v4939, %v5621
      %v5716 = vadd.f32 %v4940, %v5626
      %v5717 = vadd.f32 %v4941, %v5631
      %v5718 = vadd.f32 %v4942, %v5636
      %v5719 = vadd.f32 %v4943, %v5641
      %v5720 = vadd.f32 %v4944, %v5646
      %v5721 = vadd.f32 %v4945, %v5651
      %v5722 = vadd.f32 %v4946, %v5656
      %v5723 = vadd.f32 %v4947, %v5661
      %v5724 = vadd.f32 %v4948, %v5666
      %v5725 = vadd.f32 %v4949, %v5671
      %v5726 = vadd.f32 %v4950, %v5676
      %v5727 = vadd.f32 %v4951, %v5681
      %v5728 = vadd.f32 %v4952, %v5686
      %v5729 = vadd.f32 %v4953, %v5691
      %v5730 = vadd.f32 %v4954, %v5696
      %v5731 = vld [vmem:[%s4955 + $0x2] sm:$0xff]
      %v5732 = vld [vmem:[%s4955 + $0xa] sm:$0xff]
      %v5733 = vld [vmem:[%s4955 + $0x1a] sm:$0xff]
      %v5734 = vld [vmem:[%s4955 + $0x22] sm:$0xff]
      %v5735 = vld [vmem:[%s4955 + $0x32] sm:$0xff]
      %v5736 = vld [vmem:[%s4955 + $0x3a] sm:$0xff]
      %v5737 = vld [vmem:[%s4955 + $0x4a] sm:$0xff]
      %v5738 = vld [vmem:[%s4955 + $0x52] sm:$0xff]
      %v5739 = vld [vmem:[%s4955 + $0x62] sm:$0xff]
      %v5740 = vld [vmem:[%s4955 + $0x6a] sm:$0xff]
      %v5741 = vld [vmem:[%s4955 + $0x7a] sm:$0xff]
      %v5742 = vld [vmem:[%s4955 + $0x82] sm:$0xff]
      %v5743 = vld [vmem:[%s4955 + $0x92] sm:$0xff]
      %v5744 = vld [vmem:[%s4955 + $0x9a] sm:$0xff]
      %v5745 = vld [vmem:[%s4955 + $0xaa] sm:$0xff]
      %v5746 = vld [vmem:[%s4955 + $0xb2] sm:$0xff]
      %v5747 = vld [vmem:[%s4955 + $0xc2] sm:$0xff]
      %v5748 = vld [vmem:[%s4955 + $0xca] sm:$0xff]
      %v5749 = vld [vmem:[%s4955 + $0xda] sm:$0xff]
      %v5750 = vld [vmem:[%s4955 + $0xe2] sm:$0xff]
      %v5751 = vld [vmem:[%s4955 + $0xf2] sm:$0xff]
      %v5752 = vld [vmem:[%s4955 + $0xfa] sm:$0xff]
      %v5753 = vld [vmem:[%s4955 + $0x10a] sm:$0xff]
      %v5754 = vld [vmem:[%s4955 + $0x112] sm:$0xff]
      %v5755 = vld [vmem:[%s4955 + $0x122] sm:$0xff]
      %v5756 = vld [vmem:[%s4955 + $0x12a] sm:$0xff]
      %v5757 = vld [vmem:[%s4955 + $0x13a] sm:$0xff]
      %v5758 = vld [vmem:[%s4955 + $0x142] sm:$0xff]
      %v5759 = vld [vmem:[%s4955 + $0x152] sm:$0xff]
      %v5760 = vld [vmem:[%s4955 + $0x15a] sm:$0xff]
      %v5761 = vld [vmem:[%s4955 + $0x16a] sm:$0xff]
      %v5762 = vld [vmem:[%s4955 + $0x172] sm:$0xff]
      %s5763 = scalar_lea.vmem %s3, 56
      %v5764 = vld [vmem:[%s5763] sm:$0xff]
      %v5766 = vsel %vm374, %v5731, 0
      %v5769 = vsel %vm374, %v5732, 0
      %v5772 = vsel %vm374, %v5733, 0
      %v5775 = vsel %vm374, %v5734, 0
      %v5778 = vsel %vm374, %v5735, 0
      %v5781 = vsel %vm374, %v5736, 0
      %v5784 = vsel %vm374, %v5737, 0
      %v5787 = vsel %vm374, %v5738, 0
      %v5790 = vsel %vm374, %v5739, 0
      %v5793 = vsel %vm374, %v5740, 0
      %v5796 = vsel %vm374, %v5741, 0
      %v5799 = vsel %vm374, %v5742, 0
      %v5802 = vsel %vm374, %v5743, 0
      %v5805 = vsel %vm374, %v5744, 0
      %v5808 = vsel %vm374, %v5745, 0
      %v5811 = vsel %vm374, %v5746, 0
      %v5814 = vsel %vm374, %v5747, 0
      %v5817 = vsel %vm374, %v5748, 0
      %v5820 = vsel %vm374, %v5749, 0
      %v5823 = vsel %vm374, %v5750, 0
      %v5826 = vsel %vm374, %v5751, 0
      %v5829 = vsel %vm374, %v5752, 0
      %v5832 = vsel %vm374, %v5753, 0
      %v5835 = vsel %vm374, %v5754, 0
      %v5838 = vsel %vm374, %v5755, 0
      %v5841 = vsel %vm374, %v5756, 0
      %v5844 = vsel %vm374, %v5757, 0
      %v5847 = vsel %vm374, %v5758, 0
      %v5850 = vsel %vm374, %v5759, 0
      %v5853 = vsel %vm374, %v5760, 0
      %v5856 = vsel %vm374, %v5761, 0
      %v5859 = vsel %vm374, %v5762, 0
      %5861 = vmatprep.subr.mxu0 0.0
      %5862 = vmatpush1.msra.mxu0 0.0
      %5863 = vmatprep.subr.mxu0 0.0
      %5864 = vmatpush1.msra.mxu0 0.0
      %5865 = vmatprep.subr.mxu0 0.0
      %5866 = vmatpush1.msra.mxu0 0.0
      %5867 = vmatprep.subr.mxu0 0.0
      %5868 = vmatpush1.msra.mxu0 0.0
      %5869 = vmatprep.subr.mxu0 0.0
      %5870 = vmatpush1.msra.mxu0 0.0
      %5871 = vmatprep.subr.mxu0 0.0
      %5872 = vmatpush1.msra.mxu0 0.0
      %5873 = vmatprep.subr.mxu0 0.0
      %5874 = vmatpush1.msra.mxu0 0.0
      %5875 = vmatprep.subr.mxu0 0.0
      %5876 = vmatpush1.msra.mxu0 0.0
      %5877 = vmatprep.subr.mxu0 0.0
      %5878 = vmatpush1.msra.mxu0 0.0
      %5879 = vmatprep.subr.mxu0 0.0
      %5880 = vmatpush1.msra.mxu0 0.0
      %5881 = vmatprep.subr.mxu0 0.0
      %5882 = vmatpush1.msra.mxu0 0.0
      %5883 = vmatprep.subr.mxu0 0.0
      %5884 = vmatpush1.msra.mxu0 0.0
      %5885 = vmatprep.subr.mxu0 0.0
      %5886 = vmatpush1.msra.mxu0 0.0
      %5887 = vmatprep.subr.mxu0 0.0
      %5888 = vmatpush1.msra.mxu0 0.0
      %5889 = vmatprep.subr.mxu0 0.0
      %5890 = vmatpush1.msra.mxu0 0.0
      %5891 = vmatprep.subr.mxu0 0.0
      %5892 = vmatpush1.msra.mxu0 %v5764
      %5893 = vmatprep.subr.mxu0 0.0
      %5894 = vmatpush2.msra.mxu0 0.0
      %5895 = vmatprep.subr.mxu0 0.0
      %5896 = vmatpush2.msra.mxu0 0.0
      %5897 = vmatprep.subr.mxu0 0.0
      %5898 = vmatpush2.msra.mxu0 0.0
      %5899 = vmatprep.subr.mxu0 0.0
      %5900 = vmatpush2.msra.mxu0 0.0
      %5901 = vmatprep.subr.mxu0 0.0
      %5902 = vmatpush2.msra.mxu0 0.0
      %5903 = vmatprep.subr.mxu0 0.0
      %5904 = vmatpush2.msra.mxu0 0.0
      %5905 = vmatprep.subr.mxu0 0.0
      %5906 = vmatpush2.msra.mxu0 0.0
      %5907 = vmatprep.subr.mxu0 0.0
      %5908 = vmatpush2.msra.mxu0 0.0
      %5909 = vmatprep.subr.mxu0 0.0
      %5910 = vmatpush2.msra.mxu0 0.0
      %5911 = vmatprep.subr.mxu0 0.0
      %5912 = vmatpush2.msra.mxu0 0.0
      %5913 = vmatprep.subr.mxu0 0.0
      %5914 = vmatpush2.msra.mxu0 0.0
      %5915 = vmatprep.subr.mxu0 0.0
      %5916 = vmatpush2.msra.mxu0 0.0
      %5917 = vmatprep.subr.mxu0 0.0
      %5918 = vmatpush2.msra.mxu0 0.0
      %5919 = vmatprep.subr.mxu0 0.0
      %5920 = vmatpush2.msra.mxu0 0.0
      %5921 = vmatprep.subr.mxu0 0.0
      %5922 = vmatpush2.msra.mxu0 0.0
      %5923 = vmatprep.subr.mxu0 0.0
      %5924 = vmatpush2.msra.mxu0 0.0
      %5925 = vmatprep.mubr.f32.mxu0 0.0
      %5926 = vmatmul.mubr.f32.gmra.mxu0 %v5766
      %v5927 = vpop.f32.mrf.mxu0
      %v5928 = vadd.f32 0.0, %v5927
      %v5929 = vpop.f32.mrf.mxu0
      %5930 = vmatprep.mubr.f32.mxu0 0.0
      %5931 = vmatmul.mubr.f32.gmra.mxu0 %v5769
      %v5932 = vpop.f32.mrf.mxu0
      %v5933 = vadd.f32 0.0, %v5932
      %v5934 = vpop.f32.mrf.mxu0
      %5935 = vmatprep.mubr.f32.mxu0 0.0
      %5936 = vmatmul.mubr.f32.gmra.mxu0 %v5772
      %v5937 = vpop.f32.mrf.mxu0
      %v5938 = vadd.f32 0.0, %v5937
      %v5939 = vpop.f32.mrf.mxu0
      %5940 = vmatprep.mubr.f32.mxu0 0.0
      %5941 = vmatmul.mubr.f32.gmra.mxu0 %v5775
      %v5942 = vpop.f32.mrf.mxu0
      %v5943 = vadd.f32 0.0, %v5942
      %v5944 = vpop.f32.mrf.mxu0
      %5945 = vmatprep.mubr.f32.mxu0 0.0
      %5946 = vmatmul.mubr.f32.gmra.mxu0 %v5778
      %v5947 = vpop.f32.mrf.mxu0
      %v5948 = vadd.f32 0.0, %v5947
      %v5949 = vpop.f32.mrf.mxu0
      %5950 = vmatprep.mubr.f32.mxu0 0.0
      %5951 = vmatmul.mubr.f32.gmra.mxu0 %v5781
      %v5952 = vpop.f32.mrf.mxu0
      %v5953 = vadd.f32 0.0, %v5952
      %v5954 = vpop.f32.mrf.mxu0
      %5955 = vmatprep.mubr.f32.mxu0 0.0
      %5956 = vmatmul.mubr.f32.gmra.mxu0 %v5784
      %v5957 = vpop.f32.mrf.mxu0
      %v5958 = vadd.f32 0.0, %v5957
      %v5959 = vpop.f32.mrf.mxu0
      %5960 = vmatprep.mubr.f32.mxu0 0.0
      %5961 = vmatmul.mubr.f32.gmra.mxu0 %v5787
      %v5962 = vpop.f32.mrf.mxu0
      %v5963 = vadd.f32 0.0, %v5962
      %v5964 = vpop.f32.mrf.mxu0
      %5965 = vmatprep.mubr.f32.mxu0 0.0
      %5966 = vmatmul.mubr.f32.gmra.mxu0 %v5790
      %v5967 = vpop.f32.mrf.mxu0
      %v5968 = vadd.f32 0.0, %v5967
      %v5969 = vpop.f32.mrf.mxu0
      %5970 = vmatprep.mubr.f32.mxu0 0.0
      %5971 = vmatmul.mubr.f32.gmra.mxu0 %v5793
      %v5972 = vpop.f32.mrf.mxu0
      %v5973 = vadd.f32 0.0, %v5972
      %v5974 = vpop.f32.mrf.mxu0
      %5975 = vmatprep.mubr.f32.mxu0 0.0
      %5976 = vmatmul.mubr.f32.gmra.mxu0 %v5796
      %v5977 = vpop.f32.mrf.mxu0
      %v5978 = vadd.f32 0.0, %v5977
      %v5979 = vpop.f32.mrf.mxu0
      %5980 = vmatprep.mubr.f32.mxu0 0.0
      %5981 = vmatmul.mubr.f32.gmra.mxu0 %v5799
      %v5982 = vpop.f32.mrf.mxu0
      %v5983 = vadd.f32 0.0, %v5982
      %v5984 = vpop.f32.mrf.mxu0
      %5985 = vmatprep.mubr.f32.mxu0 0.0
      %5986 = vmatmul.mubr.f32.gmra.mxu0 %v5802
      %v5987 = vpop.f32.mrf.mxu0
      %v5988 = vadd.f32 0.0, %v5987
      %v5989 = vpop.f32.mrf.mxu0
      %5990 = vmatprep.mubr.f32.mxu0 0.0
      %5991 = vmatmul.mubr.f32.gmra.mxu0 %v5805
      %v5992 = vpop.f32.mrf.mxu0
      %v5993 = vadd.f32 0.0, %v5992
      %v5994 = vpop.f32.mrf.mxu0
      %5995 = vmatprep.mubr.f32.mxu0 0.0
      %5996 = vmatmul.mubr.f32.gmra.mxu0 %v5808
      %v5997 = vpop.f32.mrf.mxu0
      %v5998 = vadd.f32 0.0, %v5997
      %v5999 = vpop.f32.mrf.mxu0
      %6000 = vmatprep.mubr.f32.mxu0 0.0
      %6001 = vmatmul.mubr.f32.gmra.mxu0 %v5811
      %v6002 = vpop.f32.mrf.mxu0
      %v6003 = vadd.f32 0.0, %v6002
      %v6004 = vpop.f32.mrf.mxu0
      %6005 = vmatprep.mubr.f32.mxu0 0.0
      %6006 = vmatmul.mubr.f32.gmra.mxu0 %v5814
      %v6007 = vpop.f32.mrf.mxu0
      %v6008 = vadd.f32 0.0, %v6007
      %v6009 = vpop.f32.mrf.mxu0
      %6010 = vmatprep.mubr.f32.mxu0 0.0
      %6011 = vmatmul.mubr.f32.gmra.mxu0 %v5817
      %v6012 = vpop.f32.mrf.mxu0
      %v6013 = vadd.f32 0.0, %v6012
      %v6014 = vpop.f32.mrf.mxu0
      %6015 = vmatprep.mubr.f32.mxu0 0.0
      %6016 = vmatmul.mubr.f32.gmra.mxu0 %v5820
      %v6017 = vpop.f32.mrf.mxu0
      %v6018 = vadd.f32 0.0, %v6017
      %v6019 = vpop.f32.mrf.mxu0
      %6020 = vmatprep.mubr.f32.mxu0 0.0
      %6021 = vmatmul.mubr.f32.gmra.mxu0 %v5823
      %v6022 = vpop.f32.mrf.mxu0
      %v6023 = vadd.f32 0.0, %v6022
      %v6024 = vpop.f32.mrf.mxu0
      %6025 = vmatprep.mubr.f32.mxu0 0.0
      %6026 = vmatmul.mubr.f32.gmra.mxu0 %v5826
      %v6027 = vpop.f32.mrf.mxu0
      %v6028 = vadd.f32 0.0, %v6027
      %v6029 = vpop.f32.mrf.mxu0
      %6030 = vmatprep.mubr.f32.mxu0 0.0
      %6031 = vmatmul.mubr.f32.gmra.mxu0 %v5829
      %v6032 = vpop.f32.mrf.mxu0
      %v6033 = vadd.f32 0.0, %v6032
      %v6034 = vpop.f32.mrf.mxu0
      %6035 = vmatprep.mubr.f32.mxu0 0.0
      %6036 = vmatmul.mubr.f32.gmra.mxu0 %v5832
      %v6037 = vpop.f32.mrf.mxu0
      %v6038 = vadd.f32 0.0, %v6037
      %v6039 = vpop.f32.mrf.mxu0
      %6040 = vmatprep.mubr.f32.mxu0 0.0
      %6041 = vmatmul.mubr.f32.gmra.mxu0 %v5835
      %v6042 = vpop.f32.mrf.mxu0
      %v6043 = vadd.f32 0.0, %v6042
      %v6044 = vpop.f32.mrf.mxu0
      %6045 = vmatprep.mubr.f32.mxu0 0.0
      %6046 = vmatmul.mubr.f32.gmra.mxu0 %v5838
      %v6047 = vpop.f32.mrf.mxu0
      %v6048 = vadd.f32 0.0, %v6047
      %v6049 = vpop.f32.mrf.mxu0
      %6050 = vmatprep.mubr.f32.mxu0 0.0
      %6051 = vmatmul.mubr.f32.gmra.mxu0 %v5841
      %v6052 = vpop.f32.mrf.mxu0
      %v6053 = vadd.f32 0.0, %v6052
      %v6054 = vpop.f32.mrf.mxu0
      %6055 = vmatprep.mubr.f32.mxu0 0.0
      %6056 = vmatmul.mubr.f32.gmra.mxu0 %v5844
      %v6057 = vpop.f32.mrf.mxu0
      %v6058 = vadd.f32 0.0, %v6057
      %v6059 = vpop.f32.mrf.mxu0
      %6060 = vmatprep.mubr.f32.mxu0 0.0
      %6061 = vmatmul.mubr.f32.gmra.mxu0 %v5847
      %v6062 = vpop.f32.mrf.mxu0
      %v6063 = vadd.f32 0.0, %v6062
      %v6064 = vpop.f32.mrf.mxu0
      %6065 = vmatprep.mubr.f32.mxu0 0.0
      %6066 = vmatmul.mubr.f32.gmra.mxu0 %v5850
      %v6067 = vpop.f32.mrf.mxu0
      %v6068 = vadd.f32 0.0, %v6067
      %v6069 = vpop.f32.mrf.mxu0
      %6070 = vmatprep.mubr.f32.mxu0 0.0
      %6071 = vmatmul.mubr.f32.gmra.mxu0 %v5853
      %v6072 = vpop.f32.mrf.mxu0
      %v6073 = vadd.f32 0.0, %v6072
      %v6074 = vpop.f32.mrf.mxu0
      %6075 = vmatprep.mubr.f32.mxu0 0.0
      %6076 = vmatmul.mubr.f32.gmra.mxu0 %v5856
      %v6077 = vpop.f32.mrf.mxu0
      %v6078 = vadd.f32 0.0, %v6077
      %v6079 = vpop.f32.mrf.mxu0
      %6080 = vmatprep.mubr.f32.mxu0 0.0
      %6081 = vmatmul.mubr.f32.gmra.mxu0 %v5859
      %v6082 = vpop.f32.mrf.mxu0
      %v6083 = vadd.f32 0.0, %v6082
      %v6084 = vpop.f32.mrf.mxu0
      %6085 = vdwg.mxu0
      %v6086 = vadd.f32 %v5311, %v5928
      %v6087 = vadd.f32 %v5312, %v5933
      %v6088 = vadd.f32 %v5313, %v5938
      %v6089 = vadd.f32 %v5314, %v5943
      %v6090 = vadd.f32 %v5315, %v5948
      %v6091 = vadd.f32 %v5316, %v5953
      %v6092 = vadd.f32 %v5317, %v5958
      %v6093 = vadd.f32 %v5318, %v5963
      %v6094 = vadd.f32 %v5319, %v5968
      %v6095 = vadd.f32 %v5320, %v5973
      %v6096 = vadd.f32 %v5321, %v5978
      %v6097 = vadd.f32 %v5322, %v5983
      %v6098 = vadd.f32 %v5323, %v5988
      %v6099 = vadd.f32 %v5324, %v5993
      %v6100 = vadd.f32 %v5325, %v5998
      %v6101 = vadd.f32 %v5326, %v6003
      %v6102 = vadd.f32 %v5327, %v6008
      %v6103 = vadd.f32 %v5328, %v6013
      %v6104 = vadd.f32 %v5329, %v6018
      %v6105 = vadd.f32 %v5330, %v6023
      %v6106 = vadd.f32 %v5331, %v6028
      %v6107 = vadd.f32 %v5332, %v6033
      %v6108 = vadd.f32 %v5333, %v6038
      %v6109 = vadd.f32 %v5334, %v6043
      %v6110 = vadd.f32 %v5335, %v6048
      %v6111 = vadd.f32 %v5336, %v6053
      %v6112 = vadd.f32 %v5337, %v6058
      %v6113 = vadd.f32 %v5338, %v6063
      %v6114 = vadd.f32 %v5339, %v6068
      %v6115 = vadd.f32 %v5340, %v6073
      %v6116 = vadd.f32 %v5341, %v6078
      %v6117 = vadd.f32 %v5342, %v6083
      %v6118 = vld [vmem:[%s5343 + $0x2] sm:$0xff]
      %v6119 = vld [vmem:[%s5343 + $0xa] sm:$0xff]
      %v6120 = vld [vmem:[%s5343 + $0x1a] sm:$0xff]
      %v6121 = vld [vmem:[%s5343 + $0x22] sm:$0xff]
      %v6122 = vld [vmem:[%s5343 + $0x32] sm:$0xff]
      %v6123 = vld [vmem:[%s5343 + $0x3a] sm:$0xff]
      %v6124 = vld [vmem:[%s5343 + $0x4a] sm:$0xff]
      %v6125 = vld [vmem:[%s5343 + $0x52] sm:$0xff]
      %v6126 = vld [vmem:[%s5343 + $0x62] sm:$0xff]
      %v6127 = vld [vmem:[%s5343 + $0x6a] sm:$0xff]
      %v6128 = vld [vmem:[%s5343 + $0x7a] sm:$0xff]
      %v6129 = vld [vmem:[%s5343 + $0x82] sm:$0xff]
      %v6130 = vld [vmem:[%s5343 + $0x92] sm:$0xff]
      %v6131 = vld [vmem:[%s5343 + $0x9a] sm:$0xff]
      %v6132 = vld [vmem:[%s5343 + $0xaa] sm:$0xff]
      %v6133 = vld [vmem:[%s5343 + $0xb2] sm:$0xff]
      %v6134 = vld [vmem:[%s5343 + $0xc2] sm:$0xff]
      %v6135 = vld [vmem:[%s5343 + $0xca] sm:$0xff]
      %v6136 = vld [vmem:[%s5343 + $0xda] sm:$0xff]
      %v6137 = vld [vmem:[%s5343 + $0xe2] sm:$0xff]
      %v6138 = vld [vmem:[%s5343 + $0xf2] sm:$0xff]
      %v6139 = vld [vmem:[%s5343 + $0xfa] sm:$0xff]
      %v6140 = vld [vmem:[%s5343 + $0x10a] sm:$0xff]
      %v6141 = vld [vmem:[%s5343 + $0x112] sm:$0xff]
      %v6142 = vld [vmem:[%s5343 + $0x122] sm:$0xff]
      %v6143 = vld [vmem:[%s5343 + $0x12a] sm:$0xff]
      %v6144 = vld [vmem:[%s5343 + $0x13a] sm:$0xff]
      %v6145 = vld [vmem:[%s5343 + $0x142] sm:$0xff]
      %v6146 = vld [vmem:[%s5343 + $0x152] sm:$0xff]
      %v6147 = vld [vmem:[%s5343 + $0x15a] sm:$0xff]
      %v6148 = vld [vmem:[%s5343 + $0x16a] sm:$0xff]
      %v6149 = vld [vmem:[%s5343 + $0x172] sm:$0xff]
      %s6150 = scalar_lea.vmem %s5, 56
      %v6151 = vld [vmem:[%s6150] sm:$0xff]
      %v6153 = vsel %vm374, %v6118, 0
      %v6156 = vsel %vm374, %v6119, 0
      %v6159 = vsel %vm374, %v6120, 0
      %v6162 = vsel %vm374, %v6121, 0
      %v6165 = vsel %vm374, %v6122, 0
      %v6168 = vsel %vm374, %v6123, 0
      %v6171 = vsel %vm374, %v6124, 0
      %v6174 = vsel %vm374, %v6125, 0
      %v6177 = vsel %vm374, %v6126, 0
      %v6180 = vsel %vm374, %v6127, 0
      %v6183 = vsel %vm374, %v6128, 0
      %v6186 = vsel %vm374, %v6129, 0
      %v6189 = vsel %vm374, %v6130, 0
      %v6192 = vsel %vm374, %v6131, 0
      %v6195 = vsel %vm374, %v6132, 0
      %v6198 = vsel %vm374, %v6133, 0
      %v6201 = vsel %vm374, %v6134, 0
      %v6204 = vsel %vm374, %v6135, 0
      %v6207 = vsel %vm374, %v6136, 0
      %v6210 = vsel %vm374, %v6137, 0
      %v6213 = vsel %vm374, %v6138, 0
      %v6216 = vsel %vm374, %v6139, 0
      %v6219 = vsel %vm374, %v6140, 0
      %v6222 = vsel %vm374, %v6141, 0
      %v6225 = vsel %vm374, %v6142, 0
      %v6228 = vsel %vm374, %v6143, 0
      %v6231 = vsel %vm374, %v6144, 0
      %v6234 = vsel %vm374, %v6145, 0
      %v6237 = vsel %vm374, %v6146, 0
      %v6240 = vsel %vm374, %v6147, 0
      %v6243 = vsel %vm374, %v6148, 0
      %v6246 = vsel %vm374, %v6149, 0
      %6248 = vmatprep.subr.mxu0 0.0
      %6249 = vmatpush1.msra.mxu0 0.0
      %6250 = vmatprep.subr.mxu0 0.0
      %6251 = vmatpush1.msra.mxu0 0.0
      %6252 = vmatprep.subr.mxu0 0.0
      %6253 = vmatpush1.msra.mxu0 0.0
      %6254 = vmatprep.subr.mxu0 0.0
      %6255 = vmatpush1.msra.mxu0 0.0
      %6256 = vmatprep.subr.mxu0 0.0
      %6257 = vmatpush1.msra.mxu0 0.0
      %6258 = vmatprep.subr.mxu0 0.0
      %6259 = vmatpush1.msra.mxu0 0.0
      %6260 = vmatprep.subr.mxu0 0.0
      %6261 = vmatpush1.msra.mxu0 0.0
      %6262 = vmatprep.subr.mxu0 0.0
      %6263 = vmatpush1.msra.mxu0 0.0
      %6264 = vmatprep.subr.mxu0 0.0
      %6265 = vmatpush1.msra.mxu0 0.0
      %6266 = vmatprep.subr.mxu0 0.0
      %6267 = vmatpush1.msra.mxu0 0.0
      %6268 = vmatprep.subr.mxu0 0.0
      %6269 = vmatpush1.msra.mxu0 0.0
      %6270 = vmatprep.subr.mxu0 0.0
      %6271 = vmatpush1.msra.mxu0 0.0
      %6272 = vmatprep.subr.mxu0 0.0
      %6273 = vmatpush1.msra.mxu0 0.0
      %6274 = vmatprep.subr.mxu0 0.0
      %6275 = vmatpush1.msra.mxu0 0.0
      %6276 = vmatprep.subr.mxu0 0.0
      %6277 = vmatpush1.msra.mxu0 0.0
      %6278 = vmatprep.subr.mxu0 0.0
      %6279 = vmatpush1.msra.mxu0 %v6151
      %6280 = vmatprep.subr.mxu0 0.0
      %6281 = vmatpush2.msra.mxu0 0.0
      %6282 = vmatprep.subr.mxu0 0.0
      %6283 = vmatpush2.msra.mxu0 0.0
      %6284 = vmatprep.subr.mxu0 0.0
      %6285 = vmatpush2.msra.mxu0 0.0
      %6286 = vmatprep.subr.mxu0 0.0
      %6287 = vmatpush2.msra.mxu0 0.0
      %6288 = vmatprep.subr.mxu0 0.0
      %6289 = vmatpush2.msra.mxu0 0.0
      %6290 = vmatprep.subr.mxu0 0.0
      %6291 = vmatpush2.msra.mxu0 0.0
      %6292 = vmatprep.subr.mxu0 0.0
      %6293 = vmatpush2.msra.mxu0 0.0
      %6294 = vmatprep.subr.mxu0 0.0
      %6295 = vmatpush2.msra.mxu0 0.0
      %6296 = vmatprep.subr.mxu0 0.0
      %6297 = vmatpush2.msra.mxu0 0.0
      %6298 = vmatprep.subr.mxu0 0.0
      %6299 = vmatpush2.msra.mxu0 0.0
      %6300 = vmatprep.subr.mxu0 0.0
      %6301 = vmatpush2.msra.mxu0 0.0
      %6302 = vmatprep.subr.mxu0 0.0
      %6303 = vmatpush2.msra.mxu0 0.0
      %6304 = vmatprep.subr.mxu0 0.0
      %6305 = vmatpush2.msra.mxu0 0.0
      %6306 = vmatprep.subr.mxu0 0.0
      %6307 = vmatpush2.msra.mxu0 0.0
      %6308 = vmatprep.subr.mxu0 0.0
      %6309 = vmatpush2.msra.mxu0 0.0
      %6310 = vmatprep.subr.mxu0 0.0
      %6311 = vmatpush2.msra.mxu0 0.0
      %6312 = vmatprep.mubr.f32.mxu0 0.0
      %6313 = vmatmul.mubr.f32.gmra.mxu0 %v6153
      %v6314 = vpop.f32.mrf.mxu0
      %v6315 = vadd.f32 0.0, %v6314
      %v6316 = vpop.f32.mrf.mxu0
      %6317 = vmatprep.mubr.f32.mxu0 0.0
      %6318 = vmatmul.mubr.f32.gmra.mxu0 %v6156
      %v6319 = vpop.f32.mrf.mxu0
      %v6320 = vadd.f32 0.0, %v6319
      %v6321 = vpop.f32.mrf.mxu0
      %6322 = vmatprep.mubr.f32.mxu0 0.0
      %6323 = vmatmul.mubr.f32.gmra.mxu0 %v6159
      %v6324 = vpop.f32.mrf.mxu0
      %v6325 = vadd.f32 0.0, %v6324
      %v6326 = vpop.f32.mrf.mxu0
      %6327 = vmatprep.mubr.f32.mxu0 0.0
      %6328 = vmatmul.mubr.f32.gmra.mxu0 %v6162
      %v6329 = vpop.f32.mrf.mxu0
      %v6330 = vadd.f32 0.0, %v6329
      %v6331 = vpop.f32.mrf.mxu0
      %6332 = vmatprep.mubr.f32.mxu0 0.0
      %6333 = vmatmul.mubr.f32.gmra.mxu0 %v6165
      %v6334 = vpop.f32.mrf.mxu0
      %v6335 = vadd.f32 0.0, %v6334
      %v6336 = vpop.f32.mrf.mxu0
      %6337 = vmatprep.mubr.f32.mxu0 0.0
      %6338 = vmatmul.mubr.f32.gmra.mxu0 %v6168
      %v6339 = vpop.f32.mrf.mxu0
      %v6340 = vadd.f32 0.0, %v6339
      %v6341 = vpop.f32.mrf.mxu0
      %6342 = vmatprep.mubr.f32.mxu0 0.0
      %6343 = vmatmul.mubr.f32.gmra.mxu0 %v6171
      %v6344 = vpop.f32.mrf.mxu0
      %v6345 = vadd.f32 0.0, %v6344
      %v6346 = vpop.f32.mrf.mxu0
      %6347 = vmatprep.mubr.f32.mxu0 0.0
      %6348 = vmatmul.mubr.f32.gmra.mxu0 %v6174
      %v6349 = vpop.f32.mrf.mxu0
      %v6350 = vadd.f32 0.0, %v6349
      %v6351 = vpop.f32.mrf.mxu0
      %6352 = vmatprep.mubr.f32.mxu0 0.0
      %6353 = vmatmul.mubr.f32.gmra.mxu0 %v6177
      %v6354 = vpop.f32.mrf.mxu0
      %v6355 = vadd.f32 0.0, %v6354
      %v6356 = vpop.f32.mrf.mxu0
      %6357 = vmatprep.mubr.f32.mxu0 0.0
      %6358 = vmatmul.mubr.f32.gmra.mxu0 %v6180
      %v6359 = vpop.f32.mrf.mxu0
      %v6360 = vadd.f32 0.0, %v6359
      %v6361 = vpop.f32.mrf.mxu0
      %6362 = vmatprep.mubr.f32.mxu0 0.0
      %6363 = vmatmul.mubr.f32.gmra.mxu0 %v6183
      %v6364 = vpop.f32.mrf.mxu0
      %v6365 = vadd.f32 0.0, %v6364
      %v6366 = vpop.f32.mrf.mxu0
      %6367 = vmatprep.mubr.f32.mxu0 0.0
      %6368 = vmatmul.mubr.f32.gmra.mxu0 %v6186
      %v6369 = vpop.f32.mrf.mxu0
      %v6370 = vadd.f32 0.0, %v6369
      %v6371 = vpop.f32.mrf.mxu0
      %6372 = vmatprep.mubr.f32.mxu0 0.0
      %6373 = vmatmul.mubr.f32.gmra.mxu0 %v6189
      %v6374 = vpop.f32.mrf.mxu0
      %v6375 = vadd.f32 0.0, %v6374
      %v6376 = vpop.f32.mrf.mxu0
      %6377 = vmatprep.mubr.f32.mxu0 0.0
      %6378 = vmatmul.mubr.f32.gmra.mxu0 %v6192
      %v6379 = vpop.f32.mrf.mxu0
      %v6380 = vadd.f32 0.0, %v6379
      %v6381 = vpop.f32.mrf.mxu0
      %6382 = vmatprep.mubr.f32.mxu0 0.0
      %6383 = vmatmul.mubr.f32.gmra.mxu0 %v6195
      %v6384 = vpop.f32.mrf.mxu0
      %v6385 = vadd.f32 0.0, %v6384
      %v6386 = vpop.f32.mrf.mxu0
      %6387 = vmatprep.mubr.f32.mxu0 0.0
      %6388 = vmatmul.mubr.f32.gmra.mxu0 %v6198
      %v6389 = vpop.f32.mrf.mxu0
      %v6390 = vadd.f32 0.0, %v6389
      %v6391 = vpop.f32.mrf.mxu0
      %6392 = vmatprep.mubr.f32.mxu0 0.0
      %6393 = vmatmul.mubr.f32.gmra.mxu0 %v6201
      %v6394 = vpop.f32.mrf.mxu0
      %v6395 = vadd.f32 0.0, %v6394
      %v6396 = vpop.f32.mrf.mxu0
      %6397 = vmatprep.mubr.f32.mxu0 0.0
      %6398 = vmatmul.mubr.f32.gmra.mxu0 %v6204
      %v6399 = vpop.f32.mrf.mxu0
      %v6400 = vadd.f32 0.0, %v6399
      %v6401 = vpop.f32.mrf.mxu0
      %6402 = vmatprep.mubr.f32.mxu0 0.0
      %6403 = vmatmul.mubr.f32.gmra.mxu0 %v6207
      %v6404 = vpop.f32.mrf.mxu0
      %v6405 = vadd.f32 0.0, %v6404
      %v6406 = vpop.f32.mrf.mxu0
      %6407 = vmatprep.mubr.f32.mxu0 0.0
      %6408 = vmatmul.mubr.f32.gmra.mxu0 %v6210
      %v6409 = vpop.f32.mrf.mxu0
      %v6410 = vadd.f32 0.0, %v6409
      %v6411 = vpop.f32.mrf.mxu0
      %6412 = vmatprep.mubr.f32.mxu0 0.0
      %6413 = vmatmul.mubr.f32.gmra.mxu0 %v6213
      %v6414 = vpop.f32.mrf.mxu0
      %v6415 = vadd.f32 0.0, %v6414
      %v6416 = vpop.f32.mrf.mxu0
      %6417 = vmatprep.mubr.f32.mxu0 0.0
      %6418 = vmatmul.mubr.f32.gmra.mxu0 %v6216
      %v6419 = vpop.f32.mrf.mxu0
      %v6420 = vadd.f32 0.0, %v6419
      %v6421 = vpop.f32.mrf.mxu0
      %6422 = vmatprep.mubr.f32.mxu0 0.0
      %6423 = vmatmul.mubr.f32.gmra.mxu0 %v6219
      %v6424 = vpop.f32.mrf.mxu0
      %v6425 = vadd.f32 0.0, %v6424
      %v6426 = vpop.f32.mrf.mxu0
      %6427 = vmatprep.mubr.f32.mxu0 0.0
      %6428 = vmatmul.mubr.f32.gmra.mxu0 %v6222
      %v6429 = vpop.f32.mrf.mxu0
      %v6430 = vadd.f32 0.0, %v6429
      %v6431 = vpop.f32.mrf.mxu0
      %6432 = vmatprep.mubr.f32.mxu0 0.0
      %6433 = vmatmul.mubr.f32.gmra.mxu0 %v6225
      %v6434 = vpop.f32.mrf.mxu0
      %v6435 = vadd.f32 0.0, %v6434
      %v6436 = vpop.f32.mrf.mxu0
      %6437 = vmatprep.mubr.f32.mxu0 0.0
      %6438 = vmatmul.mubr.f32.gmra.mxu0 %v6228
      %v6439 = vpop.f32.mrf.mxu0
      %v6440 = vadd.f32 0.0, %v6439
      %v6441 = vpop.f32.mrf.mxu0
      %6442 = vmatprep.mubr.f32.mxu0 0.0
      %6443 = vmatmul.mubr.f32.gmra.mxu0 %v6231
      %v6444 = vpop.f32.mrf.mxu0
      %v6445 = vadd.f32 0.0, %v6444
      %v6446 = vpop.f32.mrf.mxu0
      %6447 = vmatprep.mubr.f32.mxu0 0.0
      %6448 = vmatmul.mubr.f32.gmra.mxu0 %v6234
      %v6449 = vpop.f32.mrf.mxu0
      %v6450 = vadd.f32 0.0, %v6449
      %v6451 = vpop.f32.mrf.mxu0
      %6452 = vmatprep.mubr.f32.mxu0 0.0
      %6453 = vmatmul.mubr.f32.gmra.mxu0 %v6237
      %v6454 = vpop.f32.mrf.mxu0
      %v6455 = vadd.f32 0.0, %v6454
      %v6456 = vpop.f32.mrf.mxu0
      %6457 = vmatprep.mubr.f32.mxu0 0.0
      %6458 = vmatmul.mubr.f32.gmra.mxu0 %v6240
      %v6459 = vpop.f32.mrf.mxu0
      %v6460 = vadd.f32 0.0, %v6459
      %v6461 = vpop.f32.mrf.mxu0
      %6462 = vmatprep.mubr.f32.mxu0 0.0
      %6463 = vmatmul.mubr.f32.gmra.mxu0 %v6243
      %v6464 = vpop.f32.mrf.mxu0
      %v6465 = vadd.f32 0.0, %v6464
      %v6466 = vpop.f32.mrf.mxu0
      %6467 = vmatprep.mubr.f32.mxu0 0.0
      %6468 = vmatmul.mubr.f32.gmra.mxu0 %v6246
      %v6469 = vpop.f32.mrf.mxu0
      %v6470 = vadd.f32 0.0, %v6469
      %v6471 = vpop.f32.mrf.mxu0
      %6472 = vdwg.mxu0
      %v6473 = vadd.f32 %v5699, %v6315
      %v6474 = vadd.f32 %v5700, %v6320
      %v6475 = vadd.f32 %v5701, %v6325
      %v6476 = vadd.f32 %v5702, %v6330
      %v6477 = vadd.f32 %v5703, %v6335
      %v6478 = vadd.f32 %v5704, %v6340
      %v6479 = vadd.f32 %v5705, %v6345
      %v6480 = vadd.f32 %v5706, %v6350
      %v6481 = vadd.f32 %v5707, %v6355
      %v6482 = vadd.f32 %v5708, %v6360
      %v6483 = vadd.f32 %v5709, %v6365
      %v6484 = vadd.f32 %v5710, %v6370
      %v6485 = vadd.f32 %v5711, %v6375
      %v6486 = vadd.f32 %v5712, %v6380
      %v6487 = vadd.f32 %v5713, %v6385
      %v6488 = vadd.f32 %v5714, %v6390
      %v6489 = vadd.f32 %v5715, %v6395
      %v6490 = vadd.f32 %v5716, %v6400
      %v6491 = vadd.f32 %v5717, %v6405
      %v6492 = vadd.f32 %v5718, %v6410
      %v6493 = vadd.f32 %v5719, %v6415
      %v6494 = vadd.f32 %v5720, %v6420
      %v6495 = vadd.f32 %v5721, %v6425
      %v6496 = vadd.f32 %v5722, %v6430
      %v6497 = vadd.f32 %v5723, %v6435
      %v6498 = vadd.f32 %v5724, %v6440
      %v6499 = vadd.f32 %v5725, %v6445
      %v6500 = vadd.f32 %v5726, %v6450
      %v6501 = vadd.f32 %v5727, %v6455
      %v6502 = vadd.f32 %v5728, %v6460
      %v6503 = vadd.f32 %v5729, %v6465
      %v6504 = vadd.f32 %v5730, %v6470
      %v6505 = vld [vmem:[%s4955 + $0x3] sm:$0xff]
      %v6506 = vld [vmem:[%s4955 + $0xb] sm:$0xff]
      %v6507 = vld [vmem:[%s4955 + $0x1b] sm:$0xff]
      %v6508 = vld [vmem:[%s4955 + $0x23] sm:$0xff]
      %v6509 = vld [vmem:[%s4955 + $0x33] sm:$0xff]
      %v6510 = vld [vmem:[%s4955 + $0x3b] sm:$0xff]
      %v6511 = vld [vmem:[%s4955 + $0x4b] sm:$0xff]
      %v6512 = vld [vmem:[%s4955 + $0x53] sm:$0xff]
      %v6513 = vld [vmem:[%s4955 + $0x63] sm:$0xff]
      %v6514 = vld [vmem:[%s4955 + $0x6b] sm:$0xff]
      %v6515 = vld [vmem:[%s4955 + $0x7b] sm:$0xff]
      %v6516 = vld [vmem:[%s4955 + $0x83] sm:$0xff]
      %v6517 = vld [vmem:[%s4955 + $0x93] sm:$0xff]
      %v6518 = vld [vmem:[%s4955 + $0x9b] sm:$0xff]
      %v6519 = vld [vmem:[%s4955 + $0xab] sm:$0xff]
      %v6520 = vld [vmem:[%s4955 + $0xb3] sm:$0xff]
      %v6521 = vld [vmem:[%s4955 + $0xc3] sm:$0xff]
      %v6522 = vld [vmem:[%s4955 + $0xcb] sm:$0xff]
      %v6523 = vld [vmem:[%s4955 + $0xdb] sm:$0xff]
      %v6524 = vld [vmem:[%s4955 + $0xe3] sm:$0xff]
      %v6525 = vld [vmem:[%s4955 + $0xf3] sm:$0xff]
      %v6526 = vld [vmem:[%s4955 + $0xfb] sm:$0xff]
      %v6527 = vld [vmem:[%s4955 + $0x10b] sm:$0xff]
      %v6528 = vld [vmem:[%s4955 + $0x113] sm:$0xff]
      %v6529 = vld [vmem:[%s4955 + $0x123] sm:$0xff]
      %v6530 = vld [vmem:[%s4955 + $0x12b] sm:$0xff]
      %v6531 = vld [vmem:[%s4955 + $0x13b] sm:$0xff]
      %v6532 = vld [vmem:[%s4955 + $0x143] sm:$0xff]
      %v6533 = vld [vmem:[%s4955 + $0x153] sm:$0xff]
      %v6534 = vld [vmem:[%s4955 + $0x15b] sm:$0xff]
      %v6535 = vld [vmem:[%s4955 + $0x16b] sm:$0xff]
      %v6536 = vld [vmem:[%s4955 + $0x173] sm:$0xff]
      %s6537 = scalar_lea.vmem %s3, 64
      %v6538 = vld [vmem:[%s6537] sm:$0xff]
      %v6540 = vsel %vm374, %v6505, 0
      %v6543 = vsel %vm374, %v6506, 0
      %v6546 = vsel %vm374, %v6507, 0
      %v6549 = vsel %vm374, %v6508, 0
      %v6552 = vsel %vm374, %v6509, 0
      %v6555 = vsel %vm374, %v6510, 0
      %v6558 = vsel %vm374, %v6511, 0
      %v6561 = vsel %vm374, %v6512, 0
      %v6564 = vsel %vm374, %v6513, 0
      %v6567 = vsel %vm374, %v6514, 0
      %v6570 = vsel %vm374, %v6515, 0
      %v6573 = vsel %vm374, %v6516, 0
      %v6576 = vsel %vm374, %v6517, 0
      %v6579 = vsel %vm374, %v6518, 0
      %v6582 = vsel %vm374, %v6519, 0
      %v6585 = vsel %vm374, %v6520, 0
      %v6588 = vsel %vm374, %v6521, 0
      %v6591 = vsel %vm374, %v6522, 0
      %v6594 = vsel %vm374, %v6523, 0
      %v6597 = vsel %vm374, %v6524, 0
      %v6600 = vsel %vm374, %v6525, 0
      %v6603 = vsel %vm374, %v6526, 0
      %v6606 = vsel %vm374, %v6527, 0
      %v6609 = vsel %vm374, %v6528, 0
      %v6612 = vsel %vm374, %v6529, 0
      %v6615 = vsel %vm374, %v6530, 0
      %v6618 = vsel %vm374, %v6531, 0
      %v6621 = vsel %vm374, %v6532, 0
      %v6624 = vsel %vm374, %v6533, 0
      %v6627 = vsel %vm374, %v6534, 0
      %v6630 = vsel %vm374, %v6535, 0
      %v6633 = vsel %vm374, %v6536, 0
      %6635 = vmatprep.subr.mxu0 0.0
      %6636 = vmatpush1.msra.mxu0 0.0
      %6637 = vmatprep.subr.mxu0 0.0
      %6638 = vmatpush1.msra.mxu0 0.0
      %6639 = vmatprep.subr.mxu0 0.0
      %6640 = vmatpush1.msra.mxu0 0.0
      %6641 = vmatprep.subr.mxu0 0.0
      %6642 = vmatpush1.msra.mxu0 0.0
      %6643 = vmatprep.subr.mxu0 0.0
      %6644 = vmatpush1.msra.mxu0 0.0
      %6645 = vmatprep.subr.mxu0 0.0
      %6646 = vmatpush1.msra.mxu0 0.0
      %6647 = vmatprep.subr.mxu0 0.0
      %6648 = vmatpush1.msra.mxu0 0.0
      %6649 = vmatprep.subr.mxu0 0.0
      %6650 = vmatpush1.msra.mxu0 0.0
      %6651 = vmatprep.subr.mxu0 0.0
      %6652 = vmatpush1.msra.mxu0 0.0
      %6653 = vmatprep.subr.mxu0 0.0
      %6654 = vmatpush1.msra.mxu0 0.0
      %6655 = vmatprep.subr.mxu0 0.0
      %6656 = vmatpush1.msra.mxu0 0.0
      %6657 = vmatprep.subr.mxu0 0.0
      %6658 = vmatpush1.msra.mxu0 0.0
      %6659 = vmatprep.subr.mxu0 0.0
      %6660 = vmatpush1.msra.mxu0 0.0
      %6661 = vmatprep.subr.mxu0 0.0
      %6662 = vmatpush1.msra.mxu0 0.0
      %6663 = vmatprep.subr.mxu0 0.0
      %6664 = vmatpush1.msra.mxu0 0.0
      %6665 = vmatprep.subr.mxu0 0.0
      %6666 = vmatpush1.msra.mxu0 %v6538
      %6667 = vmatprep.subr.mxu0 0.0
      %6668 = vmatpush2.msra.mxu0 0.0
      %6669 = vmatprep.subr.mxu0 0.0
      %6670 = vmatpush2.msra.mxu0 0.0
      %6671 = vmatprep.subr.mxu0 0.0
      %6672 = vmatpush2.msra.mxu0 0.0
      %6673 = vmatprep.subr.mxu0 0.0
      %6674 = vmatpush2.msra.mxu0 0.0
      %6675 = vmatprep.subr.mxu0 0.0
      %6676 = vmatpush2.msra.mxu0 0.0
      %6677 = vmatprep.subr.mxu0 0.0
      %6678 = vmatpush2.msra.mxu0 0.0
      %6679 = vmatprep.subr.mxu0 0.0
      %6680 = vmatpush2.msra.mxu0 0.0
      %6681 = vmatprep.subr.mxu0 0.0
      %6682 = vmatpush2.msra.mxu0 0.0
      %6683 = vmatprep.subr.mxu0 0.0
      %6684 = vmatpush2.msra.mxu0 0.0
      %6685 = vmatprep.subr.mxu0 0.0
      %6686 = vmatpush2.msra.mxu0 0.0
      %6687 = vmatprep.subr.mxu0 0.0
      %6688 = vmatpush2.msra.mxu0 0.0
      %6689 = vmatprep.subr.mxu0 0.0
      %6690 = vmatpush2.msra.mxu0 0.0
      %6691 = vmatprep.subr.mxu0 0.0
      %6692 = vmatpush2.msra.mxu0 0.0
      %6693 = vmatprep.subr.mxu0 0.0
      %6694 = vmatpush2.msra.mxu0 0.0
      %6695 = vmatprep.subr.mxu0 0.0
      %6696 = vmatpush2.msra.mxu0 0.0
      %6697 = vmatprep.subr.mxu0 0.0
      %6698 = vmatpush2.msra.mxu0 0.0
      %6699 = vmatprep.mubr.f32.mxu0 0.0
      %6700 = vmatmul.mubr.f32.gmra.mxu0 %v6540
      %v6701 = vpop.f32.mrf.mxu0
      %v6702 = vadd.f32 0.0, %v6701
      %v6703 = vpop.f32.mrf.mxu0
      %6704 = vmatprep.mubr.f32.mxu0 0.0
      %6705 = vmatmul.mubr.f32.gmra.mxu0 %v6543
      %v6706 = vpop.f32.mrf.mxu0
      %v6707 = vadd.f32 0.0, %v6706
      %v6708 = vpop.f32.mrf.mxu0
      %6709 = vmatprep.mubr.f32.mxu0 0.0
      %6710 = vmatmul.mubr.f32.gmra.mxu0 %v6546
      %v6711 = vpop.f32.mrf.mxu0
      %v6712 = vadd.f32 0.0, %v6711
      %v6713 = vpop.f32.mrf.mxu0
      %6714 = vmatprep.mubr.f32.mxu0 0.0
      %6715 = vmatmul.mubr.f32.gmra.mxu0 %v6549
      %v6716 = vpop.f32.mrf.mxu0
      %v6717 = vadd.f32 0.0, %v6716
      %v6718 = vpop.f32.mrf.mxu0
      %6719 = vmatprep.mubr.f32.mxu0 0.0
      %6720 = vmatmul.mubr.f32.gmra.mxu0 %v6552
      %v6721 = vpop.f32.mrf.mxu0
      %v6722 = vadd.f32 0.0, %v6721
      %v6723 = vpop.f32.mrf.mxu0
      %6724 = vmatprep.mubr.f32.mxu0 0.0
      %6725 = vmatmul.mubr.f32.gmra.mxu0 %v6555
      %v6726 = vpop.f32.mrf.mxu0
      %v6727 = vadd.f32 0.0, %v6726
      %v6728 = vpop.f32.mrf.mxu0
      %6729 = vmatprep.mubr.f32.mxu0 0.0
      %6730 = vmatmul.mubr.f32.gmra.mxu0 %v6558
      %v6731 = vpop.f32.mrf.mxu0
      %v6732 = vadd.f32 0.0, %v6731
      %v6733 = vpop.f32.mrf.mxu0
      %6734 = vmatprep.mubr.f32.mxu0 0.0
      %6735 = vmatmul.mubr.f32.gmra.mxu0 %v6561
      %v6736 = vpop.f32.mrf.mxu0
      %v6737 = vadd.f32 0.0, %v6736
      %v6738 = vpop.f32.mrf.mxu0
      %6739 = vmatprep.mubr.f32.mxu0 0.0
      %6740 = vmatmul.mubr.f32.gmra.mxu0 %v6564
      %v6741 = vpop.f32.mrf.mxu0
      %v6742 = vadd.f32 0.0, %v6741
      %v6743 = vpop.f32.mrf.mxu0
      %6744 = vmatprep.mubr.f32.mxu0 0.0
      %6745 = vmatmul.mubr.f32.gmra.mxu0 %v6567
      %v6746 = vpop.f32.mrf.mxu0
      %v6747 = vadd.f32 0.0, %v6746
      %v6748 = vpop.f32.mrf.mxu0
      %6749 = vmatprep.mubr.f32.mxu0 0.0
      %6750 = vmatmul.mubr.f32.gmra.mxu0 %v6570
      %v6751 = vpop.f32.mrf.mxu0
      %v6752 = vadd.f32 0.0, %v6751
      %v6753 = vpop.f32.mrf.mxu0
      %6754 = vmatprep.mubr.f32.mxu0 0.0
      %6755 = vmatmul.mubr.f32.gmra.mxu0 %v6573
      %v6756 = vpop.f32.mrf.mxu0
      %v6757 = vadd.f32 0.0, %v6756
      %v6758 = vpop.f32.mrf.mxu0
      %6759 = vmatprep.mubr.f32.mxu0 0.0
      %6760 = vmatmul.mubr.f32.gmra.mxu0 %v6576
      %v6761 = vpop.f32.mrf.mxu0
      %v6762 = vadd.f32 0.0, %v6761
      %v6763 = vpop.f32.mrf.mxu0
      %6764 = vmatprep.mubr.f32.mxu0 0.0
      %6765 = vmatmul.mubr.f32.gmra.mxu0 %v6579
      %v6766 = vpop.f32.mrf.mxu0
      %v6767 = vadd.f32 0.0, %v6766
      %v6768 = vpop.f32.mrf.mxu0
      %6769 = vmatprep.mubr.f32.mxu0 0.0
      %6770 = vmatmul.mubr.f32.gmra.mxu0 %v6582
      %v6771 = vpop.f32.mrf.mxu0
      %v6772 = vadd.f32 0.0, %v6771
      %v6773 = vpop.f32.mrf.mxu0
      %6774 = vmatprep.mubr.f32.mxu0 0.0
      %6775 = vmatmul.mubr.f32.gmra.mxu0 %v6585
      %v6776 = vpop.f32.mrf.mxu0
      %v6777 = vadd.f32 0.0, %v6776
      %v6778 = vpop.f32.mrf.mxu0
      %6779 = vmatprep.mubr.f32.mxu0 0.0
      %6780 = vmatmul.mubr.f32.gmra.mxu0 %v6588
      %v6781 = vpop.f32.mrf.mxu0
      %v6782 = vadd.f32 0.0, %v6781
      %v6783 = vpop.f32.mrf.mxu0
      %6784 = vmatprep.mubr.f32.mxu0 0.0
      %6785 = vmatmul.mubr.f32.gmra.mxu0 %v6591
      %v6786 = vpop.f32.mrf.mxu0
      %v6787 = vadd.f32 0.0, %v6786
      %v6788 = vpop.f32.mrf.mxu0
      %6789 = vmatprep.mubr.f32.mxu0 0.0
      %6790 = vmatmul.mubr.f32.gmra.mxu0 %v6594
      %v6791 = vpop.f32.mrf.mxu0
      %v6792 = vadd.f32 0.0, %v6791
      %v6793 = vpop.f32.mrf.mxu0
      %6794 = vmatprep.mubr.f32.mxu0 0.0
      %6795 = vmatmul.mubr.f32.gmra.mxu0 %v6597
      %v6796 = vpop.f32.mrf.mxu0
      %v6797 = vadd.f32 0.0, %v6796
      %v6798 = vpop.f32.mrf.mxu0
      %6799 = vmatprep.mubr.f32.mxu0 0.0
      %6800 = vmatmul.mubr.f32.gmra.mxu0 %v6600
      %v6801 = vpop.f32.mrf.mxu0
      %v6802 = vadd.f32 0.0, %v6801
      %v6803 = vpop.f32.mrf.mxu0
      %6804 = vmatprep.mubr.f32.mxu0 0.0
      %6805 = vmatmul.mubr.f32.gmra.mxu0 %v6603
      %v6806 = vpop.f32.mrf.mxu0
      %v6807 = vadd.f32 0.0, %v6806
      %v6808 = vpop.f32.mrf.mxu0
      %6809 = vmatprep.mubr.f32.mxu0 0.0
      %6810 = vmatmul.mubr.f32.gmra.mxu0 %v6606
      %v6811 = vpop.f32.mrf.mxu0
      %v6812 = vadd.f32 0.0, %v6811
      %v6813 = vpop.f32.mrf.mxu0
      %6814 = vmatprep.mubr.f32.mxu0 0.0
      %6815 = vmatmul.mubr.f32.gmra.mxu0 %v6609
      %v6816 = vpop.f32.mrf.mxu0
      %v6817 = vadd.f32 0.0, %v6816
      %v6818 = vpop.f32.mrf.mxu0
      %6819 = vmatprep.mubr.f32.mxu0 0.0
      %6820 = vmatmul.mubr.f32.gmra.mxu0 %v6612
      %v6821 = vpop.f32.mrf.mxu0
      %v6822 = vadd.f32 0.0, %v6821
      %v6823 = vpop.f32.mrf.mxu0
      %6824 = vmatprep.mubr.f32.mxu0 0.0
      %6825 = vmatmul.mubr.f32.gmra.mxu0 %v6615
      %v6826 = vpop.f32.mrf.mxu0
      %v6827 = vadd.f32 0.0, %v6826
      %v6828 = vpop.f32.mrf.mxu0
      %6829 = vmatprep.mubr.f32.mxu0 0.0
      %6830 = vmatmul.mubr.f32.gmra.mxu0 %v6618
      %v6831 = vpop.f32.mrf.mxu0
      %v6832 = vadd.f32 0.0, %v6831
      %v6833 = vpop.f32.mrf.mxu0
      %6834 = vmatprep.mubr.f32.mxu0 0.0
      %6835 = vmatmul.mubr.f32.gmra.mxu0 %v6621
      %v6836 = vpop.f32.mrf.mxu0
      %v6837 = vadd.f32 0.0, %v6836
      %v6838 = vpop.f32.mrf.mxu0
      %6839 = vmatprep.mubr.f32.mxu0 0.0
      %6840 = vmatmul.mubr.f32.gmra.mxu0 %v6624
      %v6841 = vpop.f32.mrf.mxu0
      %v6842 = vadd.f32 0.0, %v6841
      %v6843 = vpop.f32.mrf.mxu0
      %6844 = vmatprep.mubr.f32.mxu0 0.0
      %6845 = vmatmul.mubr.f32.gmra.mxu0 %v6627
      %v6846 = vpop.f32.mrf.mxu0
      %v6847 = vadd.f32 0.0, %v6846
      %v6848 = vpop.f32.mrf.mxu0
      %6849 = vmatprep.mubr.f32.mxu0 0.0
      %6850 = vmatmul.mubr.f32.gmra.mxu0 %v6630
      %v6851 = vpop.f32.mrf.mxu0
      %v6852 = vadd.f32 0.0, %v6851
      %v6853 = vpop.f32.mrf.mxu0
      %6854 = vmatprep.mubr.f32.mxu0 0.0
      %6855 = vmatmul.mubr.f32.gmra.mxu0 %v6633
      %v6856 = vpop.f32.mrf.mxu0
      %v6857 = vadd.f32 0.0, %v6856
      %v6858 = vpop.f32.mrf.mxu0
      %6859 = vdwg.mxu0
      %v6860 = vadd.f32 %v6086, %v6702
      %v6861 = vadd.f32 %v6087, %v6707
      %v6862 = vadd.f32 %v6088, %v6712
      %v6863 = vadd.f32 %v6089, %v6717
      %v6864 = vadd.f32 %v6090, %v6722
      %v6865 = vadd.f32 %v6091, %v6727
      %v6866 = vadd.f32 %v6092, %v6732
      %v6867 = vadd.f32 %v6093, %v6737
      %v6868 = vadd.f32 %v6094, %v6742
      %v6869 = vadd.f32 %v6095, %v6747
      %v6870 = vadd.f32 %v6096, %v6752
      %v6871 = vadd.f32 %v6097, %v6757
      %v6872 = vadd.f32 %v6098, %v6762
      %v6873 = vadd.f32 %v6099, %v6767
      %v6874 = vadd.f32 %v6100, %v6772
      %v6875 = vadd.f32 %v6101, %v6777
      %v6876 = vadd.f32 %v6102, %v6782
      %v6877 = vadd.f32 %v6103, %v6787
      %v6878 = vadd.f32 %v6104, %v6792
      %v6879 = vadd.f32 %v6105, %v6797
      %v6880 = vadd.f32 %v6106, %v6802
      %v6881 = vadd.f32 %v6107, %v6807
      %v6882 = vadd.f32 %v6108, %v6812
      %v6883 = vadd.f32 %v6109, %v6817
      %v6884 = vadd.f32 %v6110, %v6822
      %v6885 = vadd.f32 %v6111, %v6827
      %v6886 = vadd.f32 %v6112, %v6832
      %v6887 = vadd.f32 %v6113, %v6837
      %v6888 = vadd.f32 %v6114, %v6842
      %v6889 = vadd.f32 %v6115, %v6847
      %v6890 = vadd.f32 %v6116, %v6852
      %v6891 = vadd.f32 %v6117, %v6857
      %v6892 = vld [vmem:[%s5343 + $0x4] sm:$0xff]
      %v6893 = vld [vmem:[%s5343 + $0xc] sm:$0xff]
      %v6894 = vld [vmem:[%s5343 + $0x1c] sm:$0xff]
      %v6895 = vld [vmem:[%s5343 + $0x24] sm:$0xff]
      %v6896 = vld [vmem:[%s5343 + $0x34] sm:$0xff]
      %v6897 = vld [vmem:[%s5343 + $0x3c] sm:$0xff]
      %v6898 = vld [vmem:[%s5343 + $0x4c] sm:$0xff]
      %v6899 = vld [vmem:[%s5343 + $0x54] sm:$0xff]
      %v6900 = vld [vmem:[%s5343 + $0x64] sm:$0xff]
      %v6901 = vld [vmem:[%s5343 + $0x6c] sm:$0xff]
      %v6902 = vld [vmem:[%s5343 + $0x7c] sm:$0xff]
      %v6903 = vld [vmem:[%s5343 + $0x84] sm:$0xff]
      %v6904 = vld [vmem:[%s5343 + $0x94] sm:$0xff]
      %v6905 = vld [vmem:[%s5343 + $0x9c] sm:$0xff]
      %v6906 = vld [vmem:[%s5343 + $0xac] sm:$0xff]
      %v6907 = vld [vmem:[%s5343 + $0xb4] sm:$0xff]
      %v6908 = vld [vmem:[%s5343 + $0xc4] sm:$0xff]
      %v6909 = vld [vmem:[%s5343 + $0xcc] sm:$0xff]
      %v6910 = vld [vmem:[%s5343 + $0xdc] sm:$0xff]
      %v6911 = vld [vmem:[%s5343 + $0xe4] sm:$0xff]
      %v6912 = vld [vmem:[%s5343 + $0xf4] sm:$0xff]
      %v6913 = vld [vmem:[%s5343 + $0xfc] sm:$0xff]
      %v6914 = vld [vmem:[%s5343 + $0x10c] sm:$0xff]
      %v6915 = vld [vmem:[%s5343 + $0x114] sm:$0xff]
      %v6916 = vld [vmem:[%s5343 + $0x124] sm:$0xff]
      %v6917 = vld [vmem:[%s5343 + $0x12c] sm:$0xff]
      %v6918 = vld [vmem:[%s5343 + $0x13c] sm:$0xff]
      %v6919 = vld [vmem:[%s5343 + $0x144] sm:$0xff]
      %v6920 = vld [vmem:[%s5343 + $0x154] sm:$0xff]
      %v6921 = vld [vmem:[%s5343 + $0x15c] sm:$0xff]
      %v6922 = vld [vmem:[%s5343 + $0x16c] sm:$0xff]
      %v6923 = vld [vmem:[%s5343 + $0x174] sm:$0xff]
      %s6924 = scalar_lea.vmem %s5, 64
      %v6925 = vld [vmem:[%s6924] sm:$0xff]
      %v6927 = vsel %vm374, %v6892, 0
      %v6930 = vsel %vm374, %v6893, 0
      %v6933 = vsel %vm374, %v6894, 0
      %v6936 = vsel %vm374, %v6895, 0
      %v6939 = vsel %vm374, %v6896, 0
      %v6942 = vsel %vm374, %v6897, 0
      %v6945 = vsel %vm374, %v6898, 0
      %v6948 = vsel %vm374, %v6899, 0
      %v6951 = vsel %vm374, %v6900, 0
      %v6954 = vsel %vm374, %v6901, 0
      %v6957 = vsel %vm374, %v6902, 0
      %v6960 = vsel %vm374, %v6903, 0
      %v6963 = vsel %vm374, %v6904, 0
      %v6966 = vsel %vm374, %v6905, 0
      %v6969 = vsel %vm374, %v6906, 0
      %v6972 = vsel %vm374, %v6907, 0
      %v6975 = vsel %vm374, %v6908, 0
      %v6978 = vsel %vm374, %v6909, 0
      %v6981 = vsel %vm374, %v6910, 0
      %v6984 = vsel %vm374, %v6911, 0
      %v6987 = vsel %vm374, %v6912, 0
      %v6990 = vsel %vm374, %v6913, 0
      %v6993 = vsel %vm374, %v6914, 0
      %v6996 = vsel %vm374, %v6915, 0
      %v6999 = vsel %vm374, %v6916, 0
      %v7002 = vsel %vm374, %v6917, 0
      %v7005 = vsel %vm374, %v6918, 0
      %v7008 = vsel %vm374, %v6919, 0
      %v7011 = vsel %vm374, %v6920, 0
      %v7014 = vsel %vm374, %v6921, 0
      %v7017 = vsel %vm374, %v6922, 0
      %v7020 = vsel %vm374, %v6923, 0
      %7022 = vmatprep.subr.mxu0 0.0
      %7023 = vmatpush1.msra.mxu0 0.0
      %7024 = vmatprep.subr.mxu0 0.0
      %7025 = vmatpush1.msra.mxu0 0.0
      %7026 = vmatprep.subr.mxu0 0.0
      %7027 = vmatpush1.msra.mxu0 0.0
      %7028 = vmatprep.subr.mxu0 0.0
      %7029 = vmatpush1.msra.mxu0 0.0
      %7030 = vmatprep.subr.mxu0 0.0
      %7031 = vmatpush1.msra.mxu0 0.0
      %7032 = vmatprep.subr.mxu0 0.0
      %7033 = vmatpush1.msra.mxu0 0.0
      %7034 = vmatprep.subr.mxu0 0.0
      %7035 = vmatpush1.msra.mxu0 0.0
      %7036 = vmatprep.subr.mxu0 0.0
      %7037 = vmatpush1.msra.mxu0 0.0
      %7038 = vmatprep.subr.mxu0 0.0
      %7039 = vmatpush1.msra.mxu0 0.0
      %7040 = vmatprep.subr.mxu0 0.0
      %7041 = vmatpush1.msra.mxu0 0.0
      %7042 = vmatprep.subr.mxu0 0.0
      %7043 = vmatpush1.msra.mxu0 0.0
      %7044 = vmatprep.subr.mxu0 0.0
      %7045 = vmatpush1.msra.mxu0 0.0
      %7046 = vmatprep.subr.mxu0 0.0
      %7047 = vmatpush1.msra.mxu0 0.0
      %7048 = vmatprep.subr.mxu0 0.0
      %7049 = vmatpush1.msra.mxu0 0.0
      %7050 = vmatprep.subr.mxu0 0.0
      %7051 = vmatpush1.msra.mxu0 0.0
      %7052 = vmatprep.subr.mxu0 0.0
      %7053 = vmatpush1.msra.mxu0 %v6925
      %7054 = vmatprep.subr.mxu0 0.0
      %7055 = vmatpush2.msra.mxu0 0.0
      %7056 = vmatprep.subr.mxu0 0.0
      %7057 = vmatpush2.msra.mxu0 0.0
      %7058 = vmatprep.subr.mxu0 0.0
      %7059 = vmatpush2.msra.mxu0 0.0
      %7060 = vmatprep.subr.mxu0 0.0
      %7061 = vmatpush2.msra.mxu0 0.0
      %7062 = vmatprep.subr.mxu0 0.0
      %7063 = vmatpush2.msra.mxu0 0.0
      %7064 = vmatprep.subr.mxu0 0.0
      %7065 = vmatpush2.msra.mxu0 0.0
      %7066 = vmatprep.subr.mxu0 0.0
      %7067 = vmatpush2.msra.mxu0 0.0
      %7068 = vmatprep.subr.mxu0 0.0
      %7069 = vmatpush2.msra.mxu0 0.0
      %7070 = vmatprep.subr.mxu0 0.0
      %7071 = vmatpush2.msra.mxu0 0.0
      %7072 = vmatprep.subr.mxu0 0.0
      %7073 = vmatpush2.msra.mxu0 0.0
      %7074 = vmatprep.subr.mxu0 0.0
      %7075 = vmatpush2.msra.mxu0 0.0
      %7076 = vmatprep.subr.mxu0 0.0
      %7077 = vmatpush2.msra.mxu0 0.0
      %7078 = vmatprep.subr.mxu0 0.0
      %7079 = vmatpush2.msra.mxu0 0.0
      %7080 = vmatprep.subr.mxu0 0.0
      %7081 = vmatpush2.msra.mxu0 0.0
      %7082 = vmatprep.subr.mxu0 0.0
      %7083 = vmatpush2.msra.mxu0 0.0
      %7084 = vmatprep.subr.mxu0 0.0
      %7085 = vmatpush2.msra.mxu0 0.0
      %7086 = vmatprep.mubr.f32.mxu0 0.0
      %7087 = vmatmul.mubr.f32.gmra.mxu0 %v6927
      %v7088 = vpop.f32.mrf.mxu0
      %v7089 = vadd.f32 0.0, %v7088
      %v7090 = vpop.f32.mrf.mxu0
      %7091 = vmatprep.mubr.f32.mxu0 0.0
      %7092 = vmatmul.mubr.f32.gmra.mxu0 %v6930
      %v7093 = vpop.f32.mrf.mxu0
      %v7094 = vadd.f32 0.0, %v7093
      %v7095 = vpop.f32.mrf.mxu0
      %7096 = vmatprep.mubr.f32.mxu0 0.0
      %7097 = vmatmul.mubr.f32.gmra.mxu0 %v6933
      %v7098 = vpop.f32.mrf.mxu0
      %v7099 = vadd.f32 0.0, %v7098
      %v7100 = vpop.f32.mrf.mxu0
      %7101 = vmatprep.mubr.f32.mxu0 0.0
      %7102 = vmatmul.mubr.f32.gmra.mxu0 %v6936
      %v7103 = vpop.f32.mrf.mxu0
      %v7104 = vadd.f32 0.0, %v7103
      %v7105 = vpop.f32.mrf.mxu0
      %7106 = vmatprep.mubr.f32.mxu0 0.0
      %7107 = vmatmul.mubr.f32.gmra.mxu0 %v6939
      %v7108 = vpop.f32.mrf.mxu0
      %v7109 = vadd.f32 0.0, %v7108
      %v7110 = vpop.f32.mrf.mxu0
      %7111 = vmatprep.mubr.f32.mxu0 0.0
      %7112 = vmatmul.mubr.f32.gmra.mxu0 %v6942
      %v7113 = vpop.f32.mrf.mxu0
      %v7114 = vadd.f32 0.0, %v7113
      %v7115 = vpop.f32.mrf.mxu0
      %7116 = vmatprep.mubr.f32.mxu0 0.0
      %7117 = vmatmul.mubr.f32.gmra.mxu0 %v6945
      %v7118 = vpop.f32.mrf.mxu0
      %v7119 = vadd.f32 0.0, %v7118
      %v7120 = vpop.f32.mrf.mxu0
      %7121 = vmatprep.mubr.f32.mxu0 0.0
      %7122 = vmatmul.mubr.f32.gmra.mxu0 %v6948
      %v7123 = vpop.f32.mrf.mxu0
      %v7124 = vadd.f32 0.0, %v7123
      %v7125 = vpop.f32.mrf.mxu0
      %7126 = vmatprep.mubr.f32.mxu0 0.0
      %7127 = vmatmul.mubr.f32.gmra.mxu0 %v6951
      %v7128 = vpop.f32.mrf.mxu0
      %v7129 = vadd.f32 0.0, %v7128
      %v7130 = vpop.f32.mrf.mxu0
      %7131 = vmatprep.mubr.f32.mxu0 0.0
      %7132 = vmatmul.mubr.f32.gmra.mxu0 %v6954
      %v7133 = vpop.f32.mrf.mxu0
      %v7134 = vadd.f32 0.0, %v7133
      %v7135 = vpop.f32.mrf.mxu0
      %7136 = vmatprep.mubr.f32.mxu0 0.0
      %7137 = vmatmul.mubr.f32.gmra.mxu0 %v6957
      %v7138 = vpop.f32.mrf.mxu0
      %v7139 = vadd.f32 0.0, %v7138
      %v7140 = vpop.f32.mrf.mxu0
      %7141 = vmatprep.mubr.f32.mxu0 0.0
      %7142 = vmatmul.mubr.f32.gmra.mxu0 %v6960
      %v7143 = vpop.f32.mrf.mxu0
      %v7144 = vadd.f32 0.0, %v7143
      %v7145 = vpop.f32.mrf.mxu0
      %7146 = vmatprep.mubr.f32.mxu0 0.0
      %7147 = vmatmul.mubr.f32.gmra.mxu0 %v6963
      %v7148 = vpop.f32.mrf.mxu0
      %v7149 = vadd.f32 0.0, %v7148
      %v7150 = vpop.f32.mrf.mxu0
      %7151 = vmatprep.mubr.f32.mxu0 0.0
      %7152 = vmatmul.mubr.f32.gmra.mxu0 %v6966
      %v7153 = vpop.f32.mrf.mxu0
      %v7154 = vadd.f32 0.0, %v7153
      %v7155 = vpop.f32.mrf.mxu0
      %7156 = vmatprep.mubr.f32.mxu0 0.0
      %7157 = vmatmul.mubr.f32.gmra.mxu0 %v6969
      %v7158 = vpop.f32.mrf.mxu0
      %v7159 = vadd.f32 0.0, %v7158
      %v7160 = vpop.f32.mrf.mxu0
      %7161 = vmatprep.mubr.f32.mxu0 0.0
      %7162 = vmatmul.mubr.f32.gmra.mxu0 %v6972
      %v7163 = vpop.f32.mrf.mxu0
      %v7164 = vadd.f32 0.0, %v7163
      %v7165 = vpop.f32.mrf.mxu0
      %7166 = vmatprep.mubr.f32.mxu0 0.0
      %7167 = vmatmul.mubr.f32.gmra.mxu0 %v6975
      %v7168 = vpop.f32.mrf.mxu0
      %v7169 = vadd.f32 0.0, %v7168
      %v7170 = vpop.f32.mrf.mxu0
      %7171 = vmatprep.mubr.f32.mxu0 0.0
      %7172 = vmatmul.mubr.f32.gmra.mxu0 %v6978
      %v7173 = vpop.f32.mrf.mxu0
      %v7174 = vadd.f32 0.0, %v7173
      %v7175 = vpop.f32.mrf.mxu0
      %7176 = vmatprep.mubr.f32.mxu0 0.0
      %7177 = vmatmul.mubr.f32.gmra.mxu0 %v6981
      %v7178 = vpop.f32.mrf.mxu0
      %v7179 = vadd.f32 0.0, %v7178
      %v7180 = vpop.f32.mrf.mxu0
      %7181 = vmatprep.mubr.f32.mxu0 0.0
      %7182 = vmatmul.mubr.f32.gmra.mxu0 %v6984
      %v7183 = vpop.f32.mrf.mxu0
      %v7184 = vadd.f32 0.0, %v7183
      %v7185 = vpop.f32.mrf.mxu0
      %7186 = vmatprep.mubr.f32.mxu0 0.0
      %7187 = vmatmul.mubr.f32.gmra.mxu0 %v6987
      %v7188 = vpop.f32.mrf.mxu0
      %v7189 = vadd.f32 0.0, %v7188
      %v7190 = vpop.f32.mrf.mxu0
      %7191 = vmatprep.mubr.f32.mxu0 0.0
      %7192 = vmatmul.mubr.f32.gmra.mxu0 %v6990
      %v7193 = vpop.f32.mrf.mxu0
      %v7194 = vadd.f32 0.0, %v7193
      %v7195 = vpop.f32.mrf.mxu0
      %7196 = vmatprep.mubr.f32.mxu0 0.0
      %7197 = vmatmul.mubr.f32.gmra.mxu0 %v6993
      %v7198 = vpop.f32.mrf.mxu0
      %v7199 = vadd.f32 0.0, %v7198
      %v7200 = vpop.f32.mrf.mxu0
      %7201 = vmatprep.mubr.f32.mxu0 0.0
      %7202 = vmatmul.mubr.f32.gmra.mxu0 %v6996
      %v7203 = vpop.f32.mrf.mxu0
      %v7204 = vadd.f32 0.0, %v7203
      %v7205 = vpop.f32.mrf.mxu0
      %7206 = vmatprep.mubr.f32.mxu0 0.0
      %7207 = vmatmul.mubr.f32.gmra.mxu0 %v6999
      %v7208 = vpop.f32.mrf.mxu0
      %v7209 = vadd.f32 0.0, %v7208
      %v7210 = vpop.f32.mrf.mxu0
      %7211 = vmatprep.mubr.f32.mxu0 0.0
      %7212 = vmatmul.mubr.f32.gmra.mxu0 %v7002
      %v7213 = vpop.f32.mrf.mxu0
      %v7214 = vadd.f32 0.0, %v7213
      %v7215 = vpop.f32.mrf.mxu0
      %7216 = vmatprep.mubr.f32.mxu0 0.0
      %7217 = vmatmul.mubr.f32.gmra.mxu0 %v7005
      %v7218 = vpop.f32.mrf.mxu0
      %v7219 = vadd.f32 0.0, %v7218
      %v7220 = vpop.f32.mrf.mxu0
      %7221 = vmatprep.mubr.f32.mxu0 0.0
      %7222 = vmatmul.mubr.f32.gmra.mxu0 %v7008
      %v7223 = vpop.f32.mrf.mxu0
      %v7224 = vadd.f32 0.0, %v7223
      %v7225 = vpop.f32.mrf.mxu0
      %7226 = vmatprep.mubr.f32.mxu0 0.0
      %7227 = vmatmul.mubr.f32.gmra.mxu0 %v7011
      %v7228 = vpop.f32.mrf.mxu0
      %v7229 = vadd.f32 0.0, %v7228
      %v7230 = vpop.f32.mrf.mxu0
      %7231 = vmatprep.mubr.f32.mxu0 0.0
      %7232 = vmatmul.mubr.f32.gmra.mxu0 %v7014
      %v7233 = vpop.f32.mrf.mxu0
      %v7234 = vadd.f32 0.0, %v7233
      %v7235 = vpop.f32.mrf.mxu0
      %7236 = vmatprep.mubr.f32.mxu0 0.0
      %7237 = vmatmul.mubr.f32.gmra.mxu0 %v7017
      %v7238 = vpop.f32.mrf.mxu0
      %v7239 = vadd.f32 0.0, %v7238
      %v7240 = vpop.f32.mrf.mxu0
      %7241 = vmatprep.mubr.f32.mxu0 0.0
      %7242 = vmatmul.mubr.f32.gmra.mxu0 %v7020
      %v7243 = vpop.f32.mrf.mxu0
      %v7244 = vadd.f32 0.0, %v7243
      %v7245 = vpop.f32.mrf.mxu0
      %7246 = vdwg.mxu0
      %v7247 = vadd.f32 %v6473, %v7089
      %v7248 = vadd.f32 %v6474, %v7094
      %v7249 = vadd.f32 %v6475, %v7099
      %v7250 = vadd.f32 %v6476, %v7104
      %v7251 = vadd.f32 %v6477, %v7109
      %v7252 = vadd.f32 %v6478, %v7114
      %v7253 = vadd.f32 %v6479, %v7119
      %v7254 = vadd.f32 %v6480, %v7124
      %v7255 = vadd.f32 %v6481, %v7129
      %v7256 = vadd.f32 %v6482, %v7134
      %v7257 = vadd.f32 %v6483, %v7139
      %v7258 = vadd.f32 %v6484, %v7144
      %v7259 = vadd.f32 %v6485, %v7149
      %v7260 = vadd.f32 %v6486, %v7154
      %v7261 = vadd.f32 %v6487, %v7159
      %v7262 = vadd.f32 %v6488, %v7164
      %v7263 = vadd.f32 %v6489, %v7169
      %v7264 = vadd.f32 %v6490, %v7174
      %v7265 = vadd.f32 %v6491, %v7179
      %v7266 = vadd.f32 %v6492, %v7184
      %v7267 = vadd.f32 %v6493, %v7189
      %v7268 = vadd.f32 %v6494, %v7194
      %v7269 = vadd.f32 %v6495, %v7199
      %v7270 = vadd.f32 %v6496, %v7204
      %v7271 = vadd.f32 %v6497, %v7209
      %v7272 = vadd.f32 %v6498, %v7214
      %v7273 = vadd.f32 %v6499, %v7219
      %v7274 = vadd.f32 %v6500, %v7224
      %v7275 = vadd.f32 %v6501, %v7229
      %v7276 = vadd.f32 %v6502, %v7234
      %v7277 = vadd.f32 %v6503, %v7239
      %v7278 = vadd.f32 %v6504, %v7244
      %v7279 = vld [vmem:[%s4] sm:$0x1]
      %v7281 = vlaneseq
      %v7282 = vshrl.u32 %v7281, 7
      %v7283 = vsub.s32 0, %v7282
      %v7284 = vrot.slane %v7279, %v7283
      %v7286 = vadd.f32 %v6860, %v7284
      %v7287 = vadd.f32 %v6861, %v7284
      %v7288 = vadd.f32 %v6862, %v7284
      %v7289 = vadd.f32 %v6863, %v7284
      %v7290 = vadd.f32 %v6864, %v7284
      %v7291 = vadd.f32 %v6865, %v7284
      %v7292 = vadd.f32 %v6866, %v7284
      %v7293 = vadd.f32 %v6867, %v7284
      %v7294 = vadd.f32 %v6868, %v7284
      %v7295 = vadd.f32 %v6869, %v7284
      %v7296 = vadd.f32 %v6870, %v7284
      %v7297 = vadd.f32 %v6871, %v7284
      %v7298 = vadd.f32 %v6872, %v7284
      %v7299 = vadd.f32 %v6873, %v7284
      %v7300 = vadd.f32 %v6874, %v7284
      %v7301 = vadd.f32 %v6875, %v7284
      %v7302 = vadd.f32 %v6876, %v7284
      %v7303 = vadd.f32 %v6877, %v7284
      %v7304 = vadd.f32 %v6878, %v7284
      %v7305 = vadd.f32 %v6879, %v7284
      %v7306 = vadd.f32 %v6880, %v7284
      %v7307 = vadd.f32 %v6881, %v7284
      %v7308 = vadd.f32 %v6882, %v7284
      %v7309 = vadd.f32 %v6883, %v7284
      %v7310 = vadd.f32 %v6884, %v7284
      %v7311 = vadd.f32 %v6885, %v7284
      %v7312 = vadd.f32 %v6886, %v7284
      %v7313 = vadd.f32 %v6887, %v7284
      %v7314 = vadd.f32 %v6888, %v7284
      %v7315 = vadd.f32 %v6889, %v7284
      %v7316 = vadd.f32 %v6890, %v7284
      %v7317 = vadd.f32 %v6891, %v7284
      %v7318 = vld [vmem:[%s6] sm:$0x1]
      %v7320 = vlaneseq
      %v7321 = vshrl.u32 %v7320, 7
      %v7322 = vsub.s32 0, %v7321
      %v7323 = vrot.slane %v7318, %v7322
      %v7325 = vadd.f32 %v7247, %v7323
      %v7326 = vadd.f32 %v7248, %v7323
      %v7327 = vadd.f32 %v7249, %v7323
      %v7328 = vadd.f32 %v7250, %v7323
      %v7329 = vadd.f32 %v7251, %v7323
      %v7330 = vadd.f32 %v7252, %v7323
      %v7331 = vadd.f32 %v7253, %v7323
      %v7332 = vadd.f32 %v7254, %v7323
      %v7333 = vadd.f32 %v7255, %v7323
      %v7334 = vadd.f32 %v7256, %v7323
      %v7335 = vadd.f32 %v7257, %v7323
      %v7336 = vadd.f32 %v7258, %v7323
      %v7337 = vadd.f32 %v7259, %v7323
      %v7338 = vadd.f32 %v7260, %v7323
      %v7339 = vadd.f32 %v7261, %v7323
      %v7340 = vadd.f32 %v7262, %v7323
      %v7341 = vadd.f32 %v7263, %v7323
      %v7342 = vadd.f32 %v7264, %v7323
      %v7343 = vadd.f32 %v7265, %v7323
      %v7344 = vadd.f32 %v7266, %v7323
      %v7345 = vadd.f32 %v7267, %v7323
      %v7346 = vadd.f32 %v7268, %v7323
      %v7347 = vadd.f32 %v7269, %v7323
      %v7348 = vadd.f32 %v7270, %v7323
      %v7349 = vadd.f32 %v7271, %v7323
      %v7350 = vadd.f32 %v7272, %v7323
      %v7351 = vadd.f32 %v7273, %v7323
      %v7352 = vadd.f32 %v7274, %v7323
      %v7353 = vadd.f32 %v7275, %v7323
      %v7354 = vadd.f32 %v7276, %v7323
      %v7355 = vadd.f32 %v7277, %v7323
      %v7356 = vadd.f32 %v7278, %v7323
      %v7357 = vmax.f32 %v538, 0.0
      %v7358 = vmax.f32 %v543, 0.0
      %v7359 = vmax.f32 %v548, 0.0
      %v7360 = vmax.f32 %v553, 0.0
      %v7361 = vmax.f32 %v558, 0.0
      %v7362 = vmax.f32 %v563, 0.0
      %v7363 = vmax.f32 %v568, 0.0
      %v7364 = vmax.f32 %v573, 0.0
      %v7365 = vmax.f32 %v578, 0.0
      %v7366 = vmax.f32 %v583, 0.0
      %v7367 = vmax.f32 %v588, 0.0
      %v7368 = vmax.f32 %v593, 0.0
      %v7369 = vmax.f32 %v598, 0.0
      %v7370 = vmax.f32 %v603, 0.0
      %v7371 = vmax.f32 %v608, 0.0
      %v7372 = vmax.f32 %v613, 0.0
      %v7373 = vmax.f32 %v618, 0.0
      %v7374 = vmax.f32 %v623, 0.0
      %v7375 = vmax.f32 %v628, 0.0
      %v7376 = vmax.f32 %v633, 0.0
      %v7377 = vmax.f32 %v638, 0.0
      %v7378 = vmax.f32 %v643, 0.0
      %v7379 = vmax.f32 %v648, 0.0
      %v7380 = vmax.f32 %v653, 0.0
      %v7381 = vmax.f32 %v658, 0.0
      %v7382 = vmax.f32 %v663, 0.0
      %v7383 = vmax.f32 %v668, 0.0
      %v7384 = vmax.f32 %v673, 0.0
      %v7385 = vmax.f32 %v678, 0.0
      %v7386 = vmax.f32 %v683, 0.0
      %v7387 = vmax.f32 %v688, 0.0
      %v7388 = vmax.f32 %v693, 0.0
      %v7389 = vmax.f32 %v7286, 0.0
      %v7390 = vmax.f32 %v7287, 0.0
      %v7391 = vmax.f32 %v7288, 0.0
      %v7392 = vmax.f32 %v7289, 0.0
      %v7393 = vmax.f32 %v7290, 0.0
      %v7394 = vmax.f32 %v7291, 0.0
      %v7395 = vmax.f32 %v7292, 0.0
      %v7396 = vmax.f32 %v7293, 0.0
      %v7397 = vmax.f32 %v7294, 0.0
      %v7398 = vmax.f32 %v7295, 0.0
      %v7399 = vmax.f32 %v7296, 0.0
      %v7400 = vmax.f32 %v7297, 0.0
      %v7401 = vmax.f32 %v7298, 0.0
      %v7402 = vmax.f32 %v7299, 0.0
      %v7403 = vmax.f32 %v7300, 0.0
      %v7404 = vmax.f32 %v7301, 0.0
      %v7405 = vmax.f32 %v7302, 0.0
      %v7406 = vmax.f32 %v7303, 0.0
      %v7407 = vmax.f32 %v7304, 0.0
      %v7408 = vmax.f32 %v7305, 0.0
      %v7409 = vmax.f32 %v7306, 0.0
      %v7410 = vmax.f32 %v7307, 0.0
      %v7411 = vmax.f32 %v7308, 0.0
      %v7412 = vmax.f32 %v7309, 0.0
      %v7413 = vmax.f32 %v7310, 0.0
      %v7414 = vmax.f32 %v7311, 0.0
      %v7415 = vmax.f32 %v7312, 0.0
      %v7416 = vmax.f32 %v7313, 0.0
      %v7417 = vmax.f32 %v7314, 0.0
      %v7418 = vmax.f32 %v7315, 0.0
      %v7419 = vmax.f32 %v7316, 0.0
      %v7420 = vmax.f32 %v7317, 0.0
      %v7421 = vmax.f32 %v7325, 0.0
      %v7422 = vmax.f32 %v7326, 0.0
      %v7423 = vmax.f32 %v7327, 0.0
      %v7424 = vmax.f32 %v7328, 0.0
      %v7425 = vmax.f32 %v7329, 0.0
      %v7426 = vmax.f32 %v7330, 0.0
      %v7427 = vmax.f32 %v7331, 0.0
      %v7428 = vmax.f32 %v7332, 0.0
      %v7429 = vmax.f32 %v7333, 0.0
      %v7430 = vmax.f32 %v7334, 0.0
      %v7431 = vmax.f32 %v7335, 0.0
      %v7432 = vmax.f32 %v7336, 0.0
      %v7433 = vmax.f32 %v7337, 0.0
      %v7434 = vmax.f32 %v7338, 0.0
      %v7435 = vmax.f32 %v7339, 0.0
      %v7436 = vmax.f32 %v7340, 0.0
      %v7437 = vmax.f32 %v7341, 0.0
      %v7438 = vmax.f32 %v7342, 0.0
      %v7439 = vmax.f32 %v7343, 0.0
      %v7440 = vmax.f32 %v7344, 0.0
      %v7441 = vmax.f32 %v7345, 0.0
      %v7442 = vmax.f32 %v7346, 0.0
      %v7443 = vmax.f32 %v7347, 0.0
      %v7444 = vmax.f32 %v7348, 0.0
      %v7445 = vmax.f32 %v7349, 0.0
      %v7446 = vmax.f32 %v7350, 0.0
      %v7447 = vmax.f32 %v7351, 0.0
      %v7448 = vmax.f32 %v7352, 0.0
      %v7449 = vmax.f32 %v7353, 0.0
      %v7450 = vmax.f32 %v7354, 0.0
      %v7451 = vmax.f32 %v7355, 0.0
      %v7452 = vmax.f32 %v7356, 0.0
      %v7453 = vld [vmem:[%s7] sm:$0xff]
      %s7454 = scalar_lea.vmem %s7, 8
      %v7455 = vld [vmem:[%s7454] sm:$0xff]
      %v7457 = vsel %vm374, %v7389, 0
      %v7460 = vsel %vm374, %v7390, 0
      %v7463 = vsel %vm374, %v7391, 0
      %v7466 = vsel %vm374, %v7392, 0
      %v7469 = vsel %vm374, %v7393, 0
      %v7472 = vsel %vm374, %v7394, 0
      %v7475 = vsel %vm374, %v7395, 0
      %v7478 = vsel %vm374, %v7396, 0
      %v7481 = vsel %vm374, %v7397, 0
      %v7484 = vsel %vm374, %v7398, 0
      %v7487 = vsel %vm374, %v7399, 0
      %v7490 = vsel %vm374, %v7400, 0
      %v7493 = vsel %vm374, %v7401, 0
      %v7496 = vsel %vm374, %v7402, 0
      %v7499 = vsel %vm374, %v7403, 0
      %v7502 = vsel %vm374, %v7404, 0
      %v7505 = vsel %vm374, %v7405, 0
      %v7508 = vsel %vm374, %v7406, 0
      %v7511 = vsel %vm374, %v7407, 0
      %v7514 = vsel %vm374, %v7408, 0
      %v7517 = vsel %vm374, %v7409, 0
      %v7520 = vsel %vm374, %v7410, 0
      %v7523 = vsel %vm374, %v7411, 0
      %v7526 = vsel %vm374, %v7412, 0
      %v7529 = vsel %vm374, %v7413, 0
      %v7532 = vsel %vm374, %v7414, 0
      %v7535 = vsel %vm374, %v7415, 0
      %v7538 = vsel %vm374, %v7416, 0
      %v7541 = vsel %vm374, %v7417, 0
      %v7544 = vsel %vm374, %v7418, 0
      %v7547 = vsel %vm374, %v7419, 0
      %v7550 = vsel %vm374, %v7420, 0
      %7552 = vmatprep.subr.mxu0 0.0
      %7553 = vmatpush1.msra.mxu0 0.0
      %7554 = vmatprep.subr.mxu0 0.0
      %7555 = vmatpush1.msra.mxu0 0.0
      %7556 = vmatprep.subr.mxu0 0.0
      %7557 = vmatpush1.msra.mxu0 0.0
      %7558 = vmatprep.subr.mxu0 0.0
      %7559 = vmatpush1.msra.mxu0 0.0
      %7560 = vmatprep.subr.mxu0 0.0
      %7561 = vmatpush1.msra.mxu0 0.0
      %7562 = vmatprep.subr.mxu0 0.0
      %7563 = vmatpush1.msra.mxu0 0.0
      %7564 = vmatprep.subr.mxu0 0.0
      %7565 = vmatpush1.msra.mxu0 0.0
      %7566 = vmatprep.subr.mxu0 0.0
      %7567 = vmatpush1.msra.mxu0 0.0
      %7568 = vmatprep.subr.mxu0 0.0
      %7569 = vmatpush1.msra.mxu0 0.0
      %7570 = vmatprep.subr.mxu0 0.0
      %7571 = vmatpush1.msra.mxu0 0.0
      %7572 = vmatprep.subr.mxu0 0.0
      %7573 = vmatpush1.msra.mxu0 0.0
      %7574 = vmatprep.subr.mxu0 0.0
      %7575 = vmatpush1.msra.mxu0 0.0
      %7576 = vmatprep.subr.mxu0 0.0
      %7577 = vmatpush1.msra.mxu0 0.0
      %7578 = vmatprep.subr.mxu0 0.0
      %7579 = vmatpush1.msra.mxu0 0.0
      %7580 = vmatprep.subr.mxu0 0.0
      %7581 = vmatpush1.msra.mxu0 0.0
      %7582 = vmatprep.subr.mxu0 0.0
      %7583 = vmatpush1.msra.mxu0 %v7455
      %7584 = vmatprep.subr.mxu0 0.0
      %7585 = vmatpush2.msra.mxu0 0.0
      %7586 = vmatprep.subr.mxu0 0.0
      %7587 = vmatpush2.msra.mxu0 0.0
      %7588 = vmatprep.subr.mxu0 0.0
      %7589 = vmatpush2.msra.mxu0 0.0
      %7590 = vmatprep.subr.mxu0 0.0
      %7591 = vmatpush2.msra.mxu0 0.0
      %7592 = vmatprep.subr.mxu0 0.0
      %7593 = vmatpush2.msra.mxu0 0.0
      %7594 = vmatprep.subr.mxu0 0.0
      %7595 = vmatpush2.msra.mxu0 0.0
      %7596 = vmatprep.subr.mxu0 0.0
      %7597 = vmatpush2.msra.mxu0 0.0
      %7598 = vmatprep.subr.mxu0 0.0
      %7599 = vmatpush2.msra.mxu0 0.0
      %7600 = vmatprep.subr.mxu0 0.0
      %7601 = vmatpush2.msra.mxu0 0.0
      %7602 = vmatprep.subr.mxu0 0.0
      %7603 = vmatpush2.msra.mxu0 0.0
      %7604 = vmatprep.subr.mxu0 0.0
      %7605 = vmatpush2.msra.mxu0 0.0
      %7606 = vmatprep.subr.mxu0 0.0
      %7607 = vmatpush2.msra.mxu0 0.0
      %7608 = vmatprep.subr.mxu0 0.0
      %7609 = vmatpush2.msra.mxu0 0.0
      %7610 = vmatprep.subr.mxu0 0.0
      %7611 = vmatpush2.msra.mxu0 0.0
      %7612 = vmatprep.subr.mxu0 0.0
      %7613 = vmatpush2.msra.mxu0 0.0
      %7614 = vmatprep.subr.mxu0 0.0
      %7615 = vmatpush2.msra.mxu0 0.0
      %7616 = vmatprep.mubr.f32.mxu0 0.0
      %7617 = vmatmul.mubr.f32.gmra.mxu0 %v7457
      %v7618 = vpop.f32.mrf.mxu0
      %v7619 = vadd.f32 0.0, %v7618
      %v7620 = vpop.f32.mrf.mxu0
      %7621 = vmatprep.mubr.f32.mxu0 0.0
      %7622 = vmatmul.mubr.f32.gmra.mxu0 %v7460
      %v7623 = vpop.f32.mrf.mxu0
      %v7624 = vadd.f32 0.0, %v7623
      %v7625 = vpop.f32.mrf.mxu0
      %7626 = vmatprep.mubr.f32.mxu0 0.0
      %7627 = vmatmul.mubr.f32.gmra.mxu0 %v7463
      %v7628 = vpop.f32.mrf.mxu0
      %v7629 = vadd.f32 0.0, %v7628
      %v7630 = vpop.f32.mrf.mxu0
      %7631 = vmatprep.mubr.f32.mxu0 0.0
      %7632 = vmatmul.mubr.f32.gmra.mxu0 %v7466
      %v7633 = vpop.f32.mrf.mxu0
      %v7634 = vadd.f32 0.0, %v7633
      %v7635 = vpop.f32.mrf.mxu0
      %7636 = vmatprep.mubr.f32.mxu0 0.0
      %7637 = vmatmul.mubr.f32.gmra.mxu0 %v7469
      %v7638 = vpop.f32.mrf.mxu0
      %v7639 = vadd.f32 0.0, %v7638
      %v7640 = vpop.f32.mrf.mxu0
      %7641 = vmatprep.mubr.f32.mxu0 0.0
      %7642 = vmatmul.mubr.f32.gmra.mxu0 %v7472
      %v7643 = vpop.f32.mrf.mxu0
      %v7644 = vadd.f32 0.0, %v7643
      %v7645 = vpop.f32.mrf.mxu0
      %7646 = vmatprep.mubr.f32.mxu0 0.0
      %7647 = vmatmul.mubr.f32.gmra.mxu0 %v7475
      %v7648 = vpop.f32.mrf.mxu0
      %v7649 = vadd.f32 0.0, %v7648
      %v7650 = vpop.f32.mrf.mxu0
      %7651 = vmatprep.mubr.f32.mxu0 0.0
      %7652 = vmatmul.mubr.f32.gmra.mxu0 %v7478
      %v7653 = vpop.f32.mrf.mxu0
      %v7654 = vadd.f32 0.0, %v7653
      %v7655 = vpop.f32.mrf.mxu0
      %7656 = vmatprep.mubr.f32.mxu0 0.0
      %7657 = vmatmul.mubr.f32.gmra.mxu0 %v7481
      %v7658 = vpop.f32.mrf.mxu0
      %v7659 = vadd.f32 0.0, %v7658
      %v7660 = vpop.f32.mrf.mxu0
      %7661 = vmatprep.mubr.f32.mxu0 0.0
      %7662 = vmatmul.mubr.f32.gmra.mxu0 %v7484
      %v7663 = vpop.f32.mrf.mxu0
      %v7664 = vadd.f32 0.0, %v7663
      %v7665 = vpop.f32.mrf.mxu0
      %7666 = vmatprep.mubr.f32.mxu0 0.0
      %7667 = vmatmul.mubr.f32.gmra.mxu0 %v7487
      %v7668 = vpop.f32.mrf.mxu0
      %v7669 = vadd.f32 0.0, %v7668
      %v7670 = vpop.f32.mrf.mxu0
      %7671 = vmatprep.mubr.f32.mxu0 0.0
      %7672 = vmatmul.mubr.f32.gmra.mxu0 %v7490
      %v7673 = vpop.f32.mrf.mxu0
      %v7674 = vadd.f32 0.0, %v7673
      %v7675 = vpop.f32.mrf.mxu0
      %7676 = vmatprep.mubr.f32.mxu0 0.0
      %7677 = vmatmul.mubr.f32.gmra.mxu0 %v7493
      %v7678 = vpop.f32.mrf.mxu0
      %v7679 = vadd.f32 0.0, %v7678
      %v7680 = vpop.f32.mrf.mxu0
      %7681 = vmatprep.mubr.f32.mxu0 0.0
      %7682 = vmatmul.mubr.f32.gmra.mxu0 %v7496
      %v7683 = vpop.f32.mrf.mxu0
      %v7684 = vadd.f32 0.0, %v7683
      %v7685 = vpop.f32.mrf.mxu0
      %7686 = vmatprep.mubr.f32.mxu0 0.0
      %7687 = vmatmul.mubr.f32.gmra.mxu0 %v7499
      %v7688 = vpop.f32.mrf.mxu0
      %v7689 = vadd.f32 0.0, %v7688
      %v7690 = vpop.f32.mrf.mxu0
      %7691 = vmatprep.mubr.f32.mxu0 0.0
      %7692 = vmatmul.mubr.f32.gmra.mxu0 %v7502
      %v7693 = vpop.f32.mrf.mxu0
      %v7694 = vadd.f32 0.0, %v7693
      %v7695 = vpop.f32.mrf.mxu0
      %7696 = vmatprep.mubr.f32.mxu0 0.0
      %7697 = vmatmul.mubr.f32.gmra.mxu0 %v7505
      %v7698 = vpop.f32.mrf.mxu0
      %v7699 = vadd.f32 0.0, %v7698
      %v7700 = vpop.f32.mrf.mxu0
      %7701 = vmatprep.mubr.f32.mxu0 0.0
      %7702 = vmatmul.mubr.f32.gmra.mxu0 %v7508
      %v7703 = vpop.f32.mrf.mxu0
      %v7704 = vadd.f32 0.0, %v7703
      %v7705 = vpop.f32.mrf.mxu0
      %7706 = vmatprep.mubr.f32.mxu0 0.0
      %7707 = vmatmul.mubr.f32.gmra.mxu0 %v7511
      %v7708 = vpop.f32.mrf.mxu0
      %v7709 = vadd.f32 0.0, %v7708
      %v7710 = vpop.f32.mrf.mxu0
      %7711 = vmatprep.mubr.f32.mxu0 0.0
      %7712 = vmatmul.mubr.f32.gmra.mxu0 %v7514
      %v7713 = vpop.f32.mrf.mxu0
      %v7714 = vadd.f32 0.0, %v7713
      %v7715 = vpop.f32.mrf.mxu0
      %7716 = vmatprep.mubr.f32.mxu0 0.0
      %7717 = vmatmul.mubr.f32.gmra.mxu0 %v7517
      %v7718 = vpop.f32.mrf.mxu0
      %v7719 = vadd.f32 0.0, %v7718
      %v7720 = vpop.f32.mrf.mxu0
      %7721 = vmatprep.mubr.f32.mxu0 0.0
      %7722 = vmatmul.mubr.f32.gmra.mxu0 %v7520
      %v7723 = vpop.f32.mrf.mxu0
      %v7724 = vadd.f32 0.0, %v7723
      %v7725 = vpop.f32.mrf.mxu0
      %7726 = vmatprep.mubr.f32.mxu0 0.0
      %7727 = vmatmul.mubr.f32.gmra.mxu0 %v7523
      %v7728 = vpop.f32.mrf.mxu0
      %v7729 = vadd.f32 0.0, %v7728
      %v7730 = vpop.f32.mrf.mxu0
      %7731 = vmatprep.mubr.f32.mxu0 0.0
      %7732 = vmatmul.mubr.f32.gmra.mxu0 %v7526
      %v7733 = vpop.f32.mrf.mxu0
      %v7734 = vadd.f32 0.0, %v7733
      %v7735 = vpop.f32.mrf.mxu0
      %7736 = vmatprep.mubr.f32.mxu0 0.0
      %7737 = vmatmul.mubr.f32.gmra.mxu0 %v7529
      %v7738 = vpop.f32.mrf.mxu0
      %v7739 = vadd.f32 0.0, %v7738
      %v7740 = vpop.f32.mrf.mxu0
      %7741 = vmatprep.mubr.f32.mxu0 0.0
      %7742 = vmatmul.mubr.f32.gmra.mxu0 %v7532
      %v7743 = vpop.f32.mrf.mxu0
      %v7744 = vadd.f32 0.0, %v7743
      %v7745 = vpop.f32.mrf.mxu0
      %7746 = vmatprep.mubr.f32.mxu0 0.0
      %7747 = vmatmul.mubr.f32.gmra.mxu0 %v7535
      %v7748 = vpop.f32.mrf.mxu0
      %v7749 = vadd.f32 0.0, %v7748
      %v7750 = vpop.f32.mrf.mxu0
      %7751 = vmatprep.mubr.f32.mxu0 0.0
      %7752 = vmatmul.mubr.f32.gmra.mxu0 %v7538
      %v7753 = vpop.f32.mrf.mxu0
      %v7754 = vadd.f32 0.0, %v7753
      %v7755 = vpop.f32.mrf.mxu0
      %7756 = vmatprep.mubr.f32.mxu0 0.0
      %7757 = vmatmul.mubr.f32.gmra.mxu0 %v7541
      %v7758 = vpop.f32.mrf.mxu0
      %v7759 = vadd.f32 0.0, %v7758
      %v7760 = vpop.f32.mrf.mxu0
      %7761 = vmatprep.mubr.f32.mxu0 0.0
      %7762 = vmatmul.mubr.f32.gmra.mxu0 %v7544
      %v7763 = vpop.f32.mrf.mxu0
      %v7764 = vadd.f32 0.0, %v7763
      %v7765 = vpop.f32.mrf.mxu0
      %7766 = vmatprep.mubr.f32.mxu0 0.0
      %7767 = vmatmul.mubr.f32.gmra.mxu0 %v7547
      %v7768 = vpop.f32.mrf.mxu0
      %v7769 = vadd.f32 0.0, %v7768
      %v7770 = vpop.f32.mrf.mxu0
      %7771 = vmatprep.mubr.f32.mxu0 0.0
      %7772 = vmatmul.mubr.f32.gmra.mxu0 %v7550
      %v7773 = vpop.f32.mrf.mxu0
      %v7774 = vadd.f32 0.0, %v7773
      %v7775 = vpop.f32.mrf.mxu0
      %7776 = vdwg.mxu0
      %v7778 = vsel %vm374, %v7357, 0
      %v7781 = vsel %vm374, %v7358, 0
      %v7784 = vsel %vm374, %v7359, 0
      %v7787 = vsel %vm374, %v7360, 0
      %v7790 = vsel %vm374, %v7361, 0
      %v7793 = vsel %vm374, %v7362, 0
      %v7796 = vsel %vm374, %v7363, 0
      %v7799 = vsel %vm374, %v7364, 0
      %v7802 = vsel %vm374, %v7365, 0
      %v7805 = vsel %vm374, %v7366, 0
      %v7808 = vsel %vm374, %v7367, 0
      %v7811 = vsel %vm374, %v7368, 0
      %v7814 = vsel %vm374, %v7369, 0
      %v7817 = vsel %vm374, %v7370, 0
      %v7820 = vsel %vm374, %v7371, 0
      %v7823 = vsel %vm374, %v7372, 0
      %v7826 = vsel %vm374, %v7373, 0
      %v7829 = vsel %vm374, %v7374, 0
      %v7832 = vsel %vm374, %v7375, 0
      %v7835 = vsel %vm374, %v7376, 0
      %v7838 = vsel %vm374, %v7377, 0
      %v7841 = vsel %vm374, %v7378, 0
      %v7844 = vsel %vm374, %v7379, 0
      %v7847 = vsel %vm374, %v7380, 0
      %v7850 = vsel %vm374, %v7381, 0
      %v7853 = vsel %vm374, %v7382, 0
      %v7856 = vsel %vm374, %v7383, 0
      %v7859 = vsel %vm374, %v7384, 0
      %v7862 = vsel %vm374, %v7385, 0
      %v7865 = vsel %vm374, %v7386, 0
      %v7868 = vsel %vm374, %v7387, 0
      %v7871 = vsel %vm374, %v7388, 0
      %7873 = vmatprep.subr.mxu0 0.0
      %7874 = vmatpush1.msra.mxu0 0.0
      %7875 = vmatprep.subr.mxu0 0.0
      %7876 = vmatpush1.msra.mxu0 0.0
      %7877 = vmatprep.subr.mxu0 0.0
      %7878 = vmatpush1.msra.mxu0 0.0
      %7879 = vmatprep.subr.mxu0 0.0
      %7880 = vmatpush1.msra.mxu0 0.0
      %7881 = vmatprep.subr.mxu0 0.0
      %7882 = vmatpush1.msra.mxu0 0.0
      %7883 = vmatprep.subr.mxu0 0.0
      %7884 = vmatpush1.msra.mxu0 0.0
      %7885 = vmatprep.subr.mxu0 0.0
      %7886 = vmatpush1.msra.mxu0 0.0
      %7887 = vmatprep.subr.mxu0 0.0
      %7888 = vmatpush1.msra.mxu0 0.0
      %7889 = vmatprep.subr.mxu0 0.0
      %7890 = vmatpush1.msra.mxu0 0.0
      %7891 = vmatprep.subr.mxu0 0.0
      %7892 = vmatpush1.msra.mxu0 0.0
      %7893 = vmatprep.subr.mxu0 0.0
      %7894 = vmatpush1.msra.mxu0 0.0
      %7895 = vmatprep.subr.mxu0 0.0
      %7896 = vmatpush1.msra.mxu0 0.0
      %7897 = vmatprep.subr.mxu0 0.0
      %7898 = vmatpush1.msra.mxu0 0.0
      %7899 = vmatprep.subr.mxu0 0.0
      %7900 = vmatpush1.msra.mxu0 0.0
      %7901 = vmatprep.subr.mxu0 0.0
      %7902 = vmatpush1.msra.mxu0 0.0
      %7903 = vmatprep.subr.mxu0 0.0
      %7904 = vmatpush1.msra.mxu0 %v7453
      %7905 = vmatprep.subr.mxu0 0.0
      %7906 = vmatpush2.msra.mxu0 0.0
      %7907 = vmatprep.subr.mxu0 0.0
      %7908 = vmatpush2.msra.mxu0 0.0
      %7909 = vmatprep.subr.mxu0 0.0
      %7910 = vmatpush2.msra.mxu0 0.0
      %7911 = vmatprep.subr.mxu0 0.0
      %7912 = vmatpush2.msra.mxu0 0.0
      %7913 = vmatprep.subr.mxu0 0.0
      %7914 = vmatpush2.msra.mxu0 0.0
      %7915 = vmatprep.subr.mxu0 0.0
      %7916 = vmatpush2.msra.mxu0 0.0
      %7917 = vmatprep.subr.mxu0 0.0
      %7918 = vmatpush2.msra.mxu0 0.0
      %7919 = vmatprep.subr.mxu0 0.0
      %7920 = vmatpush2.msra.mxu0 0.0
      %7921 = vmatprep.subr.mxu0 0.0
      %7922 = vmatpush2.msra.mxu0 0.0
      %7923 = vmatprep.subr.mxu0 0.0
      %7924 = vmatpush2.msra.mxu0 0.0
      %7925 = vmatprep.subr.mxu0 0.0
      %7926 = vmatpush2.msra.mxu0 0.0
      %7927 = vmatprep.subr.mxu0 0.0
      %7928 = vmatpush2.msra.mxu0 0.0
      %7929 = vmatprep.subr.mxu0 0.0
      %7930 = vmatpush2.msra.mxu0 0.0
      %7931 = vmatprep.subr.mxu0 0.0
      %7932 = vmatpush2.msra.mxu0 0.0
      %7933 = vmatprep.subr.mxu0 0.0
      %7934 = vmatpush2.msra.mxu0 0.0
      %7935 = vmatprep.subr.mxu0 0.0
      %7936 = vmatpush2.msra.mxu0 0.0
      %7937 = vmatprep.mubr.f32.mxu0 0.0
      %7938 = vmatmul.mubr.f32.gmra.mxu0 %v7778
      %v7939 = vpop.f32.mrf.mxu0
      %v7940 = vadd.f32 %v7619, %v7939
      %v7941 = vpop.f32.mrf.mxu0
      %7942 = vmatprep.mubr.f32.mxu0 0.0
      %7943 = vmatmul.mubr.f32.gmra.mxu0 %v7781
      %v7944 = vpop.f32.mrf.mxu0
      %v7945 = vadd.f32 %v7624, %v7944
      %v7946 = vpop.f32.mrf.mxu0
      %7947 = vmatprep.mubr.f32.mxu0 0.0
      %7948 = vmatmul.mubr.f32.gmra.mxu0 %v7784
      %v7949 = vpop.f32.mrf.mxu0
      %v7950 = vadd.f32 %v7629, %v7949
      %v7951 = vpop.f32.mrf.mxu0
      %7952 = vmatprep.mubr.f32.mxu0 0.0
      %7953 = vmatmul.mubr.f32.gmra.mxu0 %v7787
      %v7954 = vpop.f32.mrf.mxu0
      %v7955 = vadd.f32 %v7634, %v7954
      %v7956 = vpop.f32.mrf.mxu0
      %7957 = vmatprep.mubr.f32.mxu0 0.0
      %7958 = vmatmul.mubr.f32.gmra.mxu0 %v7790
      %v7959 = vpop.f32.mrf.mxu0
      %v7960 = vadd.f32 %v7639, %v7959
      %v7961 = vpop.f32.mrf.mxu0
      %7962 = vmatprep.mubr.f32.mxu0 0.0
      %7963 = vmatmul.mubr.f32.gmra.mxu0 %v7793
      %v7964 = vpop.f32.mrf.mxu0
      %v7965 = vadd.f32 %v7644, %v7964
      %v7966 = vpop.f32.mrf.mxu0
      %7967 = vmatprep.mubr.f32.mxu0 0.0
      %7968 = vmatmul.mubr.f32.gmra.mxu0 %v7796
      %v7969 = vpop.f32.mrf.mxu0
      %v7970 = vadd.f32 %v7649, %v7969
      %v7971 = vpop.f32.mrf.mxu0
      %7972 = vmatprep.mubr.f32.mxu0 0.0
      %7973 = vmatmul.mubr.f32.gmra.mxu0 %v7799
      %v7974 = vpop.f32.mrf.mxu0
      %v7975 = vadd.f32 %v7654, %v7974
      %v7976 = vpop.f32.mrf.mxu0
      %7977 = vmatprep.mubr.f32.mxu0 0.0
      %7978 = vmatmul.mubr.f32.gmra.mxu0 %v7802
      %v7979 = vpop.f32.mrf.mxu0
      %v7980 = vadd.f32 %v7659, %v7979
      %v7981 = vpop.f32.mrf.mxu0
      %7982 = vmatprep.mubr.f32.mxu0 0.0
      %7983 = vmatmul.mubr.f32.gmra.mxu0 %v7805
      %v7984 = vpop.f32.mrf.mxu0
      %v7985 = vadd.f32 %v7664, %v7984
      %v7986 = vpop.f32.mrf.mxu0
      %7987 = vmatprep.mubr.f32.mxu0 0.0
      %7988 = vmatmul.mubr.f32.gmra.mxu0 %v7808
      %v7989 = vpop.f32.mrf.mxu0
      %v7990 = vadd.f32 %v7669, %v7989
      %v7991 = vpop.f32.mrf.mxu0
      %7992 = vmatprep.mubr.f32.mxu0 0.0
      %7993 = vmatmul.mubr.f32.gmra.mxu0 %v7811
      %v7994 = vpop.f32.mrf.mxu0
      %v7995 = vadd.f32 %v7674, %v7994
      %v7996 = vpop.f32.mrf.mxu0
      %7997 = vmatprep.mubr.f32.mxu0 0.0
      %7998 = vmatmul.mubr.f32.gmra.mxu0 %v7814
      %v7999 = vpop.f32.mrf.mxu0
      %v8000 = vadd.f32 %v7679, %v7999
      %v8001 = vpop.f32.mrf.mxu0
      %8002 = vmatprep.mubr.f32.mxu0 0.0
      %8003 = vmatmul.mubr.f32.gmra.mxu0 %v7817
      %v8004 = vpop.f32.mrf.mxu0
      %v8005 = vadd.f32 %v7684, %v8004
      %v8006 = vpop.f32.mrf.mxu0
      %8007 = vmatprep.mubr.f32.mxu0 0.0
      %8008 = vmatmul.mubr.f32.gmra.mxu0 %v7820
      %v8009 = vpop.f32.mrf.mxu0
      %v8010 = vadd.f32 %v7689, %v8009
      %v8011 = vpop.f32.mrf.mxu0
      %8012 = vmatprep.mubr.f32.mxu0 0.0
      %8013 = vmatmul.mubr.f32.gmra.mxu0 %v7823
      %v8014 = vpop.f32.mrf.mxu0
      %v8015 = vadd.f32 %v7694, %v8014
      %v8016 = vpop.f32.mrf.mxu0
      %8017 = vmatprep.mubr.f32.mxu0 0.0
      %8018 = vmatmul.mubr.f32.gmra.mxu0 %v7826
      %v8019 = vpop.f32.mrf.mxu0
      %v8020 = vadd.f32 %v7699, %v8019
      %v8021 = vpop.f32.mrf.mxu0
      %8022 = vmatprep.mubr.f32.mxu0 0.0
      %8023 = vmatmul.mubr.f32.gmra.mxu0 %v7829
      %v8024 = vpop.f32.mrf.mxu0
      %v8025 = vadd.f32 %v7704, %v8024
      %v8026 = vpop.f32.mrf.mxu0
      %8027 = vmatprep.mubr.f32.mxu0 0.0
      %8028 = vmatmul.mubr.f32.gmra.mxu0 %v7832
      %v8029 = vpop.f32.mrf.mxu0
      %v8030 = vadd.f32 %v7709, %v8029
      %v8031 = vpop.f32.mrf.mxu0
      %8032 = vmatprep.mubr.f32.mxu0 0.0
      %8033 = vmatmul.mubr.f32.gmra.mxu0 %v7835
      %v8034 = vpop.f32.mrf.mxu0
      %v8035 = vadd.f32 %v7714, %v8034
      %v8036 = vpop.f32.mrf.mxu0
      %8037 = vmatprep.mubr.f32.mxu0 0.0
      %8038 = vmatmul.mubr.f32.gmra.mxu0 %v7838
      %v8039 = vpop.f32.mrf.mxu0
      %v8040 = vadd.f32 %v7719, %v8039
      %v8041 = vpop.f32.mrf.mxu0
      %8042 = vmatprep.mubr.f32.mxu0 0.0
      %8043 = vmatmul.mubr.f32.gmra.mxu0 %v7841
      %v8044 = vpop.f32.mrf.mxu0
      %v8045 = vadd.f32 %v7724, %v8044
      %v8046 = vpop.f32.mrf.mxu0
      %8047 = vmatprep.mubr.f32.mxu0 0.0
      %8048 = vmatmul.mubr.f32.gmra.mxu0 %v7844
      %v8049 = vpop.f32.mrf.mxu0
      %v8050 = vadd.f32 %v7729, %v8049
      %v8051 = vpop.f32.mrf.mxu0
      %8052 = vmatprep.mubr.f32.mxu0 0.0
      %8053 = vmatmul.mubr.f32.gmra.mxu0 %v7847
      %v8054 = vpop.f32.mrf.mxu0
      %v8055 = vadd.f32 %v7734, %v8054
      %v8056 = vpop.f32.mrf.mxu0
      %8057 = vmatprep.mubr.f32.mxu0 0.0
      %8058 = vmatmul.mubr.f32.gmra.mxu0 %v7850
      %v8059 = vpop.f32.mrf.mxu0
      %v8060 = vadd.f32 %v7739, %v8059
      %v8061 = vpop.f32.mrf.mxu0
      %8062 = vmatprep.mubr.f32.mxu0 0.0
      %8063 = vmatmul.mubr.f32.gmra.mxu0 %v7853
      %v8064 = vpop.f32.mrf.mxu0
      %v8065 = vadd.f32 %v7744, %v8064
      %v8066 = vpop.f32.mrf.mxu0
      %8067 = vmatprep.mubr.f32.mxu0 0.0
      %8068 = vmatmul.mubr.f32.gmra.mxu0 %v7856
      %v8069 = vpop.f32.mrf.mxu0
      %v8070 = vadd.f32 %v7749, %v8069
      %v8071 = vpop.f32.mrf.mxu0
      %8072 = vmatprep.mubr.f32.mxu0 0.0
      %8073 = vmatmul.mubr.f32.gmra.mxu0 %v7859
      %v8074 = vpop.f32.mrf.mxu0
      %v8075 = vadd.f32 %v7754, %v8074
      %v8076 = vpop.f32.mrf.mxu0
      %8077 = vmatprep.mubr.f32.mxu0 0.0
      %8078 = vmatmul.mubr.f32.gmra.mxu0 %v7862
      %v8079 = vpop.f32.mrf.mxu0
      %v8080 = vadd.f32 %v7759, %v8079
      %v8081 = vpop.f32.mrf.mxu0
      %8082 = vmatprep.mubr.f32.mxu0 0.0
      %8083 = vmatmul.mubr.f32.gmra.mxu0 %v7865
      %v8084 = vpop.f32.mrf.mxu0
      %v8085 = vadd.f32 %v7764, %v8084
      %v8086 = vpop.f32.mrf.mxu0
      %8087 = vmatprep.mubr.f32.mxu0 0.0
      %8088 = vmatmul.mubr.f32.gmra.mxu0 %v7868
      %v8089 = vpop.f32.mrf.mxu0
      %v8090 = vadd.f32 %v7769, %v8089
      %v8091 = vpop.f32.mrf.mxu0
      %8092 = vmatprep.mubr.f32.mxu0 0.0
      %8093 = vmatmul.mubr.f32.gmra.mxu0 %v7871
      %v8094 = vpop.f32.mrf.mxu0
      %v8095 = vadd.f32 %v7774, %v8094
      %v8096 = vpop.f32.mrf.mxu0
      %8097 = vdwg.mxu0
      %s8098 = scalar_lea.vmem %s7, 16
      %v8099 = vld [vmem:[%s8098] sm:$0xff]
      %v8101 = vsel %vm374, %v7421, 0
      %v8104 = vsel %vm374, %v7422, 0
      %v8107 = vsel %vm374, %v7423, 0
      %v8110 = vsel %vm374, %v7424, 0
      %v8113 = vsel %vm374, %v7425, 0
      %v8116 = vsel %vm374, %v7426, 0
      %v8119 = vsel %vm374, %v7427, 0
      %v8122 = vsel %vm374, %v7428, 0
      %v8125 = vsel %vm374, %v7429, 0
      %v8128 = vsel %vm374, %v7430, 0
      %v8131 = vsel %vm374, %v7431, 0
      %v8134 = vsel %vm374, %v7432, 0
      %v8137 = vsel %vm374, %v7433, 0
      %v8140 = vsel %vm374, %v7434, 0
      %v8143 = vsel %vm374, %v7435, 0
      %v8146 = vsel %vm374, %v7436, 0
      %v8149 = vsel %vm374, %v7437, 0
      %v8152 = vsel %vm374, %v7438, 0
      %v8155 = vsel %vm374, %v7439, 0
      %v8158 = vsel %vm374, %v7440, 0
      %v8161 = vsel %vm374, %v7441, 0
      %v8164 = vsel %vm374, %v7442, 0
      %v8167 = vsel %vm374, %v7443, 0
      %v8170 = vsel %vm374, %v7444, 0
      %v8173 = vsel %vm374, %v7445, 0
      %v8176 = vsel %vm374, %v7446, 0
      %v8179 = vsel %vm374, %v7447, 0
      %v8182 = vsel %vm374, %v7448, 0
      %v8185 = vsel %vm374, %v7449, 0
      %v8188 = vsel %vm374, %v7450, 0
      %v8191 = vsel %vm374, %v7451, 0
      %v8194 = vsel %vm374, %v7452, 0
      %8196 = vmatprep.subr.mxu0 0.0
      %8197 = vmatpush1.msra.mxu0 0.0
      %8198 = vmatprep.subr.mxu0 0.0
      %8199 = vmatpush1.msra.mxu0 0.0
      %8200 = vmatprep.subr.mxu0 0.0
      %8201 = vmatpush1.msra.mxu0 0.0
      %8202 = vmatprep.subr.mxu0 0.0
      %8203 = vmatpush1.msra.mxu0 0.0
      %8204 = vmatprep.subr.mxu0 0.0
      %8205 = vmatpush1.msra.mxu0 0.0
      %8206 = vmatprep.subr.mxu0 0.0
      %8207 = vmatpush1.msra.mxu0 0.0
      %8208 = vmatprep.subr.mxu0 0.0
      %8209 = vmatpush1.msra.mxu0 0.0
      %8210 = vmatprep.subr.mxu0 0.0
      %8211 = vmatpush1.msra.mxu0 0.0
      %8212 = vmatprep.subr.mxu0 0.0
      %8213 = vmatpush1.msra.mxu0 0.0
      %8214 = vmatprep.subr.mxu0 0.0
      %8215 = vmatpush1.msra.mxu0 0.0
      %8216 = vmatprep.subr.mxu0 0.0
      %8217 = vmatpush1.msra.mxu0 0.0
      %8218 = vmatprep.subr.mxu0 0.0
      %8219 = vmatpush1.msra.mxu0 0.0
      %8220 = vmatprep.subr.mxu0 0.0
      %8221 = vmatpush1.msra.mxu0 0.0
      %8222 = vmatprep.subr.mxu0 0.0
      %8223 = vmatpush1.msra.mxu0 0.0
      %8224 = vmatprep.subr.mxu0 0.0
      %8225 = vmatpush1.msra.mxu0 0.0
      %8226 = vmatprep.subr.mxu0 0.0
      %8227 = vmatpush1.msra.mxu0 %v8099
      %8228 = vmatprep.subr.mxu0 0.0
      %8229 = vmatpush2.msra.mxu0 0.0
      %8230 = vmatprep.subr.mxu0 0.0
      %8231 = vmatpush2.msra.mxu0 0.0
      %8232 = vmatprep.subr.mxu0 0.0
      %8233 = vmatpush2.msra.mxu0 0.0
      %8234 = vmatprep.subr.mxu0 0.0
      %8235 = vmatpush2.msra.mxu0 0.0
      %8236 = vmatprep.subr.mxu0 0.0
      %8237 = vmatpush2.msra.mxu0 0.0
      %8238 = vmatprep.subr.mxu0 0.0
      %8239 = vmatpush2.msra.mxu0 0.0
      %8240 = vmatprep.subr.mxu0 0.0
      %8241 = vmatpush2.msra.mxu0 0.0
      %8242 = vmatprep.subr.mxu0 0.0
      %8243 = vmatpush2.msra.mxu0 0.0
      %8244 = vmatprep.subr.mxu0 0.0
      %8245 = vmatpush2.msra.mxu0 0.0
      %8246 = vmatprep.subr.mxu0 0.0
      %8247 = vmatpush2.msra.mxu0 0.0
      %8248 = vmatprep.subr.mxu0 0.0
      %8249 = vmatpush2.msra.mxu0 0.0
      %8250 = vmatprep.subr.mxu0 0.0
      %8251 = vmatpush2.msra.mxu0 0.0
      %8252 = vmatprep.subr.mxu0 0.0
      %8253 = vmatpush2.msra.mxu0 0.0
      %8254 = vmatprep.subr.mxu0 0.0
      %8255 = vmatpush2.msra.mxu0 0.0
      %8256 = vmatprep.subr.mxu0 0.0
      %8257 = vmatpush2.msra.mxu0 0.0
      %8258 = vmatprep.subr.mxu0 0.0
      %8259 = vmatpush2.msra.mxu0 0.0
      %8260 = vmatprep.mubr.f32.mxu0 0.0
      %8261 = vmatmul.mubr.f32.gmra.mxu0 %v8101
      %v8262 = vpop.f32.mrf.mxu0
      %v8263 = vadd.f32 0.0, %v8262
      %v8264 = vpop.f32.mrf.mxu0
      %8265 = vmatprep.mubr.f32.mxu0 0.0
      %8266 = vmatmul.mubr.f32.gmra.mxu0 %v8104
      %v8267 = vpop.f32.mrf.mxu0
      %v8268 = vadd.f32 0.0, %v8267
      %v8269 = vpop.f32.mrf.mxu0
      %8270 = vmatprep.mubr.f32.mxu0 0.0
      %8271 = vmatmul.mubr.f32.gmra.mxu0 %v8107
      %v8272 = vpop.f32.mrf.mxu0
      %v8273 = vadd.f32 0.0, %v8272
      %v8274 = vpop.f32.mrf.mxu0
      %8275 = vmatprep.mubr.f32.mxu0 0.0
      %8276 = vmatmul.mubr.f32.gmra.mxu0 %v8110
      %v8277 = vpop.f32.mrf.mxu0
      %v8278 = vadd.f32 0.0, %v8277
      %v8279 = vpop.f32.mrf.mxu0
      %8280 = vmatprep.mubr.f32.mxu0 0.0
      %8281 = vmatmul.mubr.f32.gmra.mxu0 %v8113
      %v8282 = vpop.f32.mrf.mxu0
      %v8283 = vadd.f32 0.0, %v8282
      %v8284 = vpop.f32.mrf.mxu0
      %8285 = vmatprep.mubr.f32.mxu0 0.0
      %8286 = vmatmul.mubr.f32.gmra.mxu0 %v8116
      %v8287 = vpop.f32.mrf.mxu0
      %v8288 = vadd.f32 0.0, %v8287
      %v8289 = vpop.f32.mrf.mxu0
      %8290 = vmatprep.mubr.f32.mxu0 0.0
      %8291 = vmatmul.mubr.f32.gmra.mxu0 %v8119
      %v8292 = vpop.f32.mrf.mxu0
      %v8293 = vadd.f32 0.0, %v8292
      %v8294 = vpop.f32.mrf.mxu0
      %8295 = vmatprep.mubr.f32.mxu0 0.0
      %8296 = vmatmul.mubr.f32.gmra.mxu0 %v8122
      %v8297 = vpop.f32.mrf.mxu0
      %v8298 = vadd.f32 0.0, %v8297
      %v8299 = vpop.f32.mrf.mxu0
      %8300 = vmatprep.mubr.f32.mxu0 0.0
      %8301 = vmatmul.mubr.f32.gmra.mxu0 %v8125
      %v8302 = vpop.f32.mrf.mxu0
      %v8303 = vadd.f32 0.0, %v8302
      %v8304 = vpop.f32.mrf.mxu0
      %8305 = vmatprep.mubr.f32.mxu0 0.0
      %8306 = vmatmul.mubr.f32.gmra.mxu0 %v8128
      %v8307 = vpop.f32.mrf.mxu0
      %v8308 = vadd.f32 0.0, %v8307
      %v8309 = vpop.f32.mrf.mxu0
      %8310 = vmatprep.mubr.f32.mxu0 0.0
      %8311 = vmatmul.mubr.f32.gmra.mxu0 %v8131
      %v8312 = vpop.f32.mrf.mxu0
      %v8313 = vadd.f32 0.0, %v8312
      %v8314 = vpop.f32.mrf.mxu0
      %8315 = vmatprep.mubr.f32.mxu0 0.0
      %8316 = vmatmul.mubr.f32.gmra.mxu0 %v8134
      %v8317 = vpop.f32.mrf.mxu0
      %v8318 = vadd.f32 0.0, %v8317
      %v8319 = vpop.f32.mrf.mxu0
      %8320 = vmatprep.mubr.f32.mxu0 0.0
      %8321 = vmatmul.mubr.f32.gmra.mxu0 %v8137
      %v8322 = vpop.f32.mrf.mxu0
      %v8323 = vadd.f32 0.0, %v8322
      %v8324 = vpop.f32.mrf.mxu0
      %8325 = vmatprep.mubr.f32.mxu0 0.0
      %8326 = vmatmul.mubr.f32.gmra.mxu0 %v8140
      %v8327 = vpop.f32.mrf.mxu0
      %v8328 = vadd.f32 0.0, %v8327
      %v8329 = vpop.f32.mrf.mxu0
      %8330 = vmatprep.mubr.f32.mxu0 0.0
      %8331 = vmatmul.mubr.f32.gmra.mxu0 %v8143
      %v8332 = vpop.f32.mrf.mxu0
      %v8333 = vadd.f32 0.0, %v8332
      %v8334 = vpop.f32.mrf.mxu0
      %8335 = vmatprep.mubr.f32.mxu0 0.0
      %8336 = vmatmul.mubr.f32.gmra.mxu0 %v8146
      %v8337 = vpop.f32.mrf.mxu0
      %v8338 = vadd.f32 0.0, %v8337
      %v8339 = vpop.f32.mrf.mxu0
      %8340 = vmatprep.mubr.f32.mxu0 0.0
      %8341 = vmatmul.mubr.f32.gmra.mxu0 %v8149
      %v8342 = vpop.f32.mrf.mxu0
      %v8343 = vadd.f32 0.0, %v8342
      %v8344 = vpop.f32.mrf.mxu0
      %8345 = vmatprep.mubr.f32.mxu0 0.0
      %8346 = vmatmul.mubr.f32.gmra.mxu0 %v8152
      %v8347 = vpop.f32.mrf.mxu0
      %v8348 = vadd.f32 0.0, %v8347
      %v8349 = vpop.f32.mrf.mxu0
      %8350 = vmatprep.mubr.f32.mxu0 0.0
      %8351 = vmatmul.mubr.f32.gmra.mxu0 %v8155
      %v8352 = vpop.f32.mrf.mxu0
      %v8353 = vadd.f32 0.0, %v8352
      %v8354 = vpop.f32.mrf.mxu0
      %8355 = vmatprep.mubr.f32.mxu0 0.0
      %8356 = vmatmul.mubr.f32.gmra.mxu0 %v8158
      %v8357 = vpop.f32.mrf.mxu0
      %v8358 = vadd.f32 0.0, %v8357
      %v8359 = vpop.f32.mrf.mxu0
      %8360 = vmatprep.mubr.f32.mxu0 0.0
      %8361 = vmatmul.mubr.f32.gmra.mxu0 %v8161
      %v8362 = vpop.f32.mrf.mxu0
      %v8363 = vadd.f32 0.0, %v8362
      %v8364 = vpop.f32.mrf.mxu0
      %8365 = vmatprep.mubr.f32.mxu0 0.0
      %8366 = vmatmul.mubr.f32.gmra.mxu0 %v8164
      %v8367 = vpop.f32.mrf.mxu0
      %v8368 = vadd.f32 0.0, %v8367
      %v8369 = vpop.f32.mrf.mxu0
      %8370 = vmatprep.mubr.f32.mxu0 0.0
      %8371 = vmatmul.mubr.f32.gmra.mxu0 %v8167
      %v8372 = vpop.f32.mrf.mxu0
      %v8373 = vadd.f32 0.0, %v8372
      %v8374 = vpop.f32.mrf.mxu0
      %8375 = vmatprep.mubr.f32.mxu0 0.0
      %8376 = vmatmul.mubr.f32.gmra.mxu0 %v8170
      %v8377 = vpop.f32.mrf.mxu0
      %v8378 = vadd.f32 0.0, %v8377
      %v8379 = vpop.f32.mrf.mxu0
      %8380 = vmatprep.mubr.f32.mxu0 0.0
      %8381 = vmatmul.mubr.f32.gmra.mxu0 %v8173
      %v8382 = vpop.f32.mrf.mxu0
      %v8383 = vadd.f32 0.0, %v8382
      %v8384 = vpop.f32.mrf.mxu0
      %8385 = vmatprep.mubr.f32.mxu0 0.0
      %8386 = vmatmul.mubr.f32.gmra.mxu0 %v8176
      %v8387 = vpop.f32.mrf.mxu0
      %v8388 = vadd.f32 0.0, %v8387
      %v8389 = vpop.f32.mrf.mxu0
      %8390 = vmatprep.mubr.f32.mxu0 0.0
      %8391 = vmatmul.mubr.f32.gmra.mxu0 %v8179
      %v8392 = vpop.f32.mrf.mxu0
      %v8393 = vadd.f32 0.0, %v8392
      %v8394 = vpop.f32.mrf.mxu0
      %8395 = vmatprep.mubr.f32.mxu0 0.0
      %8396 = vmatmul.mubr.f32.gmra.mxu0 %v8182
      %v8397 = vpop.f32.mrf.mxu0
      %v8398 = vadd.f32 0.0, %v8397
      %v8399 = vpop.f32.mrf.mxu0
      %8400 = vmatprep.mubr.f32.mxu0 0.0
      %8401 = vmatmul.mubr.f32.gmra.mxu0 %v8185
      %v8402 = vpop.f32.mrf.mxu0
      %v8403 = vadd.f32 0.0, %v8402
      %v8404 = vpop.f32.mrf.mxu0
      %8405 = vmatprep.mubr.f32.mxu0 0.0
      %8406 = vmatmul.mubr.f32.gmra.mxu0 %v8188
      %v8407 = vpop.f32.mrf.mxu0
      %v8408 = vadd.f32 0.0, %v8407
      %v8409 = vpop.f32.mrf.mxu0
      %8410 = vmatprep.mubr.f32.mxu0 0.0
      %8411 = vmatmul.mubr.f32.gmra.mxu0 %v8191
      %v8412 = vpop.f32.mrf.mxu0
      %v8413 = vadd.f32 0.0, %v8412
      %v8414 = vpop.f32.mrf.mxu0
      %8415 = vmatprep.mubr.f32.mxu0 0.0
      %8416 = vmatmul.mubr.f32.gmra.mxu0 %v8194
      %v8417 = vpop.f32.mrf.mxu0
      %v8418 = vadd.f32 0.0, %v8417
      %v8419 = vpop.f32.mrf.mxu0
      %8420 = vdwg.mxu0
      %v8421 = vadd.f32 %v7940, %v8263
      %v8422 = vadd.f32 %v7945, %v8268
      %v8423 = vadd.f32 %v7950, %v8273
      %v8424 = vadd.f32 %v7955, %v8278
      %v8425 = vadd.f32 %v7960, %v8283
      %v8426 = vadd.f32 %v7965, %v8288
      %v8427 = vadd.f32 %v7970, %v8293
      %v8428 = vadd.f32 %v7975, %v8298
      %v8429 = vadd.f32 %v7980, %v8303
      %v8430 = vadd.f32 %v7985, %v8308
      %v8431 = vadd.f32 %v7990, %v8313
      %v8432 = vadd.f32 %v7995, %v8318
      %v8433 = vadd.f32 %v8000, %v8323
      %v8434 = vadd.f32 %v8005, %v8328
      %v8435 = vadd.f32 %v8010, %v8333
      %v8436 = vadd.f32 %v8015, %v8338
      %v8437 = vadd.f32 %v8020, %v8343
      %v8438 = vadd.f32 %v8025, %v8348
      %v8439 = vadd.f32 %v8030, %v8353
      %v8440 = vadd.f32 %v8035, %v8358
      %v8441 = vadd.f32 %v8040, %v8363
      %v8442 = vadd.f32 %v8045, %v8368
      %v8443 = vadd.f32 %v8050, %v8373
      %v8444 = vadd.f32 %v8055, %v8378
      %v8445 = vadd.f32 %v8060, %v8383
      %v8446 = vadd.f32 %v8065, %v8388
      %v8447 = vadd.f32 %v8070, %v8393
      %v8448 = vadd.f32 %v8075, %v8398
      %v8449 = vadd.f32 %v8080, %v8403
      %v8450 = vadd.f32 %v8085, %v8408
      %v8451 = vadd.f32 %v8090, %v8413
      %v8452 = vadd.f32 %v8095, %v8418
      %v8453 = vld [vmem:[%s8] sm:$0x1]
      %v8455 = vlaneseq
      %v8456 = vshrl.u32 %v8455, 7
      %v8457 = vsub.s32 0, %v8456
      %v8458 = vrot.slane %v8453, %v8457
      %v8460 = vadd.f32 %v8421, %v8458
      %v8461 = vadd.f32 %v8422, %v8458
      %v8462 = vadd.f32 %v8423, %v8458
      %v8463 = vadd.f32 %v8424, %v8458
      %v8464 = vadd.f32 %v8425, %v8458
      %v8465 = vadd.f32 %v8426, %v8458
      %v8466 = vadd.f32 %v8427, %v8458
      %v8467 = vadd.f32 %v8428, %v8458
      %v8468 = vadd.f32 %v8429, %v8458
      %v8469 = vadd.f32 %v8430, %v8458
      %v8470 = vadd.f32 %v8431, %v8458
      %v8471 = vadd.f32 %v8432, %v8458
      %v8472 = vadd.f32 %v8433, %v8458
      %v8473 = vadd.f32 %v8434, %v8458
      %v8474 = vadd.f32 %v8435, %v8458
      %v8475 = vadd.f32 %v8436, %v8458
      %v8476 = vadd.f32 %v8437, %v8458
      %v8477 = vadd.f32 %v8438, %v8458
      %v8478 = vadd.f32 %v8439, %v8458
      %v8479 = vadd.f32 %v8440, %v8458
      %v8480 = vadd.f32 %v8441, %v8458
      %v8481 = vadd.f32 %v8442, %v8458
      %v8482 = vadd.f32 %v8443, %v8458
      %v8483 = vadd.f32 %v8444, %v8458
      %v8484 = vadd.f32 %v8445, %v8458
      %v8485 = vadd.f32 %v8446, %v8458
      %v8486 = vadd.f32 %v8447, %v8458
      %v8487 = vadd.f32 %v8448, %v8458
      %v8488 = vadd.f32 %v8449, %v8458
      %v8489 = vadd.f32 %v8450, %v8458
      %v8490 = vadd.f32 %v8451, %v8458
      %v8491 = vadd.f32 %v8452, %v8458
      %v8492 = vsub.f32 0.0, %v8460
      %v8493 = vsub.f32 0.0, %v8461
      %v8494 = vsub.f32 0.0, %v8462
      %v8495 = vsub.f32 0.0, %v8463
      %v8496 = vsub.f32 0.0, %v8464
      %v8497 = vsub.f32 0.0, %v8465
      %v8498 = vsub.f32 0.0, %v8466
      %v8499 = vsub.f32 0.0, %v8467
      %v8500 = vsub.f32 0.0, %v8468
      %v8501 = vsub.f32 0.0, %v8469
      %v8502 = vsub.f32 0.0, %v8470
      %v8503 = vsub.f32 0.0, %v8471
      %v8504 = vsub.f32 0.0, %v8472
      %v8505 = vsub.f32 0.0, %v8473
      %v8506 = vsub.f32 0.0, %v8474
      %v8507 = vsub.f32 0.0, %v8475
      %v8508 = vsub.f32 0.0, %v8476
      %v8509 = vsub.f32 0.0, %v8477
      %v8510 = vsub.f32 0.0, %v8478
      %v8511 = vsub.f32 0.0, %v8479
      %v8512 = vsub.f32 0.0, %v8480
      %v8513 = vsub.f32 0.0, %v8481
      %v8514 = vsub.f32 0.0, %v8482
      %v8515 = vsub.f32 0.0, %v8483
      %v8516 = vsub.f32 0.0, %v8484
      %v8517 = vsub.f32 0.0, %v8485
      %v8518 = vsub.f32 0.0, %v8486
      %v8519 = vsub.f32 0.0, %v8487
      %v8520 = vsub.f32 0.0, %v8488
      %v8521 = vsub.f32 0.0, %v8489
      %v8522 = vsub.f32 0.0, %v8490
      %v8523 = vsub.f32 0.0, %v8491
      %v8524 = vmul.f32 %v8492, 1.442695
      %v8525 = vpow.pop %v8524
      %v8526 = vmul.f32 %v8493, 1.442695
      %v8527 = vpow.pop %v8526
      %v8528 = vmul.f32 %v8494, 1.442695
      %v8529 = vpow.pop %v8528
      %v8530 = vmul.f32 %v8495, 1.442695
      %v8531 = vpow.pop %v8530
      %v8532 = vmul.f32 %v8496, 1.442695
      %v8533 = vpow.pop %v8532
      %v8534 = vmul.f32 %v8497, 1.442695
      %v8535 = vpow.pop %v8534
      %v8536 = vmul.f32 %v8498, 1.442695
      %v8537 = vpow.pop %v8536
      %v8538 = vmul.f32 %v8499, 1.442695
      %v8539 = vpow.pop %v8538
      %v8540 = vmul.f32 %v8500, 1.442695
      %v8541 = vpow.pop %v8540
      %v8542 = vmul.f32 %v8501, 1.442695
      %v8543 = vpow.pop %v8542
      %v8544 = vmul.f32 %v8502, 1.442695
      %v8545 = vpow.pop %v8544
      %v8546 = vmul.f32 %v8503, 1.442695
      %v8547 = vpow.pop %v8546
      %v8548 = vmul.f32 %v8504, 1.442695
      %v8549 = vpow.pop %v8548
      %v8550 = vmul.f32 %v8505, 1.442695
      %v8551 = vpow.pop %v8550
      %v8552 = vmul.f32 %v8506, 1.442695
      %v8553 = vpow.pop %v8552
      %v8554 = vmul.f32 %v8507, 1.442695
      %v8555 = vpow.pop %v8554
      %v8556 = vmul.f32 %v8508, 1.442695
      %v8557 = vpow.pop %v8556
      %v8558 = vmul.f32 %v8509, 1.442695
      %v8559 = vpow.pop %v8558
      %v8560 = vmul.f32 %v8510, 1.442695
      %v8561 = vpow.pop %v8560
      %v8562 = vmul.f32 %v8511, 1.442695
      %v8563 = vpow.pop %v8562
      %v8564 = vmul.f32 %v8512, 1.442695
      %v8565 = vpow.pop %v8564
      %v8566 = vmul.f32 %v8513, 1.442695
      %v8567 = vpow.pop %v8566
      %v8568 = vmul.f32 %v8514, 1.442695
      %v8569 = vpow.pop %v8568
      %v8570 = vmul.f32 %v8515, 1.442695
      %v8571 = vpow.pop %v8570
      %v8572 = vmul.f32 %v8516, 1.442695
      %v8573 = vpow.pop %v8572
      %v8574 = vmul.f32 %v8517, 1.442695
      %v8575 = vpow.pop %v8574
      %v8576 = vmul.f32 %v8518, 1.442695
      %v8577 = vpow.pop %v8576
      %v8578 = vmul.f32 %v8519, 1.442695
      %v8579 = vpow.pop %v8578
      %v8580 = vmul.f32 %v8520, 1.442695
      %v8581 = vpow.pop %v8580
      %v8582 = vmul.f32 %v8521, 1.442695
      %v8583 = vpow.pop %v8582
      %v8584 = vmul.f32 %v8522, 1.442695
      %v8585 = vpow.pop %v8584
      %v8586 = vmul.f32 %v8523, 1.442695
      %v8587 = vpow.pop %v8586
      %v8588 = vadd.f32 %v8525, 1.0
      %v8589 = vadd.f32 %v8527, 1.0
      %v8590 = vadd.f32 %v8529, 1.0
      %v8591 = vadd.f32 %v8531, 1.0
      %v8592 = vadd.f32 %v8533, 1.0
      %v8593 = vadd.f32 %v8535, 1.0
      %v8594 = vadd.f32 %v8537, 1.0
      %v8595 = vadd.f32 %v8539, 1.0
      %v8596 = vadd.f32 %v8541, 1.0
      %v8597 = vadd.f32 %v8543, 1.0
      %v8598 = vadd.f32 %v8545, 1.0
      %v8599 = vadd.f32 %v8547, 1.0
      %v8600 = vadd.f32 %v8549, 1.0
      %v8601 = vadd.f32 %v8551, 1.0
      %v8602 = vadd.f32 %v8553, 1.0
      %v8603 = vadd.f32 %v8555, 1.0
      %v8604 = vadd.f32 %v8557, 1.0
      %v8605 = vadd.f32 %v8559, 1.0
      %v8606 = vadd.f32 %v8561, 1.0
      %v8607 = vadd.f32 %v8563, 1.0
      %v8608 = vadd.f32 %v8565, 1.0
      %v8609 = vadd.f32 %v8567, 1.0
      %v8610 = vadd.f32 %v8569, 1.0
      %v8611 = vadd.f32 %v8571, 1.0
      %v8612 = vadd.f32 %v8573, 1.0
      %v8613 = vadd.f32 %v8575, 1.0
      %v8614 = vadd.f32 %v8577, 1.0
      %v8615 = vadd.f32 %v8579, 1.0
      %v8616 = vadd.f32 %v8581, 1.0
      %v8617 = vadd.f32 %v8583, 1.0
      %v8618 = vadd.f32 %v8585, 1.0
      %v8619 = vadd.f32 %v8587, 1.0
      %v8620 = vrcp.pop %v8588
      %v8621 = vrcp.pop %v8589
      %v8622 = vrcp.pop %v8590
      %v8623 = vrcp.pop %v8591
      %v8624 = vrcp.pop %v8592
      %v8625 = vrcp.pop %v8593
      %v8626 = vrcp.pop %v8594
      %v8627 = vrcp.pop %v8595
      %v8628 = vrcp.pop %v8596
      %v8629 = vrcp.pop %v8597
      %v8630 = vrcp.pop %v8598
      %v8631 = vrcp.pop %v8599
      %v8632 = vrcp.pop %v8600
      %v8633 = vrcp.pop %v8601
      %v8634 = vrcp.pop %v8602
      %v8635 = vrcp.pop %v8603
      %v8636 = vrcp.pop %v8604
      %v8637 = vrcp.pop %v8605
      %v8638 = vrcp.pop %v8606
      %v8639 = vrcp.pop %v8607
      %v8640 = vrcp.pop %v8608
      %v8641 = vrcp.pop %v8609
      %v8642 = vrcp.pop %v8610
      %v8643 = vrcp.pop %v8611
      %v8644 = vrcp.pop %v8612
      %v8645 = vrcp.pop %v8613
      %v8646 = vrcp.pop %v8614
      %v8647 = vrcp.pop %v8615
      %v8648 = vrcp.pop %v8616
      %v8649 = vrcp.pop %v8617
      %v8650 = vrcp.pop %v8618
      %v8651 = vrcp.pop %v8619
      %v8652 = vadd.f32 %v8620, 1.0
      %v8653 = vadd.f32 %v8621, 1.0
      %v8654 = vadd.f32 %v8622, 1.0
      %v8655 = vadd.f32 %v8623, 1.0
      %v8656 = vadd.f32 %v8624, 1.0
      %v8657 = vadd.f32 %v8625, 1.0
      %v8658 = vadd.f32 %v8626, 1.0
      %v8659 = vadd.f32 %v8627, 1.0
      %v8660 = vadd.f32 %v8628, 1.0
      %v8661 = vadd.f32 %v8629, 1.0
      %v8662 = vadd.f32 %v8630, 1.0
      %v8663 = vadd.f32 %v8631, 1.0
      %v8664 = vadd.f32 %v8632, 1.0
      %v8665 = vadd.f32 %v8633, 1.0
      %v8666 = vadd.f32 %v8634, 1.0
      %v8667 = vadd.f32 %v8635, 1.0
      %v8668 = vadd.f32 %v8636, 1.0
      %v8669 = vadd.f32 %v8637, 1.0
      %v8670 = vadd.f32 %v8638, 1.0
      %v8671 = vadd.f32 %v8639, 1.0
      %v8672 = vadd.f32 %v8640, 1.0
      %v8673 = vadd.f32 %v8641, 1.0
      %v8674 = vadd.f32 %v8642, 1.0
      %v8675 = vadd.f32 %v8643, 1.0
      %v8676 = vadd.f32 %v8644, 1.0
      %v8677 = vadd.f32 %v8645, 1.0
      %v8678 = vadd.f32 %v8646, 1.0
      %v8679 = vadd.f32 %v8647, 1.0
      %v8680 = vadd.f32 %v8648, 1.0
      %v8681 = vadd.f32 %v8649, 1.0
      %v8682 = vadd.f32 %v8650, 1.0
      %v8683 = vadd.f32 %v8651, 1.0
      %v8684 = vmul.f32 %v334, %v8652
      %v8685 = vmul.f32 %v335, %v8653
      %v8686 = vmul.f32 %v336, %v8654
      %v8687 = vmul.f32 %v337, %v8655
      %v8688 = vmul.f32 %v338, %v8656
      %v8689 = vmul.f32 %v339, %v8657
      %v8690 = vmul.f32 %v340, %v8658
      %v8691 = vmul.f32 %v341, %v8659
      %v8692 = vmul.f32 %v342, %v8660
      %v8693 = vmul.f32 %v343, %v8661
      %v8694 = vmul.f32 %v344, %v8662
      %v8695 = vmul.f32 %v345, %v8663
      %v8696 = vmul.f32 %v346, %v8664
      %v8697 = vmul.f32 %v347, %v8665
      %v8698 = vmul.f32 %v348, %v8666
      %v8699 = vmul.f32 %v349, %v8667
      %v8700 = vmul.f32 %v350, %v8668
      %v8701 = vmul.f32 %v351, %v8669
      %v8702 = vmul.f32 %v352, %v8670
      %v8703 = vmul.f32 %v353, %v8671
      %v8704 = vmul.f32 %v354, %v8672
      %v8705 = vmul.f32 %v355, %v8673
      %v8706 = vmul.f32 %v356, %v8674
      %v8707 = vmul.f32 %v357, %v8675
      %v8708 = vmul.f32 %v358, %v8676
      %v8709 = vmul.f32 %v359, %v8677
      %v8710 = vmul.f32 %v360, %v8678
      %v8711 = vmul.f32 %v361, %v8679
      %v8712 = vmul.f32 %v362, %v8680
      %v8713 = vmul.f32 %v363, %v8681
      %v8714 = vmul.f32 %v364, %v8682
      %v8715 = vmul.f32 %v365, %v8683
      %8716 = vst.msk [vmem:[%s332] sm:$0xff] %vm374, %v8684
      %8717 = vst.msk [vmem:[%s332 + $0x8] sm:$0xff] %vm374, %v8685
      %8718 = vst.msk [vmem:[%s332 + $0x10] sm:$0xff] %vm374, %v8686
      %8719 = vst.msk [vmem:[%s332 + $0x18] sm:$0xff] %vm374, %v8687
      %8720 = vst.msk [vmem:[%s332 + $0x20] sm:$0xff] %vm374, %v8688
      %8721 = vst.msk [vmem:[%s332 + $0x28] sm:$0xff] %vm374, %v8689
      %8722 = vst.msk [vmem:[%s332 + $0x30] sm:$0xff] %vm374, %v8690
      %8723 = vst.msk [vmem:[%s332 + $0x38] sm:$0xff] %vm374, %v8691
      %8724 = vst.msk [vmem:[%s332 + $0x40] sm:$0xff] %vm374, %v8692
      %8725 = vst.msk [vmem:[%s332 + $0x48] sm:$0xff] %vm374, %v8693
      %8726 = vst.msk [vmem:[%s332 + $0x50] sm:$0xff] %vm374, %v8694
      %8727 = vst.msk [vmem:[%s332 + $0x58] sm:$0xff] %vm374, %v8695
      %8728 = vst.msk [vmem:[%s332 + $0x60] sm:$0xff] %vm374, %v8696
      %8729 = vst.msk [vmem:[%s332 + $0x68] sm:$0xff] %vm374, %v8697
      %8730 = vst.msk [vmem:[%s332 + $0x70] sm:$0xff] %vm374, %v8698
      %8731 = vst.msk [vmem:[%s332 + $0x78] sm:$0xff] %vm374, %v8699
      %8732 = vst.msk [vmem:[%s332 + $0x80] sm:$0xff] %vm374, %v8700
      %8733 = vst.msk [vmem:[%s332 + $0x88] sm:$0xff] %vm374, %v8701
      %8734 = vst.msk [vmem:[%s332 + $0x90] sm:$0xff] %vm374, %v8702
      %8735 = vst.msk [vmem:[%s332 + $0x98] sm:$0xff] %vm374, %v8703
      %8736 = vst.msk [vmem:[%s332 + $0xa0] sm:$0xff] %vm374, %v8704
      %8737 = vst.msk [vmem:[%s332 + $0xa8] sm:$0xff] %vm374, %v8705
      %8738 = vst.msk [vmem:[%s332 + $0xb0] sm:$0xff] %vm374, %v8706
      %8739 = vst.msk [vmem:[%s332 + $0xb8] sm:$0xff] %vm374, %v8707
      %8740 = vst.msk [vmem:[%s332 + $0xc0] sm:$0xff] %vm374, %v8708
      %8741 = vst.msk [vmem:[%s332 + $0xc8] sm:$0xff] %vm374, %v8709
      %8742 = vst.msk [vmem:[%s332 + $0xd0] sm:$0xff] %vm374, %v8710
      %8743 = vst.msk [vmem:[%s332 + $0xd8] sm:$0xff] %vm374, %v8711
      %8744 = vst.msk [vmem:[%s332 + $0xe0] sm:$0xff] %vm374, %v8712
      %8745 = vst.msk [vmem:[%s332 + $0xe8] sm:$0xff] %vm374, %v8713
      %8746 = vst.msk [vmem:[%s332 + $0xf0] sm:$0xff] %vm374, %v8714
      %8747 = vst.msk [vmem:[%s332 + $0xf8] sm:$0xff] %vm374, %v8715
      %p8748 = scmp.lt.s32.totalorder %s20, 1
      %s8749 = scalar_select %p8748, %s20, 1
      %s8750 = smul.addr %s8749, 32
      %s8751 = smul.addr %s8750, 8
      %s8752 = scalar_lea.vmem %s9, %s8751
      // Predicated region
      $region57: #{msag_forward.1} parent=55 // pred_check
        %p8753 = pneg %p232
      $region58: #{msag_forward.1} parent=55 // pred_check_branch
        %8755 = sbr.rel (%p8753) target = $region60
      $region59: #{msag_forward.1} parent=55 // pred_region
        _
      $region60: #{msag_forward.1} parent=55 // pred_fallthru
        _
    $region56: #{msag_forward.1} parent=5 // pred_fallthru
      _
    %p8756 = scmp.le.s32.totalorder 2, %s15
    // Predicated region
    $region61: #{msag_forward.1} parent=5 // pred_check
      %p8757 = pneg %p8756
    $region62: #{msag_forward.1} parent=5 // pred_check_branch
      %8759 = sbr.rel (%p8757) target = $region64
    $region63: #{msag_forward.1} parent=5 // pred_region
      %s8760 = ssub.s32 %s15, 2
      // Predicated region
      $region65: #{msag_forward.1} parent=63 // pred_check
        %p8761 = pneg %p238
      $region66: #{msag_forward.1} parent=63 // pred_check_branch
        %8763 = sbr.rel (%p8761) target = $region68
      $region67: #{msag_forward.1} parent=63 // pred_region
        %p8764 = scmp.lt.s32.totalorder %s21, 1
        %s8765 = scalar_select %p8764, %s21, 1
        %s8766 = smul.addr %s8765, 32
        %s8767 = smul.addr %s8766, 8
        %s8768 = scalar_lea.vmem %s9, %s8767
      $region68: #{msag_forward.1} parent=63 // pred_fallthru
        _
    $region64: #{msag_forward.1} parent=5 // pred_fallthru
      _
  $region6: #{msag_forward.1} parent=0 // loop_footer
    %s19 = sadd.s32 1, %s15
  $region7: #{msag_forward.1} parent=0 // loop_footer_branch
    %14 = sbr.rel target = $region3
  $region8: #{msag_forward.1} parent=0 // loop_exit
    _

</llo_original>
